<compile_context>
chip_gen: v5e
topology: v5e:2x2
jax: 0.10.0
libtpu: 0.0.40
codegen_flags: <defaults>
</compile_context>

<pallas_src>
import jax
import jax.numpy as jnp
from jax.experimental import pallas as pl
from jax.experimental.pallas import tpu as pltpu


_TIME_BLOCK_CAP = 16    # max timesteps processed per grid step
_BATCH_BLOCK_CAP = 128  # max (padded) batch rows per grid step


def _round_up(n, m):
    return ((n + m - 1) // m) * m


def _largest_divisor(n, cap):
    for d in range(min(n, cap), 0, -1):
        if n % d == 0:
            return d
    return 1


def _choose_batch_block(b_pad, cap=_BATCH_BLOCK_CAP):
    if b_pad <= cap:
        return b_pad
    for d in range(cap, 7, -8):           # multiples of 8, descending
        if d % 8 == 0 and b_pad % d == 0:
            return d
    return 8                              # b_pad is always a multiple of 8


# --------------------------------------------------------------------------- #
# Fused kernel: all LSTM layers + Linear head + (tanh(2x)+1)/2
# grid = (batch_blocks [parallel], time_blocks [arbitrary, sequential])
# --------------------------------------------------------------------------- #
def _make_fused_lstm_kernel(num_layers, tb, b_blk, mx_dtype):
    def kernel(*refs):
        x_ref = refs[0]
        layer_refs = refs[1:1 + 3 * num_layers]     # (wih_t, whh_t, bias) per layer
        w_out_ref = refs[1 + 3 * num_layers]
        b_out_ref = refs[2 + 3 * num_layers]
        out_ref = refs[3 + 3 * num_layers]
        scratch = refs[4 + 3 * num_layers:]         # (h, c) VMEM per layer

        ti = pl.program_id(1)

        @pl.when(ti == 0)
        def _init():
            for s in scratch:
                s[...] = jnp.zeros_like(s)

        # Current block of activations, flattened to (tb*b_blk, feat).
        d_in = x_ref.shape[-1]
        cur = x_ref[...].reshape(tb * b_blk, d_in).astype(jnp.float32)

        h_final = None
        for l in range(num_layers):
            wih_t = layer_refs[3 * l][...]       # (d_in_p, 4*hp), mx_dtype
            whh_t = layer_refs[3 * l + 1][...]   # (hp,     4*hp), mx_dtype
            bias = layer_refs[3 * l + 2][...]    # (1,      4*hp), f32
            hp = layer_refs[3 * l + 1].shape[0]

            # Hoisted input projection for ALL timesteps in this block:
            # one MXU matmul instead of tb tiny ones.
            gates_in = jnp.dot(cur.astype(mx_dtype), wih_t,
                               preferred_element_type=jnp.float32) + bias

            h = scratch[2 * l][...]              # (b_blk, hp) f32 carry
            c = scratch[2 * l + 1][...]

            outs = []
            for t in range(tb):                  # fully unrolled serial recurrence
                gates = gates_in[t * b_blk:(t + 1) * b_blk, :] + jnp.dot(
                    h.astype(mx_dtype), whh_t,
                    preferred_element_type=jnp.float32)
                i_g = jax.nn.sigmoid(gates[:, 0 * hp:1 * hp])
                f_g = jax.nn.sigmoid(gates[:, 1 * hp:2 * hp])
                g_g = jnp.tanh(gates[:, 2 * hp:3 * hp])
                o_g = jax.nn.sigmoid(gates[:, 3 * hp:4 * hp])
                c = f_g * c + i_g * g_g
                h = o_g * jnp.tanh(c)
                if l + 1 < num_layers:           # last layer's sequence is unused
                    outs.append(h)

            scratch[2 * l][...] = h
            scratch[2 * l + 1][...] = c

            if l + 1 < num_layers:
                cur = jnp.concatenate(outs, axis=0)   # (tb*b_blk, hp) -> next layer
            else:
                h_final = h

        # Head (Linear + (tanh(2x)+1)/2) on the very last timestep's hidden state.
        @pl.when(ti == pl.num_programs(1) - 1)
        def _head():
            y = jnp.dot(h_final.astype(mx_dtype), w_out_ref[...],
                        preferred_element_type=jnp.float32) + b_out_ref[...]
            out_ref[...] = ((jnp.tanh(2.0 * y) + 1.0) * 0.5).astype(out_ref.dtype)

    return kernel


# --------------------------------------------------------------------------- #
# One-time parameter preparation: transpose, fuse biases, pad H to 128 lanes.
# Zero-padding is exact (padded hidden units stay 0 forever).
# --------------------------------------------------------------------------- #
def prepare_params(params, mxu_dtype=jnp.float32):
    layers = []
    prev_pad = None                          # padded input dim for layers > 0
    for (w_ih, w_hh, b_ih, b_hh) in params["lstm"]:
        four_h, d_in = w_ih.shape
        h = four_h // 4
        hp = _round_up(h, 128)
        d_in_p = d_in if prev_pad is None else prev_pad

        w_ih4 = jnp.pad(w_ih.reshape(4, h, d_in),
                        ((0, 0), (0, hp - h), (0, d_in_p - d_in)))
        w_hh4 = jnp.pad(w_hh.reshape(4, h, h),
                        ((0, 0), (0, hp - h), (0, hp - h)))
        b4 = jnp.pad((b_ih + b_hh).reshape(4, h), ((0, 0), (0, hp - h)))

        wih_t = jnp.transpose(w_ih4.reshape(4 * hp, d_in_p)).astype(mxu_dtype)
        whh_t = jnp.transpose(w_hh4.reshape(4 * hp, hp)).astype(mxu_dtype)
        bias = b4.reshape(1, 4 * hp).astype(jnp.float32)
        layers.append((wih_t, whh_t, bias))
        prev_pad = hp

    w_out, b_out = params["w_out"], params["b_out"]
    o, h_last = w_out.shape
    w_out_t = jnp.transpose(
        jnp.pad(w_out, ((0, 0), (0, prev_pad - h_last)))).astype(mxu_dtype)
    b_out2 = b_out.reshape(1, o).astype(jnp.float32)
    return {"layers": layers, "w_out_t": w_out_t, "b_out": b_out2}


# --------------------------------------------------------------------------- #
# Full model forward (batch-first input, like PyTorch batch_first=True)
# --------------------------------------------------------------------------- #
def _forward_impl(x, prepared):
    B, T, D = x.shape
    layers = prepared["layers"]
    num_layers = len(layers)
    O = prepared["w_out_t"].shape[1]

    # Time-major + batch padding to a sublane multiple.
    x_tm = jnp.transpose(x, (1, 0, 2))                     # (T, B, D)
    b_pad = _round_up(max(B, 8), 8)
    if b_pad != B:
        x_tm = jnp.pad(x_tm, ((0, 0), (0, b_pad - B), (0, 0)))

    tb = _largest_divisor(T, _TIME_BLOCK_CAP)
    b_blk = _choose_batch_block(b_pad)
    grid = (b_pad // b_blk, T // tb)

    in_specs = [pl.BlockSpec((tb, b_blk, D), lambda bi, ti: (ti, bi, 0))]
    flat_inputs = [x_tm]
    for (wih_t, whh_t, bias) in layers:
        in_specs += [
            pl.BlockSpec(wih_t.shape, lambda bi, ti: (0, 0)),
            pl.BlockSpec(whh_t.shape, lambda bi, ti: (0, 0)),
            pl.BlockSpec(bias.shape, lambda bi, ti: (0, 0)),
        ]
        flat_inputs += [wih_t, whh_t, bias]
    in_specs += [
        pl.BlockSpec(prepared["w_out_t"].shape, lambda bi, ti: (0, 0)),
        pl.BlockSpec(prepared["b_out"].shape, lambda bi, ti: (0, 0)),
    ]
    flat_inputs += [prepared["w_out_t"], prepared["b_out"]]

    scratch_shapes = []
    for (_, whh_t, _) in layers:
        hp = whh_t.shape[0]
        scratch_shapes += [pltpu.VMEM((b_blk, hp), jnp.float32),
                           pltpu.VMEM((b_blk, hp), jnp.float32)]

    mx_dtype = layers[0][0].dtype
    kernel = _make_fused_lstm_kernel(num_layers, tb, b_blk, mx_dtype)

    out = pl.pallas_call(
        kernel,
        out_shape=jax.ShapeDtypeStruct((b_pad, O), x.dtype),
        grid_spec=pltpu.PrefetchScalarGridSpec(
            num_scalar_prefetch=0,
            grid=grid,
            in_specs=in_specs,
            out_specs=pl.BlockSpec((b_blk, O), lambda bi, ti: (bi, 0)),
            scratch_shapes=scratch_shapes,
        ),
        compiler_params=pltpu.CompilerParams(
            # batch blocks are independent (megacore-splittable); the time
            # recurrence must stay sequential.
            dimension_semantics=("parallel", "arbitrary"),
        ),
    )(*flat_inputs)
    return out[:B]


lstm_model_forward = jax.jit(_forward_impl)


# --------------------------------------------------------------------------- #
# Deterministic parameter construction (PyTorch-like uniform init)
# --------------------------------------------------------------------------- #
def init_params(key, input_size, hidden_sizes, output_size):
    params = {"lstm": []}
    in_dim = input_size
    for h in hidden_sizes:
        k = 1.0 / jnp.sqrt(h)
        key, k1, k2, k3, k4 = jax.random.split(key, 5)
        w_ih = jax.random.uniform(k1, (4 * h, in_dim), jnp.float32, -k, k)
        w_hh = jax.random.uniform(k2, (4 * h, h), jnp.float32, -k, k)
        b_ih = jax.random.uniform(k3, (4 * h,), jnp.float32, -k, k)
        b_hh = jax.random.uniform(k4, (4 * h,), jnp.float32, -k, k)
        params["lstm"].append((w_ih, w_hh, b_ih, b_hh))
        in_dim = h
    k = 1.0 / jnp.sqrt(hidden_sizes[-1])
    key, k1, k2 = jax.random.split(key, 3)
    params["w_out"] = jax.random.uniform(
        k1, (output_size, hidden_sizes[-1]), jnp.float32, -k, k)
    params["b_out"] = jax.random.uniform(k2, (output_size,), jnp.float32, -k, k)
    return params


# --------------------------------------------------------------------------- #
# Pure-JAX reference (lax.scan) for correctness check
# --------------------------------------------------------------------------- #
def reference_forward(x, params):
    h_seq = x
    for (w_ih, w_hh, b_ih, b_hh) in params["lstm"]:
        H = w_hh.shape[1]
        B = h_seq.shape[0]

        def step(carry, x_t, w_ih=w_ih, w_hh=w_hh, b_ih=b_ih, b_hh=b_hh, H=H):
            h, c = carry
            gates = x_t @ w_ih.T + h @ w_hh.T + b_ih + b_hh
            i = jax.nn.sigmoid(gates[:, 0 * H:1 * H])
            f = jax.nn.sigmoid(gates[:, 1 * H:2 * H])
            g = jnp.tanh(gates[:, 2 * H:3 * H])
            o = jax.nn.sigmoid(gates[:, 3 * H:4 * H])
            c = f * c + i * g
            h = o * jnp.tanh(c)
            return (h, c), h

        init = (jnp.zeros((B, H), jnp.float32), jnp.zeros((B, H), jnp.float32))
        _, hs = jax.lax.scan(step, init, jnp.transpose(h_seq, (1, 0, 2)))
        h_seq = jnp.transpose(hs, (1, 0, 2))
    y = h_seq[:, -1, :] @ params["w_out"].T + params["b_out"]
    return (jnp.tanh(2.0 * y) + 1.0) / 2.0


if __name__ == "__main__":
    B, T = 2, 16
    input_size = 16
    hidden_sizes = (32, 32)
    output_size = 8

    key = jax.random.PRNGKey(0)
    key, kx = jax.random.split(key)
    x = jax.random.normal(kx, (B, T, input_size), jnp.float32)
    params = init_params(key, input_size, hidden_sizes, output_size)

    ref = jax.block_until_ready(reference_forward(x, params))

    # f32 MXU operands: bitwise semantics of the PyTorch module (f32 everywhere).
    prepared = prepare_params(params)
    out = jax.block_until_ready(lstm_model_forward(x, prepared))
    assert out.shape == (B, output_size), out.shape
    assert jnp.allclose(out, ref, atol=1e-5, rtol=1e-5), (out, ref)

    # bf16 MXU operands (v6e/v5e fast path): bf16 weights + activations at the
    # dots, f32 accumulation and f32 element-wise gate math.
    prepared_bf16 = prepare_params(params, mxu_dtype=jnp.bfloat16)
    out_bf16 = jax.block_until_ready(lstm_model_forward(x, prepared_bf16))
    assert out_bf16.shape == (B, output_size), out_bf16.shape
    assert jnp.allclose(out_bf16, ref, atol=1e-1), (out_bf16, ref)

    print("KERNEL_OK")
</pallas_src>

<mosaic_0001>
module attributes {stable_mosaic.version = 11 : i64} {
  func.func @kernel(%arg0: i32, %arg1: i32, %arg2: memref<16x8x16xf32, #tpu.memory_space<vmem>>, %arg3: memref<16x512xf32, #tpu.memory_space<vmem>>, %arg4: memref<128x512xf32, #tpu.memory_space<vmem>>, %arg5: memref<1x512xf32, #tpu.memory_space<vmem>>, %arg6: memref<128x512xf32, #tpu.memory_space<vmem>>, %arg7: memref<128x512xf32, #tpu.memory_space<vmem>>, %arg8: memref<1x512xf32, #tpu.memory_space<vmem>>, %arg9: memref<128x8xf32, #tpu.memory_space<vmem>>, %arg10: memref<1x8xf32, #tpu.memory_space<vmem>>, %arg11: memref<8x8xf32, #tpu.memory_space<vmem>>, %arg12: memref<8x128xf32, #tpu.memory_space<vmem>>, %arg13: memref<8x128xf32, #tpu.memory_space<vmem>>, %arg14: memref<8x128xf32, #tpu.memory_space<vmem>>, %arg15: memref<8x128xf32, #tpu.memory_space<vmem>>) attributes {dimension_semantics = [#tpu.dimension_semantics<parallel>, #tpu.dimension_semantics<arbitrary>], iteration_bounds = array<i64: 1, 1>, scalar_prefetch = 0 : i64, scratch_operands = 4 : i64, tpu.core_type = #tpu.core_type<tc>, window_params = [{transform_indices = @transform_0, window_bounds = array<i64: 16, 8, 16>}, {pipeline_mode = #tpu.pipeline_mode<synchronous>, transform_indices = @transform_1, window_bounds = array<i64: 16, 512>}, {pipeline_mode = #tpu.pipeline_mode<synchronous>, transform_indices = @transform_2, window_bounds = array<i64: 128, 512>}, {pipeline_mode = #tpu.pipeline_mode<synchronous>, transform_indices = @transform_3, window_bounds = array<i64: 1, 512>}, {pipeline_mode = #tpu.pipeline_mode<synchronous>, transform_indices = @transform_4, window_bounds = array<i64: 128, 512>}, {pipeline_mode = #tpu.pipeline_mode<synchronous>, transform_indices = @transform_5, window_bounds = array<i64: 128, 512>}, {pipeline_mode = #tpu.pipeline_mode<synchronous>, transform_indices = @transform_6, window_bounds = array<i64: 1, 512>}, {pipeline_mode = #tpu.pipeline_mode<synchronous>, transform_indices = @transform_7, window_bounds = array<i64: 128, 8>}, {pipeline_mode = #tpu.pipeline_mode<synchronous>, transform_indices = @transform_8, window_bounds = array<i64: 1, 8>}, {transform_indices = @transform_9, window_bounds = array<i64: 8, 8>}]} {
    %c0_i32 = arith.constant 0 : i32
    %0 = arith.cmpi eq, %arg1, %c0_i32 : i32
    %1 = arith.extui %0 : i1 to i32
    %c0_i32_0 = arith.constant 0 : i32
    %2 = arith.cmpi ne, %1, %c0_i32_0 : i32
    scf.if %2 {
      %cst_162 = arith.constant 0.000000e+00 : f32
      %925 = vector.broadcast %cst_162 : f32 to vector<8x128xf32>
      %c0_163 = arith.constant 0 : index
      %c0_164 = arith.constant 0 : index
      %926 = vector.load %arg12[%c0_163, %c0_164] : memref<8x128xf32, #tpu.memory_space<vmem>>, vector<8x128xf32>
      tpu.vector_store %arg12[%c0_163, %c0_164], %925 {strides = array<i32>} : memref<8x128xf32, #tpu.memory_space<vmem>>, vector<8x128xf32>,
      %cst_165 = arith.constant 0.000000e+00 : f32
      %927 = vector.broadcast %cst_165 : f32 to vector<8x128xf32>
      %c0_166 = arith.constant 0 : index
      %c0_167 = arith.constant 0 : index
      %928 = vector.load %arg13[%c0_166, %c0_167] : memref<8x128xf32, #tpu.memory_space<vmem>>, vector<8x128xf32>
      tpu.vector_store %arg13[%c0_166, %c0_167], %927 {strides = array<i32>} : memref<8x128xf32, #tpu.memory_space<vmem>>, vector<8x128xf32>,
      %cst_168 = arith.constant 0.000000e+00 : f32
      %929 = vector.broadcast %cst_168 : f32 to vector<8x128xf32>
      %c0_169 = arith.constant 0 : index
      %c0_170 = arith.constant 0 : index
      %930 = vector.load %arg14[%c0_169, %c0_170] : memref<8x128xf32, #tpu.memory_space<vmem>>, vector<8x128xf32>
      tpu.vector_store %arg14[%c0_169, %c0_170], %929 {strides = array<i32>} : memref<8x128xf32, #tpu.memory_space<vmem>>, vector<8x128xf32>,
      %cst_171 = arith.constant 0.000000e+00 : f32
      %931 = vector.broadcast %cst_171 : f32 to vector<8x128xf32>
      %c0_172 = arith.constant 0 : index
      %c0_173 = arith.constant 0 : index
      %932 = vector.load %arg15[%c0_172, %c0_173] : memref<8x128xf32, #tpu.memory_space<vmem>>, vector<8x128xf32>
      tpu.vector_store %arg15[%c0_172, %c0_173], %931 {strides = array<i32>} : memref<8x128xf32, #tpu.memory_space<vmem>>, vector<8x128xf32>,
    } else {
    }
    %c0 = arith.constant 0 : index
    %c0_1 = arith.constant 0 : index
    %c0_2 = arith.constant 0 : index
    %3 = vector.load %arg2[%c0, %c0_1, %c0_2] : memref<16x8x16xf32, #tpu.memory_space<vmem>>, vector<16x8x16xf32>
    %4 = vector.shape_cast %3 : vector<16x8x16xf32> to vector<128x16xf32>
    %c0_3 = arith.constant 0 : index
    %c0_4 = arith.constant 0 : index
    %5 = vector.load %arg3[%c0_3, %c0_4] : memref<16x512xf32, #tpu.memory_space<vmem>>, vector<16x512xf32>
    %c0_5 = arith.constant 0 : index
    %c0_6 = arith.constant 0 : index
    %6 = vector.load %arg4[%c0_5, %c0_6] : memref<128x512xf32, #tpu.memory_space<vmem>>, vector<128x512xf32>
    %c0_7 = arith.constant 0 : index
    %c0_8 = arith.constant 0 : index
    %7 = vector.load %arg5[%c0_7, %c0_8] : memref<1x512xf32, #tpu.memory_space<vmem>>, vector<1x512xf32>
    %cst = arith.constant dense<0.000000e+00> : vector<128x512xf32>
    %8 = tpu.matmul %4, %5, %cst {dimension_numbers = #tpu.dot_dimension_numbers<[1], [0], [0], [1], [0, 0, 1, 1], [], []>} : vector<128x16xf32>, vector<16x512xf32>, vector<128x512xf32> -> vector<128x512xf32>
    %9 = vector.broadcast %7 : vector<1x512xf32> to vector<128x512xf32>
    %10 = arith.addf %8, %9 : vector<128x512xf32>
    %c0_9 = arith.constant 0 : index
    %c0_10 = arith.constant 0 : index
    %11 = vector.load %arg12[%c0_9, %c0_10] : memref<8x128xf32, #tpu.memory_space<vmem>>, vector<8x128xf32>
    %c0_11 = arith.constant 0 : index
    %c0_12 = arith.constant 0 : index
    %12 = vector.load %arg13[%c0_11, %c0_12] : memref<8x128xf32, #tpu.memory_space<vmem>>, vector<8x128xf32>
    %13 = vector.extract_strided_slice %10 {offsets = [0, 0], sizes = [8, 512], strides = [1, 1]} : vector<128x512xf32> to vector<8x512xf32>
    %cst_13 = arith.constant dense<0.000000e+00> : vector<8x512xf32>
    %14 = tpu.matmul %11, %6, %cst_13 {dimension_numbers = #tpu.dot_dimension_numbers<[1], [0], [0], [1], [0, 0, 1, 1], [], []>} : vector<8x128xf32>, vector<128x512xf32>, vector<8x512xf32> -> vector<8x512xf32>
    %15 = arith.addf %13, %14 : vector<8x512xf32>
    %16 = vector.extract_strided_slice %15 {offsets = [0, 0], sizes = [8, 128], strides = [1, 1]} : vector<8x512xf32> to vector<8x128xf32>
    %17 = arith.negf %16 : vector<8x128xf32>
    %18 = math.exp %17 : vector<8x128xf32>
    %cst_14 = arith.constant 1.000000e+00 : f32
    %19 = vector.broadcast %cst_14 : f32 to vector<8x128xf32>
    %20 = arith.addf %19, %18 : vector<8x128xf32>
    %21 = arith.divf %19, %20 : vector<8x128xf32>
    %22 = vector.extract_strided_slice %15 {offsets = [0, 128], sizes = [8, 128], strides = [1, 1]} : vector<8x512xf32> to vector<8x128xf32>
    %23 = arith.negf %22 : vector<8x128xf32>
    %24 = math.exp %23 : vector<8x128xf32>
    %cst_15 = arith.constant 1.000000e+00 : f32
    %25 = vector.broadcast %cst_15 : f32 to vector<8x128xf32>
    %26 = arith.addf %25, %24 : vector<8x128xf32>
    %27 = arith.divf %25, %26 : vector<8x128xf32>
    %28 = vector.extract_strided_slice %15 {offsets = [0, 256], sizes = [8, 128], strides = [1, 1]} : vector<8x512xf32> to vector<8x128xf32>
    %29 = math.tanh %28 : vector<8x128xf32>
    %30 = vector.extract_strided_slice %15 {offsets = [0, 384], sizes = [8, 128], strides = [1, 1]} : vector<8x512xf32> to vector<8x128xf32>
    %31 = arith.negf %30 : vector<8x128xf32>
    %32 = math.exp %31 : vector<8x128xf32>
    %cst_16 = arith.constant 1.000000e+00 : f32
    %33 = vector.broadcast %cst_16 : f32 to vector<8x128xf32>
    %34 = arith.addf %33, %32 : vector<8x128xf32>
    %35 = arith.divf %33, %34 : vector<8x128xf32>
    %36 = arith.mulf %27, %12 : vector<8x128xf32>
    %37 = arith.mulf %21, %29 : vector<8x128xf32>
    %38 = arith.addf %36, %37 : vector<8x128xf32>
    %39 = math.tanh %38 : vector<8x128xf32>
    %40 = arith.mulf %35, %39 : vector<8x128xf32>
    %41 = vector.extract_strided_slice %10 {offsets = [8, 0], sizes = [8, 512], strides = [1, 1]} : vector<128x512xf32> to vector<8x512xf32>
    %cst_17 = arith.constant dense<0.000000e+00> : vector<8x512xf32>
    %42 = tpu.matmul %40, %6, %cst_17 {dimension_numbers = #tpu.dot_dimension_numbers<[1], [0], [0], [1], [0, 0, 1, 1], [], []>} : vector<8x128xf32>, vector<128x512xf32>, vector<8x512xf32> -> vector<8x512xf32>
    %43 = arith.addf %41, %42 : vector<8x512xf32>
    %44 = vector.extract_strided_slice %43 {offsets = [0, 0], sizes = [8, 128], strides = [1, 1]} : vector<8x512xf32> to vector<8x128xf32>
    %45 = arith.negf %44 : vector<8x128xf32>
    %46 = math.exp %45 : vector<8x128xf32>
    %cst_18 = arith.constant 1.000000e+00 : f32
    %47 = vector.broadcast %cst_18 : f32 to vector<8x128xf32>
    %48 = arith.addf %47, %46 : vector<8x128xf32>
    %49 = arith.divf %47, %48 : vector<8x128xf32>
    %50 = vector.extract_strided_slice %43 {offsets = [0, 128], sizes = [8, 128], strides = [1, 1]} : vector<8x512xf32> to vector<8x128xf32>
    %51 = arith.negf %50 : vector<8x128xf32>
    %52 = math.exp %51 : vector<8x128xf32>
    %cst_19 = arith.constant 1.000000e+00 : f32
    %53 = vector.broadcast %cst_19 : f32 to vector<8x128xf32>
    %54 = arith.addf %53, %52 : vector<8x128xf32>
    %55 = arith.divf %53, %54 : vector<8x128xf32>
    %56 = vector.extract_strided_slice %43 {offsets = [0, 256], sizes = [8, 128], strides = [1, 1]} : vector<8x512xf32> to vector<8x128xf32>
    %57 = math.tanh %56 : vector<8x128xf32>
    %58 = vector.extract_strided_slice %43 {offsets = [0, 384], sizes = [8, 128], strides = [1, 1]} : vector<8x512xf32> to vector<8x128xf32>
    %59 = arith.negf %58 : vector<8x128xf32>
    %60 = math.exp %59 : vector<8x128xf32>
    %cst_20 = arith.constant 1.000000e+00 : f32
    %61 = vector.broadcast %cst_20 : f32 to vector<8x128xf32>
    %62 = arith.addf %61, %60 : vector<8x128xf32>
    %63 = arith.divf %61, %62 : vector<8x128xf32>
    %64 = arith.mulf %55, %38 : vector<8x128xf32>
    %65 = arith.mulf %49, %57 : vector<8x128xf32>
    %66 = arith.addf %64, %65 : vector<8x128xf32>
    %67 = math.tanh %66 : vector<8x128xf32>
    %68 = arith.mulf %63, %67 : vector<8x128xf32>
    %69 = vector.extract_strided_slice %10 {offsets = [16, 0], sizes = [8, 512], strides = [1, 1]} : vector<128x512xf32> to vector<8x512xf32>
    %cst_21 = arith.constant dense<0.000000e+00> : vector<8x512xf32>
    %70 = tpu.matmul %68, %6, %cst_21 {dimension_numbers = #tpu.dot_dimension_numbers<[1], [0], [0], [1], [0, 0, 1, 1], [], []>} : vector<8x128xf32>, vector<128x512xf32>, vector<8x512xf32> -> vector<8x512xf32>
    %71 = arith.addf %69, %70 : vector<8x512xf32>
    %72 = vector.extract_strided_slice %71 {offsets = [0, 0], sizes = [8, 128], strides = [1, 1]} : vector<8x512xf32> to vector<8x128xf32>
    %73 = arith.negf %72 : vector<8x128xf32>
    %74 = math.exp %73 : vector<8x128xf32>
    %cst_22 = arith.constant 1.000000e+00 : f32
    %75 = vector.broadcast %cst_22 : f32 to vector<8x128xf32>
    %76 = arith.addf %75, %74 : vector<8x128xf32>
    %77 = arith.divf %75, %76 : vector<8x128xf32>
    %78 = vector.extract_strided_slice %71 {offsets = [0, 128], sizes = [8, 128], strides = [1, 1]} : vector<8x512xf32> to vector<8x128xf32>
    %79 = arith.negf %78 : vector<8x128xf32>
    %80 = math.exp %79 : vector<8x128xf32>
    %cst_23 = arith.constant 1.000000e+00 : f32
    %81 = vector.broadcast %cst_23 : f32 to vector<8x128xf32>
    %82 = arith.addf %81, %80 : vector<8x128xf32>
    %83 = arith.divf %81, %82 : vector<8x128xf32>
    %84 = vector.extract_strided_slice %71 {offsets = [0, 256], sizes = [8, 128], strides = [1, 1]} : vector<8x512xf32> to vector<8x128xf32>
    %85 = math.tanh %84 : vector<8x128xf32>
    %86 = vector.extract_strided_slice %71 {offsets = [0, 384], sizes = [8, 128], strides = [1, 1]} : vector<8x512xf32> to vector<8x128xf32>
    %87 = arith.negf %86 : vector<8x128xf32>
    %88 = math.exp %87 : vector<8x128xf32>
    %cst_24 = arith.constant 1.000000e+00 : f32
    %89 = vector.broadcast %cst_24 : f32 to vector<8x128xf32>
    %90 = arith.addf %89, %88 : vector<8x128xf32>
    %91 = arith.divf %89, %90 : vector<8x128xf32>
    %92 = arith.mulf %83, %66 : vector<8x128xf32>
    %93 = arith.mulf %77, %85 : vector<8x128xf32>
    %94 = arith.addf %92, %93 : vector<8x128xf32>
    %95 = math.tanh %94 : vector<8x128xf32>
    %96 = arith.mulf %91, %95 : vector<8x128xf32>
    %97 = vector.extract_strided_slice %10 {offsets = [24, 0], sizes = [8, 512], strides = [1, 1]} : vector<128x512xf32> to vector<8x512xf32>
    %cst_25 = arith.constant dense<0.000000e+00> : vector<8x512xf32>
    %98 = tpu.matmul %96, %6, %cst_25 {dimension_numbers = #tpu.dot_dimension_numbers<[1], [0], [0], [1], [0, 0, 1, 1], [], []>} : vector<8x128xf32>, vector<128x512xf32>, vector<8x512xf32> -> vector<8x512xf32>
    %99 = arith.addf %97, %98 : vector<8x512xf32>
    %100 = vector.extract_strided_slice %99 {offsets = [0, 0], sizes = [8, 128], strides = [1, 1]} : vector<8x512xf32> to vector<8x128xf32>
    %101 = arith.negf %100 : vector<8x128xf32>
    %102 = math.exp %101 : vector<8x128xf32>
    %cst_26 = arith.constant 1.000000e+00 : f32
    %103 = vector.broadcast %cst_26 : f32 to vector<8x128xf32>
    %104 = arith.addf %103, %102 : vector<8x128xf32>
    %105 = arith.divf %103, %104 : vector<8x128xf32>
    %106 = vector.extract_strided_slice %99 {offsets = [0, 128], sizes = [8, 128], strides = [1, 1]} : vector<8x512xf32> to vector<8x128xf32>
    %107 = arith.negf %106 : vector<8x128xf32>
    %108 = math.exp %107 : vector<8x128xf32>
    %cst_27 = arith.constant 1.000000e+00 : f32
    %109 = vector.broadcast %cst_27 : f32 to vector<8x128xf32>
    %110 = arith.addf %109, %108 : vector<8x128xf32>
    %111 = arith.divf %109, %110 : vector<8x128xf32>
    %112 = vector.extract_strided_slice %99 {offsets = [0, 256], sizes = [8, 128], strides = [1, 1]} : vector<8x512xf32> to vector<8x128xf32>
    %113 = math.tanh %112 : vector<8x128xf32>
    %114 = vector.extract_strided_slice %99 {offsets = [0, 384], sizes = [8, 128], strides = [1, 1]} : vector<8x512xf32> to vector<8x128xf32>
    %115 = arith.negf %114 : vector<8x128xf32>
    %116 = math.exp %115 : vector<8x128xf32>
    %cst_28 = arith.constant 1.000000e+00 : f32
    %117 = vector.broadcast %cst_28 : f32 to vector<8x128xf32>
    %118 = arith.addf %117, %116 : vector<8x128xf32>
    %119 = arith.divf %117, %118 : vector<8x128xf32>
    %120 = arith.mulf %111, %94 : vector<8x128xf32>
    %121 = arith.mulf %105, %113 : vector<8x128xf32>
    %122 = arith.addf %120, %121 : vector<8x128xf32>
    %123 = math.tanh %122 : vector<8x128xf32>
    %124 = arith.mulf %119, %123 : vector<8x128xf32>
    %125 = vector.extract_strided_slice %10 {offsets = [32, 0], sizes = [8, 512], strides = [1, 1]} : vector<128x512xf32> to vector<8x512xf32>
    %cst_29 = arith.constant dense<0.000000e+00> : vector<8x512xf32>
    %126 = tpu.matmul %124, %6, %cst_29 {dimension_numbers = #tpu.dot_dimension_numbers<[1], [0], [0], [1], [0, 0, 1, 1], [], []>} : vector<8x128xf32>, vector<128x512xf32>, vector<8x512xf32> -> vector<8x512xf32>
    %127 = arith.addf %125, %126 : vector<8x512xf32>
    %128 = vector.extract_strided_slice %127 {offsets = [0, 0], sizes = [8, 128], strides = [1, 1]} : vector<8x512xf32> to vector<8x128xf32>
    %129 = arith.negf %128 : vector<8x128xf32>
    %130 = math.exp %129 : vector<8x128xf32>
    %cst_30 = arith.constant 1.000000e+00 : f32
    %131 = vector.broadcast %cst_30 : f32 to vector<8x128xf32>
    %132 = arith.addf %131, %130 : vector<8x128xf32>
    %133 = arith.divf %131, %132 : vector<8x128xf32>
    %134 = vector.extract_strided_slice %127 {offsets = [0, 128], sizes = [8, 128], strides = [1, 1]} : vector<8x512xf32> to vector<8x128xf32>
    %135 = arith.negf %134 : vector<8x128xf32>
    %136 = math.exp %135 : vector<8x128xf32>
    %cst_31 = arith.constant 1.000000e+00 : f32
    %137 = vector.broadcast %cst_31 : f32 to vector<8x128xf32>
    %138 = arith.addf %137, %136 : vector<8x128xf32>
    %139 = arith.divf %137, %138 : vector<8x128xf32>
    %140 = vector.extract_strided_slice %127 {offsets = [0, 256], sizes = [8, 128], strides = [1, 1]} : vector<8x512xf32> to vector<8x128xf32>
    %141 = math.tanh %140 : vector<8x128xf32>
    %142 = vector.extract_strided_slice %127 {offsets = [0, 384], sizes = [8, 128], strides = [1, 1]} : vector<8x512xf32> to vector<8x128xf32>
    %143 = arith.negf %142 : vector<8x128xf32>
    %144 = math.exp %143 : vector<8x128xf32>
    %cst_32 = arith.constant 1.000000e+00 : f32
    %145 = vector.broadcast %cst_32 : f32 to vector<8x128xf32>
    %146 = arith.addf %145, %144 : vector<8x128xf32>
    %147 = arith.divf %145, %146 : vector<8x128xf32>
    %148 = arith.mulf %139, %122 : vector<8x128xf32>
    %149 = arith.mulf %133, %141 : vector<8x128xf32>
    %150 = arith.addf %148, %149 : vector<8x128xf32>
    %151 = math.tanh %150 : vector<8x128xf32>
    %152 = arith.mulf %147, %151 : vector<8x128xf32>
    %153 = vector.extract_strided_slice %10 {offsets = [40, 0], sizes = [8, 512], strides = [1, 1]} : vector<128x512xf32> to vector<8x512xf32>
    %cst_33 = arith.constant dense<0.000000e+00> : vector<8x512xf32>
    %154 = tpu.matmul %152, %6, %cst_33 {dimension_numbers = #tpu.dot_dimension_numbers<[1], [0], [0], [1], [0, 0, 1, 1], [], []>} : vector<8x128xf32>, vector<128x512xf32>, vector<8x512xf32> -> vector<8x512xf32>
    %155 = arith.addf %153, %154 : vector<8x512xf32>
    %156 = vector.extract_strided_slice %155 {offsets = [0, 0], sizes = [8, 128], strides = [1, 1]} : vector<8x512xf32> to vector<8x128xf32>
    %157 = arith.negf %156 : vector<8x128xf32>
    %158 = math.exp %157 : vector<8x128xf32>
    %cst_34 = arith.constant 1.000000e+00 : f32
    %159 = vector.broadcast %cst_34 : f32 to vector<8x128xf32>
    %160 = arith.addf %159, %158 : vector<8x128xf32>
    %161 = arith.divf %159, %160 : vector<8x128xf32>
    %162 = vector.extract_strided_slice %155 {offsets = [0, 128], sizes = [8, 128], strides = [1, 1]} : vector<8x512xf32> to vector<8x128xf32>
    %163 = arith.negf %162 : vector<8x128xf32>
    %164 = math.exp %163 : vector<8x128xf32>
    %cst_35 = arith.constant 1.000000e+00 : f32
    %165 = vector.broadcast %cst_35 : f32 to vector<8x128xf32>
    %166 = arith.addf %165, %164 : vector<8x128xf32>
    %167 = arith.divf %165, %166 : vector<8x128xf32>
    %168 = vector.extract_strided_slice %155 {offsets = [0, 256], sizes = [8, 128], strides = [1, 1]} : vector<8x512xf32> to vector<8x128xf32>
    %169 = math.tanh %168 : vector<8x128xf32>
    %170 = vector.extract_strided_slice %155 {offsets = [0, 384], sizes = [8, 128], strides = [1, 1]} : vector<8x512xf32> to vector<8x128xf32>
    %171 = arith.negf %170 : vector<8x128xf32>
    %172 = math.exp %171 : vector<8x128xf32>
    %cst_36 = arith.constant 1.000000e+00 : f32
    %173 = vector.broadcast %cst_36 : f32 to vector<8x128xf32>
    %174 = arith.addf %173, %172 : vector<8x128xf32>
    %175 = arith.divf %173, %174 : vector<8x128xf32>
    %176 = arith.mulf %167, %150 : vector<8x128xf32>
    %177 = arith.mulf %161, %169 : vector<8x128xf32>
    %178 = arith.addf %176, %177 : vector<8x128xf32>
    %179 = math.tanh %178 : vector<8x128xf32>
    %180 = arith.mulf %175, %179 : vector<8x128xf32>
    %181 = vector.extract_strided_slice %10 {offsets = [48, 0], sizes = [8, 512], strides = [1, 1]} : vector<128x512xf32> to vector<8x512xf32>
    %cst_37 = arith.constant dense<0.000000e+00> : vector<8x512xf32>
    %182 = tpu.matmul %180, %6, %cst_37 {dimension_numbers = #tpu.dot_dimension_numbers<[1], [0], [0], [1], [0, 0, 1, 1], [], []>} : vector<8x128xf32>, vector<128x512xf32>, vector<8x512xf32> -> vector<8x512xf32>
    %183 = arith.addf %181, %182 : vector<8x512xf32>
    %184 = vector.extract_strided_slice %183 {offsets = [0, 0], sizes = [8, 128], strides = [1, 1]} : vector<8x512xf32> to vector<8x128xf32>
    %185 = arith.negf %184 : vector<8x128xf32>
    %186 = math.exp %185 : vector<8x128xf32>
    %cst_38 = arith.constant 1.000000e+00 : f32
    %187 = vector.broadcast %cst_38 : f32 to vector<8x128xf32>
    %188 = arith.addf %187, %186 : vector<8x128xf32>
    %189 = arith.divf %187, %188 : vector<8x128xf32>
    %190 = vector.extract_strided_slice %183 {offsets = [0, 128], sizes = [8, 128], strides = [1, 1]} : vector<8x512xf32> to vector<8x128xf32>
    %191 = arith.negf %190 : vector<8x128xf32>
    %192 = math.exp %191 : vector<8x128xf32>
    %cst_39 = arith.constant 1.000000e+00 : f32
    %193 = vector.broadcast %cst_39 : f32 to vector<8x128xf32>
    %194 = arith.addf %193, %192 : vector<8x128xf32>
    %195 = arith.divf %193, %194 : vector<8x128xf32>
    %196 = vector.extract_strided_slice %183 {offsets = [0, 256], sizes = [8, 128], strides = [1, 1]} : vector<8x512xf32> to vector<8x128xf32>
    %197 = math.tanh %196 : vector<8x128xf32>
    %198 = vector.extract_strided_slice %183 {offsets = [0, 384], sizes = [8, 128], strides = [1, 1]} : vector<8x512xf32> to vector<8x128xf32>
    %199 = arith.negf %198 : vector<8x128xf32>
    %200 = math.exp %199 : vector<8x128xf32>
    %cst_40 = arith.constant 1.000000e+00 : f32
    %201 = vector.broadcast %cst_40 : f32 to vector<8x128xf32>
    %202 = arith.addf %201, %200 : vector<8x128xf32>
    %203 = arith.divf %201, %202 : vector<8x128xf32>
    %204 = arith.mulf %195, %178 : vector<8x128xf32>
    %205 = arith.mulf %189, %197 : vector<8x128xf32>
    %206 = arith.addf %204, %205 : vector<8x128xf32>
    %207 = math.tanh %206 : vector<8x128xf32>
    %208 = arith.mulf %203, %207 : vector<8x128xf32>
    %209 = vector.extract_strided_slice %10 {offsets = [56, 0], sizes = [8, 512], strides = [1, 1]} : vector<128x512xf32> to vector<8x512xf32>
    %cst_41 = arith.constant dense<0.000000e+00> : vector<8x512xf32>
    %210 = tpu.matmul %208, %6, %cst_41 {dimension_numbers = #tpu.dot_dimension_numbers<[1], [0], [0], [1], [0, 0, 1, 1], [], []>} : vector<8x128xf32>, vector<128x512xf32>, vector<8x512xf32> -> vector<8x512xf32>
    %211 = arith.addf %209, %210 : vector<8x512xf32>
    %212 = vector.extract_strided_slice %211 {offsets = [0, 0], sizes = [8, 128], strides = [1, 1]} : vector<8x512xf32> to vector<8x128xf32>
    %213 = arith.negf %212 : vector<8x128xf32>
    %214 = math.exp %213 : vector<8x128xf32>
    %cst_42 = arith.constant 1.000000e+00 : f32
    %215 = vector.broadcast %cst_42 : f32 to vector<8x128xf32>
    %216 = arith.addf %215, %214 : vector<8x128xf32>
    %217 = arith.divf %215, %216 : vector<8x128xf32>
    %218 = vector.extract_strided_slice %211 {offsets = [0, 128], sizes = [8, 128], strides = [1, 1]} : vector<8x512xf32> to vector<8x128xf32>
    %219 = arith.negf %218 : vector<8x128xf32>
    %220 = math.exp %219 : vector<8x128xf32>
    %cst_43 = arith.constant 1.000000e+00 : f32
    %221 = vector.broadcast %cst_43 : f32 to vector<8x128xf32>
    %222 = arith.addf %221, %220 : vector<8x128xf32>
    %223 = arith.divf %221, %222 : vector<8x128xf32>
    %224 = vector.extract_strided_slice %211 {offsets = [0, 256], sizes = [8, 128], strides = [1, 1]} : vector<8x512xf32> to vector<8x128xf32>
    %225 = math.tanh %224 : vector<8x128xf32>
    %226 = vector.extract_strided_slice %211 {offsets = [0, 384], sizes = [8, 128], strides = [1, 1]} : vector<8x512xf32> to vector<8x128xf32>
    %227 = arith.negf %226 : vector<8x128xf32>
    %228 = math.exp %227 : vector<8x128xf32>
    %cst_44 = arith.constant 1.000000e+00 : f32
    %229 = vector.broadcast %cst_44 : f32 to vector<8x128xf32>
    %230 = arith.addf %229, %228 : vector<8x128xf32>
    %231 = arith.divf %229, %230 : vector<8x128xf32>
    %232 = arith.mulf %223, %206 : vector<8x128xf32>
    %233 = arith.mulf %217, %225 : vector<8x128xf32>
    %234 = arith.addf %232, %233 : vector<8x128xf32>
    %235 = math.tanh %234 : vector<8x128xf32>
    %236 = arith.mulf %231, %235 : vector<8x128xf32>
    %237 = vector.extract_strided_slice %10 {offsets = [64, 0], sizes = [8, 512], strides = [1, 1]} : vector<128x512xf32> to vector<8x512xf32>
    %cst_45 = arith.constant dense<0.000000e+00> : vector<8x512xf32>
    %238 = tpu.matmul %236, %6, %cst_45 {dimension_numbers = #tpu.dot_dimension_numbers<[1], [0], [0], [1], [0, 0, 1, 1], [], []>} : vector<8x128xf32>, vector<128x512xf32>, vector<8x512xf32> -> vector<8x512xf32>
    %239 = arith.addf %237, %238 : vector<8x512xf32>
    %240 = vector.extract_strided_slice %239 {offsets = [0, 0], sizes = [8, 128], strides = [1, 1]} : vector<8x512xf32> to vector<8x128xf32>
    %241 = arith.negf %240 : vector<8x128xf32>
    %242 = math.exp %241 : vector<8x128xf32>
    %cst_46 = arith.constant 1.000000e+00 : f32
    %243 = vector.broadcast %cst_46 : f32 to vector<8x128xf32>
    %244 = arith.addf %243, %242 : vector<8x128xf32>
    %245 = arith.divf %243, %244 : vector<8x128xf32>
    %246 = vector.extract_strided_slice %239 {offsets = [0, 128], sizes = [8, 128], strides = [1, 1]} : vector<8x512xf32> to vector<8x128xf32>
    %247 = arith.negf %246 : vector<8x128xf32>
    %248 = math.exp %247 : vector<8x128xf32>
    %cst_47 = arith.constant 1.000000e+00 : f32
    %249 = vector.broadcast %cst_47 : f32 to vector<8x128xf32>
    %250 = arith.addf %249, %248 : vector<8x128xf32>
    %251 = arith.divf %249, %250 : vector<8x128xf32>
    %252 = vector.extract_strided_slice %239 {offsets = [0, 256], sizes = [8, 128], strides = [1, 1]} : vector<8x512xf32> to vector<8x128xf32>
    %253 = math.tanh %252 : vector<8x128xf32>
    %254 = vector.extract_strided_slice %239 {offsets = [0, 384], sizes = [8, 128], strides = [1, 1]} : vector<8x512xf32> to vector<8x128xf32>
    %255 = arith.negf %254 : vector<8x128xf32>
    %256 = math.exp %255 : vector<8x128xf32>
    %cst_48 = arith.constant 1.000000e+00 : f32
    %257 = vector.broadcast %cst_48 : f32 to vector<8x128xf32>
    %258 = arith.addf %257, %256 : vector<8x128xf32>
    %259 = arith.divf %257, %258 : vector<8x128xf32>
    %260 = arith.mulf %251, %234 : vector<8x128xf32>
    %261 = arith.mulf %245, %253 : vector<8x128xf32>
    %262 = arith.addf %260, %261 : vector<8x128xf32>
    %263 = math.tanh %262 : vector<8x128xf32>
    %264 = arith.mulf %259, %263 : vector<8x128xf32>
    %265 = vector.extract_strided_slice %10 {offsets = [72, 0], sizes = [8, 512], strides = [1, 1]} : vector<128x512xf32> to vector<8x512xf32>
    %cst_49 = arith.constant dense<0.000000e+00> : vector<8x512xf32>
    %266 = tpu.matmul %264, %6, %cst_49 {dimension_numbers = #tpu.dot_dimension_numbers<[1], [0], [0], [1], [0, 0, 1, 1], [], []>} : vector<8x128xf32>, vector<128x512xf32>, vector<8x512xf32> -> vector<8x512xf32>
    %267 = arith.addf %265, %266 : vector<8x512xf32>
    %268 = vector.extract_strided_slice %267 {offsets = [0, 0], sizes = [8, 128], strides = [1, 1]} : vector<8x512xf32> to vector<8x128xf32>
    %269 = arith.negf %268 : vector<8x128xf32>
    %270 = math.exp %269 : vector<8x128xf32>
    %cst_50 = arith.constant 1.000000e+00 : f32
    %271 = vector.broadcast %cst_50 : f32 to vector<8x128xf32>
    %272 = arith.addf %271, %270 : vector<8x128xf32>
    %273 = arith.divf %271, %272 : vector<8x128xf32>
    %274 = vector.extract_strided_slice %267 {offsets = [0, 128], sizes = [8, 128], strides = [1, 1]} : vector<8x512xf32> to vector<8x128xf32>
    %275 = arith.negf %274 : vector<8x128xf32>
    %276 = math.exp %275 : vector<8x128xf32>
    %cst_51 = arith.constant 1.000000e+00 : f32
    %277 = vector.broadcast %cst_51 : f32 to vector<8x128xf32>
    %278 = arith.addf %277, %276 : vector<8x128xf32>
    %279 = arith.divf %277, %278 : vector<8x128xf32>
    %280 = vector.extract_strided_slice %267 {offsets = [0, 256], sizes = [8, 128], strides = [1, 1]} : vector<8x512xf32> to vector<8x128xf32>
    %281 = math.tanh %280 : vector<8x128xf32>
    %282 = vector.extract_strided_slice %267 {offsets = [0, 384], sizes = [8, 128], strides = [1, 1]} : vector<8x512xf32> to vector<8x128xf32>
    %283 = arith.negf %282 : vector<8x128xf32>
    %284 = math.exp %283 : vector<8x128xf32>
    %cst_52 = arith.constant 1.000000e+00 : f32
    %285 = vector.broadcast %cst_52 : f32 to vector<8x128xf32>
    %286 = arith.addf %285, %284 : vector<8x128xf32>
    %287 = arith.divf %285, %286 : vector<8x128xf32>
    %288 = arith.mulf %279, %262 : vector<8x128xf32>
    %289 = arith.mulf %273, %281 : vector<8x128xf32>
    %290 = arith.addf %288, %289 : vector<8x128xf32>
    %291 = math.tanh %290 : vector<8x128xf32>
    %292 = arith.mulf %287, %291 : vector<8x128xf32>
    %293 = vector.extract_strided_slice %10 {offsets = [80, 0], sizes = [8, 512], strides = [1, 1]} : vector<128x512xf32> to vector<8x512xf32>
    %cst_53 = arith.constant dense<0.000000e+00> : vector<8x512xf32>
    %294 = tpu.matmul %292, %6, %cst_53 {dimension_numbers = #tpu.dot_dimension_numbers<[1], [0], [0], [1], [0, 0, 1, 1], [], []>} : vector<8x128xf32>, vector<128x512xf32>, vector<8x512xf32> -> vector<8x512xf32>
    %295 = arith.addf %293, %294 : vector<8x512xf32>
    %296 = vector.extract_strided_slice %295 {offsets = [0, 0], sizes = [8, 128], strides = [1, 1]} : vector<8x512xf32> to vector<8x128xf32>
    %297 = arith.negf %296 : vector<8x128xf32>
    %298 = math.exp %297 : vector<8x128xf32>
    %cst_54 = arith.constant 1.000000e+00 : f32
    %299 = vector.broadcast %cst_54 : f32 to vector<8x128xf32>
    %300 = arith.addf %299, %298 : vector<8x128xf32>
    %301 = arith.divf %299, %300 : vector<8x128xf32>
    %302 = vector.extract_strided_slice %295 {offsets = [0, 128], sizes = [8, 128], strides = [1, 1]} : vector<8x512xf32> to vector<8x128xf32>
    %303 = arith.negf %302 : vector<8x128xf32>
    %304 = math.exp %303 : vector<8x128xf32>
    %cst_55 = arith.constant 1.000000e+00 : f32
    %305 = vector.broadcast %cst_55 : f32 to vector<8x128xf32>
    %306 = arith.addf %305, %304 : vector<8x128xf32>
    %307 = arith.divf %305, %306 : vector<8x128xf32>
    %308 = vector.extract_strided_slice %295 {offsets = [0, 256], sizes = [8, 128], strides = [1, 1]} : vector<8x512xf32> to vector<8x128xf32>
    %309 = math.tanh %308 : vector<8x128xf32>
    %310 = vector.extract_strided_slice %295 {offsets = [0, 384], sizes = [8, 128], strides = [1, 1]} : vector<8x512xf32> to vector<8x128xf32>
    %311 = arith.negf %310 : vector<8x128xf32>
    %312 = math.exp %311 : vector<8x128xf32>
    %cst_56 = arith.constant 1.000000e+00 : f32
    %313 = vector.broadcast %cst_56 : f32 to vector<8x128xf32>
    %314 = arith.addf %313, %312 : vector<8x128xf32>
    %315 = arith.divf %313, %314 : vector<8x128xf32>
    %316 = arith.mulf %307, %290 : vector<8x128xf32>
    %317 = arith.mulf %301, %309 : vector<8x128xf32>
    %318 = arith.addf %316, %317 : vector<8x128xf32>
    %319 = math.tanh %318 : vector<8x128xf32>
    %320 = arith.mulf %315, %319 : vector<8x128xf32>
    %321 = vector.extract_strided_slice %10 {offsets = [88, 0], sizes = [8, 512], strides = [1, 1]} : vector<128x512xf32> to vector<8x512xf32>
    %cst_57 = arith.constant dense<0.000000e+00> : vector<8x512xf32>
    %322 = tpu.matmul %320, %6, %cst_57 {dimension_numbers = #tpu.dot_dimension_numbers<[1], [0], [0], [1], [0, 0, 1, 1], [], []>} : vector<8x128xf32>, vector<128x512xf32>, vector<8x512xf32> -> vector<8x512xf32>
    %323 = arith.addf %321, %322 : vector<8x512xf32>
    %324 = vector.extract_strided_slice %323 {offsets = [0, 0], sizes = [8, 128], strides = [1, 1]} : vector<8x512xf32> to vector<8x128xf32>
    %325 = arith.negf %324 : vector<8x128xf32>
    %326 = math.exp %325 : vector<8x128xf32>
    %cst_58 = arith.constant 1.000000e+00 : f32
    %327 = vector.broadcast %cst_58 : f32 to vector<8x128xf32>
    %328 = arith.addf %327, %326 : vector<8x128xf32>
    %329 = arith.divf %327, %328 : vector<8x128xf32>
    %330 = vector.extract_strided_slice %323 {offsets = [0, 128], sizes = [8, 128], strides = [1, 1]} : vector<8x512xf32> to vector<8x128xf32>
    %331 = arith.negf %330 : vector<8x128xf32>
    %332 = math.exp %331 : vector<8x128xf32>
    %cst_59 = arith.constant 1.000000e+00 : f32
    %333 = vector.broadcast %cst_59 : f32 to vector<8x128xf32>
    %334 = arith.addf %333, %332 : vector<8x128xf32>
    %335 = arith.divf %333, %334 : vector<8x128xf32>
    %336 = vector.extract_strided_slice %323 {offsets = [0, 256], sizes = [8, 128], strides = [1, 1]} : vector<8x512xf32> to vector<8x128xf32>
    %337 = math.tanh %336 : vector<8x128xf32>
    %338 = vector.extract_strided_slice %323 {offsets = [0, 384], sizes = [8, 128], strides = [1, 1]} : vector<8x512xf32> to vector<8x128xf32>
    %339 = arith.negf %338 : vector<8x128xf32>
    %340 = math.exp %339 : vector<8x128xf32>
    %cst_60 = arith.constant 1.000000e+00 : f32
    %341 = vector.broadcast %cst_60 : f32 to vector<8x128xf32>
    %342 = arith.addf %341, %340 : vector<8x128xf32>
    %343 = arith.divf %341, %342 : vector<8x128xf32>
    %344 = arith.mulf %335, %318 : vector<8x128xf32>
    %345 = arith.mulf %329, %337 : vector<8x128xf32>
    %346 = arith.addf %344, %345 : vector<8x128xf32>
    %347 = math.tanh %346 : vector<8x128xf32>
    %348 = arith.mulf %343, %347 : vector<8x128xf32>
    %349 = vector.extract_strided_slice %10 {offsets = [96, 0], sizes = [8, 512], strides = [1, 1]} : vector<128x512xf32> to vector<8x512xf32>
    %cst_61 = arith.constant dense<0.000000e+00> : vector<8x512xf32>
    %350 = tpu.matmul %348, %6, %cst_61 {dimension_numbers = #tpu.dot_dimension_numbers<[1], [0], [0], [1], [0, 0, 1, 1], [], []>} : vector<8x128xf32>, vector<128x512xf32>, vector<8x512xf32> -> vector<8x512xf32>
    %351 = arith.addf %349, %350 : vector<8x512xf32>
    %352 = vector.extract_strided_slice %351 {offsets = [0, 0], sizes = [8, 128], strides = [1, 1]} : vector<8x512xf32> to vector<8x128xf32>
    %353 = arith.negf %352 : vector<8x128xf32>
    %354 = math.exp %353 : vector<8x128xf32>
    %cst_62 = arith.constant 1.000000e+00 : f32
    %355 = vector.broadcast %cst_62 : f32 to vector<8x128xf32>
    %356 = arith.addf %355, %354 : vector<8x128xf32>
    %357 = arith.divf %355, %356 : vector<8x128xf32>
    %358 = vector.extract_strided_slice %351 {offsets = [0, 128], sizes = [8, 128], strides = [1, 1]} : vector<8x512xf32> to vector<8x128xf32>
    %359 = arith.negf %358 : vector<8x128xf32>
    %360 = math.exp %359 : vector<8x128xf32>
    %cst_63 = arith.constant 1.000000e+00 : f32
    %361 = vector.broadcast %cst_63 : f32 to vector<8x128xf32>
    %362 = arith.addf %361, %360 : vector<8x128xf32>
    %363 = arith.divf %361, %362 : vector<8x128xf32>
    %364 = vector.extract_strided_slice %351 {offsets = [0, 256], sizes = [8, 128], strides = [1, 1]} : vector<8x512xf32> to vector<8x128xf32>
    %365 = math.tanh %364 : vector<8x128xf32>
    %366 = vector.extract_strided_slice %351 {offsets = [0, 384], sizes = [8, 128], strides = [1, 1]} : vector<8x512xf32> to vector<8x128xf32>
    %367 = arith.negf %366 : vector<8x128xf32>
    %368 = math.exp %367 : vector<8x128xf32>
    %cst_64 = arith.constant 1.000000e+00 : f32
    %369 = vector.broadcast %cst_64 : f32 to vector<8x128xf32>
    %370 = arith.addf %369, %368 : vector<8x128xf32>
    %371 = arith.divf %369, %370 : vector<8x128xf32>
    %372 = arith.mulf %363, %346 : vector<8x128xf32>
    %373 = arith.mulf %357, %365 : vector<8x128xf32>
    %374 = arith.addf %372, %373 : vector<8x128xf32>
    %375 = math.tanh %374 : vector<8x128xf32>
    %376 = arith.mulf %371, %375 : vector<8x128xf32>
    %377 = vector.extract_strided_slice %10 {offsets = [104, 0], sizes = [8, 512], strides = [1, 1]} : vector<128x512xf32> to vector<8x512xf32>
    %cst_65 = arith.constant dense<0.000000e+00> : vector<8x512xf32>
    %378 = tpu.matmul %376, %6, %cst_65 {dimension_numbers = #tpu.dot_dimension_numbers<[1], [0], [0], [1], [0, 0, 1, 1], [], []>} : vector<8x128xf32>, vector<128x512xf32>, vector<8x512xf32> -> vector<8x512xf32>
    %379 = arith.addf %377, %378 : vector<8x512xf32>
    %380 = vector.extract_strided_slice %379 {offsets = [0, 0], sizes = [8, 128], strides = [1, 1]} : vector<8x512xf32> to vector<8x128xf32>
    %381 = arith.negf %380 : vector<8x128xf32>
    %382 = math.exp %381 : vector<8x128xf32>
    %cst_66 = arith.constant 1.000000e+00 : f32
    %383 = vector.broadcast %cst_66 : f32 to vector<8x128xf32>
    %384 = arith.addf %383, %382 : vector<8x128xf32>
    %385 = arith.divf %383, %384 : vector<8x128xf32>
    %386 = vector.extract_strided_slice %379 {offsets = [0, 128], sizes = [8, 128], strides = [1, 1]} : vector<8x512xf32> to vector<8x128xf32>
    %387 = arith.negf %386 : vector<8x128xf32>
    %388 = math.exp %387 : vector<8x128xf32>
    %cst_67 = arith.constant 1.000000e+00 : f32
    %389 = vector.broadcast %cst_67 : f32 to vector<8x128xf32>
    %390 = arith.addf %389, %388 : vector<8x128xf32>
    %391 = arith.divf %389, %390 : vector<8x128xf32>
    %392 = vector.extract_strided_slice %379 {offsets = [0, 256], sizes = [8, 128], strides = [1, 1]} : vector<8x512xf32> to vector<8x128xf32>
    %393 = math.tanh %392 : vector<8x128xf32>
    %394 = vector.extract_strided_slice %379 {offsets = [0, 384], sizes = [8, 128], strides = [1, 1]} : vector<8x512xf32> to vector<8x128xf32>
    %395 = arith.negf %394 : vector<8x128xf32>
    %396 = math.exp %395 : vector<8x128xf32>
    %cst_68 = arith.constant 1.000000e+00 : f32
    %397 = vector.broadcast %cst_68 : f32 to vector<8x128xf32>
    %398 = arith.addf %397, %396 : vector<8x128xf32>
    %399 = arith.divf %397, %398 : vector<8x128xf32>
    %400 = arith.mulf %391, %374 : vector<8x128xf32>
    %401 = arith.mulf %385, %393 : vector<8x128xf32>
    %402 = arith.addf %400, %401 : vector<8x128xf32>
    %403 = math.tanh %402 : vector<8x128xf32>
    %404 = arith.mulf %399, %403 : vector<8x128xf32>
    %405 = vector.extract_strided_slice %10 {offsets = [112, 0], sizes = [8, 512], strides = [1, 1]} : vector<128x512xf32> to vector<8x512xf32>
    %cst_69 = arith.constant dense<0.000000e+00> : vector<8x512xf32>
    %406 = tpu.matmul %404, %6, %cst_69 {dimension_numbers = #tpu.dot_dimension_numbers<[1], [0], [0], [1], [0, 0, 1, 1], [], []>} : vector<8x128xf32>, vector<128x512xf32>, vector<8x512xf32> -> vector<8x512xf32>
    %407 = arith.addf %405, %406 : vector<8x512xf32>
    %408 = vector.extract_strided_slice %407 {offsets = [0, 0], sizes = [8, 128], strides = [1, 1]} : vector<8x512xf32> to vector<8x128xf32>
    %409 = arith.negf %408 : vector<8x128xf32>
    %410 = math.exp %409 : vector<8x128xf32>
    %cst_70 = arith.constant 1.000000e+00 : f32
    %411 = vector.broadcast %cst_70 : f32 to vector<8x128xf32>
    %412 = arith.addf %411, %410 : vector<8x128xf32>
    %413 = arith.divf %411, %412 : vector<8x128xf32>
    %414 = vector.extract_strided_slice %407 {offsets = [0, 128], sizes = [8, 128], strides = [1, 1]} : vector<8x512xf32> to vector<8x128xf32>
    %415 = arith.negf %414 : vector<8x128xf32>
    %416 = math.exp %415 : vector<8x128xf32>
    %cst_71 = arith.constant 1.000000e+00 : f32
    %417 = vector.broadcast %cst_71 : f32 to vector<8x128xf32>
    %418 = arith.addf %417, %416 : vector<8x128xf32>
    %419 = arith.divf %417, %418 : vector<8x128xf32>
    %420 = vector.extract_strided_slice %407 {offsets = [0, 256], sizes = [8, 128], strides = [1, 1]} : vector<8x512xf32> to vector<8x128xf32>
    %421 = math.tanh %420 : vector<8x128xf32>
    %422 = vector.extract_strided_slice %407 {offsets = [0, 384], sizes = [8, 128], strides = [1, 1]} : vector<8x512xf32> to vector<8x128xf32>
    %423 = arith.negf %422 : vector<8x128xf32>
    %424 = math.exp %423 : vector<8x128xf32>
    %cst_72 = arith.constant 1.000000e+00 : f32
    %425 = vector.broadcast %cst_72 : f32 to vector<8x128xf32>
    %426 = arith.addf %425, %424 : vector<8x128xf32>
    %427 = arith.divf %425, %426 : vector<8x128xf32>
    %428 = arith.mulf %419, %402 : vector<8x128xf32>
    %429 = arith.mulf %413, %421 : vector<8x128xf32>
    %430 = arith.addf %428, %429 : vector<8x128xf32>
    %431 = math.tanh %430 : vector<8x128xf32>
    %432 = arith.mulf %427, %431 : vector<8x128xf32>
    %433 = vector.extract_strided_slice %10 {offsets = [120, 0], sizes = [8, 512], strides = [1, 1]} : vector<128x512xf32> to vector<8x512xf32>
    %cst_73 = arith.constant dense<0.000000e+00> : vector<8x512xf32>
    %434 = tpu.matmul %432, %6, %cst_73 {dimension_numbers = #tpu.dot_dimension_numbers<[1], [0], [0], [1], [0, 0, 1, 1], [], []>} : vector<8x128xf32>, vector<128x512xf32>, vector<8x512xf32> -> vector<8x512xf32>
    %435 = arith.addf %433, %434 : vector<8x512xf32>
    %436 = vector.extract_strided_slice %435 {offsets = [0, 0], sizes = [8, 128], strides = [1, 1]} : vector<8x512xf32> to vector<8x128xf32>
    %437 = arith.negf %436 : vector<8x128xf32>
    %438 = math.exp %437 : vector<8x128xf32>
    %cst_74 = arith.constant 1.000000e+00 : f32
    %439 = vector.broadcast %cst_74 : f32 to vector<8x128xf32>
    %440 = arith.addf %439, %438 : vector<8x128xf32>
    %441 = arith.divf %439, %440 : vector<8x128xf32>
    %442 = vector.extract_strided_slice %435 {offsets = [0, 128], sizes = [8, 128], strides = [1, 1]} : vector<8x512xf32> to vector<8x128xf32>
    %443 = arith.negf %442 : vector<8x128xf32>
    %444 = math.exp %443 : vector<8x128xf32>
    %cst_75 = arith.constant 1.000000e+00 : f32
    %445 = vector.broadcast %cst_75 : f32 to vector<8x128xf32>
    %446 = arith.addf %445, %444 : vector<8x128xf32>
    %447 = arith.divf %445, %446 : vector<8x128xf32>
    %448 = vector.extract_strided_slice %435 {offsets = [0, 256], sizes = [8, 128], strides = [1, 1]} : vector<8x512xf32> to vector<8x128xf32>
    %449 = math.tanh %448 : vector<8x128xf32>
    %450 = vector.extract_strided_slice %435 {offsets = [0, 384], sizes = [8, 128], strides = [1, 1]} : vector<8x512xf32> to vector<8x128xf32>
    %451 = arith.negf %450 : vector<8x128xf32>
    %452 = math.exp %451 : vector<8x128xf32>
    %cst_76 = arith.constant 1.000000e+00 : f32
    %453 = vector.broadcast %cst_76 : f32 to vector<8x128xf32>
    %454 = arith.addf %453, %452 : vector<8x128xf32>
    %455 = arith.divf %453, %454 : vector<8x128xf32>
    %456 = arith.mulf %447, %430 : vector<8x128xf32>
    %457 = arith.mulf %441, %449 : vector<8x128xf32>
    %458 = arith.addf %456, %457 : vector<8x128xf32>
    %459 = math.tanh %458 : vector<8x128xf32>
    %460 = arith.mulf %455, %459 : vector<8x128xf32>
    %c0_77 = arith.constant 0 : index
    %c0_78 = arith.constant 0 : index
    %461 = vector.load %arg12[%c0_77, %c0_78] : memref<8x128xf32, #tpu.memory_space<vmem>>, vector<8x128xf32>
    tpu.vector_store %arg12[%c0_77, %c0_78], %460 {strides = array<i32>} : memref<8x128xf32, #tpu.memory_space<vmem>>, vector<8x128xf32>,
    %c0_79 = arith.constant 0 : index
    %c0_80 = arith.constant 0 : index
    %462 = vector.load %arg13[%c0_79, %c0_80] : memref<8x128xf32, #tpu.memory_space<vmem>>, vector<8x128xf32>
    tpu.vector_store %arg13[%c0_79, %c0_80], %458 {strides = array<i32>} : memref<8x128xf32, #tpu.memory_space<vmem>>, vector<8x128xf32>,
    %463 = tpu.concatenate %40, %68, %96, %124, %152, %180, %208, %236, %264, %292, %320, %348, %376, %404, %432, %460 in 0 : vector<8x128xf32>, vector<8x128xf32>, vector<8x128xf32>, vector<8x128xf32>, vector<8x128xf32>, vector<8x128xf32>, vector<8x128xf32>, vector<8x128xf32>, vector<8x128xf32>, vector<8x128xf32>, vector<8x128xf32>, vector<8x128xf32>, vector<8x128xf32>, vector<8x128xf32>, vector<8x128xf32>, vector<8x128xf32> -> vector<128x128xf32>
    %c0_81 = arith.constant 0 : index
    %c0_82 = arith.constant 0 : index
    %464 = vector.load %arg6[%c0_81, %c0_82] : memref<128x512xf32, #tpu.memory_space<vmem>>, vector<128x512xf32>
    %c0_83 = arith.constant 0 : index
    %c0_84 = arith.constant 0 : index
    %465 = vector.load %arg7[%c0_83, %c0_84] : memref<128x512xf32, #tpu.memory_space<vmem>>, vector<128x512xf32>
    %c0_85 = arith.constant 0 : index
    %c0_86 = arith.constant 0 : index
    %466 = vector.load %arg8[%c0_85, %c0_86] : memref<1x512xf32, #tpu.memory_space<vmem>>, vector<1x512xf32>
    %cst_87 = arith.constant dense<0.000000e+00> : vector<128x512xf32>
    %467 = tpu.matmul %463, %464, %cst_87 {dimension_numbers = #tpu.dot_dimension_numbers<[1], [0], [0], [1], [0, 0, 1, 1], [], []>} : vector<128x128xf32>, vector<128x512xf32>, vector<128x512xf32> -> vector<128x512xf32>
    %468 = vector.broadcast %466 : vector<1x512xf32> to vector<128x512xf32>
    %469 = arith.addf %467, %468 : vector<128x512xf32>
    %c0_88 = arith.constant 0 : index
    %c0_89 = arith.constant 0 : index
    %470 = vector.load %arg14[%c0_88, %c0_89] : memref<8x128xf32, #tpu.memory_space<vmem>>, vector<8x128xf32>
    %c0_90 = arith.constant 0 : index
    %c0_91 = arith.constant 0 : index
    %471 = vector.load %arg15[%c0_90, %c0_91] : memref<8x128xf32, #tpu.memory_space<vmem>>, vector<8x128xf32>
    %472 = vector.extract_strided_slice %469 {offsets = [0, 0], sizes = [8, 512], strides = [1, 1]} : vector<128x512xf32> to vector<8x512xf32>
    %cst_92 = arith.constant dense<0.000000e+00> : vector<8x512xf32>
    %473 = tpu.matmul %470, %465, %cst_92 {dimension_numbers = #tpu.dot_dimension_numbers<[1], [0], [0], [1], [0, 0, 1, 1], [], []>} : vector<8x128xf32>, vector<128x512xf32>, vector<8x512xf32> -> vector<8x512xf32>
    %474 = arith.addf %472, %473 : vector<8x512xf32>
    %475 = vector.extract_strided_slice %474 {offsets = [0, 0], sizes = [8, 128], strides = [1, 1]} : vector<8x512xf32> to vector<8x128xf32>
    %476 = arith.negf %475 : vector<8x128xf32>
    %477 = math.exp %476 : vector<8x128xf32>
    %cst_93 = arith.constant 1.000000e+00 : f32
    %478 = vector.broadcast %cst_93 : f32 to vector<8x128xf32>
    %479 = arith.addf %478, %477 : vector<8x128xf32>
    %480 = arith.divf %478, %479 : vector<8x128xf32>
    %481 = vector.extract_strided_slice %474 {offsets = [0, 128], sizes = [8, 128], strides = [1, 1]} : vector<8x512xf32> to vector<8x128xf32>
    %482 = arith.negf %481 : vector<8x128xf32>
    %483 = math.exp %482 : vector<8x128xf32>
    %cst_94 = arith.constant 1.000000e+00 : f32
    %484 = vector.broadcast %cst_94 : f32 to vector<8x128xf32>
    %485 = arith.addf %484, %483 : vector<8x128xf32>
    %486 = arith.divf %484, %485 : vector<8x128xf32>
    %487 = vector.extract_strided_slice %474 {offsets = [0, 256], sizes = [8, 128], strides = [1, 1]} : vector<8x512xf32> to vector<8x128xf32>
    %488 = math.tanh %487 : vector<8x128xf32>
    %489 = vector.extract_strided_slice %474 {offsets = [0, 384], sizes = [8, 128], strides = [1, 1]} : vector<8x512xf32> to vector<8x128xf32>
    %490 = arith.negf %489 : vector<8x128xf32>
    %491 = math.exp %490 : vector<8x128xf32>
    %cst_95 = arith.constant 1.000000e+00 : f32
    %492 = vector.broadcast %cst_95 : f32 to vector<8x128xf32>
    %493 = arith.addf %492, %491 : vector<8x128xf32>
    %494 = arith.divf %492, %493 : vector<8x128xf32>
    %495 = arith.mulf %486, %471 : vector<8x128xf32>
    %496 = arith.mulf %480, %488 : vector<8x128xf32>
    %497 = arith.addf %495, %496 : vector<8x128xf32>
    %498 = math.tanh %497 : vector<8x128xf32>
    %499 = arith.mulf %494, %498 : vector<8x128xf32>
    %500 = vector.extract_strided_slice %469 {offsets = [8, 0], sizes = [8, 512], strides = [1, 1]} : vector<128x512xf32> to vector<8x512xf32>
    %cst_96 = arith.constant dense<0.000000e+00> : vector<8x512xf32>
    %501 = tpu.matmul %499, %465, %cst_96 {dimension_numbers = #tpu.dot_dimension_numbers<[1], [0], [0], [1], [0, 0, 1, 1], [], []>} : vector<8x128xf32>, vector<128x512xf32>, vector<8x512xf32> -> vector<8x512xf32>
    %502 = arith.addf %500, %501 : vector<8x512xf32>
    %503 = vector.extract_strided_slice %502 {offsets = [0, 0], sizes = [8, 128], strides = [1, 1]} : vector<8x512xf32> to vector<8x128xf32>
    %504 = arith.negf %503 : vector<8x128xf32>
    %505 = math.exp %504 : vector<8x128xf32>
    %cst_97 = arith.constant 1.000000e+00 : f32
    %506 = vector.broadcast %cst_97 : f32 to vector<8x128xf32>
    %507 = arith.addf %506, %505 : vector<8x128xf32>
    %508 = arith.divf %506, %507 : vector<8x128xf32>
    %509 = vector.extract_strided_slice %502 {offsets = [0, 128], sizes = [8, 128], strides = [1, 1]} : vector<8x512xf32> to vector<8x128xf32>
    %510 = arith.negf %509 : vector<8x128xf32>
    %511 = math.exp %510 : vector<8x128xf32>
    %cst_98 = arith.constant 1.000000e+00 : f32
    %512 = vector.broadcast %cst_98 : f32 to vector<8x128xf32>
    %513 = arith.addf %512, %511 : vector<8x128xf32>
    %514 = arith.divf %512, %513 : vector<8x128xf32>
    %515 = vector.extract_strided_slice %502 {offsets = [0, 256], sizes = [8, 128], strides = [1, 1]} : vector<8x512xf32> to vector<8x128xf32>
    %516 = math.tanh %515 : vector<8x128xf32>
    %517 = vector.extract_strided_slice %502 {offsets = [0, 384], sizes = [8, 128], strides = [1, 1]} : vector<8x512xf32> to vector<8x128xf32>
    %518 = arith.negf %517 : vector<8x128xf32>
    %519 = math.exp %518 : vector<8x128xf32>
    %cst_99 = arith.constant 1.000000e+00 : f32
    %520 = vector.broadcast %cst_99 : f32 to vector<8x128xf32>
    %521 = arith.addf %520, %519 : vector<8x128xf32>
    %522 = arith.divf %520, %521 : vector<8x128xf32>
    %523 = arith.mulf %514, %497 : vector<8x128xf32>
    %524 = arith.mulf %508, %516 : vector<8x128xf32>
    %525 = arith.addf %523, %524 : vector<8x128xf32>
    %526 = math.tanh %525 : vector<8x128xf32>
    %527 = arith.mulf %522, %526 : vector<8x128xf32>
    %528 = vector.extract_strided_slice %469 {offsets = [16, 0], sizes = [8, 512], strides = [1, 1]} : vector<128x512xf32> to vector<8x512xf32>
    %cst_100 = arith.constant dense<0.000000e+00> : vector<8x512xf32>
    %529 = tpu.matmul %527, %465, %cst_100 {dimension_numbers = #tpu.dot_dimension_numbers<[1], [0], [0], [1], [0, 0, 1, 1], [], []>} : vector<8x128xf32>, vector<128x512xf32>, vector<8x512xf32> -> vector<8x512xf32>
    %530 = arith.addf %528, %529 : vector<8x512xf32>
    %531 = vector.extract_strided_slice %530 {offsets = [0, 0], sizes = [8, 128], strides = [1, 1]} : vector<8x512xf32> to vector<8x128xf32>
    %532 = arith.negf %531 : vector<8x128xf32>
    %533 = math.exp %532 : vector<8x128xf32>
    %cst_101 = arith.constant 1.000000e+00 : f32
    %534 = vector.broadcast %cst_101 : f32 to vector<8x128xf32>
    %535 = arith.addf %534, %533 : vector<8x128xf32>
    %536 = arith.divf %534, %535 : vector<8x128xf32>
    %537 = vector.extract_strided_slice %530 {offsets = [0, 128], sizes = [8, 128], strides = [1, 1]} : vector<8x512xf32> to vector<8x128xf32>
    %538 = arith.negf %537 : vector<8x128xf32>
    %539 = math.exp %538 : vector<8x128xf32>
    %cst_102 = arith.constant 1.000000e+00 : f32
    %540 = vector.broadcast %cst_102 : f32 to vector<8x128xf32>
    %541 = arith.addf %540, %539 : vector<8x128xf32>
    %542 = arith.divf %540, %541 : vector<8x128xf32>
    %543 = vector.extract_strided_slice %530 {offsets = [0, 256], sizes = [8, 128], strides = [1, 1]} : vector<8x512xf32> to vector<8x128xf32>
    %544 = math.tanh %543 : vector<8x128xf32>
    %545 = vector.extract_strided_slice %530 {offsets = [0, 384], sizes = [8, 128], strides = [1, 1]} : vector<8x512xf32> to vector<8x128xf32>
    %546 = arith.negf %545 : vector<8x128xf32>
    %547 = math.exp %546 : vector<8x128xf32>
    %cst_103 = arith.constant 1.000000e+00 : f32
    %548 = vector.broadcast %cst_103 : f32 to vector<8x128xf32>
    %549 = arith.addf %548, %547 : vector<8x128xf32>
    %550 = arith.divf %548, %549 : vector<8x128xf32>
    %551 = arith.mulf %542, %525 : vector<8x128xf32>
    %552 = arith.mulf %536, %544 : vector<8x128xf32>
    %553 = arith.addf %551, %552 : vector<8x128xf32>
    %554 = math.tanh %553 : vector<8x128xf32>
    %555 = arith.mulf %550, %554 : vector<8x128xf32>
    %556 = vector.extract_strided_slice %469 {offsets = [24, 0], sizes = [8, 512], strides = [1, 1]} : vector<128x512xf32> to vector<8x512xf32>
    %cst_104 = arith.constant dense<0.000000e+00> : vector<8x512xf32>
    %557 = tpu.matmul %555, %465, %cst_104 {dimension_numbers = #tpu.dot_dimension_numbers<[1], [0], [0], [1], [0, 0, 1, 1], [], []>} : vector<8x128xf32>, vector<128x512xf32>, vector<8x512xf32> -> vector<8x512xf32>
    %558 = arith.addf %556, %557 : vector<8x512xf32>
    %559 = vector.extract_strided_slice %558 {offsets = [0, 0], sizes = [8, 128], strides = [1, 1]} : vector<8x512xf32> to vector<8x128xf32>
    %560 = arith.negf %559 : vector<8x128xf32>
    %561 = math.exp %560 : vector<8x128xf32>
    %cst_105 = arith.constant 1.000000e+00 : f32
    %562 = vector.broadcast %cst_105 : f32 to vector<8x128xf32>
    %563 = arith.addf %562, %561 : vector<8x128xf32>
    %564 = arith.divf %562, %563 : vector<8x128xf32>
    %565 = vector.extract_strided_slice %558 {offsets = [0, 128], sizes = [8, 128], strides = [1, 1]} : vector<8x512xf32> to vector<8x128xf32>
    %566 = arith.negf %565 : vector<8x128xf32>
    %567 = math.exp %566 : vector<8x128xf32>
    %cst_106 = arith.constant 1.000000e+00 : f32
    %568 = vector.broadcast %cst_106 : f32 to vector<8x128xf32>
    %569 = arith.addf %568, %567 : vector<8x128xf32>
    %570 = arith.divf %568, %569 : vector<8x128xf32>
    %571 = vector.extract_strided_slice %558 {offsets = [0, 256], sizes = [8, 128], strides = [1, 1]} : vector<8x512xf32> to vector<8x128xf32>
    %572 = math.tanh %571 : vector<8x128xf32>
    %573 = vector.extract_strided_slice %558 {offsets = [0, 384], sizes = [8, 128], strides = [1, 1]} : vector<8x512xf32> to vector<8x128xf32>
    %574 = arith.negf %573 : vector<8x128xf32>
    %575 = math.exp %574 : vector<8x128xf32>
    %cst_107 = arith.constant 1.000000e+00 : f32
    %576 = vector.broadcast %cst_107 : f32 to vector<8x128xf32>
    %577 = arith.addf %576, %575 : vector<8x128xf32>
    %578 = arith.divf %576, %577 : vector<8x128xf32>
    %579 = arith.mulf %570, %553 : vector<8x128xf32>
    %580 = arith.mulf %564, %572 : vector<8x128xf32>
    %581 = arith.addf %579, %580 : vector<8x128xf32>
    %582 = math.tanh %581 : vector<8x128xf32>
    %583 = arith.mulf %578, %582 : vector<8x128xf32>
    %584 = vector.extract_strided_slice %469 {offsets = [32, 0], sizes = [8, 512], strides = [1, 1]} : vector<128x512xf32> to vector<8x512xf32>
    %cst_108 = arith.constant dense<0.000000e+00> : vector<8x512xf32>
    %585 = tpu.matmul %583, %465, %cst_108 {dimension_numbers = #tpu.dot_dimension_numbers<[1], [0], [0], [1], [0, 0, 1, 1], [], []>} : vector<8x128xf32>, vector<128x512xf32>, vector<8x512xf32> -> vector<8x512xf32>
    %586 = arith.addf %584, %585 : vector<8x512xf32>
    %587 = vector.extract_strided_slice %586 {offsets = [0, 0], sizes = [8, 128], strides = [1, 1]} : vector<8x512xf32> to vector<8x128xf32>
    %588 = arith.negf %587 : vector<8x128xf32>
    %589 = math.exp %588 : vector<8x128xf32>
    %cst_109 = arith.constant 1.000000e+00 : f32
    %590 = vector.broadcast %cst_109 : f32 to vector<8x128xf32>
    %591 = arith.addf %590, %589 : vector<8x128xf32>
    %592 = arith.divf %590, %591 : vector<8x128xf32>
    %593 = vector.extract_strided_slice %586 {offsets = [0, 128], sizes = [8, 128], strides = [1, 1]} : vector<8x512xf32> to vector<8x128xf32>
    %594 = arith.negf %593 : vector<8x128xf32>
    %595 = math.exp %594 : vector<8x128xf32>
    %cst_110 = arith.constant 1.000000e+00 : f32
    %596 = vector.broadcast %cst_110 : f32 to vector<8x128xf32>
    %597 = arith.addf %596, %595 : vector<8x128xf32>
    %598 = arith.divf %596, %597 : vector<8x128xf32>
    %599 = vector.extract_strided_slice %586 {offsets = [0, 256], sizes = [8, 128], strides = [1, 1]} : vector<8x512xf32> to vector<8x128xf32>
    %600 = math.tanh %599 : vector<8x128xf32>
    %601 = vector.extract_strided_slice %586 {offsets = [0, 384], sizes = [8, 128], strides = [1, 1]} : vector<8x512xf32> to vector<8x128xf32>
    %602 = arith.negf %601 : vector<8x128xf32>
    %603 = math.exp %602 : vector<8x128xf32>
    %cst_111 = arith.constant 1.000000e+00 : f32
    %604 = vector.broadcast %cst_111 : f32 to vector<8x128xf32>
    %605 = arith.addf %604, %603 : vector<8x128xf32>
    %606 = arith.divf %604, %605 : vector<8x128xf32>
    %607 = arith.mulf %598, %581 : vector<8x128xf32>
    %608 = arith.mulf %592, %600 : vector<8x128xf32>
    %609 = arith.addf %607, %608 : vector<8x128xf32>
    %610 = math.tanh %609 : vector<8x128xf32>
    %611 = arith.mulf %606, %610 : vector<8x128xf32>
    %612 = vector.extract_strided_slice %469 {offsets = [40, 0], sizes = [8, 512], strides = [1, 1]} : vector<128x512xf32> to vector<8x512xf32>
    %cst_112 = arith.constant dense<0.000000e+00> : vector<8x512xf32>
    %613 = tpu.matmul %611, %465, %cst_112 {dimension_numbers = #tpu.dot_dimension_numbers<[1], [0], [0], [1], [0, 0, 1, 1], [], []>} : vector<8x128xf32>, vector<128x512xf32>, vector<8x512xf32> -> vector<8x512xf32>
    %614 = arith.addf %612, %613 : vector<8x512xf32>
    %615 = vector.extract_strided_slice %614 {offsets = [0, 0], sizes = [8, 128], strides = [1, 1]} : vector<8x512xf32> to vector<8x128xf32>
    %616 = arith.negf %615 : vector<8x128xf32>
    %617 = math.exp %616 : vector<8x128xf32>
    %cst_113 = arith.constant 1.000000e+00 : f32
    %618 = vector.broadcast %cst_113 : f32 to vector<8x128xf32>
    %619 = arith.addf %618, %617 : vector<8x128xf32>
    %620 = arith.divf %618, %619 : vector<8x128xf32>
    %621 = vector.extract_strided_slice %614 {offsets = [0, 128], sizes = [8, 128], strides = [1, 1]} : vector<8x512xf32> to vector<8x128xf32>
    %622 = arith.negf %621 : vector<8x128xf32>
    %623 = math.exp %622 : vector<8x128xf32>
    %cst_114 = arith.constant 1.000000e+00 : f32
    %624 = vector.broadcast %cst_114 : f32 to vector<8x128xf32>
    %625 = arith.addf %624, %623 : vector<8x128xf32>
    %626 = arith.divf %624, %625 : vector<8x128xf32>
    %627 = vector.extract_strided_slice %614 {offsets = [0, 256], sizes = [8, 128], strides = [1, 1]} : vector<8x512xf32> to vector<8x128xf32>
    %628 = math.tanh %627 : vector<8x128xf32>
    %629 = vector.extract_strided_slice %614 {offsets = [0, 384], sizes = [8, 128], strides = [1, 1]} : vector<8x512xf32> to vector<8x128xf32>
    %630 = arith.negf %629 : vector<8x128xf32>
    %631 = math.exp %630 : vector<8x128xf32>
    %cst_115 = arith.constant 1.000000e+00 : f32
    %632 = vector.broadcast %cst_115 : f32 to vector<8x128xf32>
    %633 = arith.addf %632, %631 : vector<8x128xf32>
    %634 = arith.divf %632, %633 : vector<8x128xf32>
    %635 = arith.mulf %626, %609 : vector<8x128xf32>
    %636 = arith.mulf %620, %628 : vector<8x128xf32>
    %637 = arith.addf %635, %636 : vector<8x128xf32>
    %638 = math.tanh %637 : vector<8x128xf32>
    %639 = arith.mulf %634, %638 : vector<8x128xf32>
    %640 = vector.extract_strided_slice %469 {offsets = [48, 0], sizes = [8, 512], strides = [1, 1]} : vector<128x512xf32> to vector<8x512xf32>
    %cst_116 = arith.constant dense<0.000000e+00> : vector<8x512xf32>
    %641 = tpu.matmul %639, %465, %cst_116 {dimension_numbers = #tpu.dot_dimension_numbers<[1], [0], [0], [1], [0, 0, 1, 1], [], []>} : vector<8x128xf32>, vector<128x512xf32>, vector<8x512xf32> -> vector<8x512xf32>
    %642 = arith.addf %640, %641 : vector<8x512xf32>
    %643 = vector.extract_strided_slice %642 {offsets = [0, 0], sizes = [8, 128], strides = [1, 1]} : vector<8x512xf32> to vector<8x128xf32>
    %644 = arith.negf %643 : vector<8x128xf32>
    %645 = math.exp %644 : vector<8x128xf32>
    %cst_117 = arith.constant 1.000000e+00 : f32
    %646 = vector.broadcast %cst_117 : f32 to vector<8x128xf32>
    %647 = arith.addf %646, %645 : vector<8x128xf32>
    %648 = arith.divf %646, %647 : vector<8x128xf32>
    %649 = vector.extract_strided_slice %642 {offsets = [0, 128], sizes = [8, 128], strides = [1, 1]} : vector<8x512xf32> to vector<8x128xf32>
    %650 = arith.negf %649 : vector<8x128xf32>
    %651 = math.exp %650 : vector<8x128xf32>
    %cst_118 = arith.constant 1.000000e+00 : f32
    %652 = vector.broadcast %cst_118 : f32 to vector<8x128xf32>
    %653 = arith.addf %652, %651 : vector<8x128xf32>
    %654 = arith.divf %652, %653 : vector<8x128xf32>
    %655 = vector.extract_strided_slice %642 {offsets = [0, 256], sizes = [8, 128], strides = [1, 1]} : vector<8x512xf32> to vector<8x128xf32>
    %656 = math.tanh %655 : vector<8x128xf32>
    %657 = vector.extract_strided_slice %642 {offsets = [0, 384], sizes = [8, 128], strides = [1, 1]} : vector<8x512xf32> to vector<8x128xf32>
    %658 = arith.negf %657 : vector<8x128xf32>
    %659 = math.exp %658 : vector<8x128xf32>
    %cst_119 = arith.constant 1.000000e+00 : f32
    %660 = vector.broadcast %cst_119 : f32 to vector<8x128xf32>
    %661 = arith.addf %660, %659 : vector<8x128xf32>
    %662 = arith.divf %660, %661 : vector<8x128xf32>
    %663 = arith.mulf %654, %637 : vector<8x128xf32>
    %664 = arith.mulf %648, %656 : vector<8x128xf32>
    %665 = arith.addf %663, %664 : vector<8x128xf32>
    %666 = math.tanh %665 : vector<8x128xf32>
    %667 = arith.mulf %662, %666 : vector<8x128xf32>
    %668 = vector.extract_strided_slice %469 {offsets = [56, 0], sizes = [8, 512], strides = [1, 1]} : vector<128x512xf32> to vector<8x512xf32>
    %cst_120 = arith.constant dense<0.000000e+00> : vector<8x512xf32>
    %669 = tpu.matmul %667, %465, %cst_120 {dimension_numbers = #tpu.dot_dimension_numbers<[1], [0], [0], [1], [0, 0, 1, 1], [], []>} : vector<8x128xf32>, vector<128x512xf32>, vector<8x512xf32> -> vector<8x512xf32>
    %670 = arith.addf %668, %669 : vector<8x512xf32>
    %671 = vector.extract_strided_slice %670 {offsets = [0, 0], sizes = [8, 128], strides = [1, 1]} : vector<8x512xf32> to vector<8x128xf32>
    %672 = arith.negf %671 : vector<8x128xf32>
    %673 = math.exp %672 : vector<8x128xf32>
    %cst_121 = arith.constant 1.000000e+00 : f32
    %674 = vector.broadcast %cst_121 : f32 to vector<8x128xf32>
    %675 = arith.addf %674, %673 : vector<8x128xf32>
    %676 = arith.divf %674, %675 : vector<8x128xf32>
    %677 = vector.extract_strided_slice %670 {offsets = [0, 128], sizes = [8, 128], strides = [1, 1]} : vector<8x512xf32> to vector<8x128xf32>
    %678 = arith.negf %677 : vector<8x128xf32>
    %679 = math.exp %678 : vector<8x128xf32>
    %cst_122 = arith.constant 1.000000e+00 : f32
    %680 = vector.broadcast %cst_122 : f32 to vector<8x128xf32>
    %681 = arith.addf %680, %679 : vector<8x128xf32>
    %682 = arith.divf %680, %681 : vector<8x128xf32>
    %683 = vector.extract_strided_slice %670 {offsets = [0, 256], sizes = [8, 128], strides = [1, 1]} : vector<8x512xf32> to vector<8x128xf32>
    %684 = math.tanh %683 : vector<8x128xf32>
    %685 = vector.extract_strided_slice %670 {offsets = [0, 384], sizes = [8, 128], strides = [1, 1]} : vector<8x512xf32> to vector<8x128xf32>
    %686 = arith.negf %685 : vector<8x128xf32>
    %687 = math.exp %686 : vector<8x128xf32>
    %cst_123 = arith.constant 1.000000e+00 : f32
    %688 = vector.broadcast %cst_123 : f32 to vector<8x128xf32>
    %689 = arith.addf %688, %687 : vector<8x128xf32>
    %690 = arith.divf %688, %689 : vector<8x128xf32>
    %691 = arith.mulf %682, %665 : vector<8x128xf32>
    %692 = arith.mulf %676, %684 : vector<8x128xf32>
    %693 = arith.addf %691, %692 : vector<8x128xf32>
    %694 = math.tanh %693 : vector<8x128xf32>
    %695 = arith.mulf %690, %694 : vector<8x128xf32>
    %696 = vector.extract_strided_slice %469 {offsets = [64, 0], sizes = [8, 512], strides = [1, 1]} : vector<128x512xf32> to vector<8x512xf32>
    %cst_124 = arith.constant dense<0.000000e+00> : vector<8x512xf32>
    %697 = tpu.matmul %695, %465, %cst_124 {dimension_numbers = #tpu.dot_dimension_numbers<[1], [0], [0], [1], [0, 0, 1, 1], [], []>} : vector<8x128xf32>, vector<128x512xf32>, vector<8x512xf32> -> vector<8x512xf32>
    %698 = arith.addf %696, %697 : vector<8x512xf32>
    %699 = vector.extract_strided_slice %698 {offsets = [0, 0], sizes = [8, 128], strides = [1, 1]} : vector<8x512xf32> to vector<8x128xf32>
    %700 = arith.negf %699 : vector<8x128xf32>
    %701 = math.exp %700 : vector<8x128xf32>
    %cst_125 = arith.constant 1.000000e+00 : f32
    %702 = vector.broadcast %cst_125 : f32 to vector<8x128xf32>
    %703 = arith.addf %702, %701 : vector<8x128xf32>
    %704 = arith.divf %702, %703 : vector<8x128xf32>
    %705 = vector.extract_strided_slice %698 {offsets = [0, 128], sizes = [8, 128], strides = [1, 1]} : vector<8x512xf32> to vector<8x128xf32>
    %706 = arith.negf %705 : vector<8x128xf32>
    %707 = math.exp %706 : vector<8x128xf32>
    %cst_126 = arith.constant 1.000000e+00 : f32
    %708 = vector.broadcast %cst_126 : f32 to vector<8x128xf32>
    %709 = arith.addf %708, %707 : vector<8x128xf32>
    %710 = arith.divf %708, %709 : vector<8x128xf32>
    %711 = vector.extract_strided_slice %698 {offsets = [0, 256], sizes = [8, 128], strides = [1, 1]} : vector<8x512xf32> to vector<8x128xf32>
    %712 = math.tanh %711 : vector<8x128xf32>
    %713 = vector.extract_strided_slice %698 {offsets = [0, 384], sizes = [8, 128], strides = [1, 1]} : vector<8x512xf32> to vector<8x128xf32>
    %714 = arith.negf %713 : vector<8x128xf32>
    %715 = math.exp %714 : vector<8x128xf32>
    %cst_127 = arith.constant 1.000000e+00 : f32
    %716 = vector.broadcast %cst_127 : f32 to vector<8x128xf32>
    %717 = arith.addf %716, %715 : vector<8x128xf32>
    %718 = arith.divf %716, %717 : vector<8x128xf32>
    %719 = arith.mulf %710, %693 : vector<8x128xf32>
    %720 = arith.mulf %704, %712 : vector<8x128xf32>
    %721 = arith.addf %719, %720 : vector<8x128xf32>
    %722 = math.tanh %721 : vector<8x128xf32>
    %723 = arith.mulf %718, %722 : vector<8x128xf32>
    %724 = vector.extract_strided_slice %469 {offsets = [72, 0], sizes = [8, 512], strides = [1, 1]} : vector<128x512xf32> to vector<8x512xf32>
    %cst_128 = arith.constant dense<0.000000e+00> : vector<8x512xf32>
    %725 = tpu.matmul %723, %465, %cst_128 {dimension_numbers = #tpu.dot_dimension_numbers<[1], [0], [0], [1], [0, 0, 1, 1], [], []>} : vector<8x128xf32>, vector<128x512xf32>, vector<8x512xf32> -> vector<8x512xf32>
    %726 = arith.addf %724, %725 : vector<8x512xf32>
    %727 = vector.extract_strided_slice %726 {offsets = [0, 0], sizes = [8, 128], strides = [1, 1]} : vector<8x512xf32> to vector<8x128xf32>
    %728 = arith.negf %727 : vector<8x128xf32>
    %729 = math.exp %728 : vector<8x128xf32>
    %cst_129 = arith.constant 1.000000e+00 : f32
    %730 = vector.broadcast %cst_129 : f32 to vector<8x128xf32>
    %731 = arith.addf %730, %729 : vector<8x128xf32>
    %732 = arith.divf %730, %731 : vector<8x128xf32>
    %733 = vector.extract_strided_slice %726 {offsets = [0, 128], sizes = [8, 128], strides = [1, 1]} : vector<8x512xf32> to vector<8x128xf32>
    %734 = arith.negf %733 : vector<8x128xf32>
    %735 = math.exp %734 : vector<8x128xf32>
    %cst_130 = arith.constant 1.000000e+00 : f32
    %736 = vector.broadcast %cst_130 : f32 to vector<8x128xf32>
    %737 = arith.addf %736, %735 : vector<8x128xf32>
    %738 = arith.divf %736, %737 : vector<8x128xf32>
    %739 = vector.extract_strided_slice %726 {offsets = [0, 256], sizes = [8, 128], strides = [1, 1]} : vector<8x512xf32> to vector<8x128xf32>
    %740 = math.tanh %739 : vector<8x128xf32>
    %741 = vector.extract_strided_slice %726 {offsets = [0, 384], sizes = [8, 128], strides = [1, 1]} : vector<8x512xf32> to vector<8x128xf32>
    %742 = arith.negf %741 : vector<8x128xf32>
    %743 = math.exp %742 : vector<8x128xf32>
    %cst_131 = arith.constant 1.000000e+00 : f32
    %744 = vector.broadcast %cst_131 : f32 to vector<8x128xf32>
    %745 = arith.addf %744, %743 : vector<8x128xf32>
    %746 = arith.divf %744, %745 : vector<8x128xf32>
    %747 = arith.mulf %738, %721 : vector<8x128xf32>
    %748 = arith.mulf %732, %740 : vector<8x128xf32>
    %749 = arith.addf %747, %748 : vector<8x128xf32>
    %750 = math.tanh %749 : vector<8x128xf32>
    %751 = arith.mulf %746, %750 : vector<8x128xf32>
    %752 = vector.extract_strided_slice %469 {offsets = [80, 0], sizes = [8, 512], strides = [1, 1]} : vector<128x512xf32> to vector<8x512xf32>
    %cst_132 = arith.constant dense<0.000000e+00> : vector<8x512xf32>
    %753 = tpu.matmul %751, %465, %cst_132 {dimension_numbers = #tpu.dot_dimension_numbers<[1], [0], [0], [1], [0, 0, 1, 1], [], []>} : vector<8x128xf32>, vector<128x512xf32>, vector<8x512xf32> -> vector<8x512xf32>
    %754 = arith.addf %752, %753 : vector<8x512xf32>
    %755 = vector.extract_strided_slice %754 {offsets = [0, 0], sizes = [8, 128], strides = [1, 1]} : vector<8x512xf32> to vector<8x128xf32>
    %756 = arith.negf %755 : vector<8x128xf32>
    %757 = math.exp %756 : vector<8x128xf32>
    %cst_133 = arith.constant 1.000000e+00 : f32
    %758 = vector.broadcast %cst_133 : f32 to vector<8x128xf32>
    %759 = arith.addf %758, %757 : vector<8x128xf32>
    %760 = arith.divf %758, %759 : vector<8x128xf32>
    %761 = vector.extract_strided_slice %754 {offsets = [0, 128], sizes = [8, 128], strides = [1, 1]} : vector<8x512xf32> to vector<8x128xf32>
    %762 = arith.negf %761 : vector<8x128xf32>
    %763 = math.exp %762 : vector<8x128xf32>
    %cst_134 = arith.constant 1.000000e+00 : f32
    %764 = vector.broadcast %cst_134 : f32 to vector<8x128xf32>
    %765 = arith.addf %764, %763 : vector<8x128xf32>
    %766 = arith.divf %764, %765 : vector<8x128xf32>
    %767 = vector.extract_strided_slice %754 {offsets = [0, 256], sizes = [8, 128], strides = [1, 1]} : vector<8x512xf32> to vector<8x128xf32>
    %768 = math.tanh %767 : vector<8x128xf32>
    %769 = vector.extract_strided_slice %754 {offsets = [0, 384], sizes = [8, 128], strides = [1, 1]} : vector<8x512xf32> to vector<8x128xf32>
    %770 = arith.negf %769 : vector<8x128xf32>
    %771 = math.exp %770 : vector<8x128xf32>
    %cst_135 = arith.constant 1.000000e+00 : f32
    %772 = vector.broadcast %cst_135 : f32 to vector<8x128xf32>
    %773 = arith.addf %772, %771 : vector<8x128xf32>
    %774 = arith.divf %772, %773 : vector<8x128xf32>
    %775 = arith.mulf %766, %749 : vector<8x128xf32>
    %776 = arith.mulf %760, %768 : vector<8x128xf32>
    %777 = arith.addf %775, %776 : vector<8x128xf32>
    %778 = math.tanh %777 : vector<8x128xf32>
    %779 = arith.mulf %774, %778 : vector<8x128xf32>
    %780 = vector.extract_strided_slice %469 {offsets = [88, 0], sizes = [8, 512], strides = [1, 1]} : vector<128x512xf32> to vector<8x512xf32>
    %cst_136 = arith.constant dense<0.000000e+00> : vector<8x512xf32>
    %781 = tpu.matmul %779, %465, %cst_136 {dimension_numbers = #tpu.dot_dimension_numbers<[1], [0], [0], [1], [0, 0, 1, 1], [], []>} : vector<8x128xf32>, vector<128x512xf32>, vector<8x512xf32> -> vector<8x512xf32>
    %782 = arith.addf %780, %781 : vector<8x512xf32>
    %783 = vector.extract_strided_slice %782 {offsets = [0, 0], sizes = [8, 128], strides = [1, 1]} : vector<8x512xf32> to vector<8x128xf32>
    %784 = arith.negf %783 : vector<8x128xf32>
    %785 = math.exp %784 : vector<8x128xf32>
    %cst_137 = arith.constant 1.000000e+00 : f32
    %786 = vector.broadcast %cst_137 : f32 to vector<8x128xf32>
    %787 = arith.addf %786, %785 : vector<8x128xf32>
    %788 = arith.divf %786, %787 : vector<8x128xf32>
    %789 = vector.extract_strided_slice %782 {offsets = [0, 128], sizes = [8, 128], strides = [1, 1]} : vector<8x512xf32> to vector<8x128xf32>
    %790 = arith.negf %789 : vector<8x128xf32>
    %791 = math.exp %790 : vector<8x128xf32>
    %cst_138 = arith.constant 1.000000e+00 : f32
    %792 = vector.broadcast %cst_138 : f32 to vector<8x128xf32>
    %793 = arith.addf %792, %791 : vector<8x128xf32>
    %794 = arith.divf %792, %793 : vector<8x128xf32>
    %795 = vector.extract_strided_slice %782 {offsets = [0, 256], sizes = [8, 128], strides = [1, 1]} : vector<8x512xf32> to vector<8x128xf32>
    %796 = math.tanh %795 : vector<8x128xf32>
    %797 = vector.extract_strided_slice %782 {offsets = [0, 384], sizes = [8, 128], strides = [1, 1]} : vector<8x512xf32> to vector<8x128xf32>
    %798 = arith.negf %797 : vector<8x128xf32>
    %799 = math.exp %798 : vector<8x128xf32>
    %cst_139 = arith.constant 1.000000e+00 : f32
    %800 = vector.broadcast %cst_139 : f32 to vector<8x128xf32>
    %801 = arith.addf %800, %799 : vector<8x128xf32>
    %802 = arith.divf %800, %801 : vector<8x128xf32>
    %803 = arith.mulf %794, %777 : vector<8x128xf32>
    %804 = arith.mulf %788, %796 : vector<8x128xf32>
    %805 = arith.addf %803, %804 : vector<8x128xf32>
    %806 = math.tanh %805 : vector<8x128xf32>
    %807 = arith.mulf %802, %806 : vector<8x128xf32>
    %808 = vector.extract_strided_slice %469 {offsets = [96, 0], sizes = [8, 512], strides = [1, 1]} : vector<128x512xf32> to vector<8x512xf32>
    %cst_140 = arith.constant dense<0.000000e+00> : vector<8x512xf32>
    %809 = tpu.matmul %807, %465, %cst_140 {dimension_numbers = #tpu.dot_dimension_numbers<[1], [0], [0], [1], [0, 0, 1, 1], [], []>} : vector<8x128xf32>, vector<128x512xf32>, vector<8x512xf32> -> vector<8x512xf32>
    %810 = arith.addf %808, %809 : vector<8x512xf32>
    %811 = vector.extract_strided_slice %810 {offsets = [0, 0], sizes = [8, 128], strides = [1, 1]} : vector<8x512xf32> to vector<8x128xf32>
    %812 = arith.negf %811 : vector<8x128xf32>
    %813 = math.exp %812 : vector<8x128xf32>
    %cst_141 = arith.constant 1.000000e+00 : f32
    %814 = vector.broadcast %cst_141 : f32 to vector<8x128xf32>
    %815 = arith.addf %814, %813 : vector<8x128xf32>
    %816 = arith.divf %814, %815 : vector<8x128xf32>
    %817 = vector.extract_strided_slice %810 {offsets = [0, 128], sizes = [8, 128], strides = [1, 1]} : vector<8x512xf32> to vector<8x128xf32>
    %818 = arith.negf %817 : vector<8x128xf32>
    %819 = math.exp %818 : vector<8x128xf32>
    %cst_142 = arith.constant 1.000000e+00 : f32
    %820 = vector.broadcast %cst_142 : f32 to vector<8x128xf32>
    %821 = arith.addf %820, %819 : vector<8x128xf32>
    %822 = arith.divf %820, %821 : vector<8x128xf32>
    %823 = vector.extract_strided_slice %810 {offsets = [0, 256], sizes = [8, 128], strides = [1, 1]} : vector<8x512xf32> to vector<8x128xf32>
    %824 = math.tanh %823 : vector<8x128xf32>
    %825 = vector.extract_strided_slice %810 {offsets = [0, 384], sizes = [8, 128], strides = [1, 1]} : vector<8x512xf32> to vector<8x128xf32>
    %826 = arith.negf %825 : vector<8x128xf32>
    %827 = math.exp %826 : vector<8x128xf32>
    %cst_143 = arith.constant 1.000000e+00 : f32
    %828 = vector.broadcast %cst_143 : f32 to vector<8x128xf32>
    %829 = arith.addf %828, %827 : vector<8x128xf32>
    %830 = arith.divf %828, %829 : vector<8x128xf32>
    %831 = arith.mulf %822, %805 : vector<8x128xf32>
    %832 = arith.mulf %816, %824 : vector<8x128xf32>
    %833 = arith.addf %831, %832 : vector<8x128xf32>
    %834 = math.tanh %833 : vector<8x128xf32>
    %835 = arith.mulf %830, %834 : vector<8x128xf32>
    %836 = vector.extract_strided_slice %469 {offsets = [104, 0], sizes = [8, 512], strides = [1, 1]} : vector<128x512xf32> to vector<8x512xf32>
    %cst_144 = arith.constant dense<0.000000e+00> : vector<8x512xf32>
    %837 = tpu.matmul %835, %465, %cst_144 {dimension_numbers = #tpu.dot_dimension_numbers<[1], [0], [0], [1], [0, 0, 1, 1], [], []>} : vector<8x128xf32>, vector<128x512xf32>, vector<8x512xf32> -> vector<8x512xf32>
    %838 = arith.addf %836, %837 : vector<8x512xf32>
    %839 = vector.extract_strided_slice %838 {offsets = [0, 0], sizes = [8, 128], strides = [1, 1]} : vector<8x512xf32> to vector<8x128xf32>
    %840 = arith.negf %839 : vector<8x128xf32>
    %841 = math.exp %840 : vector<8x128xf32>
    %cst_145 = arith.constant 1.000000e+00 : f32
    %842 = vector.broadcast %cst_145 : f32 to vector<8x128xf32>
    %843 = arith.addf %842, %841 : vector<8x128xf32>
    %844 = arith.divf %842, %843 : vector<8x128xf32>
    %845 = vector.extract_strided_slice %838 {offsets = [0, 128], sizes = [8, 128], strides = [1, 1]} : vector<8x512xf32> to vector<8x128xf32>
    %846 = arith.negf %845 : vector<8x128xf32>
    %847 = math.exp %846 : vector<8x128xf32>
    %cst_146 = arith.constant 1.000000e+00 : f32
    %848 = vector.broadcast %cst_146 : f32 to vector<8x128xf32>
    %849 = arith.addf %848, %847 : vector<8x128xf32>
    %850 = arith.divf %848, %849 : vector<8x128xf32>
    %851 = vector.extract_strided_slice %838 {offsets = [0, 256], sizes = [8, 128], strides = [1, 1]} : vector<8x512xf32> to vector<8x128xf32>
    %852 = math.tanh %851 : vector<8x128xf32>
    %853 = vector.extract_strided_slice %838 {offsets = [0, 384], sizes = [8, 128], strides = [1, 1]} : vector<8x512xf32> to vector<8x128xf32>
    %854 = arith.negf %853 : vector<8x128xf32>
    %855 = math.exp %854 : vector<8x128xf32>
    %cst_147 = arith.constant 1.000000e+00 : f32
    %856 = vector.broadcast %cst_147 : f32 to vector<8x128xf32>
    %857 = arith.addf %856, %855 : vector<8x128xf32>
    %858 = arith.divf %856, %857 : vector<8x128xf32>
    %859 = arith.mulf %850, %833 : vector<8x128xf32>
    %860 = arith.mulf %844, %852 : vector<8x128xf32>
    %861 = arith.addf %859, %860 : vector<8x128xf32>
    %862 = math.tanh %861 : vector<8x128xf32>
    %863 = arith.mulf %858, %862 : vector<8x128xf32>
    %864 = vector.extract_strided_slice %469 {offsets = [112, 0], sizes = [8, 512], strides = [1, 1]} : vector<128x512xf32> to vector<8x512xf32>
    %cst_148 = arith.constant dense<0.000000e+00> : vector<8x512xf32>
    %865 = tpu.matmul %863, %465, %cst_148 {dimension_numbers = #tpu.dot_dimension_numbers<[1], [0], [0], [1], [0, 0, 1, 1], [], []>} : vector<8x128xf32>, vector<128x512xf32>, vector<8x512xf32> -> vector<8x512xf32>
    %866 = arith.addf %864, %865 : vector<8x512xf32>
    %867 = vector.extract_strided_slice %866 {offsets = [0, 0], sizes = [8, 128], strides = [1, 1]} : vector<8x512xf32> to vector<8x128xf32>
    %868 = arith.negf %867 : vector<8x128xf32>
    %869 = math.exp %868 : vector<8x128xf32>
    %cst_149 = arith.constant 1.000000e+00 : f32
    %870 = vector.broadcast %cst_149 : f32 to vector<8x128xf32>
    %871 = arith.addf %870, %869 : vector<8x128xf32>
    %872 = arith.divf %870, %871 : vector<8x128xf32>
    %873 = vector.extract_strided_slice %866 {offsets = [0, 128], sizes = [8, 128], strides = [1, 1]} : vector<8x512xf32> to vector<8x128xf32>
    %874 = arith.negf %873 : vector<8x128xf32>
    %875 = math.exp %874 : vector<8x128xf32>
    %cst_150 = arith.constant 1.000000e+00 : f32
    %876 = vector.broadcast %cst_150 : f32 to vector<8x128xf32>
    %877 = arith.addf %876, %875 : vector<8x128xf32>
    %878 = arith.divf %876, %877 : vector<8x128xf32>
    %879 = vector.extract_strided_slice %866 {offsets = [0, 256], sizes = [8, 128], strides = [1, 1]} : vector<8x512xf32> to vector<8x128xf32>
    %880 = math.tanh %879 : vector<8x128xf32>
    %881 = vector.extract_strided_slice %866 {offsets = [0, 384], sizes = [8, 128], strides = [1, 1]} : vector<8x512xf32> to vector<8x128xf32>
    %882 = arith.negf %881 : vector<8x128xf32>
    %883 = math.exp %882 : vector<8x128xf32>
    %cst_151 = arith.constant 1.000000e+00 : f32
    %884 = vector.broadcast %cst_151 : f32 to vector<8x128xf32>
    %885 = arith.addf %884, %883 : vector<8x128xf32>
    %886 = arith.divf %884, %885 : vector<8x128xf32>
    %887 = arith.mulf %878, %861 : vector<8x128xf32>
    %888 = arith.mulf %872, %880 : vector<8x128xf32>
    %889 = arith.addf %887, %888 : vector<8x128xf32>
    %890 = math.tanh %889 : vector<8x128xf32>
    %891 = arith.mulf %886, %890 : vector<8x128xf32>
    %892 = vector.extract_strided_slice %469 {offsets = [120, 0], sizes = [8, 512], strides = [1, 1]} : vector<128x512xf32> to vector<8x512xf32>
    %cst_152 = arith.constant dense<0.000000e+00> : vector<8x512xf32>
    %893 = tpu.matmul %891, %465, %cst_152 {dimension_numbers = #tpu.dot_dimension_numbers<[1], [0], [0], [1], [0, 0, 1, 1], [], []>} : vector<8x128xf32>, vector<128x512xf32>, vector<8x512xf32> -> vector<8x512xf32>
    %894 = arith.addf %892, %893 : vector<8x512xf32>
    %895 = vector.extract_strided_slice %894 {offsets = [0, 0], sizes = [8, 128], strides = [1, 1]} : vector<8x512xf32> to vector<8x128xf32>
    %896 = arith.negf %895 : vector<8x128xf32>
    %897 = math.exp %896 : vector<8x128xf32>
    %cst_153 = arith.constant 1.000000e+00 : f32
    %898 = vector.broadcast %cst_153 : f32 to vector<8x128xf32>
    %899 = arith.addf %898, %897 : vector<8x128xf32>
    %900 = arith.divf %898, %899 : vector<8x128xf32>
    %901 = vector.extract_strided_slice %894 {offsets = [0, 128], sizes = [8, 128], strides = [1, 1]} : vector<8x512xf32> to vector<8x128xf32>
    %902 = arith.negf %901 : vector<8x128xf32>
    %903 = math.exp %902 : vector<8x128xf32>
    %cst_154 = arith.constant 1.000000e+00 : f32
    %904 = vector.broadcast %cst_154 : f32 to vector<8x128xf32>
    %905 = arith.addf %904, %903 : vector<8x128xf32>
    %906 = arith.divf %904, %905 : vector<8x128xf32>
    %907 = vector.extract_strided_slice %894 {offsets = [0, 256], sizes = [8, 128], strides = [1, 1]} : vector<8x512xf32> to vector<8x128xf32>
    %908 = math.tanh %907 : vector<8x128xf32>
    %909 = vector.extract_strided_slice %894 {offsets = [0, 384], sizes = [8, 128], strides = [1, 1]} : vector<8x512xf32> to vector<8x128xf32>
    %910 = arith.negf %909 : vector<8x128xf32>
    %911 = math.exp %910 : vector<8x128xf32>
    %cst_155 = arith.constant 1.000000e+00 : f32
    %912 = vector.broadcast %cst_155 : f32 to vector<8x128xf32>
    %913 = arith.addf %912, %911 : vector<8x128xf32>
    %914 = arith.divf %912, %913 : vector<8x128xf32>
    %915 = arith.mulf %906, %889 : vector<8x128xf32>
    %916 = arith.mulf %900, %908 : vector<8x128xf32>
    %917 = arith.addf %915, %916 : vector<8x128xf32>
    %918 = math.tanh %917 : vector<8x128xf32>
    %919 = arith.mulf %914, %918 : vector<8x128xf32>
    %c0_156 = arith.constant 0 : index
    %c0_157 = arith.constant 0 : index
    %920 = vector.load %arg14[%c0_156, %c0_157] : memref<8x128xf32, #tpu.memory_space<vmem>>, vector<8x128xf32>
    tpu.vector_store %arg14[%c0_156, %c0_157], %919 {strides = array<i32>} : memref<8x128xf32, #tpu.memory_space<vmem>>, vector<8x128xf32>,
    %c0_158 = arith.constant 0 : index
    %c0_159 = arith.constant 0 : index
    %921 = vector.load %arg15[%c0_158, %c0_159] : memref<8x128xf32, #tpu.memory_space<vmem>>, vector<8x128xf32>
    tpu.vector_store %arg15[%c0_158, %c0_159], %917 {strides = array<i32>} : memref<8x128xf32, #tpu.memory_space<vmem>>, vector<8x128xf32>,
    %c0_i32_160 = arith.constant 0 : i32
    %922 = arith.cmpi eq, %arg1, %c0_i32_160 : i32
    %923 = arith.extui %922 : i1 to i32
    %c0_i32_161 = arith.constant 0 : i32
    %924 = arith.cmpi ne, %923, %c0_i32_161 : i32
    scf.if %924 {
      %c0_162 = arith.constant 0 : index
      %c0_163 = arith.constant 0 : index
      %925 = vector.load %arg9[%c0_162, %c0_163] : memref<128x8xf32, #tpu.memory_space<vmem>>, vector<128x8xf32>
      %cst_164 = arith.constant dense<0.000000e+00> : vector<8x8xf32>
      %926 = tpu.matmul %919, %925, %cst_164 {dimension_numbers = #tpu.dot_dimension_numbers<[1], [0], [0], [1], [0, 0, 1, 1], [], []>} : vector<8x128xf32>, vector<128x8xf32>, vector<8x8xf32> -> vector<8x8xf32>
      %c0_165 = arith.constant 0 : index
      %c0_166 = arith.constant 0 : index
      %927 = vector.load %arg10[%c0_165, %c0_166] : memref<1x8xf32, #tpu.memory_space<vmem>>, vector<1x8xf32>
      %928 = vector.broadcast %927 : vector<1x8xf32> to vector<8x8xf32>
      %929 = arith.addf %926, %928 : vector<8x8xf32>
      %cst_167 = arith.constant 2.000000e+00 : f32
      %930 = vector.broadcast %cst_167 : f32 to vector<8x8xf32>
      %931 = arith.mulf %930, %929 : vector<8x8xf32>
      %932 = math.tanh %931 : vector<8x8xf32>
      %cst_168 = arith.constant 1.000000e+00 : f32
      %933 = vector.broadcast %cst_168 : f32 to vector<8x8xf32>
      %934 = arith.addf %932, %933 : vector<8x8xf32>
      %cst_169 = arith.constant 5.000000e-01 : f32
      %935 = vector.broadcast %cst_169 : f32 to vector<8x8xf32>
      %936 = arith.mulf %934, %935 : vector<8x8xf32>
      %c0_170 = arith.constant 0 : index
      %c0_171 = arith.constant 0 : index
      %937 = vector.load %arg11[%c0_170, %c0_171] : memref<8x8xf32, #tpu.memory_space<vmem>>, vector<8x8xf32>
      tpu.vector_store %arg11[%c0_170, %c0_171], %936 {strides = array<i32>} : memref<8x8xf32, #tpu.memory_space<vmem>>, vector<8x8xf32>,
    } else {
    }
    return
  }
  func.func @transform_0(%arg0: i32, %arg1: i32) -> (i32, i32, i32) {
    %c0_i32 = arith.constant 0 : i32
    %c0_i32_0 = arith.constant 0 : i32
    return %arg1, %arg0, %c0_i32 : i32, i32, i32
  }
  func.func @transform_1(%arg0: i32, %arg1: i32) -> (i32, i32) {
    %c0_i32 = arith.constant 0 : i32
    %c0_i32_0 = arith.constant 0 : i32
    %c0_i32_1 = arith.constant 0 : i32
    return %c0_i32, %c0_i32_0 : i32, i32
  }
  func.func @transform_2(%arg0: i32, %arg1: i32) -> (i32, i32) {
    %c0_i32 = arith.constant 0 : i32
    %c0_i32_0 = arith.constant 0 : i32
    %c0_i32_1 = arith.constant 0 : i32
    return %c0_i32, %c0_i32_0 : i32, i32
  }
  func.func @transform_3(%arg0: i32, %arg1: i32) -> (i32, i32) {
    %c0_i32 = arith.constant 0 : i32
    %c0_i32_0 = arith.constant 0 : i32
    %c0_i32_1 = arith.constant 0 : i32
    return %c0_i32, %c0_i32_0 : i32, i32
  }
  func.func @transform_4(%arg0: i32, %arg1: i32) -> (i32, i32) {
    %c0_i32 = arith.constant 0 : i32
    %c0_i32_0 = arith.constant 0 : i32
    %c0_i32_1 = arith.constant 0 : i32
    return %c0_i32, %c0_i32_0 : i32, i32
  }
  func.func @transform_5(%arg0: i32, %arg1: i32) -> (i32, i32) {
    %c0_i32 = arith.constant 0 : i32
    %c0_i32_0 = arith.constant 0 : i32
    %c0_i32_1 = arith.constant 0 : i32
    return %c0_i32, %c0_i32_0 : i32, i32
  }
  func.func @transform_6(%arg0: i32, %arg1: i32) -> (i32, i32) {
    %c0_i32 = arith.constant 0 : i32
    %c0_i32_0 = arith.constant 0 : i32
    %c0_i32_1 = arith.constant 0 : i32
    return %c0_i32, %c0_i32_0 : i32, i32
  }
  func.func @transform_7(%arg0: i32, %arg1: i32) -> (i32, i32) {
    %c0_i32 = arith.constant 0 : i32
    %c0_i32_0 = arith.constant 0 : i32
    %c0_i32_1 = arith.constant 0 : i32
    return %c0_i32, %c0_i32_0 : i32, i32
  }
  func.func @transform_8(%arg0: i32, %arg1: i32) -> (i32, i32) {
    %c0_i32 = arith.constant 0 : i32
    %c0_i32_0 = arith.constant 0 : i32
    %c0_i32_1 = arith.constant 0 : i32
    return %c0_i32, %c0_i32_0 : i32, i32
  }
  func.func @transform_9(%arg0: i32, %arg1: i32) -> (i32, i32) {
    %c0_i32 = arith.constant 0 : i32
    %c0_i32_0 = arith.constant 0 : i32
    return %arg0, %c0_i32 : i32, i32
  }
}

</mosaic_0001>

<llo_original>
// kernel: _forward_impl.1
$region0: #{_forward_impl.1}
  #allocation0 [shape = 'u32[]', space=smem, size = 0x4, offset = 0x4, fixed_abs, tag = 'smem constant byte address 0x4 - core index']
  #allocation1 [shape = 'u32[72,128]{1,0:T(1,128)}', space=vmem, size = 0x9000, scoped, tag = 'internal scratch']
  #allocation2 [shape = 'f32[8,128]{1,0:T(8,128)}', space=vmem, size = 0x1000, scoped, tag = 'scratch operand']
  #allocation3 [shape = 'f32[8,128]{1,0:T(8,128)}', space=vmem, size = 0x1000, scoped, tag = 'scratch operand']
  #allocation4 [shape = 'f32[8,128]{1,0:T(8,128)}', space=vmem, size = 0x1000, scoped, tag = 'scratch operand']
  #allocation5 [shape = 'f32[8,128]{1,0:T(8,128)}', space=vmem, size = 0x1000, scoped, tag = 'scratch operand']
  %s0 = inlined_call_operand.vmem [shape: f32[16,8,16], index: 0, kind: input, shape index: {}]
  %s1 = inlined_call_operand.vmem [shape: f32[16,512], index: 1, kind: input, shape index: {}]
  %s2 = inlined_call_operand.hbm [shape: f32[128,512], index: 2, kind: input, shape index: {}]
  %s3 = inlined_call_operand.vmem [shape: f32[1,512], index: 3, kind: input, shape index: {}]
  %s4 = inlined_call_operand.hbm [shape: f32[128,512], index: 4, kind: input, shape index: {}]
  %s5 = inlined_call_operand.hbm [shape: f32[128,512], index: 5, kind: input, shape index: {}]
  %s6 = inlined_call_operand.vmem [shape: f32[1,512], index: 6, kind: input, shape index: {}]
  %s7 = inlined_call_operand.vmem [shape: f32[128,8], index: 7, kind: input, shape index: {}]
  %s8 = inlined_call_operand.vmem [shape: f32[1,8], index: 8, kind: input, shape index: {}]
  %s9 = inlined_call_operand.vmem [shape: f32[8,8], index: 9, kind: output, shape index: {}]
  %s10 = sld [smem:[#allocation0]]
  $region66: #{_forward_impl.1} parent=0
    _
  %s12 = ssub.s32 1, %s10
  %s13 = scalar_select 0, %s12, %s10
  $region1: #{_forward_impl.1} parent=0
    #allocation6 [shape = 'u8[262144]{0}', space=vmem, size = 0x40000, scoped, tag = 'input window, operand 2, single buffered']
    #allocation7 [shape = 's32[1]{0}', space=sflag, size = 0x4, scoped, tag = 'scoped memory for _forward_impl.1']
    #allocation8 [shape = 'u8[262144]{0}', space=vmem, size = 0x40000, scoped, tag = 'input window, operand 4, single buffered']
    #allocation9 [shape = 's32[1]{0}', space=sflag, size = 0x4, scoped, tag = 'scoped memory for _forward_impl.1']
    #allocation10 [shape = 'u8[262144]{0}', space=vmem, size = 0x40000, scoped, tag = 'input window, operand 5, single buffered']
    %14 = vsyncpa [#allocation7], 0
    %15 = vsyncpa [#allocation9], 0
    // Predicated region
    $region2: #{_forward_impl.1} parent=1 // pred_check
      _
    $region3: #{_forward_impl.1} parent=1 // pred_check_branch
      %17 = sbr.rel (0) target = $region5
    $region4: #{_forward_impl.1} parent=1 // pred_region
      _
    $region5: #{_forward_impl.1} parent=1 // pred_fallthru
      _
    // Predicated region
    $region6: #{_forward_impl.1} parent=1 // pred_check
      _
    $region7: #{_forward_impl.1} parent=1 // pred_check_branch
      %19 = sbr.rel (0) target = $region9
    $region8: #{_forward_impl.1} parent=1 // pred_region
      _
    $region9: #{_forward_impl.1} parent=1 // pred_fallthru
      _
    // Predicated region
    $region10: #{_forward_impl.1} parent=1 // pred_check
      _
    $region11: #{_forward_impl.1} parent=1 // pred_check_branch
      %21 = sbr.rel (0) target = $region13
    $region12: #{_forward_impl.1} parent=1 // pred_region
      %23 = vsyncadd [#allocation7], 0
      %s24 = sshll.u32 %s2, 4
      %s25 = int_to_ptr.hbm [resolvable:$true] %s24
      %s26 = sshll.u32 [#allocation6], 4
      %s27 = int_to_ptr.vmem [resolvable:$true] %s26
      %32 = dma.hbm_to_vmem [thread:$0]  %s25, 8192, %s27, [#allocation7], 512, 512, 32
    $region13: #{_forward_impl.1} parent=1 // pred_fallthru
      _
    // Predicated region
    $region14: #{_forward_impl.1} parent=1 // pred_check
      _
    $region15: #{_forward_impl.1} parent=1 // pred_check_branch
      %34 = sbr.rel (0) target = $region17
    $region16: #{_forward_impl.1} parent=1 // pred_region
      _
    $region17: #{_forward_impl.1} parent=1 // pred_fallthru
      _
    // Predicated region
    $region18: #{_forward_impl.1} parent=1 // pred_check
      _
    $region19: #{_forward_impl.1} parent=1 // pred_check_branch
      %36 = sbr.rel (0) target = $region21
    $region20: #{_forward_impl.1} parent=1 // pred_region
      %38 = vsyncadd [#allocation9], 0
      %s39 = sshll.u32 %s4, 4
      %s40 = int_to_ptr.hbm [resolvable:$true] %s39
      %s41 = sshll.u32 [#allocation8], 4
      %s42 = int_to_ptr.vmem [resolvable:$true] %s41
      %47 = dma.hbm_to_vmem [thread:$0]  %s40, 8192, %s42, [#allocation9], 512, 512, 32
    $region21: #{_forward_impl.1} parent=1 // pred_fallthru
      _
    // Predicated region
    $region22: #{_forward_impl.1} parent=1 // pred_check
      _
    $region23: #{_forward_impl.1} parent=1 // pred_check_branch
      %49 = sbr.rel (0) target = $region25
    $region24: #{_forward_impl.1} parent=1 // pred_region
      %51 = vsyncadd [#allocation9], 0
      %s52 = sshll.u32 %s5, 4
      %s53 = int_to_ptr.hbm [resolvable:$true] %s52
      %s54 = sshll.u32 [#allocation10], 4
      %s55 = int_to_ptr.vmem [resolvable:$true] %s54
      %60 = dma.hbm_to_vmem [thread:$0]  %s53, 8192, %s55, [#allocation9], 512, 512, 32
    $region25: #{_forward_impl.1} parent=1 // pred_fallthru
      _
    // Predicated region
    $region26: #{_forward_impl.1} parent=1 // pred_check
      _
    $region27: #{_forward_impl.1} parent=1 // pred_check_branch
      %62 = sbr.rel (0) target = $region29
    $region28: #{_forward_impl.1} parent=1 // pred_region
      _
    $region29: #{_forward_impl.1} parent=1 // pred_fallthru
      _
    // Predicated region
    $region30: #{_forward_impl.1} parent=1 // pred_check
      _
    $region31: #{_forward_impl.1} parent=1 // pred_check_branch
      %64 = sbr.rel (0) target = $region33
    $region32: #{_forward_impl.1} parent=1 // pred_region
      _
    $region33: #{_forward_impl.1} parent=1 // pred_fallthru
      _
    // Predicated region
    $region34: #{_forward_impl.1} parent=1 // pred_check
      _
    $region35: #{_forward_impl.1} parent=1 // pred_check_branch
      %66 = sbr.rel (0) target = $region37
    $region36: #{_forward_impl.1} parent=1 // pred_region
      _
    $region37: #{_forward_impl.1} parent=1 // pred_fallthru
      _
    // Predicated region
    $region38: #{_forward_impl.1} parent=1 // pred_check
      _
    $region39: #{_forward_impl.1} parent=1 // pred_check_branch
      %68 = sbr.rel (0) target = $region41
    $region40: #{_forward_impl.1} parent=1 // pred_region
      %70 = dma.done [#allocation7], 8192
    $region41: #{_forward_impl.1} parent=1 // pred_fallthru
      _
    // Predicated region
    $region42: #{_forward_impl.1} parent=1 // pred_check
      _
    $region43: #{_forward_impl.1} parent=1 // pred_check_branch
      %72 = sbr.rel (0) target = $region45
    $region44: #{_forward_impl.1} parent=1 // pred_region
      %74 = dma.done [#allocation9], 8192
    $region45: #{_forward_impl.1} parent=1 // pred_fallthru
      _
    // Predicated region
    $region46: #{_forward_impl.1} parent=1 // pred_check
      _
    $region47: #{_forward_impl.1} parent=1 // pred_check_branch
      %76 = sbr.rel (0) target = $region49
    $region48: #{_forward_impl.1} parent=1 // pred_region
      %78 = dma.done [#allocation9], 8192
    $region49: #{_forward_impl.1} parent=1 // pred_fallthru
      _
    %p79 = scmp.eq.s32.totalorder 0, 0
    // Predicated region
    $region50: #{_forward_impl.1} parent=1 // pred_check
      %p80 = pneg %p79
    $region51: #{_forward_impl.1} parent=1 // pred_check_branch
      %82 = sbr.rel (%p80) target = $region53
    $region52: #{_forward_impl.1} parent=1 // pred_region
      %83 = vst [vmem:[#allocation2] sm:$0xff] 0.0
      %84 = vst [vmem:[#allocation3] sm:$0xff] 0.0
      %85 = vst [vmem:[#allocation4] sm:$0xff] 0.0
      %86 = vst [vmem:[#allocation5] sm:$0xff] 0.0
    $region53: #{_forward_impl.1} parent=1 // pred_fallthru
      _
    %v87 = vld [vmem:[%s0] sm:$0xff]
    %v88 = vld [vmem:[%s0 + $0x8] sm:$0xff]
    %v89 = vld [vmem:[%s0 + $0x10] sm:$0xff]
    %v90 = vld [vmem:[%s0 + $0x18] sm:$0xff]
    %v91 = vld [vmem:[%s0 + $0x20] sm:$0xff]
    %v92 = vld [vmem:[%s0 + $0x28] sm:$0xff]
    %v93 = vld [vmem:[%s0 + $0x30] sm:$0xff]
    %v94 = vld [vmem:[%s0 + $0x38] sm:$0xff]
    %v95 = vld [vmem:[%s0 + $0x40] sm:$0xff]
    %v96 = vld [vmem:[%s0 + $0x48] sm:$0xff]
    %v97 = vld [vmem:[%s0 + $0x50] sm:$0xff]
    %v98 = vld [vmem:[%s0 + $0x58] sm:$0xff]
    %v99 = vld [vmem:[%s0 + $0x60] sm:$0xff]
    %v100 = vld [vmem:[%s0 + $0x68] sm:$0xff]
    %v101 = vld [vmem:[%s0 + $0x70] sm:$0xff]
    %v102 = vld [vmem:[%s0 + $0x78] sm:$0xff]
    %v103 = vld [vmem:[%s1] sm:$0xff]
    %v104 = vld [vmem:[%s1 + $0x8] sm:$0xff]
    %v105 = vld [vmem:[%s1 + $0x10] sm:$0xff]
    %v106 = vld [vmem:[%s1 + $0x18] sm:$0xff]
    %v107 = vld [vmem:[%s1 + $0x20] sm:$0xff]
    %v108 = vld [vmem:[%s1 + $0x28] sm:$0xff]
    %v109 = vld [vmem:[%s1 + $0x30] sm:$0xff]
    %v110 = vld [vmem:[%s1 + $0x38] sm:$0xff]
    %v111 = vld [vmem:[#allocation6] sm:$0xff]
    %v112 = vld [vmem:[#allocation6 + $0x8] sm:$0xff]
    %v113 = vld [vmem:[#allocation6 + $0x10] sm:$0xff]
    %v114 = vld [vmem:[#allocation6 + $0x18] sm:$0xff]
    %v115 = vld [vmem:[#allocation6 + $0x20] sm:$0xff]
    %v116 = vld [vmem:[#allocation6 + $0x28] sm:$0xff]
    %v117 = vld [vmem:[#allocation6 + $0x30] sm:$0xff]
    %v118 = vld [vmem:[#allocation6 + $0x38] sm:$0xff]
    %v119 = vld [vmem:[#allocation6 + $0x40] sm:$0xff]
    %v120 = vld [vmem:[#allocation6 + $0x48] sm:$0xff]
    %v121 = vld [vmem:[#allocation6 + $0x50] sm:$0xff]
    %v122 = vld [vmem:[#allocation6 + $0x58] sm:$0xff]
    %v123 = vld [vmem:[#allocation6 + $0x60] sm:$0xff]
    %v124 = vld [vmem:[#allocation6 + $0x68] sm:$0xff]
    %v125 = vld [vmem:[#allocation6 + $0x70] sm:$0xff]
    %v126 = vld [vmem:[#allocation6 + $0x78] sm:$0xff]
    %v127 = vld [vmem:[#allocation6 + $0x80] sm:$0xff]
    %v128 = vld [vmem:[#allocation6 + $0x88] sm:$0xff]
    %v129 = vld [vmem:[#allocation6 + $0x90] sm:$0xff]
    %v130 = vld [vmem:[#allocation6 + $0x98] sm:$0xff]
    %v131 = vld [vmem:[#allocation6 + $0xa0] sm:$0xff]
    %v132 = vld [vmem:[#allocation6 + $0xa8] sm:$0xff]
    %v133 = vld [vmem:[#allocation6 + $0xb0] sm:$0xff]
    %v134 = vld [vmem:[#allocation6 + $0xb8] sm:$0xff]
    %v135 = vld [vmem:[#allocation6 + $0xc0] sm:$0xff]
    %v136 = vld [vmem:[#allocation6 + $0xc8] sm:$0xff]
    %v137 = vld [vmem:[#allocation6 + $0xd0] sm:$0xff]
    %v138 = vld [vmem:[#allocation6 + $0xd8] sm:$0xff]
    %v139 = vld [vmem:[#allocation6 + $0xe0] sm:$0xff]
    %v140 = vld [vmem:[#allocation6 + $0xe8] sm:$0xff]
    %v141 = vld [vmem:[#allocation6 + $0xf0] sm:$0xff]
    %v142 = vld [vmem:[#allocation6 + $0xf8] sm:$0xff]
    %v143 = vld [vmem:[#allocation6 + $0x100] sm:$0xff]
    %v144 = vld [vmem:[#allocation6 + $0x108] sm:$0xff]
    %v145 = vld [vmem:[#allocation6 + $0x110] sm:$0xff]
    %v146 = vld [vmem:[#allocation6 + $0x118] sm:$0xff]
    %v147 = vld [vmem:[#allocation6 + $0x120] sm:$0xff]
    %v148 = vld [vmem:[#allocation6 + $0x128] sm:$0xff]
    %v149 = vld [vmem:[#allocation6 + $0x130] sm:$0xff]
    %v150 = vld [vmem:[#allocation6 + $0x138] sm:$0xff]
    %v151 = vld [vmem:[#allocation6 + $0x140] sm:$0xff]
    %v152 = vld [vmem:[#allocation6 + $0x148] sm:$0xff]
    %v153 = vld [vmem:[#allocation6 + $0x150] sm:$0xff]
    %v154 = vld [vmem:[#allocation6 + $0x158] sm:$0xff]
    %v155 = vld [vmem:[#allocation6 + $0x160] sm:$0xff]
    %v156 = vld [vmem:[#allocation6 + $0x168] sm:$0xff]
    %v157 = vld [vmem:[#allocation6 + $0x170] sm:$0xff]
    %v158 = vld [vmem:[#allocation6 + $0x178] sm:$0xff]
    %v159 = vld [vmem:[#allocation6 + $0x180] sm:$0xff]
    %v160 = vld [vmem:[#allocation6 + $0x188] sm:$0xff]
    %v161 = vld [vmem:[#allocation6 + $0x190] sm:$0xff]
    %v162 = vld [vmem:[#allocation6 + $0x198] sm:$0xff]
    %v163 = vld [vmem:[#allocation6 + $0x1a0] sm:$0xff]
    %v164 = vld [vmem:[#allocation6 + $0x1a8] sm:$0xff]
    %v165 = vld [vmem:[#allocation6 + $0x1b0] sm:$0xff]
    %v166 = vld [vmem:[#allocation6 + $0x1b8] sm:$0xff]
    %v167 = vld [vmem:[#allocation6 + $0x1c0] sm:$0xff]
    %v168 = vld [vmem:[#allocation6 + $0x1c8] sm:$0xff]
    %v169 = vld [vmem:[#allocation6 + $0x1d0] sm:$0xff]
    %v170 = vld [vmem:[#allocation6 + $0x1d8] sm:$0xff]
    %v171 = vld [vmem:[#allocation6 + $0x1e0] sm:$0xff]
    %v172 = vld [vmem:[#allocation6 + $0x1e8] sm:$0xff]
    %v173 = vld [vmem:[#allocation6 + $0x1f0] sm:$0xff]
    %v174 = vld [vmem:[#allocation6 + $0x1f8] sm:$0xff]
    %v175 = vld [vmem:[%s3] sm:$0xf]
    %v177 = vperm.slane %v175, 0
    %v178 = vperm.slane %v175, 1
    %v179 = vperm.slane %v175, 2
    %v180 = vperm.slane %v175, 3
    %vm185 = vcmask 130048
    %v187 = vsel %vm185, %v87, 0
    %v190 = vsel %vm185, %v88, 0
    %v193 = vsel %vm185, %v89, 0
    %v196 = vsel %vm185, %v90, 0
    %v199 = vsel %vm185, %v91, 0
    %v202 = vsel %vm185, %v92, 0
    %v205 = vsel %vm185, %v93, 0
    %v208 = vsel %vm185, %v94, 0
    %v211 = vsel %vm185, %v95, 0
    %v214 = vsel %vm185, %v96, 0
    %v217 = vsel %vm185, %v97, 0
    %v220 = vsel %vm185, %v98, 0
    %v223 = vsel %vm185, %v99, 0
    %v226 = vsel %vm185, %v100, 0
    %v229 = vsel %vm185, %v101, 0
    %v232 = vsel %vm185, %v102, 0
    %234 = vmatpush.msra.mxu0 0.0
    %235 = vmatpush.msra.mxu0 0.0
    %236 = vmatpush.msra.mxu0 0.0
    %237 = vmatpush.msra.mxu0 0.0
    %238 = vmatpush.msra.mxu0 0.0
    %239 = vmatpush.msra.mxu0 0.0
    %240 = vmatpush.msra.mxu0 0.0
    %241 = vmatpush.msra.mxu0 0.0
    %242 = vmatpush.msra.mxu0 0.0
    %243 = vmatpush.msra.mxu0 0.0
    %244 = vmatpush.msra.mxu0 0.0
    %245 = vmatpush.msra.mxu0 0.0
    %246 = vmatpush.msra.mxu0 0.0
    %247 = vmatpush.msra.mxu0 0.0
    %248 = vmatpush.msra.mxu0 %v107
    %249 = vmatpush.msra.mxu0 %v103
    %250 = vmatmul.f32.gmra.mxu0 %v187
    %v251 = vpop.f32.mrf.mxu0
    %v252 = vadd.f32 %v177, %v251
    %253 = vmatmul.f32.gmra.mxu0 %v190
    %v254 = vpop.f32.mrf.mxu0
    %v255 = vadd.f32 %v177, %v254
    %256 = vmatmul.f32.gmra.mxu0 %v193
    %v257 = vpop.f32.mrf.mxu0
    %v258 = vadd.f32 %v177, %v257
    %259 = vmatmul.f32.gmra.mxu0 %v196
    %v260 = vpop.f32.mrf.mxu0
    %v261 = vadd.f32 %v177, %v260
    %262 = vmatmul.f32.gmra.mxu0 %v199
    %v263 = vpop.f32.mrf.mxu0
    %v264 = vadd.f32 %v177, %v263
    %265 = vmatmul.f32.gmra.mxu0 %v202
    %v266 = vpop.f32.mrf.mxu0
    %v267 = vadd.f32 %v177, %v266
    %268 = vmatmul.f32.gmra.mxu0 %v205
    %v269 = vpop.f32.mrf.mxu0
    %v270 = vadd.f32 %v177, %v269
    %271 = vmatmul.f32.gmra.mxu0 %v208
    %v272 = vpop.f32.mrf.mxu0
    %v273 = vadd.f32 %v177, %v272
    %274 = vmatmul.f32.gmra.mxu0 %v211
    %v275 = vpop.f32.mrf.mxu0
    %v276 = vadd.f32 %v177, %v275
    %277 = vmatmul.f32.gmra.mxu0 %v214
    %v278 = vpop.f32.mrf.mxu0
    %v279 = vadd.f32 %v177, %v278
    %280 = vmatmul.f32.gmra.mxu0 %v217
    %v281 = vpop.f32.mrf.mxu0
    %v282 = vadd.f32 %v177, %v281
    %283 = vmatmul.f32.gmra.mxu0 %v220
    %v284 = vpop.f32.mrf.mxu0
    %v285 = vadd.f32 %v177, %v284
    %286 = vmatmul.f32.gmra.mxu0 %v223
    %v287 = vpop.f32.mrf.mxu0
    %v288 = vadd.f32 %v177, %v287
    %289 = vmatmul.f32.gmra.mxu0 %v226
    %v290 = vpop.f32.mrf.mxu0
    %v291 = vadd.f32 %v177, %v290
    %292 = vmatmul.f32.gmra.mxu0 %v229
    %v293 = vpop.f32.mrf.mxu0
    %v294 = vadd.f32 %v177, %v293
    %295 = vmatmul.f32.gmra.mxu0 %v232
    %v296 = vpop.f32.mrf.mxu0
    %v297 = vadd.f32 %v177, %v296
    %298 = vdwg.mxu0
    %299 = vmatpush.msra.mxu0 0.0
    %300 = vmatpush.msra.mxu0 0.0
    %301 = vmatpush.msra.mxu0 0.0
    %302 = vmatpush.msra.mxu0 0.0
    %303 = vmatpush.msra.mxu0 0.0
    %304 = vmatpush.msra.mxu0 0.0
    %305 = vmatpush.msra.mxu0 0.0
    %306 = vmatpush.msra.mxu0 0.0
    %307 = vmatpush.msra.mxu0 0.0
    %308 = vmatpush.msra.mxu0 0.0
    %309 = vmatpush.msra.mxu0 0.0
    %310 = vmatpush.msra.mxu0 0.0
    %311 = vmatpush.msra.mxu0 0.0
    %312 = vmatpush.msra.mxu0 0.0
    %313 = vmatpush.msra.mxu0 %v108
    %314 = vmatpush.msra.mxu0 %v104
    %315 = vmatmul.f32.gmra.mxu0 %v187
    %v316 = vpop.f32.mrf.mxu0
    %v317 = vadd.f32 %v178, %v316
    %318 = vmatmul.f32.gmra.mxu0 %v190
    %v319 = vpop.f32.mrf.mxu0
    %v320 = vadd.f32 %v178, %v319
    %321 = vmatmul.f32.gmra.mxu0 %v193
    %v322 = vpop.f32.mrf.mxu0
    %v323 = vadd.f32 %v178, %v322
    %324 = vmatmul.f32.gmra.mxu0 %v196
    %v325 = vpop.f32.mrf.mxu0
    %v326 = vadd.f32 %v178, %v325
    %327 = vmatmul.f32.gmra.mxu0 %v199
    %v328 = vpop.f32.mrf.mxu0
    %v329 = vadd.f32 %v178, %v328
    %330 = vmatmul.f32.gmra.mxu0 %v202
    %v331 = vpop.f32.mrf.mxu0
    %v332 = vadd.f32 %v178, %v331
    %333 = vmatmul.f32.gmra.mxu0 %v205
    %v334 = vpop.f32.mrf.mxu0
    %v335 = vadd.f32 %v178, %v334
    %336 = vmatmul.f32.gmra.mxu0 %v208
    %v337 = vpop.f32.mrf.mxu0
    %v338 = vadd.f32 %v178, %v337
    %339 = vmatmul.f32.gmra.mxu0 %v211
    %v340 = vpop.f32.mrf.mxu0
    %v341 = vadd.f32 %v178, %v340
    %342 = vmatmul.f32.gmra.mxu0 %v214
    %v343 = vpop.f32.mrf.mxu0
    %v344 = vadd.f32 %v178, %v343
    %345 = vmatmul.f32.gmra.mxu0 %v217
    %v346 = vpop.f32.mrf.mxu0
    %v347 = vadd.f32 %v178, %v346
    %348 = vmatmul.f32.gmra.mxu0 %v220
    %v349 = vpop.f32.mrf.mxu0
    %v350 = vadd.f32 %v178, %v349
    %351 = vmatmul.f32.gmra.mxu0 %v223
    %v352 = vpop.f32.mrf.mxu0
    %v353 = vadd.f32 %v178, %v352
    %354 = vmatmul.f32.gmra.mxu0 %v226
    %v355 = vpop.f32.mrf.mxu0
    %v356 = vadd.f32 %v178, %v355
    %357 = vmatmul.f32.gmra.mxu0 %v229
    %v358 = vpop.f32.mrf.mxu0
    %v359 = vadd.f32 %v178, %v358
    %360 = vmatmul.f32.gmra.mxu0 %v232
    %v361 = vpop.f32.mrf.mxu0
    %v362 = vadd.f32 %v178, %v361
    %363 = vdwg.mxu0
    %364 = vmatpush.msra.mxu0 0.0
    %365 = vmatpush.msra.mxu0 0.0
    %366 = vmatpush.msra.mxu0 0.0
    %367 = vmatpush.msra.mxu0 0.0
    %368 = vmatpush.msra.mxu0 0.0
    %369 = vmatpush.msra.mxu0 0.0
    %370 = vmatpush.msra.mxu0 0.0
    %371 = vmatpush.msra.mxu0 0.0
    %372 = vmatpush.msra.mxu0 0.0
    %373 = vmatpush.msra.mxu0 0.0
    %374 = vmatpush.msra.mxu0 0.0
    %375 = vmatpush.msra.mxu0 0.0
    %376 = vmatpush.msra.mxu0 0.0
    %377 = vmatpush.msra.mxu0 0.0
    %378 = vmatpush.msra.mxu0 %v109
    %379 = vmatpush.msra.mxu0 %v105
    %380 = vmatmul.f32.gmra.mxu0 %v187
    %v381 = vpop.f32.mrf.mxu0
    %v382 = vadd.f32 %v179, %v381
    %383 = vmatmul.f32.gmra.mxu0 %v190
    %v384 = vpop.f32.mrf.mxu0
    %v385 = vadd.f32 %v179, %v384
    %386 = vmatmul.f32.gmra.mxu0 %v193
    %v387 = vpop.f32.mrf.mxu0
    %v388 = vadd.f32 %v179, %v387
    %389 = vmatmul.f32.gmra.mxu0 %v196
    %v390 = vpop.f32.mrf.mxu0
    %v391 = vadd.f32 %v179, %v390
    %392 = vmatmul.f32.gmra.mxu0 %v199
    %v393 = vpop.f32.mrf.mxu0
    %v394 = vadd.f32 %v179, %v393
    %395 = vmatmul.f32.gmra.mxu0 %v202
    %v396 = vpop.f32.mrf.mxu0
    %v397 = vadd.f32 %v179, %v396
    %398 = vmatmul.f32.gmra.mxu0 %v205
    %v399 = vpop.f32.mrf.mxu0
    %v400 = vadd.f32 %v179, %v399
    %401 = vmatmul.f32.gmra.mxu0 %v208
    %v402 = vpop.f32.mrf.mxu0
    %v403 = vadd.f32 %v179, %v402
    %404 = vmatmul.f32.gmra.mxu0 %v211
    %v405 = vpop.f32.mrf.mxu0
    %v406 = vadd.f32 %v179, %v405
    %407 = vmatmul.f32.gmra.mxu0 %v214
    %v408 = vpop.f32.mrf.mxu0
    %v409 = vadd.f32 %v179, %v408
    %410 = vmatmul.f32.gmra.mxu0 %v217
    %v411 = vpop.f32.mrf.mxu0
    %v412 = vadd.f32 %v179, %v411
    %413 = vmatmul.f32.gmra.mxu0 %v220
    %v414 = vpop.f32.mrf.mxu0
    %v415 = vadd.f32 %v179, %v414
    %416 = vmatmul.f32.gmra.mxu0 %v223
    %v417 = vpop.f32.mrf.mxu0
    %v418 = vadd.f32 %v179, %v417
    %419 = vmatmul.f32.gmra.mxu0 %v226
    %v420 = vpop.f32.mrf.mxu0
    %v421 = vadd.f32 %v179, %v420
    %422 = vmatmul.f32.gmra.mxu0 %v229
    %v423 = vpop.f32.mrf.mxu0
    %v424 = vadd.f32 %v179, %v423
    %425 = vmatmul.f32.gmra.mxu0 %v232
    %v426 = vpop.f32.mrf.mxu0
    %v427 = vadd.f32 %v179, %v426
    %428 = vdwg.mxu0
    %429 = vmatpush.msra.mxu0 0.0
    %430 = vmatpush.msra.mxu0 0.0
    %431 = vmatpush.msra.mxu0 0.0
    %432 = vmatpush.msra.mxu0 0.0
    %433 = vmatpush.msra.mxu0 0.0
    %434 = vmatpush.msra.mxu0 0.0
    %435 = vmatpush.msra.mxu0 0.0
    %436 = vmatpush.msra.mxu0 0.0
    %437 = vmatpush.msra.mxu0 0.0
    %438 = vmatpush.msra.mxu0 0.0
    %439 = vmatpush.msra.mxu0 0.0
    %440 = vmatpush.msra.mxu0 0.0
    %441 = vmatpush.msra.mxu0 0.0
    %442 = vmatpush.msra.mxu0 0.0
    %443 = vmatpush.msra.mxu0 %v110
    %444 = vmatpush.msra.mxu0 %v106
    %445 = vmatmul.f32.gmra.mxu0 %v187
    %v446 = vpop.f32.mrf.mxu0
    %v447 = vadd.f32 %v180, %v446
    %448 = vmatmul.f32.gmra.mxu0 %v190
    %v449 = vpop.f32.mrf.mxu0
    %v450 = vadd.f32 %v180, %v449
    %451 = vmatmul.f32.gmra.mxu0 %v193
    %v452 = vpop.f32.mrf.mxu0
    %v453 = vadd.f32 %v180, %v452
    %454 = vmatmul.f32.gmra.mxu0 %v196
    %v455 = vpop.f32.mrf.mxu0
    %v456 = vadd.f32 %v180, %v455
    %457 = vmatmul.f32.gmra.mxu0 %v199
    %v458 = vpop.f32.mrf.mxu0
    %v459 = vadd.f32 %v180, %v458
    %460 = vmatmul.f32.gmra.mxu0 %v202
    %v461 = vpop.f32.mrf.mxu0
    %v462 = vadd.f32 %v180, %v461
    %463 = vmatmul.f32.gmra.mxu0 %v205
    %v464 = vpop.f32.mrf.mxu0
    %v465 = vadd.f32 %v180, %v464
    %466 = vmatmul.f32.gmra.mxu0 %v208
    %v467 = vpop.f32.mrf.mxu0
    %v468 = vadd.f32 %v180, %v467
    %469 = vmatmul.f32.gmra.mxu0 %v211
    %v470 = vpop.f32.mrf.mxu0
    %v471 = vadd.f32 %v180, %v470
    %472 = vmatmul.f32.gmra.mxu0 %v214
    %v473 = vpop.f32.mrf.mxu0
    %v474 = vadd.f32 %v180, %v473
    %475 = vmatmul.f32.gmra.mxu0 %v217
    %v476 = vpop.f32.mrf.mxu0
    %v477 = vadd.f32 %v180, %v476
    %478 = vmatmul.f32.gmra.mxu0 %v220
    %v479 = vpop.f32.mrf.mxu0
    %v480 = vadd.f32 %v180, %v479
    %481 = vmatmul.f32.gmra.mxu0 %v223
    %v482 = vpop.f32.mrf.mxu0
    %v483 = vadd.f32 %v180, %v482
    %484 = vmatmul.f32.gmra.mxu0 %v226
    %v485 = vpop.f32.mrf.mxu0
    %v486 = vadd.f32 %v180, %v485
    %487 = vmatmul.f32.gmra.mxu0 %v229
    %v488 = vpop.f32.mrf.mxu0
    %v489 = vadd.f32 %v180, %v488
    %490 = vmatmul.f32.gmra.mxu0 %v232
    %v491 = vpop.f32.mrf.mxu0
    %v492 = vadd.f32 %v180, %v491
    %493 = vdwg.mxu0
    %v494 = vld [vmem:[#allocation2] sm:$0xff]
    %v495 = vld [vmem:[#allocation3] sm:$0xff]
    %496 = vmatpush.msra.mxu0 %v171
    %497 = vmatpush.msra.mxu0 %v167
    %498 = vmatpush.msra.mxu0 %v163
    %499 = vmatpush.msra.mxu0 %v159
    %500 = vmatpush.msra.mxu0 %v155
    %501 = vmatpush.msra.mxu0 %v151
    %502 = vmatpush.msra.mxu0 %v147
    %503 = vmatpush.msra.mxu0 %v143
    %504 = vmatpush.msra.mxu0 %v139
    %505 = vmatpush.msra.mxu0 %v135
    %506 = vmatpush.msra.mxu0 %v131
    %507 = vmatpush.msra.mxu0 %v127
    %508 = vmatpush.msra.mxu0 %v123
    %509 = vmatpush.msra.mxu0 %v119
    %510 = vmatpush.msra.mxu0 %v115
    %511 = vmatpush.msra.mxu0 %v111
    %512 = vmatmul.f32.gmra.mxu0 %v494
    %v513 = vpop.f32.mrf.mxu0
    %v514 = vadd.f32 0.0, %v513
    %515 = vdwg.mxu0
    %516 = vmatpush.msra.mxu0 %v172
    %517 = vmatpush.msra.mxu0 %v168
    %518 = vmatpush.msra.mxu0 %v164
    %519 = vmatpush.msra.mxu0 %v160
    %520 = vmatpush.msra.mxu0 %v156
    %521 = vmatpush.msra.mxu0 %v152
    %522 = vmatpush.msra.mxu0 %v148
    %523 = vmatpush.msra.mxu0 %v144
    %524 = vmatpush.msra.mxu0 %v140
    %525 = vmatpush.msra.mxu0 %v136
    %526 = vmatpush.msra.mxu0 %v132
    %527 = vmatpush.msra.mxu0 %v128
    %528 = vmatpush.msra.mxu0 %v124
    %529 = vmatpush.msra.mxu0 %v120
    %530 = vmatpush.msra.mxu0 %v116
    %531 = vmatpush.msra.mxu0 %v112
    %532 = vmatmul.f32.gmra.mxu0 %v494
    %v533 = vpop.f32.mrf.mxu0
    %v534 = vadd.f32 0.0, %v533
    %535 = vdwg.mxu0
    %536 = vmatpush.msra.mxu0 %v173
    %537 = vmatpush.msra.mxu0 %v169
    %538 = vmatpush.msra.mxu0 %v165
    %539 = vmatpush.msra.mxu0 %v161
    %540 = vmatpush.msra.mxu0 %v157
    %541 = vmatpush.msra.mxu0 %v153
    %542 = vmatpush.msra.mxu0 %v149
    %543 = vmatpush.msra.mxu0 %v145
    %544 = vmatpush.msra.mxu0 %v141
    %545 = vmatpush.msra.mxu0 %v137
    %546 = vmatpush.msra.mxu0 %v133
    %547 = vmatpush.msra.mxu0 %v129
    %548 = vmatpush.msra.mxu0 %v125
    %549 = vmatpush.msra.mxu0 %v121
    %550 = vmatpush.msra.mxu0 %v117
    %551 = vmatpush.msra.mxu0 %v113
    %552 = vmatmul.f32.gmra.mxu0 %v494
    %v553 = vpop.f32.mrf.mxu0
    %v554 = vadd.f32 0.0, %v553
    %555 = vdwg.mxu0
    %556 = vmatpush.msra.mxu0 %v174
    %557 = vmatpush.msra.mxu0 %v170
    %558 = vmatpush.msra.mxu0 %v166
    %559 = vmatpush.msra.mxu0 %v162
    %560 = vmatpush.msra.mxu0 %v158
    %561 = vmatpush.msra.mxu0 %v154
    %562 = vmatpush.msra.mxu0 %v150
    %563 = vmatpush.msra.mxu0 %v146
    %564 = vmatpush.msra.mxu0 %v142
    %565 = vmatpush.msra.mxu0 %v138
    %566 = vmatpush.msra.mxu0 %v134
    %567 = vmatpush.msra.mxu0 %v130
    %568 = vmatpush.msra.mxu0 %v126
    %569 = vmatpush.msra.mxu0 %v122
    %570 = vmatpush.msra.mxu0 %v118
    %571 = vmatpush.msra.mxu0 %v114
    %572 = vmatmul.f32.gmra.mxu0 %v494
    %v573 = vpop.f32.mrf.mxu0
    %v574 = vadd.f32 0.0, %v573
    %575 = vdwg.mxu0
    %v576 = vadd.f32 %v252, %v514
    %v577 = vadd.f32 %v317, %v534
    %v578 = vadd.f32 %v382, %v554
    %v579 = vadd.f32 %v447, %v574
    %v580 = vxor.u32 %v576, 2147483648
    %v581 = vmul.f32 %v580, 1.442695
    %v582 = vpow.pop %v581
    %v583 = vadd.f32 %v582, 1.0
    %v584 = vrcp.pop %v583
    %v585 = vmul.f32 %v583, %v584
    %v586 = vsub.f32 1.0, %v585
    %v587 = vmul.f32 %v584, %v586
    %v588 = vadd.f32 %v584, %v587
    %vm589 = vweird.f32 %v583
    %vm590 = vweird.f32 %v584
    %vm591 = vmor %vm589, %vm590
    %v592 = vsel %vm591, %v584, %v588
    %v593 = vand.u32 2147483647, %v583
    %vm594 = vcmp.eq.f32.partialorder %v593, 8.507059e+37
    %v595 = vand.u32 %v583, 2147483648
    %v596 = vor.u32 1.1754944e-38, %v595
    %v597 = vsel %vm594, %v596, %v592
    %v598 = vmul.f32 1.0, %v597
    %v599 = vxor.u32 %v577, 2147483648
    %v600 = vmul.f32 %v599, 1.442695
    %v601 = vpow.pop %v600
    %v602 = vadd.f32 %v601, 1.0
    %v603 = vrcp.pop %v602
    %v604 = vmul.f32 %v602, %v603
    %v605 = vsub.f32 1.0, %v604
    %v606 = vmul.f32 %v603, %v605
    %v607 = vadd.f32 %v603, %v606
    %vm608 = vweird.f32 %v602
    %vm609 = vweird.f32 %v603
    %vm610 = vmor %vm608, %vm609
    %v611 = vsel %vm610, %v603, %v607
    %v612 = vand.u32 2147483647, %v602
    %vm613 = vcmp.eq.f32.partialorder %v612, 8.507059e+37
    %v614 = vand.u32 %v602, 2147483648
    %v615 = vor.u32 1.1754944e-38, %v614
    %v616 = vsel %vm613, %v615, %v611
    %v617 = vmul.f32 1.0, %v616
    %v618 = vtanh.pop %v578
    %v619 = vxor.u32 %v579, 2147483648
    %v620 = vmul.f32 %v619, 1.442695
    %v621 = vpow.pop %v620
    %v622 = vadd.f32 %v621, 1.0
    %v623 = vrcp.pop %v622
    %v624 = vmul.f32 %v622, %v623
    %v625 = vsub.f32 1.0, %v624
    %v626 = vmul.f32 %v623, %v625
    %v627 = vadd.f32 %v623, %v626
    %vm628 = vweird.f32 %v622
    %vm629 = vweird.f32 %v623
    %vm630 = vmor %vm628, %vm629
    %v631 = vsel %vm630, %v623, %v627
    %v632 = vand.u32 2147483647, %v622
    %vm633 = vcmp.eq.f32.partialorder %v632, 8.507059e+37
    %v634 = vand.u32 %v622, 2147483648
    %v635 = vor.u32 1.1754944e-38, %v634
    %v636 = vsel %vm633, %v635, %v631
    %v637 = vmul.f32 1.0, %v636
    %v638 = vmul.f32 %v617, %v495
    %v639 = vmul.f32 %v598, %v618
    %v640 = vadd.f32 %v638, %v639
    %v641 = vtanh.pop %v640
    %v642 = vmul.f32 %v637, %v641
    %643 = vmatpush.msra.mxu0 %v171
    %644 = vmatpush.msra.mxu0 %v167
    %645 = vmatpush.msra.mxu0 %v163
    %646 = vmatpush.msra.mxu0 %v159
    %647 = vmatpush.msra.mxu0 %v155
    %648 = vmatpush.msra.mxu0 %v151
    %649 = vmatpush.msra.mxu0 %v147
    %650 = vmatpush.msra.mxu0 %v143
    %651 = vmatpush.msra.mxu0 %v139
    %652 = vmatpush.msra.mxu0 %v135
    %653 = vmatpush.msra.mxu0 %v131
    %654 = vmatpush.msra.mxu0 %v127
    %655 = vmatpush.msra.mxu0 %v123
    %656 = vmatpush.msra.mxu0 %v119
    %657 = vmatpush.msra.mxu0 %v115
    %658 = vmatpush.msra.mxu0 %v111
    %659 = vmatmul.f32.gmra.mxu0 %v642
    %v660 = vpop.f32.mrf.mxu0
    %v661 = vadd.f32 0.0, %v660
    %662 = vdwg.mxu0
    %663 = vmatpush.msra.mxu0 %v172
    %664 = vmatpush.msra.mxu0 %v168
    %665 = vmatpush.msra.mxu0 %v164
    %666 = vmatpush.msra.mxu0 %v160
    %667 = vmatpush.msra.mxu0 %v156
    %668 = vmatpush.msra.mxu0 %v152
    %669 = vmatpush.msra.mxu0 %v148
    %670 = vmatpush.msra.mxu0 %v144
    %671 = vmatpush.msra.mxu0 %v140
    %672 = vmatpush.msra.mxu0 %v136
    %673 = vmatpush.msra.mxu0 %v132
    %674 = vmatpush.msra.mxu0 %v128
    %675 = vmatpush.msra.mxu0 %v124
    %676 = vmatpush.msra.mxu0 %v120
    %677 = vmatpush.msra.mxu0 %v116
    %678 = vmatpush.msra.mxu0 %v112
    %679 = vmatmul.f32.gmra.mxu0 %v642
    %v680 = vpop.f32.mrf.mxu0
    %v681 = vadd.f32 0.0, %v680
    %682 = vdwg.mxu0
    %683 = vmatpush.msra.mxu0 %v173
    %684 = vmatpush.msra.mxu0 %v169
    %685 = vmatpush.msra.mxu0 %v165
    %686 = vmatpush.msra.mxu0 %v161
    %687 = vmatpush.msra.mxu0 %v157
    %688 = vmatpush.msra.mxu0 %v153
    %689 = vmatpush.msra.mxu0 %v149
    %690 = vmatpush.msra.mxu0 %v145
    %691 = vmatpush.msra.mxu0 %v141
    %692 = vmatpush.msra.mxu0 %v137
    %693 = vmatpush.msra.mxu0 %v133
    %694 = vmatpush.msra.mxu0 %v129
    %695 = vmatpush.msra.mxu0 %v125
    %696 = vmatpush.msra.mxu0 %v121
    %697 = vmatpush.msra.mxu0 %v117
    %698 = vmatpush.msra.mxu0 %v113
    %699 = vmatmul.f32.gmra.mxu0 %v642
    %v700 = vpop.f32.mrf.mxu0
    %v701 = vadd.f32 0.0, %v700
    %702 = vdwg.mxu0
    %703 = vmatpush.msra.mxu0 %v174
    %704 = vmatpush.msra.mxu0 %v170
    %705 = vmatpush.msra.mxu0 %v166
    %706 = vmatpush.msra.mxu0 %v162
    %707 = vmatpush.msra.mxu0 %v158
    %708 = vmatpush.msra.mxu0 %v154
    %709 = vmatpush.msra.mxu0 %v150
    %710 = vmatpush.msra.mxu0 %v146
    %711 = vmatpush.msra.mxu0 %v142
    %712 = vmatpush.msra.mxu0 %v138
    %713 = vmatpush.msra.mxu0 %v134
    %714 = vmatpush.msra.mxu0 %v130
    %715 = vmatpush.msra.mxu0 %v126
    %716 = vmatpush.msra.mxu0 %v122
    %717 = vmatpush.msra.mxu0 %v118
    %718 = vmatpush.msra.mxu0 %v114
    %719 = vmatmul.f32.gmra.mxu0 %v642
    %v720 = vpop.f32.mrf.mxu0
    %v721 = vadd.f32 0.0, %v720
    %722 = vdwg.mxu0
    %v723 = vadd.f32 %v255, %v661
    %v724 = vadd.f32 %v320, %v681
    %v725 = vadd.f32 %v385, %v701
    %v726 = vadd.f32 %v450, %v721
    %v727 = vxor.u32 %v723, 2147483648
    %v728 = vmul.f32 %v727, 1.442695
    %v729 = vpow.pop %v728
    %v730 = vadd.f32 %v729, 1.0
    %v731 = vrcp.pop %v730
    %v732 = vmul.f32 %v730, %v731
    %v733 = vsub.f32 1.0, %v732
    %v734 = vmul.f32 %v731, %v733
    %v735 = vadd.f32 %v731, %v734
    %vm736 = vweird.f32 %v730
    %vm737 = vweird.f32 %v731
    %vm738 = vmor %vm736, %vm737
    %v739 = vsel %vm738, %v731, %v735
    %v740 = vand.u32 2147483647, %v730
    %vm741 = vcmp.eq.f32.partialorder %v740, 8.507059e+37
    %v742 = vand.u32 %v730, 2147483648
    %v743 = vor.u32 1.1754944e-38, %v742
    %v744 = vsel %vm741, %v743, %v739
    %v745 = vmul.f32 1.0, %v744
    %v746 = vxor.u32 %v724, 2147483648
    %v747 = vmul.f32 %v746, 1.442695
    %v748 = vpow.pop %v747
    %v749 = vadd.f32 %v748, 1.0
    %v750 = vrcp.pop %v749
    %v751 = vmul.f32 %v749, %v750
    %v752 = vsub.f32 1.0, %v751
    %v753 = vmul.f32 %v750, %v752
    %v754 = vadd.f32 %v750, %v753
    %vm755 = vweird.f32 %v749
    %vm756 = vweird.f32 %v750
    %vm757 = vmor %vm755, %vm756
    %v758 = vsel %vm757, %v750, %v754
    %v759 = vand.u32 2147483647, %v749
    %vm760 = vcmp.eq.f32.partialorder %v759, 8.507059e+37
    %v761 = vand.u32 %v749, 2147483648
    %v762 = vor.u32 1.1754944e-38, %v761
    %v763 = vsel %vm760, %v762, %v758
    %v764 = vmul.f32 1.0, %v763
    %v765 = vtanh.pop %v725
    %v766 = vxor.u32 %v726, 2147483648
    %v767 = vmul.f32 %v766, 1.442695
    %v768 = vpow.pop %v767
    %v769 = vadd.f32 %v768, 1.0
    %v770 = vrcp.pop %v769
    %v771 = vmul.f32 %v769, %v770
    %v772 = vsub.f32 1.0, %v771
    %v773 = vmul.f32 %v770, %v772
    %v774 = vadd.f32 %v770, %v773
    %vm775 = vweird.f32 %v769
    %vm776 = vweird.f32 %v770
    %vm777 = vmor %vm775, %vm776
    %v778 = vsel %vm777, %v770, %v774
    %v779 = vand.u32 2147483647, %v769
    %vm780 = vcmp.eq.f32.partialorder %v779, 8.507059e+37
    %v781 = vand.u32 %v769, 2147483648
    %v782 = vor.u32 1.1754944e-38, %v781
    %v783 = vsel %vm780, %v782, %v778
    %v784 = vmul.f32 1.0, %v783
    %v785 = vmul.f32 %v764, %v640
    %v786 = vmul.f32 %v745, %v765
    %v787 = vadd.f32 %v785, %v786
    %v788 = vtanh.pop %v787
    %v789 = vmul.f32 %v784, %v788
    %790 = vmatpush.msra.mxu0 %v171
    %791 = vmatpush.msra.mxu0 %v167
    %792 = vmatpush.msra.mxu0 %v163
    %793 = vmatpush.msra.mxu0 %v159
    %794 = vmatpush.msra.mxu0 %v155
    %795 = vmatpush.msra.mxu0 %v151
    %796 = vmatpush.msra.mxu0 %v147
    %797 = vmatpush.msra.mxu0 %v143
    %798 = vmatpush.msra.mxu0 %v139
    %799 = vmatpush.msra.mxu0 %v135
    %800 = vmatpush.msra.mxu0 %v131
    %801 = vmatpush.msra.mxu0 %v127
    %802 = vmatpush.msra.mxu0 %v123
    %803 = vmatpush.msra.mxu0 %v119
    %804 = vmatpush.msra.mxu0 %v115
    %805 = vmatpush.msra.mxu0 %v111
    %806 = vmatmul.f32.gmra.mxu0 %v789
    %v807 = vpop.f32.mrf.mxu0
    %v808 = vadd.f32 0.0, %v807
    %809 = vdwg.mxu0
    %810 = vmatpush.msra.mxu0 %v172
    %811 = vmatpush.msra.mxu0 %v168
    %812 = vmatpush.msra.mxu0 %v164
    %813 = vmatpush.msra.mxu0 %v160
    %814 = vmatpush.msra.mxu0 %v156
    %815 = vmatpush.msra.mxu0 %v152
    %816 = vmatpush.msra.mxu0 %v148
    %817 = vmatpush.msra.mxu0 %v144
    %818 = vmatpush.msra.mxu0 %v140
    %819 = vmatpush.msra.mxu0 %v136
    %820 = vmatpush.msra.mxu0 %v132
    %821 = vmatpush.msra.mxu0 %v128
    %822 = vmatpush.msra.mxu0 %v124
    %823 = vmatpush.msra.mxu0 %v120
    %824 = vmatpush.msra.mxu0 %v116
    %825 = vmatpush.msra.mxu0 %v112
    %826 = vmatmul.f32.gmra.mxu0 %v789
    %v827 = vpop.f32.mrf.mxu0
    %v828 = vadd.f32 0.0, %v827
    %829 = vdwg.mxu0
    %830 = vmatpush.msra.mxu0 %v173
    %831 = vmatpush.msra.mxu0 %v169
    %832 = vmatpush.msra.mxu0 %v165
    %833 = vmatpush.msra.mxu0 %v161
    %834 = vmatpush.msra.mxu0 %v157
    %835 = vmatpush.msra.mxu0 %v153
    %836 = vmatpush.msra.mxu0 %v149
    %837 = vmatpush.msra.mxu0 %v145
    %838 = vmatpush.msra.mxu0 %v141
    %839 = vmatpush.msra.mxu0 %v137
    %840 = vmatpush.msra.mxu0 %v133
    %841 = vmatpush.msra.mxu0 %v129
    %842 = vmatpush.msra.mxu0 %v125
    %843 = vmatpush.msra.mxu0 %v121
    %844 = vmatpush.msra.mxu0 %v117
    %845 = vmatpush.msra.mxu0 %v113
    %846 = vmatmul.f32.gmra.mxu0 %v789
    %v847 = vpop.f32.mrf.mxu0
    %v848 = vadd.f32 0.0, %v847
    %849 = vdwg.mxu0
    %850 = vmatpush.msra.mxu0 %v174
    %851 = vmatpush.msra.mxu0 %v170
    %852 = vmatpush.msra.mxu0 %v166
    %853 = vmatpush.msra.mxu0 %v162
    %854 = vmatpush.msra.mxu0 %v158
    %855 = vmatpush.msra.mxu0 %v154
    %856 = vmatpush.msra.mxu0 %v150
    %857 = vmatpush.msra.mxu0 %v146
    %858 = vmatpush.msra.mxu0 %v142
    %859 = vmatpush.msra.mxu0 %v138
    %860 = vmatpush.msra.mxu0 %v134
    %861 = vmatpush.msra.mxu0 %v130
    %862 = vmatpush.msra.mxu0 %v126
    %863 = vmatpush.msra.mxu0 %v122
    %864 = vmatpush.msra.mxu0 %v118
    %865 = vmatpush.msra.mxu0 %v114
    %866 = vmatmul.f32.gmra.mxu0 %v789
    %v867 = vpop.f32.mrf.mxu0
    %v868 = vadd.f32 0.0, %v867
    %869 = vdwg.mxu0
    %v870 = vadd.f32 %v258, %v808
    %v871 = vadd.f32 %v323, %v828
    %v872 = vadd.f32 %v388, %v848
    %v873 = vadd.f32 %v453, %v868
    %v874 = vxor.u32 %v870, 2147483648
    %v875 = vmul.f32 %v874, 1.442695
    %v876 = vpow.pop %v875
    %v877 = vadd.f32 %v876, 1.0
    %v878 = vrcp.pop %v877
    %v879 = vmul.f32 %v877, %v878
    %v880 = vsub.f32 1.0, %v879
    %v881 = vmul.f32 %v878, %v880
    %v882 = vadd.f32 %v878, %v881
    %vm883 = vweird.f32 %v877
    %vm884 = vweird.f32 %v878
    %vm885 = vmor %vm883, %vm884
    %v886 = vsel %vm885, %v878, %v882
    %v887 = vand.u32 2147483647, %v877
    %vm888 = vcmp.eq.f32.partialorder %v887, 8.507059e+37
    %v889 = vand.u32 %v877, 2147483648
    %v890 = vor.u32 1.1754944e-38, %v889
    %v891 = vsel %vm888, %v890, %v886
    %v892 = vmul.f32 1.0, %v891
    %v893 = vxor.u32 %v871, 2147483648
    %v894 = vmul.f32 %v893, 1.442695
    %v895 = vpow.pop %v894
    %v896 = vadd.f32 %v895, 1.0
    %v897 = vrcp.pop %v896
    %v898 = vmul.f32 %v896, %v897
    %v899 = vsub.f32 1.0, %v898
    %v900 = vmul.f32 %v897, %v899
    %v901 = vadd.f32 %v897, %v900
    %vm902 = vweird.f32 %v896
    %vm903 = vweird.f32 %v897
    %vm904 = vmor %vm902, %vm903
    %v905 = vsel %vm904, %v897, %v901
    %v906 = vand.u32 2147483647, %v896
    %vm907 = vcmp.eq.f32.partialorder %v906, 8.507059e+37
    %v908 = vand.u32 %v896, 2147483648
    %v909 = vor.u32 1.1754944e-38, %v908
    %v910 = vsel %vm907, %v909, %v905
    %v911 = vmul.f32 1.0, %v910
    %v912 = vtanh.pop %v872
    %v913 = vxor.u32 %v873, 2147483648
    %v914 = vmul.f32 %v913, 1.442695
    %v915 = vpow.pop %v914
    %v916 = vadd.f32 %v915, 1.0
    %v917 = vrcp.pop %v916
    %v918 = vmul.f32 %v916, %v917
    %v919 = vsub.f32 1.0, %v918
    %v920 = vmul.f32 %v917, %v919
    %v921 = vadd.f32 %v917, %v920
    %vm922 = vweird.f32 %v916
    %vm923 = vweird.f32 %v917
    %vm924 = vmor %vm922, %vm923
    %v925 = vsel %vm924, %v917, %v921
    %v926 = vand.u32 2147483647, %v916
    %vm927 = vcmp.eq.f32.partialorder %v926, 8.507059e+37
    %v928 = vand.u32 %v916, 2147483648
    %v929 = vor.u32 1.1754944e-38, %v928
    %v930 = vsel %vm927, %v929, %v925
    %v931 = vmul.f32 1.0, %v930
    %v932 = vmul.f32 %v911, %v787
    %v933 = vmul.f32 %v892, %v912
    %v934 = vadd.f32 %v932, %v933
    %v935 = vtanh.pop %v934
    %v936 = vmul.f32 %v931, %v935
    %937 = vmatpush.msra.mxu0 %v171
    %938 = vmatpush.msra.mxu0 %v167
    %939 = vmatpush.msra.mxu0 %v163
    %940 = vmatpush.msra.mxu0 %v159
    %941 = vmatpush.msra.mxu0 %v155
    %942 = vmatpush.msra.mxu0 %v151
    %943 = vmatpush.msra.mxu0 %v147
    %944 = vmatpush.msra.mxu0 %v143
    %945 = vmatpush.msra.mxu0 %v139
    %946 = vmatpush.msra.mxu0 %v135
    %947 = vmatpush.msra.mxu0 %v131
    %948 = vmatpush.msra.mxu0 %v127
    %949 = vmatpush.msra.mxu0 %v123
    %950 = vmatpush.msra.mxu0 %v119
    %951 = vmatpush.msra.mxu0 %v115
    %952 = vmatpush.msra.mxu0 %v111
    %953 = vmatmul.f32.gmra.mxu0 %v936
    %v954 = vpop.f32.mrf.mxu0
    %v955 = vadd.f32 0.0, %v954
    %956 = vdwg.mxu0
    %957 = vmatpush.msra.mxu0 %v172
    %958 = vmatpush.msra.mxu0 %v168
    %959 = vmatpush.msra.mxu0 %v164
    %960 = vmatpush.msra.mxu0 %v160
    %961 = vmatpush.msra.mxu0 %v156
    %962 = vmatpush.msra.mxu0 %v152
    %963 = vmatpush.msra.mxu0 %v148
    %964 = vmatpush.msra.mxu0 %v144
    %965 = vmatpush.msra.mxu0 %v140
    %966 = vmatpush.msra.mxu0 %v136
    %967 = vmatpush.msra.mxu0 %v132
    %968 = vmatpush.msra.mxu0 %v128
    %969 = vmatpush.msra.mxu0 %v124
    %970 = vmatpush.msra.mxu0 %v120
    %971 = vmatpush.msra.mxu0 %v116
    %972 = vmatpush.msra.mxu0 %v112
    %973 = vmatmul.f32.gmra.mxu0 %v936
    %v974 = vpop.f32.mrf.mxu0
    %v975 = vadd.f32 0.0, %v974
    %976 = vdwg.mxu0
    %977 = vmatpush.msra.mxu0 %v173
    %978 = vmatpush.msra.mxu0 %v169
    %979 = vmatpush.msra.mxu0 %v165
    %980 = vmatpush.msra.mxu0 %v161
    %981 = vmatpush.msra.mxu0 %v157
    %982 = vmatpush.msra.mxu0 %v153
    %983 = vmatpush.msra.mxu0 %v149
    %984 = vmatpush.msra.mxu0 %v145
    %985 = vmatpush.msra.mxu0 %v141
    %986 = vmatpush.msra.mxu0 %v137
    %987 = vmatpush.msra.mxu0 %v133
    %988 = vmatpush.msra.mxu0 %v129
    %989 = vmatpush.msra.mxu0 %v125
    %990 = vmatpush.msra.mxu0 %v121
    %991 = vmatpush.msra.mxu0 %v117
    %992 = vmatpush.msra.mxu0 %v113
    %993 = vmatmul.f32.gmra.mxu0 %v936
    %v994 = vpop.f32.mrf.mxu0
    %v995 = vadd.f32 0.0, %v994
    %996 = vdwg.mxu0
    %997 = vmatpush.msra.mxu0 %v174
    %998 = vmatpush.msra.mxu0 %v170
    %999 = vmatpush.msra.mxu0 %v166
    %1000 = vmatpush.msra.mxu0 %v162
    %1001 = vmatpush.msra.mxu0 %v158
    %1002 = vmatpush.msra.mxu0 %v154
    %1003 = vmatpush.msra.mxu0 %v150
    %1004 = vmatpush.msra.mxu0 %v146
    %1005 = vmatpush.msra.mxu0 %v142
    %1006 = vmatpush.msra.mxu0 %v138
    %1007 = vmatpush.msra.mxu0 %v134
    %1008 = vmatpush.msra.mxu0 %v130
    %1009 = vmatpush.msra.mxu0 %v126
    %1010 = vmatpush.msra.mxu0 %v122
    %1011 = vmatpush.msra.mxu0 %v118
    %1012 = vmatpush.msra.mxu0 %v114
    %1013 = vmatmul.f32.gmra.mxu0 %v936
    %v1014 = vpop.f32.mrf.mxu0
    %v1015 = vadd.f32 0.0, %v1014
    %1016 = vdwg.mxu0
    %v1017 = vadd.f32 %v261, %v955
    %v1018 = vadd.f32 %v326, %v975
    %v1019 = vadd.f32 %v391, %v995
    %v1020 = vadd.f32 %v456, %v1015
    %v1021 = vxor.u32 %v1017, 2147483648
    %v1022 = vmul.f32 %v1021, 1.442695
    %v1023 = vpow.pop %v1022
    %v1024 = vadd.f32 %v1023, 1.0
    %v1025 = vrcp.pop %v1024
    %v1026 = vmul.f32 %v1024, %v1025
    %v1027 = vsub.f32 1.0, %v1026
    %v1028 = vmul.f32 %v1025, %v1027
    %v1029 = vadd.f32 %v1025, %v1028
    %vm1030 = vweird.f32 %v1024
    %vm1031 = vweird.f32 %v1025
    %vm1032 = vmor %vm1030, %vm1031
    %v1033 = vsel %vm1032, %v1025, %v1029
    %v1034 = vand.u32 2147483647, %v1024
    %vm1035 = vcmp.eq.f32.partialorder %v1034, 8.507059e+37
    %v1036 = vand.u32 %v1024, 2147483648
    %v1037 = vor.u32 1.1754944e-38, %v1036
    %v1038 = vsel %vm1035, %v1037, %v1033
    %v1039 = vmul.f32 1.0, %v1038
    %v1040 = vxor.u32 %v1018, 2147483648
    %v1041 = vmul.f32 %v1040, 1.442695
    %v1042 = vpow.pop %v1041
    %v1043 = vadd.f32 %v1042, 1.0
    %v1044 = vrcp.pop %v1043
    %v1045 = vmul.f32 %v1043, %v1044
    %v1046 = vsub.f32 1.0, %v1045
    %v1047 = vmul.f32 %v1044, %v1046
    %v1048 = vadd.f32 %v1044, %v1047
    %vm1049 = vweird.f32 %v1043
    %vm1050 = vweird.f32 %v1044
    %vm1051 = vmor %vm1049, %vm1050
    %v1052 = vsel %vm1051, %v1044, %v1048
    %v1053 = vand.u32 2147483647, %v1043
    %vm1054 = vcmp.eq.f32.partialorder %v1053, 8.507059e+37
    %v1055 = vand.u32 %v1043, 2147483648
    %v1056 = vor.u32 1.1754944e-38, %v1055
    %v1057 = vsel %vm1054, %v1056, %v1052
    %v1058 = vmul.f32 1.0, %v1057
    %v1059 = vtanh.pop %v1019
    %v1060 = vxor.u32 %v1020, 2147483648
    %v1061 = vmul.f32 %v1060, 1.442695
    %v1062 = vpow.pop %v1061
    %v1063 = vadd.f32 %v1062, 1.0
    %v1064 = vrcp.pop %v1063
    %v1065 = vmul.f32 %v1063, %v1064
    %v1066 = vsub.f32 1.0, %v1065
    %v1067 = vmul.f32 %v1064, %v1066
    %v1068 = vadd.f32 %v1064, %v1067
    %vm1069 = vweird.f32 %v1063
    %vm1070 = vweird.f32 %v1064
    %vm1071 = vmor %vm1069, %vm1070
    %v1072 = vsel %vm1071, %v1064, %v1068
    %v1073 = vand.u32 2147483647, %v1063
    %vm1074 = vcmp.eq.f32.partialorder %v1073, 8.507059e+37
    %v1075 = vand.u32 %v1063, 2147483648
    %v1076 = vor.u32 1.1754944e-38, %v1075
    %v1077 = vsel %vm1074, %v1076, %v1072
    %v1078 = vmul.f32 1.0, %v1077
    %v1079 = vmul.f32 %v1058, %v934
    %v1080 = vmul.f32 %v1039, %v1059
    %v1081 = vadd.f32 %v1079, %v1080
    %v1082 = vtanh.pop %v1081
    %v1083 = vmul.f32 %v1078, %v1082
    %1084 = vmatpush.msra.mxu0 %v171
    %1085 = vmatpush.msra.mxu0 %v167
    %1086 = vmatpush.msra.mxu0 %v163
    %1087 = vmatpush.msra.mxu0 %v159
    %1088 = vmatpush.msra.mxu0 %v155
    %1089 = vmatpush.msra.mxu0 %v151
    %1090 = vmatpush.msra.mxu0 %v147
    %1091 = vmatpush.msra.mxu0 %v143
    %1092 = vmatpush.msra.mxu0 %v139
    %1093 = vmatpush.msra.mxu0 %v135
    %1094 = vmatpush.msra.mxu0 %v131
    %1095 = vmatpush.msra.mxu0 %v127
    %1096 = vmatpush.msra.mxu0 %v123
    %1097 = vmatpush.msra.mxu0 %v119
    %1098 = vmatpush.msra.mxu0 %v115
    %1099 = vmatpush.msra.mxu0 %v111
    %1100 = vmatmul.f32.gmra.mxu0 %v1083
    %v1101 = vpop.f32.mrf.mxu0
    %v1102 = vadd.f32 0.0, %v1101
    %1103 = vdwg.mxu0
    %1104 = vmatpush.msra.mxu0 %v172
    %1105 = vmatpush.msra.mxu0 %v168
    %1106 = vmatpush.msra.mxu0 %v164
    %1107 = vmatpush.msra.mxu0 %v160
    %1108 = vmatpush.msra.mxu0 %v156
    %1109 = vmatpush.msra.mxu0 %v152
    %1110 = vmatpush.msra.mxu0 %v148
    %1111 = vmatpush.msra.mxu0 %v144
    %1112 = vmatpush.msra.mxu0 %v140
    %1113 = vmatpush.msra.mxu0 %v136
    %1114 = vmatpush.msra.mxu0 %v132
    %1115 = vmatpush.msra.mxu0 %v128
    %1116 = vmatpush.msra.mxu0 %v124
    %1117 = vmatpush.msra.mxu0 %v120
    %1118 = vmatpush.msra.mxu0 %v116
    %1119 = vmatpush.msra.mxu0 %v112
    %1120 = vmatmul.f32.gmra.mxu0 %v1083
    %v1121 = vpop.f32.mrf.mxu0
    %v1122 = vadd.f32 0.0, %v1121
    %1123 = vdwg.mxu0
    %1124 = vmatpush.msra.mxu0 %v173
    %1125 = vmatpush.msra.mxu0 %v169
    %1126 = vmatpush.msra.mxu0 %v165
    %1127 = vmatpush.msra.mxu0 %v161
    %1128 = vmatpush.msra.mxu0 %v157
    %1129 = vmatpush.msra.mxu0 %v153
    %1130 = vmatpush.msra.mxu0 %v149
    %1131 = vmatpush.msra.mxu0 %v145
    %1132 = vmatpush.msra.mxu0 %v141
    %1133 = vmatpush.msra.mxu0 %v137
    %1134 = vmatpush.msra.mxu0 %v133
    %1135 = vmatpush.msra.mxu0 %v129
    %1136 = vmatpush.msra.mxu0 %v125
    %1137 = vmatpush.msra.mxu0 %v121
    %1138 = vmatpush.msra.mxu0 %v117
    %1139 = vmatpush.msra.mxu0 %v113
    %1140 = vmatmul.f32.gmra.mxu0 %v1083
    %v1141 = vpop.f32.mrf.mxu0
    %v1142 = vadd.f32 0.0, %v1141
    %1143 = vdwg.mxu0
    %1144 = vmatpush.msra.mxu0 %v174
    %1145 = vmatpush.msra.mxu0 %v170
    %1146 = vmatpush.msra.mxu0 %v166
    %1147 = vmatpush.msra.mxu0 %v162
    %1148 = vmatpush.msra.mxu0 %v158
    %1149 = vmatpush.msra.mxu0 %v154
    %1150 = vmatpush.msra.mxu0 %v150
    %1151 = vmatpush.msra.mxu0 %v146
    %1152 = vmatpush.msra.mxu0 %v142
    %1153 = vmatpush.msra.mxu0 %v138
    %1154 = vmatpush.msra.mxu0 %v134
    %1155 = vmatpush.msra.mxu0 %v130
    %1156 = vmatpush.msra.mxu0 %v126
    %1157 = vmatpush.msra.mxu0 %v122
    %1158 = vmatpush.msra.mxu0 %v118
    %1159 = vmatpush.msra.mxu0 %v114
    %1160 = vmatmul.f32.gmra.mxu0 %v1083
    %v1161 = vpop.f32.mrf.mxu0
    %v1162 = vadd.f32 0.0, %v1161
    %1163 = vdwg.mxu0
    %v1164 = vadd.f32 %v264, %v1102
    %v1165 = vadd.f32 %v329, %v1122
    %v1166 = vadd.f32 %v394, %v1142
    %v1167 = vadd.f32 %v459, %v1162
    %v1168 = vxor.u32 %v1164, 2147483648
    %v1169 = vmul.f32 %v1168, 1.442695
    %v1170 = vpow.pop %v1169
    %v1171 = vadd.f32 %v1170, 1.0
    %v1172 = vrcp.pop %v1171
    %v1173 = vmul.f32 %v1171, %v1172
    %v1174 = vsub.f32 1.0, %v1173
    %v1175 = vmul.f32 %v1172, %v1174
    %v1176 = vadd.f32 %v1172, %v1175
    %vm1177 = vweird.f32 %v1171
    %vm1178 = vweird.f32 %v1172
    %vm1179 = vmor %vm1177, %vm1178
    %v1180 = vsel %vm1179, %v1172, %v1176
    %v1181 = vand.u32 2147483647, %v1171
    %vm1182 = vcmp.eq.f32.partialorder %v1181, 8.507059e+37
    %v1183 = vand.u32 %v1171, 2147483648
    %v1184 = vor.u32 1.1754944e-38, %v1183
    %v1185 = vsel %vm1182, %v1184, %v1180
    %v1186 = vmul.f32 1.0, %v1185
    %v1187 = vxor.u32 %v1165, 2147483648
    %v1188 = vmul.f32 %v1187, 1.442695
    %v1189 = vpow.pop %v1188
    %v1190 = vadd.f32 %v1189, 1.0
    %v1191 = vrcp.pop %v1190
    %v1192 = vmul.f32 %v1190, %v1191
    %v1193 = vsub.f32 1.0, %v1192
    %v1194 = vmul.f32 %v1191, %v1193
    %v1195 = vadd.f32 %v1191, %v1194
    %vm1196 = vweird.f32 %v1190
    %vm1197 = vweird.f32 %v1191
    %vm1198 = vmor %vm1196, %vm1197
    %v1199 = vsel %vm1198, %v1191, %v1195
    %v1200 = vand.u32 2147483647, %v1190
    %vm1201 = vcmp.eq.f32.partialorder %v1200, 8.507059e+37
    %v1202 = vand.u32 %v1190, 2147483648
    %v1203 = vor.u32 1.1754944e-38, %v1202
    %v1204 = vsel %vm1201, %v1203, %v1199
    %v1205 = vmul.f32 1.0, %v1204
    %v1206 = vtanh.pop %v1166
    %v1207 = vxor.u32 %v1167, 2147483648
    %v1208 = vmul.f32 %v1207, 1.442695
    %v1209 = vpow.pop %v1208
    %v1210 = vadd.f32 %v1209, 1.0
    %v1211 = vrcp.pop %v1210
    %v1212 = vmul.f32 %v1210, %v1211
    %v1213 = vsub.f32 1.0, %v1212
    %v1214 = vmul.f32 %v1211, %v1213
    %v1215 = vadd.f32 %v1211, %v1214
    %vm1216 = vweird.f32 %v1210
    %vm1217 = vweird.f32 %v1211
    %vm1218 = vmor %vm1216, %vm1217
    %v1219 = vsel %vm1218, %v1211, %v1215
    %v1220 = vand.u32 2147483647, %v1210
    %vm1221 = vcmp.eq.f32.partialorder %v1220, 8.507059e+37
    %v1222 = vand.u32 %v1210, 2147483648
    %v1223 = vor.u32 1.1754944e-38, %v1222
    %v1224 = vsel %vm1221, %v1223, %v1219
    %v1225 = vmul.f32 1.0, %v1224
    %v1226 = vmul.f32 %v1205, %v1081
    %v1227 = vmul.f32 %v1186, %v1206
    %v1228 = vadd.f32 %v1226, %v1227
    %v1229 = vtanh.pop %v1228
    %v1230 = vmul.f32 %v1225, %v1229
    %1231 = vmatpush.msra.mxu0 %v171
    %1232 = vmatpush.msra.mxu0 %v167
    %1233 = vmatpush.msra.mxu0 %v163
    %1234 = vmatpush.msra.mxu0 %v159
    %1235 = vmatpush.msra.mxu0 %v155
    %1236 = vmatpush.msra.mxu0 %v151
    %1237 = vmatpush.msra.mxu0 %v147
    %1238 = vmatpush.msra.mxu0 %v143
    %1239 = vmatpush.msra.mxu0 %v139
    %1240 = vmatpush.msra.mxu0 %v135
    %1241 = vmatpush.msra.mxu0 %v131
    %1242 = vmatpush.msra.mxu0 %v127
    %1243 = vmatpush.msra.mxu0 %v123
    %1244 = vmatpush.msra.mxu0 %v119
    %1245 = vmatpush.msra.mxu0 %v115
    %1246 = vmatpush.msra.mxu0 %v111
    %1247 = vmatmul.f32.gmra.mxu0 %v1230
    %v1248 = vpop.f32.mrf.mxu0
    %v1249 = vadd.f32 0.0, %v1248
    %1250 = vdwg.mxu0
    %1251 = vmatpush.msra.mxu0 %v172
    %1252 = vmatpush.msra.mxu0 %v168
    %1253 = vmatpush.msra.mxu0 %v164
    %1254 = vmatpush.msra.mxu0 %v160
    %1255 = vmatpush.msra.mxu0 %v156
    %1256 = vmatpush.msra.mxu0 %v152
    %1257 = vmatpush.msra.mxu0 %v148
    %1258 = vmatpush.msra.mxu0 %v144
    %1259 = vmatpush.msra.mxu0 %v140
    %1260 = vmatpush.msra.mxu0 %v136
    %1261 = vmatpush.msra.mxu0 %v132
    %1262 = vmatpush.msra.mxu0 %v128
    %1263 = vmatpush.msra.mxu0 %v124
    %1264 = vmatpush.msra.mxu0 %v120
    %1265 = vmatpush.msra.mxu0 %v116
    %1266 = vmatpush.msra.mxu0 %v112
    %1267 = vmatmul.f32.gmra.mxu0 %v1230
    %v1268 = vpop.f32.mrf.mxu0
    %v1269 = vadd.f32 0.0, %v1268
    %1270 = vdwg.mxu0
    %1271 = vmatpush.msra.mxu0 %v173
    %1272 = vmatpush.msra.mxu0 %v169
    %1273 = vmatpush.msra.mxu0 %v165
    %1274 = vmatpush.msra.mxu0 %v161
    %1275 = vmatpush.msra.mxu0 %v157
    %1276 = vmatpush.msra.mxu0 %v153
    %1277 = vmatpush.msra.mxu0 %v149
    %1278 = vmatpush.msra.mxu0 %v145
    %1279 = vmatpush.msra.mxu0 %v141
    %1280 = vmatpush.msra.mxu0 %v137
    %1281 = vmatpush.msra.mxu0 %v133
    %1282 = vmatpush.msra.mxu0 %v129
    %1283 = vmatpush.msra.mxu0 %v125
    %1284 = vmatpush.msra.mxu0 %v121
    %1285 = vmatpush.msra.mxu0 %v117
    %1286 = vmatpush.msra.mxu0 %v113
    %1287 = vmatmul.f32.gmra.mxu0 %v1230
    %v1288 = vpop.f32.mrf.mxu0
    %v1289 = vadd.f32 0.0, %v1288
    %1290 = vdwg.mxu0
    %1291 = vmatpush.msra.mxu0 %v174
    %1292 = vmatpush.msra.mxu0 %v170
    %1293 = vmatpush.msra.mxu0 %v166
    %1294 = vmatpush.msra.mxu0 %v162
    %1295 = vmatpush.msra.mxu0 %v158
    %1296 = vmatpush.msra.mxu0 %v154
    %1297 = vmatpush.msra.mxu0 %v150
    %1298 = vmatpush.msra.mxu0 %v146
    %1299 = vmatpush.msra.mxu0 %v142
    %1300 = vmatpush.msra.mxu0 %v138
    %1301 = vmatpush.msra.mxu0 %v134
    %1302 = vmatpush.msra.mxu0 %v130
    %1303 = vmatpush.msra.mxu0 %v126
    %1304 = vmatpush.msra.mxu0 %v122
    %1305 = vmatpush.msra.mxu0 %v118
    %1306 = vmatpush.msra.mxu0 %v114
    %1307 = vmatmul.f32.gmra.mxu0 %v1230
    %v1308 = vpop.f32.mrf.mxu0
    %v1309 = vadd.f32 0.0, %v1308
    %1310 = vdwg.mxu0
    %v1311 = vadd.f32 %v267, %v1249
    %v1312 = vadd.f32 %v332, %v1269
    %v1313 = vadd.f32 %v397, %v1289
    %v1314 = vadd.f32 %v462, %v1309
    %v1315 = vxor.u32 %v1311, 2147483648
    %v1316 = vmul.f32 %v1315, 1.442695
    %v1317 = vpow.pop %v1316
    %v1318 = vadd.f32 %v1317, 1.0
    %v1319 = vrcp.pop %v1318
    %v1320 = vmul.f32 %v1318, %v1319
    %v1321 = vsub.f32 1.0, %v1320
    %v1322 = vmul.f32 %v1319, %v1321
    %v1323 = vadd.f32 %v1319, %v1322
    %vm1324 = vweird.f32 %v1318
    %vm1325 = vweird.f32 %v1319
    %vm1326 = vmor %vm1324, %vm1325
    %v1327 = vsel %vm1326, %v1319, %v1323
    %v1328 = vand.u32 2147483647, %v1318
    %vm1329 = vcmp.eq.f32.partialorder %v1328, 8.507059e+37
    %v1330 = vand.u32 %v1318, 2147483648
    %v1331 = vor.u32 1.1754944e-38, %v1330
    %v1332 = vsel %vm1329, %v1331, %v1327
    %v1333 = vmul.f32 1.0, %v1332
    %v1334 = vxor.u32 %v1312, 2147483648
    %v1335 = vmul.f32 %v1334, 1.442695
    %v1336 = vpow.pop %v1335
    %v1337 = vadd.f32 %v1336, 1.0
    %v1338 = vrcp.pop %v1337
    %v1339 = vmul.f32 %v1337, %v1338
    %v1340 = vsub.f32 1.0, %v1339
    %v1341 = vmul.f32 %v1338, %v1340
    %v1342 = vadd.f32 %v1338, %v1341
    %vm1343 = vweird.f32 %v1337
    %vm1344 = vweird.f32 %v1338
    %vm1345 = vmor %vm1343, %vm1344
    %v1346 = vsel %vm1345, %v1338, %v1342
    %v1347 = vand.u32 2147483647, %v1337
    %vm1348 = vcmp.eq.f32.partialorder %v1347, 8.507059e+37
    %v1349 = vand.u32 %v1337, 2147483648
    %v1350 = vor.u32 1.1754944e-38, %v1349
    %v1351 = vsel %vm1348, %v1350, %v1346
    %v1352 = vmul.f32 1.0, %v1351
    %v1353 = vtanh.pop %v1313
    %v1354 = vxor.u32 %v1314, 2147483648
    %v1355 = vmul.f32 %v1354, 1.442695
    %v1356 = vpow.pop %v1355
    %v1357 = vadd.f32 %v1356, 1.0
    %v1358 = vrcp.pop %v1357
    %v1359 = vmul.f32 %v1357, %v1358
    %v1360 = vsub.f32 1.0, %v1359
    %v1361 = vmul.f32 %v1358, %v1360
    %v1362 = vadd.f32 %v1358, %v1361
    %vm1363 = vweird.f32 %v1357
    %vm1364 = vweird.f32 %v1358
    %vm1365 = vmor %vm1363, %vm1364
    %v1366 = vsel %vm1365, %v1358, %v1362
    %v1367 = vand.u32 2147483647, %v1357
    %vm1368 = vcmp.eq.f32.partialorder %v1367, 8.507059e+37
    %v1369 = vand.u32 %v1357, 2147483648
    %v1370 = vor.u32 1.1754944e-38, %v1369
    %v1371 = vsel %vm1368, %v1370, %v1366
    %v1372 = vmul.f32 1.0, %v1371
    %v1373 = vmul.f32 %v1352, %v1228
    %v1374 = vmul.f32 %v1333, %v1353
    %v1375 = vadd.f32 %v1373, %v1374
    %v1376 = vtanh.pop %v1375
    %v1377 = vmul.f32 %v1372, %v1376
    %1378 = vmatpush.msra.mxu0 %v171
    %1379 = vmatpush.msra.mxu0 %v167
    %1380 = vmatpush.msra.mxu0 %v163
    %1381 = vmatpush.msra.mxu0 %v159
    %1382 = vmatpush.msra.mxu0 %v155
    %1383 = vmatpush.msra.mxu0 %v151
    %1384 = vmatpush.msra.mxu0 %v147
    %1385 = vmatpush.msra.mxu0 %v143
    %1386 = vmatpush.msra.mxu0 %v139
    %1387 = vmatpush.msra.mxu0 %v135
    %1388 = vmatpush.msra.mxu0 %v131
    %1389 = vmatpush.msra.mxu0 %v127
    %1390 = vmatpush.msra.mxu0 %v123
    %1391 = vmatpush.msra.mxu0 %v119
    %1392 = vmatpush.msra.mxu0 %v115
    %1393 = vmatpush.msra.mxu0 %v111
    %1394 = vmatmul.f32.gmra.mxu0 %v1377
    %v1395 = vpop.f32.mrf.mxu0
    %v1396 = vadd.f32 0.0, %v1395
    %1397 = vdwg.mxu0
    %1398 = vmatpush.msra.mxu0 %v172
    %1399 = vmatpush.msra.mxu0 %v168
    %1400 = vmatpush.msra.mxu0 %v164
    %1401 = vmatpush.msra.mxu0 %v160
    %1402 = vmatpush.msra.mxu0 %v156
    %1403 = vmatpush.msra.mxu0 %v152
    %1404 = vmatpush.msra.mxu0 %v148
    %1405 = vmatpush.msra.mxu0 %v144
    %1406 = vmatpush.msra.mxu0 %v140
    %1407 = vmatpush.msra.mxu0 %v136
    %1408 = vmatpush.msra.mxu0 %v132
    %1409 = vmatpush.msra.mxu0 %v128
    %1410 = vmatpush.msra.mxu0 %v124
    %1411 = vmatpush.msra.mxu0 %v120
    %1412 = vmatpush.msra.mxu0 %v116
    %1413 = vmatpush.msra.mxu0 %v112
    %1414 = vmatmul.f32.gmra.mxu0 %v1377
    %v1415 = vpop.f32.mrf.mxu0
    %v1416 = vadd.f32 0.0, %v1415
    %1417 = vdwg.mxu0
    %1418 = vmatpush.msra.mxu0 %v173
    %1419 = vmatpush.msra.mxu0 %v169
    %1420 = vmatpush.msra.mxu0 %v165
    %1421 = vmatpush.msra.mxu0 %v161
    %1422 = vmatpush.msra.mxu0 %v157
    %1423 = vmatpush.msra.mxu0 %v153
    %1424 = vmatpush.msra.mxu0 %v149
    %1425 = vmatpush.msra.mxu0 %v145
    %1426 = vmatpush.msra.mxu0 %v141
    %1427 = vmatpush.msra.mxu0 %v137
    %1428 = vmatpush.msra.mxu0 %v133
    %1429 = vmatpush.msra.mxu0 %v129
    %1430 = vmatpush.msra.mxu0 %v125
    %1431 = vmatpush.msra.mxu0 %v121
    %1432 = vmatpush.msra.mxu0 %v117
    %1433 = vmatpush.msra.mxu0 %v113
    %1434 = vmatmul.f32.gmra.mxu0 %v1377
    %v1435 = vpop.f32.mrf.mxu0
    %v1436 = vadd.f32 0.0, %v1435
    %1437 = vdwg.mxu0
    %1438 = vmatpush.msra.mxu0 %v174
    %1439 = vmatpush.msra.mxu0 %v170
    %1440 = vmatpush.msra.mxu0 %v166
    %1441 = vmatpush.msra.mxu0 %v162
    %1442 = vmatpush.msra.mxu0 %v158
    %1443 = vmatpush.msra.mxu0 %v154
    %1444 = vmatpush.msra.mxu0 %v150
    %1445 = vmatpush.msra.mxu0 %v146
    %1446 = vmatpush.msra.mxu0 %v142
    %1447 = vmatpush.msra.mxu0 %v138
    %1448 = vmatpush.msra.mxu0 %v134
    %1449 = vmatpush.msra.mxu0 %v130
    %1450 = vmatpush.msra.mxu0 %v126
    %1451 = vmatpush.msra.mxu0 %v122
    %1452 = vmatpush.msra.mxu0 %v118
    %1453 = vmatpush.msra.mxu0 %v114
    %1454 = vmatmul.f32.gmra.mxu0 %v1377
    %v1455 = vpop.f32.mrf.mxu0
    %v1456 = vadd.f32 0.0, %v1455
    %1457 = vdwg.mxu0
    %v1458 = vadd.f32 %v270, %v1396
    %v1459 = vadd.f32 %v335, %v1416
    %v1460 = vadd.f32 %v400, %v1436
    %v1461 = vadd.f32 %v465, %v1456
    %v1462 = vxor.u32 %v1458, 2147483648
    %v1463 = vmul.f32 %v1462, 1.442695
    %v1464 = vpow.pop %v1463
    %v1465 = vadd.f32 %v1464, 1.0
    %v1466 = vrcp.pop %v1465
    %v1467 = vmul.f32 %v1465, %v1466
    %v1468 = vsub.f32 1.0, %v1467
    %v1469 = vmul.f32 %v1466, %v1468
    %v1470 = vadd.f32 %v1466, %v1469
    %vm1471 = vweird.f32 %v1465
    %vm1472 = vweird.f32 %v1466
    %vm1473 = vmor %vm1471, %vm1472
    %v1474 = vsel %vm1473, %v1466, %v1470
    %v1475 = vand.u32 2147483647, %v1465
    %vm1476 = vcmp.eq.f32.partialorder %v1475, 8.507059e+37
    %v1477 = vand.u32 %v1465, 2147483648
    %v1478 = vor.u32 1.1754944e-38, %v1477
    %v1479 = vsel %vm1476, %v1478, %v1474
    %v1480 = vmul.f32 1.0, %v1479
    %v1481 = vxor.u32 %v1459, 2147483648
    %v1482 = vmul.f32 %v1481, 1.442695
    %v1483 = vpow.pop %v1482
    %v1484 = vadd.f32 %v1483, 1.0
    %v1485 = vrcp.pop %v1484
    %v1486 = vmul.f32 %v1484, %v1485
    %v1487 = vsub.f32 1.0, %v1486
    %v1488 = vmul.f32 %v1485, %v1487
    %v1489 = vadd.f32 %v1485, %v1488
    %vm1490 = vweird.f32 %v1484
    %vm1491 = vweird.f32 %v1485
    %vm1492 = vmor %vm1490, %vm1491
    %v1493 = vsel %vm1492, %v1485, %v1489
    %v1494 = vand.u32 2147483647, %v1484
    %vm1495 = vcmp.eq.f32.partialorder %v1494, 8.507059e+37
    %v1496 = vand.u32 %v1484, 2147483648
    %v1497 = vor.u32 1.1754944e-38, %v1496
    %v1498 = vsel %vm1495, %v1497, %v1493
    %v1499 = vmul.f32 1.0, %v1498
    %v1500 = vtanh.pop %v1460
    %v1501 = vxor.u32 %v1461, 2147483648
    %v1502 = vmul.f32 %v1501, 1.442695
    %v1503 = vpow.pop %v1502
    %v1504 = vadd.f32 %v1503, 1.0
    %v1505 = vrcp.pop %v1504
    %v1506 = vmul.f32 %v1504, %v1505
    %v1507 = vsub.f32 1.0, %v1506
    %v1508 = vmul.f32 %v1505, %v1507
    %v1509 = vadd.f32 %v1505, %v1508
    %vm1510 = vweird.f32 %v1504
    %vm1511 = vweird.f32 %v1505
    %vm1512 = vmor %vm1510, %vm1511
    %v1513 = vsel %vm1512, %v1505, %v1509
    %v1514 = vand.u32 2147483647, %v1504
    %vm1515 = vcmp.eq.f32.partialorder %v1514, 8.507059e+37
    %v1516 = vand.u32 %v1504, 2147483648
    %v1517 = vor.u32 1.1754944e-38, %v1516
    %v1518 = vsel %vm1515, %v1517, %v1513
    %v1519 = vmul.f32 1.0, %v1518
    %v1520 = vmul.f32 %v1499, %v1375
    %v1521 = vmul.f32 %v1480, %v1500
    %v1522 = vadd.f32 %v1520, %v1521
    %v1523 = vtanh.pop %v1522
    %v1524 = vmul.f32 %v1519, %v1523
    %1525 = vmatpush.msra.mxu0 %v171
    %1526 = vmatpush.msra.mxu0 %v167
    %1527 = vmatpush.msra.mxu0 %v163
    %1528 = vmatpush.msra.mxu0 %v159
    %1529 = vmatpush.msra.mxu0 %v155
    %1530 = vmatpush.msra.mxu0 %v151
    %1531 = vmatpush.msra.mxu0 %v147
    %1532 = vmatpush.msra.mxu0 %v143
    %1533 = vmatpush.msra.mxu0 %v139
    %1534 = vmatpush.msra.mxu0 %v135
    %1535 = vmatpush.msra.mxu0 %v131
    %1536 = vmatpush.msra.mxu0 %v127
    %1537 = vmatpush.msra.mxu0 %v123
    %1538 = vmatpush.msra.mxu0 %v119
    %1539 = vmatpush.msra.mxu0 %v115
    %1540 = vmatpush.msra.mxu0 %v111
    %1541 = vmatmul.f32.gmra.mxu0 %v1524
    %v1542 = vpop.f32.mrf.mxu0
    %v1543 = vadd.f32 0.0, %v1542
    %1544 = vdwg.mxu0
    %1545 = vmatpush.msra.mxu0 %v172
    %1546 = vmatpush.msra.mxu0 %v168
    %1547 = vmatpush.msra.mxu0 %v164
    %1548 = vmatpush.msra.mxu0 %v160
    %1549 = vmatpush.msra.mxu0 %v156
    %1550 = vmatpush.msra.mxu0 %v152
    %1551 = vmatpush.msra.mxu0 %v148
    %1552 = vmatpush.msra.mxu0 %v144
    %1553 = vmatpush.msra.mxu0 %v140
    %1554 = vmatpush.msra.mxu0 %v136
    %1555 = vmatpush.msra.mxu0 %v132
    %1556 = vmatpush.msra.mxu0 %v128
    %1557 = vmatpush.msra.mxu0 %v124
    %1558 = vmatpush.msra.mxu0 %v120
    %1559 = vmatpush.msra.mxu0 %v116
    %1560 = vmatpush.msra.mxu0 %v112
    %1561 = vmatmul.f32.gmra.mxu0 %v1524
    %v1562 = vpop.f32.mrf.mxu0
    %v1563 = vadd.f32 0.0, %v1562
    %1564 = vdwg.mxu0
    %1565 = vmatpush.msra.mxu0 %v173
    %1566 = vmatpush.msra.mxu0 %v169
    %1567 = vmatpush.msra.mxu0 %v165
    %1568 = vmatpush.msra.mxu0 %v161
    %1569 = vmatpush.msra.mxu0 %v157
    %1570 = vmatpush.msra.mxu0 %v153
    %1571 = vmatpush.msra.mxu0 %v149
    %1572 = vmatpush.msra.mxu0 %v145
    %1573 = vmatpush.msra.mxu0 %v141
    %1574 = vmatpush.msra.mxu0 %v137
    %1575 = vmatpush.msra.mxu0 %v133
    %1576 = vmatpush.msra.mxu0 %v129
    %1577 = vmatpush.msra.mxu0 %v125
    %1578 = vmatpush.msra.mxu0 %v121
    %1579 = vmatpush.msra.mxu0 %v117
    %1580 = vmatpush.msra.mxu0 %v113
    %1581 = vmatmul.f32.gmra.mxu0 %v1524
    %v1582 = vpop.f32.mrf.mxu0
    %v1583 = vadd.f32 0.0, %v1582
    %1584 = vdwg.mxu0
    %1585 = vmatpush.msra.mxu0 %v174
    %1586 = vmatpush.msra.mxu0 %v170
    %1587 = vmatpush.msra.mxu0 %v166
    %1588 = vmatpush.msra.mxu0 %v162
    %1589 = vmatpush.msra.mxu0 %v158
    %1590 = vmatpush.msra.mxu0 %v154
    %1591 = vmatpush.msra.mxu0 %v150
    %1592 = vmatpush.msra.mxu0 %v146
    %1593 = vmatpush.msra.mxu0 %v142
    %1594 = vmatpush.msra.mxu0 %v138
    %1595 = vmatpush.msra.mxu0 %v134
    %1596 = vmatpush.msra.mxu0 %v130
    %1597 = vmatpush.msra.mxu0 %v126
    %1598 = vmatpush.msra.mxu0 %v122
    %1599 = vmatpush.msra.mxu0 %v118
    %1600 = vmatpush.msra.mxu0 %v114
    %1601 = vmatmul.f32.gmra.mxu0 %v1524
    %v1602 = vpop.f32.mrf.mxu0
    %v1603 = vadd.f32 0.0, %v1602
    %1604 = vdwg.mxu0
    %v1605 = vadd.f32 %v273, %v1543
    %v1606 = vadd.f32 %v338, %v1563
    %v1607 = vadd.f32 %v403, %v1583
    %v1608 = vadd.f32 %v468, %v1603
    %v1609 = vxor.u32 %v1605, 2147483648
    %v1610 = vmul.f32 %v1609, 1.442695
    %v1611 = vpow.pop %v1610
    %v1612 = vadd.f32 %v1611, 1.0
    %v1613 = vrcp.pop %v1612
    %v1614 = vmul.f32 %v1612, %v1613
    %v1615 = vsub.f32 1.0, %v1614
    %v1616 = vmul.f32 %v1613, %v1615
    %v1617 = vadd.f32 %v1613, %v1616
    %vm1618 = vweird.f32 %v1612
    %vm1619 = vweird.f32 %v1613
    %vm1620 = vmor %vm1618, %vm1619
    %v1621 = vsel %vm1620, %v1613, %v1617
    %v1622 = vand.u32 2147483647, %v1612
    %vm1623 = vcmp.eq.f32.partialorder %v1622, 8.507059e+37
    %v1624 = vand.u32 %v1612, 2147483648
    %v1625 = vor.u32 1.1754944e-38, %v1624
    %v1626 = vsel %vm1623, %v1625, %v1621
    %v1627 = vmul.f32 1.0, %v1626
    %v1628 = vxor.u32 %v1606, 2147483648
    %v1629 = vmul.f32 %v1628, 1.442695
    %v1630 = vpow.pop %v1629
    %v1631 = vadd.f32 %v1630, 1.0
    %v1632 = vrcp.pop %v1631
    %v1633 = vmul.f32 %v1631, %v1632
    %v1634 = vsub.f32 1.0, %v1633
    %v1635 = vmul.f32 %v1632, %v1634
    %v1636 = vadd.f32 %v1632, %v1635
    %vm1637 = vweird.f32 %v1631
    %vm1638 = vweird.f32 %v1632
    %vm1639 = vmor %vm1637, %vm1638
    %v1640 = vsel %vm1639, %v1632, %v1636
    %v1641 = vand.u32 2147483647, %v1631
    %vm1642 = vcmp.eq.f32.partialorder %v1641, 8.507059e+37
    %v1643 = vand.u32 %v1631, 2147483648
    %v1644 = vor.u32 1.1754944e-38, %v1643
    %v1645 = vsel %vm1642, %v1644, %v1640
    %v1646 = vmul.f32 1.0, %v1645
    %v1647 = vtanh.pop %v1607
    %v1648 = vxor.u32 %v1608, 2147483648
    %v1649 = vmul.f32 %v1648, 1.442695
    %v1650 = vpow.pop %v1649
    %v1651 = vadd.f32 %v1650, 1.0
    %v1652 = vrcp.pop %v1651
    %v1653 = vmul.f32 %v1651, %v1652
    %v1654 = vsub.f32 1.0, %v1653
    %v1655 = vmul.f32 %v1652, %v1654
    %v1656 = vadd.f32 %v1652, %v1655
    %vm1657 = vweird.f32 %v1651
    %vm1658 = vweird.f32 %v1652
    %vm1659 = vmor %vm1657, %vm1658
    %v1660 = vsel %vm1659, %v1652, %v1656
    %v1661 = vand.u32 2147483647, %v1651
    %vm1662 = vcmp.eq.f32.partialorder %v1661, 8.507059e+37
    %v1663 = vand.u32 %v1651, 2147483648
    %v1664 = vor.u32 1.1754944e-38, %v1663
    %v1665 = vsel %vm1662, %v1664, %v1660
    %v1666 = vmul.f32 1.0, %v1665
    %v1667 = vmul.f32 %v1646, %v1522
    %v1668 = vmul.f32 %v1627, %v1647
    %v1669 = vadd.f32 %v1667, %v1668
    %v1670 = vtanh.pop %v1669
    %v1671 = vmul.f32 %v1666, %v1670
    %1672 = vmatpush.msra.mxu0 %v171
    %1673 = vmatpush.msra.mxu0 %v167
    %1674 = vmatpush.msra.mxu0 %v163
    %1675 = vmatpush.msra.mxu0 %v159
    %1676 = vmatpush.msra.mxu0 %v155
    %1677 = vmatpush.msra.mxu0 %v151
    %1678 = vmatpush.msra.mxu0 %v147
    %1679 = vmatpush.msra.mxu0 %v143
    %1680 = vmatpush.msra.mxu0 %v139
    %1681 = vmatpush.msra.mxu0 %v135
    %1682 = vmatpush.msra.mxu0 %v131
    %1683 = vmatpush.msra.mxu0 %v127
    %1684 = vmatpush.msra.mxu0 %v123
    %1685 = vmatpush.msra.mxu0 %v119
    %1686 = vmatpush.msra.mxu0 %v115
    %1687 = vmatpush.msra.mxu0 %v111
    %1688 = vmatmul.f32.gmra.mxu0 %v1671
    %v1689 = vpop.f32.mrf.mxu0
    %v1690 = vadd.f32 0.0, %v1689
    %1691 = vdwg.mxu0
    %1692 = vmatpush.msra.mxu0 %v172
    %1693 = vmatpush.msra.mxu0 %v168
    %1694 = vmatpush.msra.mxu0 %v164
    %1695 = vmatpush.msra.mxu0 %v160
    %1696 = vmatpush.msra.mxu0 %v156
    %1697 = vmatpush.msra.mxu0 %v152
    %1698 = vmatpush.msra.mxu0 %v148
    %1699 = vmatpush.msra.mxu0 %v144
    %1700 = vmatpush.msra.mxu0 %v140
    %1701 = vmatpush.msra.mxu0 %v136
    %1702 = vmatpush.msra.mxu0 %v132
    %1703 = vmatpush.msra.mxu0 %v128
    %1704 = vmatpush.msra.mxu0 %v124
    %1705 = vmatpush.msra.mxu0 %v120
    %1706 = vmatpush.msra.mxu0 %v116
    %1707 = vmatpush.msra.mxu0 %v112
    %1708 = vmatmul.f32.gmra.mxu0 %v1671
    %v1709 = vpop.f32.mrf.mxu0
    %v1710 = vadd.f32 0.0, %v1709
    %1711 = vdwg.mxu0
    %1712 = vmatpush.msra.mxu0 %v173
    %1713 = vmatpush.msra.mxu0 %v169
    %1714 = vmatpush.msra.mxu0 %v165
    %1715 = vmatpush.msra.mxu0 %v161
    %1716 = vmatpush.msra.mxu0 %v157
    %1717 = vmatpush.msra.mxu0 %v153
    %1718 = vmatpush.msra.mxu0 %v149
    %1719 = vmatpush.msra.mxu0 %v145
    %1720 = vmatpush.msra.mxu0 %v141
    %1721 = vmatpush.msra.mxu0 %v137
    %1722 = vmatpush.msra.mxu0 %v133
    %1723 = vmatpush.msra.mxu0 %v129
    %1724 = vmatpush.msra.mxu0 %v125
    %1725 = vmatpush.msra.mxu0 %v121
    %1726 = vmatpush.msra.mxu0 %v117
    %1727 = vmatpush.msra.mxu0 %v113
    %1728 = vmatmul.f32.gmra.mxu0 %v1671
    %v1729 = vpop.f32.mrf.mxu0
    %v1730 = vadd.f32 0.0, %v1729
    %1731 = vdwg.mxu0
    %1732 = vmatpush.msra.mxu0 %v174
    %1733 = vmatpush.msra.mxu0 %v170
    %1734 = vmatpush.msra.mxu0 %v166
    %1735 = vmatpush.msra.mxu0 %v162
    %1736 = vmatpush.msra.mxu0 %v158
    %1737 = vmatpush.msra.mxu0 %v154
    %1738 = vmatpush.msra.mxu0 %v150
    %1739 = vmatpush.msra.mxu0 %v146
    %1740 = vmatpush.msra.mxu0 %v142
    %1741 = vmatpush.msra.mxu0 %v138
    %1742 = vmatpush.msra.mxu0 %v134
    %1743 = vmatpush.msra.mxu0 %v130
    %1744 = vmatpush.msra.mxu0 %v126
    %1745 = vmatpush.msra.mxu0 %v122
    %1746 = vmatpush.msra.mxu0 %v118
    %1747 = vmatpush.msra.mxu0 %v114
    %1748 = vmatmul.f32.gmra.mxu0 %v1671
    %v1749 = vpop.f32.mrf.mxu0
    %v1750 = vadd.f32 0.0, %v1749
    %1751 = vdwg.mxu0
    %v1752 = vadd.f32 %v276, %v1690
    %v1753 = vadd.f32 %v341, %v1710
    %v1754 = vadd.f32 %v406, %v1730
    %v1755 = vadd.f32 %v471, %v1750
    %v1756 = vxor.u32 %v1752, 2147483648
    %v1757 = vmul.f32 %v1756, 1.442695
    %v1758 = vpow.pop %v1757
    %v1759 = vadd.f32 %v1758, 1.0
    %v1760 = vrcp.pop %v1759
    %v1761 = vmul.f32 %v1759, %v1760
    %v1762 = vsub.f32 1.0, %v1761
    %v1763 = vmul.f32 %v1760, %v1762
    %v1764 = vadd.f32 %v1760, %v1763
    %vm1765 = vweird.f32 %v1759
    %vm1766 = vweird.f32 %v1760
    %vm1767 = vmor %vm1765, %vm1766
    %v1768 = vsel %vm1767, %v1760, %v1764
    %v1769 = vand.u32 2147483647, %v1759
    %vm1770 = vcmp.eq.f32.partialorder %v1769, 8.507059e+37
    %v1771 = vand.u32 %v1759, 2147483648
    %v1772 = vor.u32 1.1754944e-38, %v1771
    %v1773 = vsel %vm1770, %v1772, %v1768
    %v1774 = vmul.f32 1.0, %v1773
    %v1775 = vxor.u32 %v1753, 2147483648
    %v1776 = vmul.f32 %v1775, 1.442695
    %v1777 = vpow.pop %v1776
    %v1778 = vadd.f32 %v1777, 1.0
    %v1779 = vrcp.pop %v1778
    %v1780 = vmul.f32 %v1778, %v1779
    %v1781 = vsub.f32 1.0, %v1780
    %v1782 = vmul.f32 %v1779, %v1781
    %v1783 = vadd.f32 %v1779, %v1782
    %vm1784 = vweird.f32 %v1778
    %vm1785 = vweird.f32 %v1779
    %vm1786 = vmor %vm1784, %vm1785
    %v1787 = vsel %vm1786, %v1779, %v1783
    %v1788 = vand.u32 2147483647, %v1778
    %vm1789 = vcmp.eq.f32.partialorder %v1788, 8.507059e+37
    %v1790 = vand.u32 %v1778, 2147483648
    %v1791 = vor.u32 1.1754944e-38, %v1790
    %v1792 = vsel %vm1789, %v1791, %v1787
    %v1793 = vmul.f32 1.0, %v1792
    %v1794 = vtanh.pop %v1754
    %v1795 = vxor.u32 %v1755, 2147483648
    %v1796 = vmul.f32 %v1795, 1.442695
    %v1797 = vpow.pop %v1796
    %v1798 = vadd.f32 %v1797, 1.0
    %v1799 = vrcp.pop %v1798
    %v1800 = vmul.f32 %v1798, %v1799
    %v1801 = vsub.f32 1.0, %v1800
    %v1802 = vmul.f32 %v1799, %v1801
    %v1803 = vadd.f32 %v1799, %v1802
    %vm1804 = vweird.f32 %v1798
    %vm1805 = vweird.f32 %v1799
    %vm1806 = vmor %vm1804, %vm1805
    %v1807 = vsel %vm1806, %v1799, %v1803
    %v1808 = vand.u32 2147483647, %v1798
    %vm1809 = vcmp.eq.f32.partialorder %v1808, 8.507059e+37
    %v1810 = vand.u32 %v1798, 2147483648
    %v1811 = vor.u32 1.1754944e-38, %v1810
    %v1812 = vsel %vm1809, %v1811, %v1807
    %v1813 = vmul.f32 1.0, %v1812
    %v1814 = vmul.f32 %v1793, %v1669
    %v1815 = vmul.f32 %v1774, %v1794
    %v1816 = vadd.f32 %v1814, %v1815
    %v1817 = vtanh.pop %v1816
    %v1818 = vmul.f32 %v1813, %v1817
    %1819 = vmatpush.msra.mxu0 %v171
    %1820 = vmatpush.msra.mxu0 %v167
    %1821 = vmatpush.msra.mxu0 %v163
    %1822 = vmatpush.msra.mxu0 %v159
    %1823 = vmatpush.msra.mxu0 %v155
    %1824 = vmatpush.msra.mxu0 %v151
    %1825 = vmatpush.msra.mxu0 %v147
    %1826 = vmatpush.msra.mxu0 %v143
    %1827 = vmatpush.msra.mxu0 %v139
    %1828 = vmatpush.msra.mxu0 %v135
    %1829 = vmatpush.msra.mxu0 %v131
    %1830 = vmatpush.msra.mxu0 %v127
    %1831 = vmatpush.msra.mxu0 %v123
    %1832 = vmatpush.msra.mxu0 %v119
    %1833 = vmatpush.msra.mxu0 %v115
    %1834 = vmatpush.msra.mxu0 %v111
    %1835 = vmatmul.f32.gmra.mxu0 %v1818
    %v1836 = vpop.f32.mrf.mxu0
    %v1837 = vadd.f32 0.0, %v1836
    %1838 = vdwg.mxu0
    %1839 = vmatpush.msra.mxu0 %v172
    %1840 = vmatpush.msra.mxu0 %v168
    %1841 = vmatpush.msra.mxu0 %v164
    %1842 = vmatpush.msra.mxu0 %v160
    %1843 = vmatpush.msra.mxu0 %v156
    %1844 = vmatpush.msra.mxu0 %v152
    %1845 = vmatpush.msra.mxu0 %v148
    %1846 = vmatpush.msra.mxu0 %v144
    %1847 = vmatpush.msra.mxu0 %v140
    %1848 = vmatpush.msra.mxu0 %v136
    %1849 = vmatpush.msra.mxu0 %v132
    %1850 = vmatpush.msra.mxu0 %v128
    %1851 = vmatpush.msra.mxu0 %v124
    %1852 = vmatpush.msra.mxu0 %v120
    %1853 = vmatpush.msra.mxu0 %v116
    %1854 = vmatpush.msra.mxu0 %v112
    %1855 = vmatmul.f32.gmra.mxu0 %v1818
    %v1856 = vpop.f32.mrf.mxu0
    %v1857 = vadd.f32 0.0, %v1856
    %1858 = vdwg.mxu0
    %1859 = vmatpush.msra.mxu0 %v173
    %1860 = vmatpush.msra.mxu0 %v169
    %1861 = vmatpush.msra.mxu0 %v165
    %1862 = vmatpush.msra.mxu0 %v161
    %1863 = vmatpush.msra.mxu0 %v157
    %1864 = vmatpush.msra.mxu0 %v153
    %1865 = vmatpush.msra.mxu0 %v149
    %1866 = vmatpush.msra.mxu0 %v145
    %1867 = vmatpush.msra.mxu0 %v141
    %1868 = vmatpush.msra.mxu0 %v137
    %1869 = vmatpush.msra.mxu0 %v133
    %1870 = vmatpush.msra.mxu0 %v129
    %1871 = vmatpush.msra.mxu0 %v125
    %1872 = vmatpush.msra.mxu0 %v121
    %1873 = vmatpush.msra.mxu0 %v117
    %1874 = vmatpush.msra.mxu0 %v113
    %1875 = vmatmul.f32.gmra.mxu0 %v1818
    %v1876 = vpop.f32.mrf.mxu0
    %v1877 = vadd.f32 0.0, %v1876
    %1878 = vdwg.mxu0
    %1879 = vmatpush.msra.mxu0 %v174
    %1880 = vmatpush.msra.mxu0 %v170
    %1881 = vmatpush.msra.mxu0 %v166
    %1882 = vmatpush.msra.mxu0 %v162
    %1883 = vmatpush.msra.mxu0 %v158
    %1884 = vmatpush.msra.mxu0 %v154
    %1885 = vmatpush.msra.mxu0 %v150
    %1886 = vmatpush.msra.mxu0 %v146
    %1887 = vmatpush.msra.mxu0 %v142
    %1888 = vmatpush.msra.mxu0 %v138
    %1889 = vmatpush.msra.mxu0 %v134
    %1890 = vmatpush.msra.mxu0 %v130
    %1891 = vmatpush.msra.mxu0 %v126
    %1892 = vmatpush.msra.mxu0 %v122
    %1893 = vmatpush.msra.mxu0 %v118
    %1894 = vmatpush.msra.mxu0 %v114
    %1895 = vmatmul.f32.gmra.mxu0 %v1818
    %v1896 = vpop.f32.mrf.mxu0
    %v1897 = vadd.f32 0.0, %v1896
    %1898 = vdwg.mxu0
    %v1899 = vadd.f32 %v279, %v1837
    %v1900 = vadd.f32 %v344, %v1857
    %v1901 = vadd.f32 %v409, %v1877
    %v1902 = vadd.f32 %v474, %v1897
    %v1903 = vxor.u32 %v1899, 2147483648
    %v1904 = vmul.f32 %v1903, 1.442695
    %v1905 = vpow.pop %v1904
    %v1906 = vadd.f32 %v1905, 1.0
    %v1907 = vrcp.pop %v1906
    %v1908 = vmul.f32 %v1906, %v1907
    %v1909 = vsub.f32 1.0, %v1908
    %v1910 = vmul.f32 %v1907, %v1909
    %v1911 = vadd.f32 %v1907, %v1910
    %vm1912 = vweird.f32 %v1906
    %vm1913 = vweird.f32 %v1907
    %vm1914 = vmor %vm1912, %vm1913
    %v1915 = vsel %vm1914, %v1907, %v1911
    %v1916 = vand.u32 2147483647, %v1906
    %vm1917 = vcmp.eq.f32.partialorder %v1916, 8.507059e+37
    %v1918 = vand.u32 %v1906, 2147483648
    %v1919 = vor.u32 1.1754944e-38, %v1918
    %v1920 = vsel %vm1917, %v1919, %v1915
    %v1921 = vmul.f32 1.0, %v1920
    %v1922 = vxor.u32 %v1900, 2147483648
    %v1923 = vmul.f32 %v1922, 1.442695
    %v1924 = vpow.pop %v1923
    %v1925 = vadd.f32 %v1924, 1.0
    %v1926 = vrcp.pop %v1925
    %v1927 = vmul.f32 %v1925, %v1926
    %v1928 = vsub.f32 1.0, %v1927
    %v1929 = vmul.f32 %v1926, %v1928
    %v1930 = vadd.f32 %v1926, %v1929
    %vm1931 = vweird.f32 %v1925
    %vm1932 = vweird.f32 %v1926
    %vm1933 = vmor %vm1931, %vm1932
    %v1934 = vsel %vm1933, %v1926, %v1930
    %v1935 = vand.u32 2147483647, %v1925
    %vm1936 = vcmp.eq.f32.partialorder %v1935, 8.507059e+37
    %v1937 = vand.u32 %v1925, 2147483648
    %v1938 = vor.u32 1.1754944e-38, %v1937
    %v1939 = vsel %vm1936, %v1938, %v1934
    %v1940 = vmul.f32 1.0, %v1939
    %v1941 = vtanh.pop %v1901
    %v1942 = vxor.u32 %v1902, 2147483648
    %v1943 = vmul.f32 %v1942, 1.442695
    %v1944 = vpow.pop %v1943
    %v1945 = vadd.f32 %v1944, 1.0
    %v1946 = vrcp.pop %v1945
    %v1947 = vmul.f32 %v1945, %v1946
    %v1948 = vsub.f32 1.0, %v1947
    %v1949 = vmul.f32 %v1946, %v1948
    %v1950 = vadd.f32 %v1946, %v1949
    %vm1951 = vweird.f32 %v1945
    %vm1952 = vweird.f32 %v1946
    %vm1953 = vmor %vm1951, %vm1952
    %v1954 = vsel %vm1953, %v1946, %v1950
    %v1955 = vand.u32 2147483647, %v1945
    %vm1956 = vcmp.eq.f32.partialorder %v1955, 8.507059e+37
    %v1957 = vand.u32 %v1945, 2147483648
    %v1958 = vor.u32 1.1754944e-38, %v1957
    %v1959 = vsel %vm1956, %v1958, %v1954
    %v1960 = vmul.f32 1.0, %v1959
    %v1961 = vmul.f32 %v1940, %v1816
    %v1962 = vmul.f32 %v1921, %v1941
    %v1963 = vadd.f32 %v1961, %v1962
    %v1964 = vtanh.pop %v1963
    %v1965 = vmul.f32 %v1960, %v1964
    %1966 = vmatpush.msra.mxu0 %v171
    %1967 = vmatpush.msra.mxu0 %v167
    %1968 = vmatpush.msra.mxu0 %v163
    %1969 = vmatpush.msra.mxu0 %v159
    %1970 = vmatpush.msra.mxu0 %v155
    %1971 = vmatpush.msra.mxu0 %v151
    %1972 = vmatpush.msra.mxu0 %v147
    %1973 = vmatpush.msra.mxu0 %v143
    %1974 = vmatpush.msra.mxu0 %v139
    %1975 = vmatpush.msra.mxu0 %v135
    %1976 = vmatpush.msra.mxu0 %v131
    %1977 = vmatpush.msra.mxu0 %v127
    %1978 = vmatpush.msra.mxu0 %v123
    %1979 = vmatpush.msra.mxu0 %v119
    %1980 = vmatpush.msra.mxu0 %v115
    %1981 = vmatpush.msra.mxu0 %v111
    %1982 = vmatmul.f32.gmra.mxu0 %v1965
    %v1983 = vpop.f32.mrf.mxu0
    %v1984 = vadd.f32 0.0, %v1983
    %1985 = vdwg.mxu0
    %1986 = vmatpush.msra.mxu0 %v172
    %1987 = vmatpush.msra.mxu0 %v168
    %1988 = vmatpush.msra.mxu0 %v164
    %1989 = vmatpush.msra.mxu0 %v160
    %1990 = vmatpush.msra.mxu0 %v156
    %1991 = vmatpush.msra.mxu0 %v152
    %1992 = vmatpush.msra.mxu0 %v148
    %1993 = vmatpush.msra.mxu0 %v144
    %1994 = vmatpush.msra.mxu0 %v140
    %1995 = vmatpush.msra.mxu0 %v136
    %1996 = vmatpush.msra.mxu0 %v132
    %1997 = vmatpush.msra.mxu0 %v128
    %1998 = vmatpush.msra.mxu0 %v124
    %1999 = vmatpush.msra.mxu0 %v120
    %2000 = vmatpush.msra.mxu0 %v116
    %2001 = vmatpush.msra.mxu0 %v112
    %2002 = vmatmul.f32.gmra.mxu0 %v1965
    %v2003 = vpop.f32.mrf.mxu0
    %v2004 = vadd.f32 0.0, %v2003
    %2005 = vdwg.mxu0
    %2006 = vmatpush.msra.mxu0 %v173
    %2007 = vmatpush.msra.mxu0 %v169
    %2008 = vmatpush.msra.mxu0 %v165
    %2009 = vmatpush.msra.mxu0 %v161
    %2010 = vmatpush.msra.mxu0 %v157
    %2011 = vmatpush.msra.mxu0 %v153
    %2012 = vmatpush.msra.mxu0 %v149
    %2013 = vmatpush.msra.mxu0 %v145
    %2014 = vmatpush.msra.mxu0 %v141
    %2015 = vmatpush.msra.mxu0 %v137
    %2016 = vmatpush.msra.mxu0 %v133
    %2017 = vmatpush.msra.mxu0 %v129
    %2018 = vmatpush.msra.mxu0 %v125
    %2019 = vmatpush.msra.mxu0 %v121
    %2020 = vmatpush.msra.mxu0 %v117
    %2021 = vmatpush.msra.mxu0 %v113
    %2022 = vmatmul.f32.gmra.mxu0 %v1965
    %v2023 = vpop.f32.mrf.mxu0
    %v2024 = vadd.f32 0.0, %v2023
    %2025 = vdwg.mxu0
    %2026 = vmatpush.msra.mxu0 %v174
    %2027 = vmatpush.msra.mxu0 %v170
    %2028 = vmatpush.msra.mxu0 %v166
    %2029 = vmatpush.msra.mxu0 %v162
    %2030 = vmatpush.msra.mxu0 %v158
    %2031 = vmatpush.msra.mxu0 %v154
    %2032 = vmatpush.msra.mxu0 %v150
    %2033 = vmatpush.msra.mxu0 %v146
    %2034 = vmatpush.msra.mxu0 %v142
    %2035 = vmatpush.msra.mxu0 %v138
    %2036 = vmatpush.msra.mxu0 %v134
    %2037 = vmatpush.msra.mxu0 %v130
    %2038 = vmatpush.msra.mxu0 %v126
    %2039 = vmatpush.msra.mxu0 %v122
    %2040 = vmatpush.msra.mxu0 %v118
    %2041 = vmatpush.msra.mxu0 %v114
    %2042 = vmatmul.f32.gmra.mxu0 %v1965
    %v2043 = vpop.f32.mrf.mxu0
    %v2044 = vadd.f32 0.0, %v2043
    %2045 = vdwg.mxu0
    %v2046 = vadd.f32 %v282, %v1984
    %v2047 = vadd.f32 %v347, %v2004
    %v2048 = vadd.f32 %v412, %v2024
    %v2049 = vadd.f32 %v477, %v2044
    %v2050 = vxor.u32 %v2046, 2147483648
    %v2051 = vmul.f32 %v2050, 1.442695
    %v2052 = vpow.pop %v2051
    %v2053 = vadd.f32 %v2052, 1.0
    %v2054 = vrcp.pop %v2053
    %v2055 = vmul.f32 %v2053, %v2054
    %v2056 = vsub.f32 1.0, %v2055
    %v2057 = vmul.f32 %v2054, %v2056
    %v2058 = vadd.f32 %v2054, %v2057
    %vm2059 = vweird.f32 %v2053
    %vm2060 = vweird.f32 %v2054
    %vm2061 = vmor %vm2059, %vm2060
    %v2062 = vsel %vm2061, %v2054, %v2058
    %v2063 = vand.u32 2147483647, %v2053
    %vm2064 = vcmp.eq.f32.partialorder %v2063, 8.507059e+37
    %v2065 = vand.u32 %v2053, 2147483648
    %v2066 = vor.u32 1.1754944e-38, %v2065
    %v2067 = vsel %vm2064, %v2066, %v2062
    %v2068 = vmul.f32 1.0, %v2067
    %v2069 = vxor.u32 %v2047, 2147483648
    %v2070 = vmul.f32 %v2069, 1.442695
    %v2071 = vpow.pop %v2070
    %v2072 = vadd.f32 %v2071, 1.0
    %v2073 = vrcp.pop %v2072
    %v2074 = vmul.f32 %v2072, %v2073
    %v2075 = vsub.f32 1.0, %v2074
    %v2076 = vmul.f32 %v2073, %v2075
    %v2077 = vadd.f32 %v2073, %v2076
    %vm2078 = vweird.f32 %v2072
    %vm2079 = vweird.f32 %v2073
    %vm2080 = vmor %vm2078, %vm2079
    %v2081 = vsel %vm2080, %v2073, %v2077
    %v2082 = vand.u32 2147483647, %v2072
    %vm2083 = vcmp.eq.f32.partialorder %v2082, 8.507059e+37
    %v2084 = vand.u32 %v2072, 2147483648
    %v2085 = vor.u32 1.1754944e-38, %v2084
    %v2086 = vsel %vm2083, %v2085, %v2081
    %v2087 = vmul.f32 1.0, %v2086
    %v2088 = vtanh.pop %v2048
    %v2089 = vxor.u32 %v2049, 2147483648
    %v2090 = vmul.f32 %v2089, 1.442695
    %v2091 = vpow.pop %v2090
    %v2092 = vadd.f32 %v2091, 1.0
    %v2093 = vrcp.pop %v2092
    %v2094 = vmul.f32 %v2092, %v2093
    %v2095 = vsub.f32 1.0, %v2094
    %v2096 = vmul.f32 %v2093, %v2095
    %v2097 = vadd.f32 %v2093, %v2096
    %vm2098 = vweird.f32 %v2092
    %vm2099 = vweird.f32 %v2093
    %vm2100 = vmor %vm2098, %vm2099
    %v2101 = vsel %vm2100, %v2093, %v2097
    %v2102 = vand.u32 2147483647, %v2092
    %vm2103 = vcmp.eq.f32.partialorder %v2102, 8.507059e+37
    %v2104 = vand.u32 %v2092, 2147483648
    %v2105 = vor.u32 1.1754944e-38, %v2104
    %v2106 = vsel %vm2103, %v2105, %v2101
    %v2107 = vmul.f32 1.0, %v2106
    %v2108 = vmul.f32 %v2087, %v1963
    %v2109 = vmul.f32 %v2068, %v2088
    %v2110 = vadd.f32 %v2108, %v2109
    %v2111 = vtanh.pop %v2110
    %v2112 = vmul.f32 %v2107, %v2111
    %2113 = vmatpush.msra.mxu0 %v171
    %2114 = vmatpush.msra.mxu0 %v167
    %2115 = vmatpush.msra.mxu0 %v163
    %2116 = vmatpush.msra.mxu0 %v159
    %2117 = vmatpush.msra.mxu0 %v155
    %2118 = vmatpush.msra.mxu0 %v151
    %2119 = vmatpush.msra.mxu0 %v147
    %2120 = vmatpush.msra.mxu0 %v143
    %2121 = vmatpush.msra.mxu0 %v139
    %2122 = vmatpush.msra.mxu0 %v135
    %2123 = vmatpush.msra.mxu0 %v131
    %2124 = vmatpush.msra.mxu0 %v127
    %2125 = vmatpush.msra.mxu0 %v123
    %2126 = vmatpush.msra.mxu0 %v119
    %2127 = vmatpush.msra.mxu0 %v115
    %2128 = vmatpush.msra.mxu0 %v111
    %2129 = vmatmul.f32.gmra.mxu0 %v2112
    %v2130 = vpop.f32.mrf.mxu0
    %v2131 = vadd.f32 0.0, %v2130
    %2132 = vdwg.mxu0
    %2133 = vmatpush.msra.mxu0 %v172
    %2134 = vmatpush.msra.mxu0 %v168
    %2135 = vmatpush.msra.mxu0 %v164
    %2136 = vmatpush.msra.mxu0 %v160
    %2137 = vmatpush.msra.mxu0 %v156
    %2138 = vmatpush.msra.mxu0 %v152
    %2139 = vmatpush.msra.mxu0 %v148
    %2140 = vmatpush.msra.mxu0 %v144
    %2141 = vmatpush.msra.mxu0 %v140
    %2142 = vmatpush.msra.mxu0 %v136
    %2143 = vmatpush.msra.mxu0 %v132
    %2144 = vmatpush.msra.mxu0 %v128
    %2145 = vmatpush.msra.mxu0 %v124
    %2146 = vmatpush.msra.mxu0 %v120
    %2147 = vmatpush.msra.mxu0 %v116
    %2148 = vmatpush.msra.mxu0 %v112
    %2149 = vmatmul.f32.gmra.mxu0 %v2112
    %v2150 = vpop.f32.mrf.mxu0
    %v2151 = vadd.f32 0.0, %v2150
    %2152 = vdwg.mxu0
    %2153 = vmatpush.msra.mxu0 %v173
    %2154 = vmatpush.msra.mxu0 %v169
    %2155 = vmatpush.msra.mxu0 %v165
    %2156 = vmatpush.msra.mxu0 %v161
    %2157 = vmatpush.msra.mxu0 %v157
    %2158 = vmatpush.msra.mxu0 %v153
    %2159 = vmatpush.msra.mxu0 %v149
    %2160 = vmatpush.msra.mxu0 %v145
    %2161 = vmatpush.msra.mxu0 %v141
    %2162 = vmatpush.msra.mxu0 %v137
    %2163 = vmatpush.msra.mxu0 %v133
    %2164 = vmatpush.msra.mxu0 %v129
    %2165 = vmatpush.msra.mxu0 %v125
    %2166 = vmatpush.msra.mxu0 %v121
    %2167 = vmatpush.msra.mxu0 %v117
    %2168 = vmatpush.msra.mxu0 %v113
    %2169 = vmatmul.f32.gmra.mxu0 %v2112
    %v2170 = vpop.f32.mrf.mxu0
    %v2171 = vadd.f32 0.0, %v2170
    %2172 = vdwg.mxu0
    %2173 = vmatpush.msra.mxu0 %v174
    %2174 = vmatpush.msra.mxu0 %v170
    %2175 = vmatpush.msra.mxu0 %v166
    %2176 = vmatpush.msra.mxu0 %v162
    %2177 = vmatpush.msra.mxu0 %v158
    %2178 = vmatpush.msra.mxu0 %v154
    %2179 = vmatpush.msra.mxu0 %v150
    %2180 = vmatpush.msra.mxu0 %v146
    %2181 = vmatpush.msra.mxu0 %v142
    %2182 = vmatpush.msra.mxu0 %v138
    %2183 = vmatpush.msra.mxu0 %v134
    %2184 = vmatpush.msra.mxu0 %v130
    %2185 = vmatpush.msra.mxu0 %v126
    %2186 = vmatpush.msra.mxu0 %v122
    %2187 = vmatpush.msra.mxu0 %v118
    %2188 = vmatpush.msra.mxu0 %v114
    %2189 = vmatmul.f32.gmra.mxu0 %v2112
    %v2190 = vpop.f32.mrf.mxu0
    %v2191 = vadd.f32 0.0, %v2190
    %2192 = vdwg.mxu0
    %v2193 = vadd.f32 %v285, %v2131
    %v2194 = vadd.f32 %v350, %v2151
    %v2195 = vadd.f32 %v415, %v2171
    %v2196 = vadd.f32 %v480, %v2191
    %v2197 = vxor.u32 %v2193, 2147483648
    %v2198 = vmul.f32 %v2197, 1.442695
    %v2199 = vpow.pop %v2198
    %v2200 = vadd.f32 %v2199, 1.0
    %v2201 = vrcp.pop %v2200
    %v2202 = vmul.f32 %v2200, %v2201
    %v2203 = vsub.f32 1.0, %v2202
    %v2204 = vmul.f32 %v2201, %v2203
    %v2205 = vadd.f32 %v2201, %v2204
    %vm2206 = vweird.f32 %v2200
    %vm2207 = vweird.f32 %v2201
    %vm2208 = vmor %vm2206, %vm2207
    %v2209 = vsel %vm2208, %v2201, %v2205
    %v2210 = vand.u32 2147483647, %v2200
    %vm2211 = vcmp.eq.f32.partialorder %v2210, 8.507059e+37
    %v2212 = vand.u32 %v2200, 2147483648
    %v2213 = vor.u32 1.1754944e-38, %v2212
    %v2214 = vsel %vm2211, %v2213, %v2209
    %v2215 = vmul.f32 1.0, %v2214
    %v2216 = vxor.u32 %v2194, 2147483648
    %v2217 = vmul.f32 %v2216, 1.442695
    %v2218 = vpow.pop %v2217
    %v2219 = vadd.f32 %v2218, 1.0
    %v2220 = vrcp.pop %v2219
    %v2221 = vmul.f32 %v2219, %v2220
    %v2222 = vsub.f32 1.0, %v2221
    %v2223 = vmul.f32 %v2220, %v2222
    %v2224 = vadd.f32 %v2220, %v2223
    %vm2225 = vweird.f32 %v2219
    %vm2226 = vweird.f32 %v2220
    %vm2227 = vmor %vm2225, %vm2226
    %v2228 = vsel %vm2227, %v2220, %v2224
    %v2229 = vand.u32 2147483647, %v2219
    %vm2230 = vcmp.eq.f32.partialorder %v2229, 8.507059e+37
    %v2231 = vand.u32 %v2219, 2147483648
    %v2232 = vor.u32 1.1754944e-38, %v2231
    %v2233 = vsel %vm2230, %v2232, %v2228
    %v2234 = vmul.f32 1.0, %v2233
    %v2235 = vtanh.pop %v2195
    %v2236 = vxor.u32 %v2196, 2147483648
    %v2237 = vmul.f32 %v2236, 1.442695
    %v2238 = vpow.pop %v2237
    %v2239 = vadd.f32 %v2238, 1.0
    %v2240 = vrcp.pop %v2239
    %v2241 = vmul.f32 %v2239, %v2240
    %v2242 = vsub.f32 1.0, %v2241
    %v2243 = vmul.f32 %v2240, %v2242
    %v2244 = vadd.f32 %v2240, %v2243
    %vm2245 = vweird.f32 %v2239
    %vm2246 = vweird.f32 %v2240
    %vm2247 = vmor %vm2245, %vm2246
    %v2248 = vsel %vm2247, %v2240, %v2244
    %v2249 = vand.u32 2147483647, %v2239
    %vm2250 = vcmp.eq.f32.partialorder %v2249, 8.507059e+37
    %v2251 = vand.u32 %v2239, 2147483648
    %v2252 = vor.u32 1.1754944e-38, %v2251
    %v2253 = vsel %vm2250, %v2252, %v2248
    %v2254 = vmul.f32 1.0, %v2253
    %v2255 = vmul.f32 %v2234, %v2110
    %v2256 = vmul.f32 %v2215, %v2235
    %v2257 = vadd.f32 %v2255, %v2256
    %v2258 = vtanh.pop %v2257
    %v2259 = vmul.f32 %v2254, %v2258
    %2260 = vmatpush.msra.mxu0 %v171
    %2261 = vmatpush.msra.mxu0 %v167
    %2262 = vmatpush.msra.mxu0 %v163
    %2263 = vmatpush.msra.mxu0 %v159
    %2264 = vmatpush.msra.mxu0 %v155
    %2265 = vmatpush.msra.mxu0 %v151
    %2266 = vmatpush.msra.mxu0 %v147
    %2267 = vmatpush.msra.mxu0 %v143
    %2268 = vmatpush.msra.mxu0 %v139
    %2269 = vmatpush.msra.mxu0 %v135
    %2270 = vmatpush.msra.mxu0 %v131
    %2271 = vmatpush.msra.mxu0 %v127
    %2272 = vmatpush.msra.mxu0 %v123
    %2273 = vmatpush.msra.mxu0 %v119
    %2274 = vmatpush.msra.mxu0 %v115
    %2275 = vmatpush.msra.mxu0 %v111
    %2276 = vmatmul.f32.gmra.mxu0 %v2259
    %v2277 = vpop.f32.mrf.mxu0
    %v2278 = vadd.f32 0.0, %v2277
    %2279 = vdwg.mxu0
    %2280 = vmatpush.msra.mxu0 %v172
    %2281 = vmatpush.msra.mxu0 %v168
    %2282 = vmatpush.msra.mxu0 %v164
    %2283 = vmatpush.msra.mxu0 %v160
    %2284 = vmatpush.msra.mxu0 %v156
    %2285 = vmatpush.msra.mxu0 %v152
    %2286 = vmatpush.msra.mxu0 %v148
    %2287 = vmatpush.msra.mxu0 %v144
    %2288 = vmatpush.msra.mxu0 %v140
    %2289 = vmatpush.msra.mxu0 %v136
    %2290 = vmatpush.msra.mxu0 %v132
    %2291 = vmatpush.msra.mxu0 %v128
    %2292 = vmatpush.msra.mxu0 %v124
    %2293 = vmatpush.msra.mxu0 %v120
    %2294 = vmatpush.msra.mxu0 %v116
    %2295 = vmatpush.msra.mxu0 %v112
    %2296 = vmatmul.f32.gmra.mxu0 %v2259
    %v2297 = vpop.f32.mrf.mxu0
    %v2298 = vadd.f32 0.0, %v2297
    %2299 = vdwg.mxu0
    %2300 = vmatpush.msra.mxu0 %v173
    %2301 = vmatpush.msra.mxu0 %v169
    %2302 = vmatpush.msra.mxu0 %v165
    %2303 = vmatpush.msra.mxu0 %v161
    %2304 = vmatpush.msra.mxu0 %v157
    %2305 = vmatpush.msra.mxu0 %v153
    %2306 = vmatpush.msra.mxu0 %v149
    %2307 = vmatpush.msra.mxu0 %v145
    %2308 = vmatpush.msra.mxu0 %v141
    %2309 = vmatpush.msra.mxu0 %v137
    %2310 = vmatpush.msra.mxu0 %v133
    %2311 = vmatpush.msra.mxu0 %v129
    %2312 = vmatpush.msra.mxu0 %v125
    %2313 = vmatpush.msra.mxu0 %v121
    %2314 = vmatpush.msra.mxu0 %v117
    %2315 = vmatpush.msra.mxu0 %v113
    %2316 = vmatmul.f32.gmra.mxu0 %v2259
    %v2317 = vpop.f32.mrf.mxu0
    %v2318 = vadd.f32 0.0, %v2317
    %2319 = vdwg.mxu0
    %2320 = vmatpush.msra.mxu0 %v174
    %2321 = vmatpush.msra.mxu0 %v170
    %2322 = vmatpush.msra.mxu0 %v166
    %2323 = vmatpush.msra.mxu0 %v162
    %2324 = vmatpush.msra.mxu0 %v158
    %2325 = vmatpush.msra.mxu0 %v154
    %2326 = vmatpush.msra.mxu0 %v150
    %2327 = vmatpush.msra.mxu0 %v146
    %2328 = vmatpush.msra.mxu0 %v142
    %2329 = vmatpush.msra.mxu0 %v138
    %2330 = vmatpush.msra.mxu0 %v134
    %2331 = vmatpush.msra.mxu0 %v130
    %2332 = vmatpush.msra.mxu0 %v126
    %2333 = vmatpush.msra.mxu0 %v122
    %2334 = vmatpush.msra.mxu0 %v118
    %2335 = vmatpush.msra.mxu0 %v114
    %2336 = vmatmul.f32.gmra.mxu0 %v2259
    %v2337 = vpop.f32.mrf.mxu0
    %v2338 = vadd.f32 0.0, %v2337
    %2339 = vdwg.mxu0
    %v2340 = vadd.f32 %v288, %v2278
    %v2341 = vadd.f32 %v353, %v2298
    %v2342 = vadd.f32 %v418, %v2318
    %v2343 = vadd.f32 %v483, %v2338
    %v2344 = vxor.u32 %v2340, 2147483648
    %v2345 = vmul.f32 %v2344, 1.442695
    %v2346 = vpow.pop %v2345
    %v2347 = vadd.f32 %v2346, 1.0
    %v2348 = vrcp.pop %v2347
    %v2349 = vmul.f32 %v2347, %v2348
    %v2350 = vsub.f32 1.0, %v2349
    %v2351 = vmul.f32 %v2348, %v2350
    %v2352 = vadd.f32 %v2348, %v2351
    %vm2353 = vweird.f32 %v2347
    %vm2354 = vweird.f32 %v2348
    %vm2355 = vmor %vm2353, %vm2354
    %v2356 = vsel %vm2355, %v2348, %v2352
    %v2357 = vand.u32 2147483647, %v2347
    %vm2358 = vcmp.eq.f32.partialorder %v2357, 8.507059e+37
    %v2359 = vand.u32 %v2347, 2147483648
    %v2360 = vor.u32 1.1754944e-38, %v2359
    %v2361 = vsel %vm2358, %v2360, %v2356
    %v2362 = vmul.f32 1.0, %v2361
    %v2363 = vxor.u32 %v2341, 2147483648
    %v2364 = vmul.f32 %v2363, 1.442695
    %v2365 = vpow.pop %v2364
    %v2366 = vadd.f32 %v2365, 1.0
    %v2367 = vrcp.pop %v2366
    %v2368 = vmul.f32 %v2366, %v2367
    %v2369 = vsub.f32 1.0, %v2368
    %v2370 = vmul.f32 %v2367, %v2369
    %v2371 = vadd.f32 %v2367, %v2370
    %vm2372 = vweird.f32 %v2366
    %vm2373 = vweird.f32 %v2367
    %vm2374 = vmor %vm2372, %vm2373
    %v2375 = vsel %vm2374, %v2367, %v2371
    %v2376 = vand.u32 2147483647, %v2366
    %vm2377 = vcmp.eq.f32.partialorder %v2376, 8.507059e+37
    %v2378 = vand.u32 %v2366, 2147483648
    %v2379 = vor.u32 1.1754944e-38, %v2378
    %v2380 = vsel %vm2377, %v2379, %v2375
    %v2381 = vmul.f32 1.0, %v2380
    %v2382 = vtanh.pop %v2342
    %v2383 = vxor.u32 %v2343, 2147483648
    %v2384 = vmul.f32 %v2383, 1.442695
    %v2385 = vpow.pop %v2384
    %v2386 = vadd.f32 %v2385, 1.0
    %v2387 = vrcp.pop %v2386
    %v2388 = vmul.f32 %v2386, %v2387
    %v2389 = vsub.f32 1.0, %v2388
    %v2390 = vmul.f32 %v2387, %v2389
    %v2391 = vadd.f32 %v2387, %v2390
    %vm2392 = vweird.f32 %v2386
    %vm2393 = vweird.f32 %v2387
    %vm2394 = vmor %vm2392, %vm2393
    %v2395 = vsel %vm2394, %v2387, %v2391
    %v2396 = vand.u32 2147483647, %v2386
    %vm2397 = vcmp.eq.f32.partialorder %v2396, 8.507059e+37
    %v2398 = vand.u32 %v2386, 2147483648
    %v2399 = vor.u32 1.1754944e-38, %v2398
    %v2400 = vsel %vm2397, %v2399, %v2395
    %v2401 = vmul.f32 1.0, %v2400
    %v2402 = vmul.f32 %v2381, %v2257
    %v2403 = vmul.f32 %v2362, %v2382
    %v2404 = vadd.f32 %v2402, %v2403
    %v2405 = vtanh.pop %v2404
    %v2406 = vmul.f32 %v2401, %v2405
    %2407 = vmatpush.msra.mxu0 %v171
    %2408 = vmatpush.msra.mxu0 %v167
    %2409 = vmatpush.msra.mxu0 %v163
    %2410 = vmatpush.msra.mxu0 %v159
    %2411 = vmatpush.msra.mxu0 %v155
    %2412 = vmatpush.msra.mxu0 %v151
    %2413 = vmatpush.msra.mxu0 %v147
    %2414 = vmatpush.msra.mxu0 %v143
    %2415 = vmatpush.msra.mxu0 %v139
    %2416 = vmatpush.msra.mxu0 %v135
    %2417 = vmatpush.msra.mxu0 %v131
    %2418 = vmatpush.msra.mxu0 %v127
    %2419 = vmatpush.msra.mxu0 %v123
    %2420 = vmatpush.msra.mxu0 %v119
    %2421 = vmatpush.msra.mxu0 %v115
    %2422 = vmatpush.msra.mxu0 %v111
    %2423 = vmatmul.f32.gmra.mxu0 %v2406
    %v2424 = vpop.f32.mrf.mxu0
    %v2425 = vadd.f32 0.0, %v2424
    %2426 = vdwg.mxu0
    %2427 = vmatpush.msra.mxu0 %v172
    %2428 = vmatpush.msra.mxu0 %v168
    %2429 = vmatpush.msra.mxu0 %v164
    %2430 = vmatpush.msra.mxu0 %v160
    %2431 = vmatpush.msra.mxu0 %v156
    %2432 = vmatpush.msra.mxu0 %v152
    %2433 = vmatpush.msra.mxu0 %v148
    %2434 = vmatpush.msra.mxu0 %v144
    %2435 = vmatpush.msra.mxu0 %v140
    %2436 = vmatpush.msra.mxu0 %v136
    %2437 = vmatpush.msra.mxu0 %v132
    %2438 = vmatpush.msra.mxu0 %v128
    %2439 = vmatpush.msra.mxu0 %v124
    %2440 = vmatpush.msra.mxu0 %v120
    %2441 = vmatpush.msra.mxu0 %v116
    %2442 = vmatpush.msra.mxu0 %v112
    %2443 = vmatmul.f32.gmra.mxu0 %v2406
    %v2444 = vpop.f32.mrf.mxu0
    %v2445 = vadd.f32 0.0, %v2444
    %2446 = vdwg.mxu0
    %2447 = vmatpush.msra.mxu0 %v173
    %2448 = vmatpush.msra.mxu0 %v169
    %2449 = vmatpush.msra.mxu0 %v165
    %2450 = vmatpush.msra.mxu0 %v161
    %2451 = vmatpush.msra.mxu0 %v157
    %2452 = vmatpush.msra.mxu0 %v153
    %2453 = vmatpush.msra.mxu0 %v149
    %2454 = vmatpush.msra.mxu0 %v145
    %2455 = vmatpush.msra.mxu0 %v141
    %2456 = vmatpush.msra.mxu0 %v137
    %2457 = vmatpush.msra.mxu0 %v133
    %2458 = vmatpush.msra.mxu0 %v129
    %2459 = vmatpush.msra.mxu0 %v125
    %2460 = vmatpush.msra.mxu0 %v121
    %2461 = vmatpush.msra.mxu0 %v117
    %2462 = vmatpush.msra.mxu0 %v113
    %2463 = vmatmul.f32.gmra.mxu0 %v2406
    %v2464 = vpop.f32.mrf.mxu0
    %v2465 = vadd.f32 0.0, %v2464
    %2466 = vdwg.mxu0
    %2467 = vmatpush.msra.mxu0 %v174
    %2468 = vmatpush.msra.mxu0 %v170
    %2469 = vmatpush.msra.mxu0 %v166
    %2470 = vmatpush.msra.mxu0 %v162
    %2471 = vmatpush.msra.mxu0 %v158
    %2472 = vmatpush.msra.mxu0 %v154
    %2473 = vmatpush.msra.mxu0 %v150
    %2474 = vmatpush.msra.mxu0 %v146
    %2475 = vmatpush.msra.mxu0 %v142
    %2476 = vmatpush.msra.mxu0 %v138
    %2477 = vmatpush.msra.mxu0 %v134
    %2478 = vmatpush.msra.mxu0 %v130
    %2479 = vmatpush.msra.mxu0 %v126
    %2480 = vmatpush.msra.mxu0 %v122
    %2481 = vmatpush.msra.mxu0 %v118
    %2482 = vmatpush.msra.mxu0 %v114
    %2483 = vmatmul.f32.gmra.mxu0 %v2406
    %v2484 = vpop.f32.mrf.mxu0
    %v2485 = vadd.f32 0.0, %v2484
    %2486 = vdwg.mxu0
    %v2487 = vadd.f32 %v291, %v2425
    %v2488 = vadd.f32 %v356, %v2445
    %v2489 = vadd.f32 %v421, %v2465
    %v2490 = vadd.f32 %v486, %v2485
    %v2491 = vxor.u32 %v2487, 2147483648
    %v2492 = vmul.f32 %v2491, 1.442695
    %v2493 = vpow.pop %v2492
    %v2494 = vadd.f32 %v2493, 1.0
    %v2495 = vrcp.pop %v2494
    %v2496 = vmul.f32 %v2494, %v2495
    %v2497 = vsub.f32 1.0, %v2496
    %v2498 = vmul.f32 %v2495, %v2497
    %v2499 = vadd.f32 %v2495, %v2498
    %vm2500 = vweird.f32 %v2494
    %vm2501 = vweird.f32 %v2495
    %vm2502 = vmor %vm2500, %vm2501
    %v2503 = vsel %vm2502, %v2495, %v2499
    %v2504 = vand.u32 2147483647, %v2494
    %vm2505 = vcmp.eq.f32.partialorder %v2504, 8.507059e+37
    %v2506 = vand.u32 %v2494, 2147483648
    %v2507 = vor.u32 1.1754944e-38, %v2506
    %v2508 = vsel %vm2505, %v2507, %v2503
    %v2509 = vmul.f32 1.0, %v2508
    %v2510 = vxor.u32 %v2488, 2147483648
    %v2511 = vmul.f32 %v2510, 1.442695
    %v2512 = vpow.pop %v2511
    %v2513 = vadd.f32 %v2512, 1.0
    %v2514 = vrcp.pop %v2513
    %v2515 = vmul.f32 %v2513, %v2514
    %v2516 = vsub.f32 1.0, %v2515
    %v2517 = vmul.f32 %v2514, %v2516
    %v2518 = vadd.f32 %v2514, %v2517
    %vm2519 = vweird.f32 %v2513
    %vm2520 = vweird.f32 %v2514
    %vm2521 = vmor %vm2519, %vm2520
    %v2522 = vsel %vm2521, %v2514, %v2518
    %v2523 = vand.u32 2147483647, %v2513
    %vm2524 = vcmp.eq.f32.partialorder %v2523, 8.507059e+37
    %v2525 = vand.u32 %v2513, 2147483648
    %v2526 = vor.u32 1.1754944e-38, %v2525
    %v2527 = vsel %vm2524, %v2526, %v2522
    %v2528 = vmul.f32 1.0, %v2527
    %v2529 = vtanh.pop %v2489
    %v2530 = vxor.u32 %v2490, 2147483648
    %v2531 = vmul.f32 %v2530, 1.442695
    %v2532 = vpow.pop %v2531
    %v2533 = vadd.f32 %v2532, 1.0
    %v2534 = vrcp.pop %v2533
    %v2535 = vmul.f32 %v2533, %v2534
    %v2536 = vsub.f32 1.0, %v2535
    %v2537 = vmul.f32 %v2534, %v2536
    %v2538 = vadd.f32 %v2534, %v2537
    %vm2539 = vweird.f32 %v2533
    %vm2540 = vweird.f32 %v2534
    %vm2541 = vmor %vm2539, %vm2540
    %v2542 = vsel %vm2541, %v2534, %v2538
    %v2543 = vand.u32 2147483647, %v2533
    %vm2544 = vcmp.eq.f32.partialorder %v2543, 8.507059e+37
    %v2545 = vand.u32 %v2533, 2147483648
    %v2546 = vor.u32 1.1754944e-38, %v2545
    %v2547 = vsel %vm2544, %v2546, %v2542
    %v2548 = vmul.f32 1.0, %v2547
    %v2549 = vmul.f32 %v2528, %v2404
    %v2550 = vmul.f32 %v2509, %v2529
    %v2551 = vadd.f32 %v2549, %v2550
    %v2552 = vtanh.pop %v2551
    %v2553 = vmul.f32 %v2548, %v2552
    %2554 = vmatpush.msra.mxu0 %v171
    %2555 = vmatpush.msra.mxu0 %v167
    %2556 = vmatpush.msra.mxu0 %v163
    %2557 = vmatpush.msra.mxu0 %v159
    %2558 = vmatpush.msra.mxu0 %v155
    %2559 = vmatpush.msra.mxu0 %v151
    %2560 = vmatpush.msra.mxu0 %v147
    %2561 = vmatpush.msra.mxu0 %v143
    %2562 = vmatpush.msra.mxu0 %v139
    %2563 = vmatpush.msra.mxu0 %v135
    %2564 = vmatpush.msra.mxu0 %v131
    %2565 = vmatpush.msra.mxu0 %v127
    %2566 = vmatpush.msra.mxu0 %v123
    %2567 = vmatpush.msra.mxu0 %v119
    %2568 = vmatpush.msra.mxu0 %v115
    %2569 = vmatpush.msra.mxu0 %v111
    %2570 = vmatmul.f32.gmra.mxu0 %v2553
    %v2571 = vpop.f32.mrf.mxu0
    %v2572 = vadd.f32 0.0, %v2571
    %2573 = vdwg.mxu0
    %2574 = vmatpush.msra.mxu0 %v172
    %2575 = vmatpush.msra.mxu0 %v168
    %2576 = vmatpush.msra.mxu0 %v164
    %2577 = vmatpush.msra.mxu0 %v160
    %2578 = vmatpush.msra.mxu0 %v156
    %2579 = vmatpush.msra.mxu0 %v152
    %2580 = vmatpush.msra.mxu0 %v148
    %2581 = vmatpush.msra.mxu0 %v144
    %2582 = vmatpush.msra.mxu0 %v140
    %2583 = vmatpush.msra.mxu0 %v136
    %2584 = vmatpush.msra.mxu0 %v132
    %2585 = vmatpush.msra.mxu0 %v128
    %2586 = vmatpush.msra.mxu0 %v124
    %2587 = vmatpush.msra.mxu0 %v120
    %2588 = vmatpush.msra.mxu0 %v116
    %2589 = vmatpush.msra.mxu0 %v112
    %2590 = vmatmul.f32.gmra.mxu0 %v2553
    %v2591 = vpop.f32.mrf.mxu0
    %v2592 = vadd.f32 0.0, %v2591
    %2593 = vdwg.mxu0
    %2594 = vmatpush.msra.mxu0 %v173
    %2595 = vmatpush.msra.mxu0 %v169
    %2596 = vmatpush.msra.mxu0 %v165
    %2597 = vmatpush.msra.mxu0 %v161
    %2598 = vmatpush.msra.mxu0 %v157
    %2599 = vmatpush.msra.mxu0 %v153
    %2600 = vmatpush.msra.mxu0 %v149
    %2601 = vmatpush.msra.mxu0 %v145
    %2602 = vmatpush.msra.mxu0 %v141
    %2603 = vmatpush.msra.mxu0 %v137
    %2604 = vmatpush.msra.mxu0 %v133
    %2605 = vmatpush.msra.mxu0 %v129
    %2606 = vmatpush.msra.mxu0 %v125
    %2607 = vmatpush.msra.mxu0 %v121
    %2608 = vmatpush.msra.mxu0 %v117
    %2609 = vmatpush.msra.mxu0 %v113
    %2610 = vmatmul.f32.gmra.mxu0 %v2553
    %v2611 = vpop.f32.mrf.mxu0
    %v2612 = vadd.f32 0.0, %v2611
    %2613 = vdwg.mxu0
    %2614 = vmatpush.msra.mxu0 %v174
    %2615 = vmatpush.msra.mxu0 %v170
    %2616 = vmatpush.msra.mxu0 %v166
    %2617 = vmatpush.msra.mxu0 %v162
    %2618 = vmatpush.msra.mxu0 %v158
    %2619 = vmatpush.msra.mxu0 %v154
    %2620 = vmatpush.msra.mxu0 %v150
    %2621 = vmatpush.msra.mxu0 %v146
    %2622 = vmatpush.msra.mxu0 %v142
    %2623 = vmatpush.msra.mxu0 %v138
    %2624 = vmatpush.msra.mxu0 %v134
    %2625 = vmatpush.msra.mxu0 %v130
    %2626 = vmatpush.msra.mxu0 %v126
    %2627 = vmatpush.msra.mxu0 %v122
    %2628 = vmatpush.msra.mxu0 %v118
    %2629 = vmatpush.msra.mxu0 %v114
    %2630 = vmatmul.f32.gmra.mxu0 %v2553
    %v2631 = vpop.f32.mrf.mxu0
    %v2632 = vadd.f32 0.0, %v2631
    %2633 = vdwg.mxu0
    %v2634 = vadd.f32 %v294, %v2572
    %v2635 = vadd.f32 %v359, %v2592
    %v2636 = vadd.f32 %v424, %v2612
    %v2637 = vadd.f32 %v489, %v2632
    %v2638 = vxor.u32 %v2634, 2147483648
    %v2639 = vmul.f32 %v2638, 1.442695
    %v2640 = vpow.pop %v2639
    %v2641 = vadd.f32 %v2640, 1.0
    %v2642 = vrcp.pop %v2641
    %v2643 = vmul.f32 %v2641, %v2642
    %v2644 = vsub.f32 1.0, %v2643
    %v2645 = vmul.f32 %v2642, %v2644
    %v2646 = vadd.f32 %v2642, %v2645
    %vm2647 = vweird.f32 %v2641
    %vm2648 = vweird.f32 %v2642
    %vm2649 = vmor %vm2647, %vm2648
    %v2650 = vsel %vm2649, %v2642, %v2646
    %v2651 = vand.u32 2147483647, %v2641
    %vm2652 = vcmp.eq.f32.partialorder %v2651, 8.507059e+37
    %v2653 = vand.u32 %v2641, 2147483648
    %v2654 = vor.u32 1.1754944e-38, %v2653
    %v2655 = vsel %vm2652, %v2654, %v2650
    %v2656 = vmul.f32 1.0, %v2655
    %v2657 = vxor.u32 %v2635, 2147483648
    %v2658 = vmul.f32 %v2657, 1.442695
    %v2659 = vpow.pop %v2658
    %v2660 = vadd.f32 %v2659, 1.0
    %v2661 = vrcp.pop %v2660
    %v2662 = vmul.f32 %v2660, %v2661
    %v2663 = vsub.f32 1.0, %v2662
    %v2664 = vmul.f32 %v2661, %v2663
    %v2665 = vadd.f32 %v2661, %v2664
    %vm2666 = vweird.f32 %v2660
    %vm2667 = vweird.f32 %v2661
    %vm2668 = vmor %vm2666, %vm2667
    %v2669 = vsel %vm2668, %v2661, %v2665
    %v2670 = vand.u32 2147483647, %v2660
    %vm2671 = vcmp.eq.f32.partialorder %v2670, 8.507059e+37
    %v2672 = vand.u32 %v2660, 2147483648
    %v2673 = vor.u32 1.1754944e-38, %v2672
    %v2674 = vsel %vm2671, %v2673, %v2669
    %v2675 = vmul.f32 1.0, %v2674
    %v2676 = vtanh.pop %v2636
    %v2677 = vxor.u32 %v2637, 2147483648
    %v2678 = vmul.f32 %v2677, 1.442695
    %v2679 = vpow.pop %v2678
    %v2680 = vadd.f32 %v2679, 1.0
    %v2681 = vrcp.pop %v2680
    %v2682 = vmul.f32 %v2680, %v2681
    %v2683 = vsub.f32 1.0, %v2682
    %v2684 = vmul.f32 %v2681, %v2683
    %v2685 = vadd.f32 %v2681, %v2684
    %vm2686 = vweird.f32 %v2680
    %vm2687 = vweird.f32 %v2681
    %vm2688 = vmor %vm2686, %vm2687
    %v2689 = vsel %vm2688, %v2681, %v2685
    %v2690 = vand.u32 2147483647, %v2680
    %vm2691 = vcmp.eq.f32.partialorder %v2690, 8.507059e+37
    %v2692 = vand.u32 %v2680, 2147483648
    %v2693 = vor.u32 1.1754944e-38, %v2692
    %v2694 = vsel %vm2691, %v2693, %v2689
    %v2695 = vmul.f32 1.0, %v2694
    %v2696 = vmul.f32 %v2675, %v2551
    %v2697 = vmul.f32 %v2656, %v2676
    %v2698 = vadd.f32 %v2696, %v2697
    %v2699 = vtanh.pop %v2698
    %v2700 = vmul.f32 %v2695, %v2699
    %2701 = vmatpush.msra.mxu0 %v171
    %2702 = vmatpush.msra.mxu0 %v167
    %2703 = vmatpush.msra.mxu0 %v163
    %2704 = vmatpush.msra.mxu0 %v159
    %2705 = vmatpush.msra.mxu0 %v155
    %2706 = vmatpush.msra.mxu0 %v151
    %2707 = vmatpush.msra.mxu0 %v147
    %2708 = vmatpush.msra.mxu0 %v143
    %2709 = vmatpush.msra.mxu0 %v139
    %2710 = vmatpush.msra.mxu0 %v135
    %2711 = vmatpush.msra.mxu0 %v131
    %2712 = vmatpush.msra.mxu0 %v127
    %2713 = vmatpush.msra.mxu0 %v123
    %2714 = vmatpush.msra.mxu0 %v119
    %2715 = vmatpush.msra.mxu0 %v115
    %2716 = vmatpush.msra.mxu0 %v111
    %2717 = vmatmul.f32.gmra.mxu0 %v2700
    %v2718 = vpop.f32.mrf.mxu0
    %v2719 = vadd.f32 0.0, %v2718
    %2720 = vdwg.mxu0
    %2721 = vmatpush.msra.mxu0 %v172
    %2722 = vmatpush.msra.mxu0 %v168
    %2723 = vmatpush.msra.mxu0 %v164
    %2724 = vmatpush.msra.mxu0 %v160
    %2725 = vmatpush.msra.mxu0 %v156
    %2726 = vmatpush.msra.mxu0 %v152
    %2727 = vmatpush.msra.mxu0 %v148
    %2728 = vmatpush.msra.mxu0 %v144
    %2729 = vmatpush.msra.mxu0 %v140
    %2730 = vmatpush.msra.mxu0 %v136
    %2731 = vmatpush.msra.mxu0 %v132
    %2732 = vmatpush.msra.mxu0 %v128
    %2733 = vmatpush.msra.mxu0 %v124
    %2734 = vmatpush.msra.mxu0 %v120
    %2735 = vmatpush.msra.mxu0 %v116
    %2736 = vmatpush.msra.mxu0 %v112
    %2737 = vmatmul.f32.gmra.mxu0 %v2700
    %v2738 = vpop.f32.mrf.mxu0
    %v2739 = vadd.f32 0.0, %v2738
    %2740 = vdwg.mxu0
    %2741 = vmatpush.msra.mxu0 %v173
    %2742 = vmatpush.msra.mxu0 %v169
    %2743 = vmatpush.msra.mxu0 %v165
    %2744 = vmatpush.msra.mxu0 %v161
    %2745 = vmatpush.msra.mxu0 %v157
    %2746 = vmatpush.msra.mxu0 %v153
    %2747 = vmatpush.msra.mxu0 %v149
    %2748 = vmatpush.msra.mxu0 %v145
    %2749 = vmatpush.msra.mxu0 %v141
    %2750 = vmatpush.msra.mxu0 %v137
    %2751 = vmatpush.msra.mxu0 %v133
    %2752 = vmatpush.msra.mxu0 %v129
    %2753 = vmatpush.msra.mxu0 %v125
    %2754 = vmatpush.msra.mxu0 %v121
    %2755 = vmatpush.msra.mxu0 %v117
    %2756 = vmatpush.msra.mxu0 %v113
    %2757 = vmatmul.f32.gmra.mxu0 %v2700
    %v2758 = vpop.f32.mrf.mxu0
    %v2759 = vadd.f32 0.0, %v2758
    %2760 = vdwg.mxu0
    %2761 = vmatpush.msra.mxu0 %v174
    %2762 = vmatpush.msra.mxu0 %v170
    %2763 = vmatpush.msra.mxu0 %v166
    %2764 = vmatpush.msra.mxu0 %v162
    %2765 = vmatpush.msra.mxu0 %v158
    %2766 = vmatpush.msra.mxu0 %v154
    %2767 = vmatpush.msra.mxu0 %v150
    %2768 = vmatpush.msra.mxu0 %v146
    %2769 = vmatpush.msra.mxu0 %v142
    %2770 = vmatpush.msra.mxu0 %v138
    %2771 = vmatpush.msra.mxu0 %v134
    %2772 = vmatpush.msra.mxu0 %v130
    %2773 = vmatpush.msra.mxu0 %v126
    %2774 = vmatpush.msra.mxu0 %v122
    %2775 = vmatpush.msra.mxu0 %v118
    %2776 = vmatpush.msra.mxu0 %v114
    %2777 = vmatmul.f32.gmra.mxu0 %v2700
    %v2778 = vpop.f32.mrf.mxu0
    %v2779 = vadd.f32 0.0, %v2778
    %2780 = vdwg.mxu0
    %v2781 = vadd.f32 %v297, %v2719
    %v2782 = vadd.f32 %v362, %v2739
    %v2783 = vadd.f32 %v427, %v2759
    %v2784 = vadd.f32 %v492, %v2779
    %v2785 = vxor.u32 %v2781, 2147483648
    %v2786 = vmul.f32 %v2785, 1.442695
    %v2787 = vpow.pop %v2786
    %v2788 = vadd.f32 %v2787, 1.0
    %v2789 = vrcp.pop %v2788
    %v2790 = vmul.f32 %v2788, %v2789
    %v2791 = vsub.f32 1.0, %v2790
    %v2792 = vmul.f32 %v2789, %v2791
    %v2793 = vadd.f32 %v2789, %v2792
    %vm2794 = vweird.f32 %v2788
    %vm2795 = vweird.f32 %v2789
    %vm2796 = vmor %vm2794, %vm2795
    %v2797 = vsel %vm2796, %v2789, %v2793
    %v2798 = vand.u32 2147483647, %v2788
    %vm2799 = vcmp.eq.f32.partialorder %v2798, 8.507059e+37
    %v2800 = vand.u32 %v2788, 2147483648
    %v2801 = vor.u32 1.1754944e-38, %v2800
    %v2802 = vsel %vm2799, %v2801, %v2797
    %v2803 = vmul.f32 1.0, %v2802
    %v2804 = vxor.u32 %v2782, 2147483648
    %v2805 = vmul.f32 %v2804, 1.442695
    %v2806 = vpow.pop %v2805
    %v2807 = vadd.f32 %v2806, 1.0
    %v2808 = vrcp.pop %v2807
    %v2809 = vmul.f32 %v2807, %v2808
    %v2810 = vsub.f32 1.0, %v2809
    %v2811 = vmul.f32 %v2808, %v2810
    %v2812 = vadd.f32 %v2808, %v2811
    %vm2813 = vweird.f32 %v2807
    %vm2814 = vweird.f32 %v2808
    %vm2815 = vmor %vm2813, %vm2814
    %v2816 = vsel %vm2815, %v2808, %v2812
    %v2817 = vand.u32 2147483647, %v2807
    %vm2818 = vcmp.eq.f32.partialorder %v2817, 8.507059e+37
    %v2819 = vand.u32 %v2807, 2147483648
    %v2820 = vor.u32 1.1754944e-38, %v2819
    %v2821 = vsel %vm2818, %v2820, %v2816
    %v2822 = vmul.f32 1.0, %v2821
    %v2823 = vtanh.pop %v2783
    %v2824 = vxor.u32 %v2784, 2147483648
    %v2825 = vmul.f32 %v2824, 1.442695
    %v2826 = vpow.pop %v2825
    %v2827 = vadd.f32 %v2826, 1.0
    %v2828 = vrcp.pop %v2827
    %v2829 = vmul.f32 %v2827, %v2828
    %v2830 = vsub.f32 1.0, %v2829
    %v2831 = vmul.f32 %v2828, %v2830
    %v2832 = vadd.f32 %v2828, %v2831
    %vm2833 = vweird.f32 %v2827
    %vm2834 = vweird.f32 %v2828
    %vm2835 = vmor %vm2833, %vm2834
    %v2836 = vsel %vm2835, %v2828, %v2832
    %v2837 = vand.u32 2147483647, %v2827
    %vm2838 = vcmp.eq.f32.partialorder %v2837, 8.507059e+37
    %v2839 = vand.u32 %v2827, 2147483648
    %v2840 = vor.u32 1.1754944e-38, %v2839
    %v2841 = vsel %vm2838, %v2840, %v2836
    %v2842 = vmul.f32 1.0, %v2841
    %v2843 = vmul.f32 %v2822, %v2698
    %v2844 = vmul.f32 %v2803, %v2823
    %v2845 = vadd.f32 %v2843, %v2844
    %v2846 = vtanh.pop %v2845
    %v2847 = vmul.f32 %v2842, %v2846
    %2848 = vst [vmem:[#allocation2] sm:$0xff] %v2847
    %2849 = vst [vmem:[#allocation3] sm:$0xff] %v2845
    %v2850 = vld [vmem:[#allocation8] sm:$0xff]
    %v2851 = vld [vmem:[#allocation8 + $0x8] sm:$0xff]
    %v2852 = vld [vmem:[#allocation8 + $0x10] sm:$0xff]
    %v2853 = vld [vmem:[#allocation8 + $0x18] sm:$0xff]
    %v2854 = vld [vmem:[#allocation8 + $0x20] sm:$0xff]
    %v2855 = vld [vmem:[#allocation8 + $0x28] sm:$0xff]
    %v2856 = vld [vmem:[#allocation8 + $0x30] sm:$0xff]
    %v2857 = vld [vmem:[#allocation8 + $0x38] sm:$0xff]
    %v2858 = vld [vmem:[#allocation8 + $0x40] sm:$0xff]
    %v2859 = vld [vmem:[#allocation8 + $0x48] sm:$0xff]
    %v2860 = vld [vmem:[#allocation8 + $0x50] sm:$0xff]
    %v2861 = vld [vmem:[#allocation8 + $0x58] sm:$0xff]
    %v2862 = vld [vmem:[#allocation8 + $0x60] sm:$0xff]
    %v2863 = vld [vmem:[#allocation8 + $0x68] sm:$0xff]
    %v2864 = vld [vmem:[#allocation8 + $0x70] sm:$0xff]
    %v2865 = vld [vmem:[#allocation8 + $0x78] sm:$0xff]
    %v2866 = vld [vmem:[#allocation8 + $0x80] sm:$0xff]
    %v2867 = vld [vmem:[#allocation8 + $0x88] sm:$0xff]
    %v2868 = vld [vmem:[#allocation8 + $0x90] sm:$0xff]
    %v2869 = vld [vmem:[#allocation8 + $0x98] sm:$0xff]
    %v2870 = vld [vmem:[#allocation8 + $0xa0] sm:$0xff]
    %v2871 = vld [vmem:[#allocation8 + $0xa8] sm:$0xff]
    %v2872 = vld [vmem:[#allocation8 + $0xb0] sm:$0xff]
    %v2873 = vld [vmem:[#allocation8 + $0xb8] sm:$0xff]
    %v2874 = vld [vmem:[#allocation8 + $0xc0] sm:$0xff]
    %v2875 = vld [vmem:[#allocation8 + $0xc8] sm:$0xff]
    %v2876 = vld [vmem:[#allocation8 + $0xd0] sm:$0xff]
    %v2877 = vld [vmem:[#allocation8 + $0xd8] sm:$0xff]
    %v2878 = vld [vmem:[#allocation8 + $0xe0] sm:$0xff]
    %v2879 = vld [vmem:[#allocation8 + $0xe8] sm:$0xff]
    %v2880 = vld [vmem:[#allocation8 + $0xf0] sm:$0xff]
    %v2881 = vld [vmem:[#allocation8 + $0xf8] sm:$0xff]
    %v2882 = vld [vmem:[#allocation8 + $0x100] sm:$0xff]
    %v2883 = vld [vmem:[#allocation8 + $0x108] sm:$0xff]
    %v2884 = vld [vmem:[#allocation8 + $0x110] sm:$0xff]
    %v2885 = vld [vmem:[#allocation8 + $0x118] sm:$0xff]
    %v2886 = vld [vmem:[#allocation8 + $0x120] sm:$0xff]
    %v2887 = vld [vmem:[#allocation8 + $0x128] sm:$0xff]
    %v2888 = vld [vmem:[#allocation8 + $0x130] sm:$0xff]
    %v2889 = vld [vmem:[#allocation8 + $0x138] sm:$0xff]
    %v2890 = vld [vmem:[#allocation8 + $0x140] sm:$0xff]
    %v2891 = vld [vmem:[#allocation8 + $0x148] sm:$0xff]
    %v2892 = vld [vmem:[#allocation8 + $0x150] sm:$0xff]
    %v2893 = vld [vmem:[#allocation8 + $0x158] sm:$0xff]
    %v2894 = vld [vmem:[#allocation8 + $0x160] sm:$0xff]
    %v2895 = vld [vmem:[#allocation8 + $0x168] sm:$0xff]
    %v2896 = vld [vmem:[#allocation8 + $0x170] sm:$0xff]
    %v2897 = vld [vmem:[#allocation8 + $0x178] sm:$0xff]
    %v2898 = vld [vmem:[#allocation8 + $0x180] sm:$0xff]
    %v2899 = vld [vmem:[#allocation8 + $0x188] sm:$0xff]
    %v2900 = vld [vmem:[#allocation8 + $0x190] sm:$0xff]
    %v2901 = vld [vmem:[#allocation8 + $0x198] sm:$0xff]
    %v2902 = vld [vmem:[#allocation8 + $0x1a0] sm:$0xff]
    %v2903 = vld [vmem:[#allocation8 + $0x1a8] sm:$0xff]
    %v2904 = vld [vmem:[#allocation8 + $0x1b0] sm:$0xff]
    %v2905 = vld [vmem:[#allocation8 + $0x1b8] sm:$0xff]
    %v2906 = vld [vmem:[#allocation8 + $0x1c0] sm:$0xff]
    %v2907 = vld [vmem:[#allocation8 + $0x1c8] sm:$0xff]
    %v2908 = vld [vmem:[#allocation8 + $0x1d0] sm:$0xff]
    %v2909 = vld [vmem:[#allocation8 + $0x1d8] sm:$0xff]
    %v2910 = vld [vmem:[#allocation8 + $0x1e0] sm:$0xff]
    %v2911 = vld [vmem:[#allocation8 + $0x1e8] sm:$0xff]
    %v2912 = vld [vmem:[#allocation8 + $0x1f0] sm:$0xff]
    %v2913 = vld [vmem:[#allocation8 + $0x1f8] sm:$0xff]
    %v2914 = vld [vmem:[#allocation10] sm:$0xff]
    %v2915 = vld [vmem:[#allocation10 + $0x8] sm:$0xff]
    %v2916 = vld [vmem:[#allocation10 + $0x10] sm:$0xff]
    %v2917 = vld [vmem:[#allocation10 + $0x18] sm:$0xff]
    %v2918 = vld [vmem:[#allocation10 + $0x20] sm:$0xff]
    %v2919 = vld [vmem:[#allocation10 + $0x28] sm:$0xff]
    %v2920 = vld [vmem:[#allocation10 + $0x30] sm:$0xff]
    %v2921 = vld [vmem:[#allocation10 + $0x38] sm:$0xff]
    %v2922 = vld [vmem:[#allocation10 + $0x40] sm:$0xff]
    %v2923 = vld [vmem:[#allocation10 + $0x48] sm:$0xff]
    %v2924 = vld [vmem:[#allocation10 + $0x50] sm:$0xff]
    %v2925 = vld [vmem:[#allocation10 + $0x58] sm:$0xff]
    %v2926 = vld [vmem:[#allocation10 + $0x60] sm:$0xff]
    %v2927 = vld [vmem:[#allocation10 + $0x68] sm:$0xff]
    %v2928 = vld [vmem:[#allocation10 + $0x70] sm:$0xff]
    %v2929 = vld [vmem:[#allocation10 + $0x78] sm:$0xff]
    %v2930 = vld [vmem:[#allocation10 + $0x80] sm:$0xff]
    %v2931 = vld [vmem:[#allocation10 + $0x88] sm:$0xff]
    %v2932 = vld [vmem:[#allocation10 + $0x90] sm:$0xff]
    %v2933 = vld [vmem:[#allocation10 + $0x98] sm:$0xff]
    %v2934 = vld [vmem:[#allocation10 + $0xa0] sm:$0xff]
    %v2935 = vld [vmem:[#allocation10 + $0xa8] sm:$0xff]
    %v2936 = vld [vmem:[#allocation10 + $0xb0] sm:$0xff]
    %v2937 = vld [vmem:[#allocation10 + $0xb8] sm:$0xff]
    %v2938 = vld [vmem:[#allocation10 + $0xc0] sm:$0xff]
    %v2939 = vld [vmem:[#allocation10 + $0xc8] sm:$0xff]
    %v2940 = vld [vmem:[#allocation10 + $0xd0] sm:$0xff]
    %v2941 = vld [vmem:[#allocation10 + $0xd8] sm:$0xff]
    %v2942 = vld [vmem:[#allocation10 + $0xe0] sm:$0xff]
    %v2943 = vld [vmem:[#allocation10 + $0xe8] sm:$0xff]
    %v2944 = vld [vmem:[#allocation10 + $0xf0] sm:$0xff]
    %v2945 = vld [vmem:[#allocation10 + $0xf8] sm:$0xff]
    %v2946 = vld [vmem:[#allocation10 + $0x100] sm:$0xff]
    %v2947 = vld [vmem:[#allocation10 + $0x108] sm:$0xff]
    %v2948 = vld [vmem:[#allocation10 + $0x110] sm:$0xff]
    %v2949 = vld [vmem:[#allocation10 + $0x118] sm:$0xff]
    %v2950 = vld [vmem:[#allocation10 + $0x120] sm:$0xff]
    %v2951 = vld [vmem:[#allocation10 + $0x128] sm:$0xff]
    %v2952 = vld [vmem:[#allocation10 + $0x130] sm:$0xff]
    %v2953 = vld [vmem:[#allocation10 + $0x138] sm:$0xff]
    %v2954 = vld [vmem:[#allocation10 + $0x140] sm:$0xff]
    %v2955 = vld [vmem:[#allocation10 + $0x148] sm:$0xff]
    %v2956 = vld [vmem:[#allocation10 + $0x150] sm:$0xff]
    %v2957 = vld [vmem:[#allocation10 + $0x158] sm:$0xff]
    %v2958 = vld [vmem:[#allocation10 + $0x160] sm:$0xff]
    %v2959 = vld [vmem:[#allocation10 + $0x168] sm:$0xff]
    %v2960 = vld [vmem:[#allocation10 + $0x170] sm:$0xff]
    %v2961 = vld [vmem:[#allocation10 + $0x178] sm:$0xff]
    %v2962 = vld [vmem:[#allocation10 + $0x180] sm:$0xff]
    %v2963 = vld [vmem:[#allocation10 + $0x188] sm:$0xff]
    %v2964 = vld [vmem:[#allocation10 + $0x190] sm:$0xff]
    %v2965 = vld [vmem:[#allocation10 + $0x198] sm:$0xff]
    %v2966 = vld [vmem:[#allocation10 + $0x1a0] sm:$0xff]
    %v2967 = vld [vmem:[#allocation10 + $0x1a8] sm:$0xff]
    %v2968 = vld [vmem:[#allocation10 + $0x1b0] sm:$0xff]
    %v2969 = vld [vmem:[#allocation10 + $0x1b8] sm:$0xff]
    %v2970 = vld [vmem:[#allocation10 + $0x1c0] sm:$0xff]
    %v2971 = vld [vmem:[#allocation10 + $0x1c8] sm:$0xff]
    %v2972 = vld [vmem:[#allocation10 + $0x1d0] sm:$0xff]
    %v2973 = vld [vmem:[#allocation10 + $0x1d8] sm:$0xff]
    %v2974 = vld [vmem:[#allocation10 + $0x1e0] sm:$0xff]
    %v2975 = vld [vmem:[#allocation10 + $0x1e8] sm:$0xff]
    %v2976 = vld [vmem:[#allocation10 + $0x1f0] sm:$0xff]
    %v2977 = vld [vmem:[#allocation10 + $0x1f8] sm:$0xff]
    %v2978 = vld [vmem:[%s6] sm:$0xf]
    %v2980 = vperm.slane %v2978, 0
    %v2981 = vperm.slane %v2978, 1
    %v2982 = vperm.slane %v2978, 2
    %v2983 = vperm.slane %v2978, 3
    %2988 = vmatpush.msra.mxu0 %v2910
    %2989 = vmatpush.msra.mxu0 %v2906
    %2990 = vmatpush.msra.mxu0 %v2902
    %2991 = vmatpush.msra.mxu0 %v2898
    %2992 = vmatpush.msra.mxu0 %v2894
    %2993 = vmatpush.msra.mxu0 %v2890
    %2994 = vmatpush.msra.mxu0 %v2886
    %2995 = vmatpush.msra.mxu0 %v2882
    %2996 = vmatpush.msra.mxu0 %v2878
    %2997 = vmatpush.msra.mxu0 %v2874
    %2998 = vmatpush.msra.mxu0 %v2870
    %2999 = vmatpush.msra.mxu0 %v2866
    %3000 = vmatpush.msra.mxu0 %v2862
    %3001 = vmatpush.msra.mxu0 %v2858
    %3002 = vmatpush.msra.mxu0 %v2854
    %3003 = vmatpush.msra.mxu0 %v2850
    %3004 = vmatmul.f32.gmra.mxu0 %v642
    %v3005 = vpop.f32.mrf.mxu0
    %v3006 = vadd.f32 %v2980, %v3005
    %3007 = vmatmul.f32.gmra.mxu0 %v789
    %v3008 = vpop.f32.mrf.mxu0
    %v3009 = vadd.f32 %v2980, %v3008
    %3010 = vmatmul.f32.gmra.mxu0 %v936
    %v3011 = vpop.f32.mrf.mxu0
    %v3012 = vadd.f32 %v2980, %v3011
    %3013 = vmatmul.f32.gmra.mxu0 %v1083
    %v3014 = vpop.f32.mrf.mxu0
    %v3015 = vadd.f32 %v2980, %v3014
    %3016 = vmatmul.f32.gmra.mxu0 %v1230
    %v3017 = vpop.f32.mrf.mxu0
    %v3018 = vadd.f32 %v2980, %v3017
    %3019 = vmatmul.f32.gmra.mxu0 %v1377
    %v3020 = vpop.f32.mrf.mxu0
    %v3021 = vadd.f32 %v2980, %v3020
    %3022 = vmatmul.f32.gmra.mxu0 %v1524
    %v3023 = vpop.f32.mrf.mxu0
    %v3024 = vadd.f32 %v2980, %v3023
    %3025 = vmatmul.f32.gmra.mxu0 %v1671
    %v3026 = vpop.f32.mrf.mxu0
    %v3027 = vadd.f32 %v2980, %v3026
    %3028 = vmatmul.f32.gmra.mxu0 %v1818
    %v3029 = vpop.f32.mrf.mxu0
    %v3030 = vadd.f32 %v2980, %v3029
    %3031 = vmatmul.f32.gmra.mxu0 %v1965
    %v3032 = vpop.f32.mrf.mxu0
    %v3033 = vadd.f32 %v2980, %v3032
    %3034 = vmatmul.f32.gmra.mxu0 %v2112
    %v3035 = vpop.f32.mrf.mxu0
    %v3036 = vadd.f32 %v2980, %v3035
    %3037 = vmatmul.f32.gmra.mxu0 %v2259
    %v3038 = vpop.f32.mrf.mxu0
    %v3039 = vadd.f32 %v2980, %v3038
    %3040 = vmatmul.f32.gmra.mxu0 %v2406
    %v3041 = vpop.f32.mrf.mxu0
    %v3042 = vadd.f32 %v2980, %v3041
    %3043 = vmatmul.f32.gmra.mxu0 %v2553
    %v3044 = vpop.f32.mrf.mxu0
    %v3045 = vadd.f32 %v2980, %v3044
    %3046 = vmatmul.f32.gmra.mxu0 %v2700
    %v3047 = vpop.f32.mrf.mxu0
    %v3048 = vadd.f32 %v2980, %v3047
    %3049 = vmatmul.f32.gmra.mxu0 %v2847
    %v3050 = vpop.f32.mrf.mxu0
    %v3051 = vadd.f32 %v2980, %v3050
    %3052 = vdwg.mxu0
    %3053 = vmatpush.msra.mxu0 %v2911
    %3054 = vmatpush.msra.mxu0 %v2907
    %3055 = vmatpush.msra.mxu0 %v2903
    %3056 = vmatpush.msra.mxu0 %v2899
    %3057 = vmatpush.msra.mxu0 %v2895
    %3058 = vmatpush.msra.mxu0 %v2891
    %3059 = vmatpush.msra.mxu0 %v2887
    %3060 = vmatpush.msra.mxu0 %v2883
    %3061 = vmatpush.msra.mxu0 %v2879
    %3062 = vmatpush.msra.mxu0 %v2875
    %3063 = vmatpush.msra.mxu0 %v2871
    %3064 = vmatpush.msra.mxu0 %v2867
    %3065 = vmatpush.msra.mxu0 %v2863
    %3066 = vmatpush.msra.mxu0 %v2859
    %3067 = vmatpush.msra.mxu0 %v2855
    %3068 = vmatpush.msra.mxu0 %v2851
    %3069 = vmatmul.f32.gmra.mxu0 %v642
    %v3070 = vpop.f32.mrf.mxu0
    %v3071 = vadd.f32 %v2981, %v3070
    %3072 = vmatmul.f32.gmra.mxu0 %v789
    %v3073 = vpop.f32.mrf.mxu0
    %v3074 = vadd.f32 %v2981, %v3073
    %3075 = vmatmul.f32.gmra.mxu0 %v936
    %v3076 = vpop.f32.mrf.mxu0
    %v3077 = vadd.f32 %v2981, %v3076
    %3078 = vmatmul.f32.gmra.mxu0 %v1083
    %v3079 = vpop.f32.mrf.mxu0
    %v3080 = vadd.f32 %v2981, %v3079
    %3081 = vmatmul.f32.gmra.mxu0 %v1230
    %v3082 = vpop.f32.mrf.mxu0
    %v3083 = vadd.f32 %v2981, %v3082
    %3084 = vmatmul.f32.gmra.mxu0 %v1377
    %v3085 = vpop.f32.mrf.mxu0
    %v3086 = vadd.f32 %v2981, %v3085
    %3087 = vmatmul.f32.gmra.mxu0 %v1524
    %v3088 = vpop.f32.mrf.mxu0
    %v3089 = vadd.f32 %v2981, %v3088
    %3090 = vmatmul.f32.gmra.mxu0 %v1671
    %v3091 = vpop.f32.mrf.mxu0
    %v3092 = vadd.f32 %v2981, %v3091
    %3093 = vmatmul.f32.gmra.mxu0 %v1818
    %v3094 = vpop.f32.mrf.mxu0
    %v3095 = vadd.f32 %v2981, %v3094
    %3096 = vmatmul.f32.gmra.mxu0 %v1965
    %v3097 = vpop.f32.mrf.mxu0
    %v3098 = vadd.f32 %v2981, %v3097
    %3099 = vmatmul.f32.gmra.mxu0 %v2112
    %v3100 = vpop.f32.mrf.mxu0
    %v3101 = vadd.f32 %v2981, %v3100
    %3102 = vmatmul.f32.gmra.mxu0 %v2259
    %v3103 = vpop.f32.mrf.mxu0
    %v3104 = vadd.f32 %v2981, %v3103
    %3105 = vmatmul.f32.gmra.mxu0 %v2406
    %v3106 = vpop.f32.mrf.mxu0
    %v3107 = vadd.f32 %v2981, %v3106
    %3108 = vmatmul.f32.gmra.mxu0 %v2553
    %v3109 = vpop.f32.mrf.mxu0
    %v3110 = vadd.f32 %v2981, %v3109
    %3111 = vmatmul.f32.gmra.mxu0 %v2700
    %v3112 = vpop.f32.mrf.mxu0
    %v3113 = vadd.f32 %v2981, %v3112
    %3114 = vmatmul.f32.gmra.mxu0 %v2847
    %v3115 = vpop.f32.mrf.mxu0
    %v3116 = vadd.f32 %v2981, %v3115
    %3117 = vdwg.mxu0
    %3118 = vmatpush.msra.mxu0 %v2912
    %3119 = vmatpush.msra.mxu0 %v2908
    %3120 = vmatpush.msra.mxu0 %v2904
    %3121 = vmatpush.msra.mxu0 %v2900
    %3122 = vmatpush.msra.mxu0 %v2896
    %3123 = vmatpush.msra.mxu0 %v2892
    %3124 = vmatpush.msra.mxu0 %v2888
    %3125 = vmatpush.msra.mxu0 %v2884
    %3126 = vmatpush.msra.mxu0 %v2880
    %3127 = vmatpush.msra.mxu0 %v2876
    %3128 = vmatpush.msra.mxu0 %v2872
    %3129 = vmatpush.msra.mxu0 %v2868
    %3130 = vmatpush.msra.mxu0 %v2864
    %3131 = vmatpush.msra.mxu0 %v2860
    %3132 = vmatpush.msra.mxu0 %v2856
    %3133 = vmatpush.msra.mxu0 %v2852
    %3134 = vmatmul.f32.gmra.mxu0 %v642
    %v3135 = vpop.f32.mrf.mxu0
    %v3136 = vadd.f32 %v2982, %v3135
    %3137 = vmatmul.f32.gmra.mxu0 %v789
    %v3138 = vpop.f32.mrf.mxu0
    %v3139 = vadd.f32 %v2982, %v3138
    %3140 = vmatmul.f32.gmra.mxu0 %v936
    %v3141 = vpop.f32.mrf.mxu0
    %v3142 = vadd.f32 %v2982, %v3141
    %3143 = vmatmul.f32.gmra.mxu0 %v1083
    %v3144 = vpop.f32.mrf.mxu0
    %v3145 = vadd.f32 %v2982, %v3144
    %3146 = vmatmul.f32.gmra.mxu0 %v1230
    %v3147 = vpop.f32.mrf.mxu0
    %v3148 = vadd.f32 %v2982, %v3147
    %3149 = vmatmul.f32.gmra.mxu0 %v1377
    %v3150 = vpop.f32.mrf.mxu0
    %v3151 = vadd.f32 %v2982, %v3150
    %3152 = vmatmul.f32.gmra.mxu0 %v1524
    %v3153 = vpop.f32.mrf.mxu0
    %v3154 = vadd.f32 %v2982, %v3153
    %3155 = vmatmul.f32.gmra.mxu0 %v1671
    %v3156 = vpop.f32.mrf.mxu0
    %v3157 = vadd.f32 %v2982, %v3156
    %3158 = vmatmul.f32.gmra.mxu0 %v1818
    %v3159 = vpop.f32.mrf.mxu0
    %v3160 = vadd.f32 %v2982, %v3159
    %3161 = vmatmul.f32.gmra.mxu0 %v1965
    %v3162 = vpop.f32.mrf.mxu0
    %v3163 = vadd.f32 %v2982, %v3162
    %3164 = vmatmul.f32.gmra.mxu0 %v2112
    %v3165 = vpop.f32.mrf.mxu0
    %v3166 = vadd.f32 %v2982, %v3165
    %3167 = vmatmul.f32.gmra.mxu0 %v2259
    %v3168 = vpop.f32.mrf.mxu0
    %v3169 = vadd.f32 %v2982, %v3168
    %3170 = vmatmul.f32.gmra.mxu0 %v2406
    %v3171 = vpop.f32.mrf.mxu0
    %v3172 = vadd.f32 %v2982, %v3171
    %3173 = vmatmul.f32.gmra.mxu0 %v2553
    %v3174 = vpop.f32.mrf.mxu0
    %v3175 = vadd.f32 %v2982, %v3174
    %3176 = vmatmul.f32.gmra.mxu0 %v2700
    %v3177 = vpop.f32.mrf.mxu0
    %v3178 = vadd.f32 %v2982, %v3177
    %3179 = vmatmul.f32.gmra.mxu0 %v2847
    %v3180 = vpop.f32.mrf.mxu0
    %v3181 = vadd.f32 %v2982, %v3180
    %3182 = vdwg.mxu0
    %3183 = vmatpush.msra.mxu0 %v2913
    %3184 = vmatpush.msra.mxu0 %v2909
    %3185 = vmatpush.msra.mxu0 %v2905
    %3186 = vmatpush.msra.mxu0 %v2901
    %3187 = vmatpush.msra.mxu0 %v2897
    %3188 = vmatpush.msra.mxu0 %v2893
    %3189 = vmatpush.msra.mxu0 %v2889
    %3190 = vmatpush.msra.mxu0 %v2885
    %3191 = vmatpush.msra.mxu0 %v2881
    %3192 = vmatpush.msra.mxu0 %v2877
    %3193 = vmatpush.msra.mxu0 %v2873
    %3194 = vmatpush.msra.mxu0 %v2869
    %3195 = vmatpush.msra.mxu0 %v2865
    %3196 = vmatpush.msra.mxu0 %v2861
    %3197 = vmatpush.msra.mxu0 %v2857
    %3198 = vmatpush.msra.mxu0 %v2853
    %3199 = vmatmul.f32.gmra.mxu0 %v642
    %v3200 = vpop.f32.mrf.mxu0
    %v3201 = vadd.f32 %v2983, %v3200
    %3202 = vmatmul.f32.gmra.mxu0 %v789
    %v3203 = vpop.f32.mrf.mxu0
    %v3204 = vadd.f32 %v2983, %v3203
    %3205 = vmatmul.f32.gmra.mxu0 %v936
    %v3206 = vpop.f32.mrf.mxu0
    %v3207 = vadd.f32 %v2983, %v3206
    %3208 = vmatmul.f32.gmra.mxu0 %v1083
    %v3209 = vpop.f32.mrf.mxu0
    %v3210 = vadd.f32 %v2983, %v3209
    %3211 = vmatmul.f32.gmra.mxu0 %v1230
    %v3212 = vpop.f32.mrf.mxu0
    %v3213 = vadd.f32 %v2983, %v3212
    %3214 = vmatmul.f32.gmra.mxu0 %v1377
    %v3215 = vpop.f32.mrf.mxu0
    %v3216 = vadd.f32 %v2983, %v3215
    %3217 = vmatmul.f32.gmra.mxu0 %v1524
    %v3218 = vpop.f32.mrf.mxu0
    %v3219 = vadd.f32 %v2983, %v3218
    %3220 = vmatmul.f32.gmra.mxu0 %v1671
    %v3221 = vpop.f32.mrf.mxu0
    %v3222 = vadd.f32 %v2983, %v3221
    %3223 = vmatmul.f32.gmra.mxu0 %v1818
    %v3224 = vpop.f32.mrf.mxu0
    %v3225 = vadd.f32 %v2983, %v3224
    %3226 = vmatmul.f32.gmra.mxu0 %v1965
    %v3227 = vpop.f32.mrf.mxu0
    %v3228 = vadd.f32 %v2983, %v3227
    %3229 = vmatmul.f32.gmra.mxu0 %v2112
    %v3230 = vpop.f32.mrf.mxu0
    %v3231 = vadd.f32 %v2983, %v3230
    %3232 = vmatmul.f32.gmra.mxu0 %v2259
    %v3233 = vpop.f32.mrf.mxu0
    %v3234 = vadd.f32 %v2983, %v3233
    %3235 = vmatmul.f32.gmra.mxu0 %v2406
    %v3236 = vpop.f32.mrf.mxu0
    %v3237 = vadd.f32 %v2983, %v3236
    %3238 = vmatmul.f32.gmra.mxu0 %v2553
    %v3239 = vpop.f32.mrf.mxu0
    %v3240 = vadd.f32 %v2983, %v3239
    %3241 = vmatmul.f32.gmra.mxu0 %v2700
    %v3242 = vpop.f32.mrf.mxu0
    %v3243 = vadd.f32 %v2983, %v3242
    %3244 = vmatmul.f32.gmra.mxu0 %v2847
    %v3245 = vpop.f32.mrf.mxu0
    %v3246 = vadd.f32 %v2983, %v3245
    %3247 = vdwg.mxu0
    %v3248 = vld [vmem:[#allocation4] sm:$0xff]
    %v3249 = vld [vmem:[#allocation5] sm:$0xff]
    %3250 = vmatpush.msra.mxu0 %v2974
    %3251 = vmatpush.msra.mxu0 %v2970
    %3252 = vmatpush.msra.mxu0 %v2966
    %3253 = vmatpush.msra.mxu0 %v2962
    %3254 = vmatpush.msra.mxu0 %v2958
    %3255 = vmatpush.msra.mxu0 %v2954
    %3256 = vmatpush.msra.mxu0 %v2950
    %3257 = vmatpush.msra.mxu0 %v2946
    %3258 = vmatpush.msra.mxu0 %v2942
    %3259 = vmatpush.msra.mxu0 %v2938
    %3260 = vmatpush.msra.mxu0 %v2934
    %3261 = vmatpush.msra.mxu0 %v2930
    %3262 = vmatpush.msra.mxu0 %v2926
    %3263 = vmatpush.msra.mxu0 %v2922
    %3264 = vmatpush.msra.mxu0 %v2918
    %3265 = vmatpush.msra.mxu0 %v2914
    %3266 = vmatmul.f32.gmra.mxu0 %v3248
    %v3267 = vpop.f32.mrf.mxu0
    %v3268 = vadd.f32 0.0, %v3267
    %3269 = vdwg.mxu0
    %3270 = vmatpush.msra.mxu0 %v2975
    %3271 = vmatpush.msra.mxu0 %v2971
    %3272 = vmatpush.msra.mxu0 %v2967
    %3273 = vmatpush.msra.mxu0 %v2963
    %3274 = vmatpush.msra.mxu0 %v2959
    %3275 = vmatpush.msra.mxu0 %v2955
    %3276 = vmatpush.msra.mxu0 %v2951
    %3277 = vmatpush.msra.mxu0 %v2947
    %3278 = vmatpush.msra.mxu0 %v2943
    %3279 = vmatpush.msra.mxu0 %v2939
    %3280 = vmatpush.msra.mxu0 %v2935
    %3281 = vmatpush.msra.mxu0 %v2931
    %3282 = vmatpush.msra.mxu0 %v2927
    %3283 = vmatpush.msra.mxu0 %v2923
    %3284 = vmatpush.msra.mxu0 %v2919
    %3285 = vmatpush.msra.mxu0 %v2915
    %3286 = vmatmul.f32.gmra.mxu0 %v3248
    %v3287 = vpop.f32.mrf.mxu0
    %v3288 = vadd.f32 0.0, %v3287
    %3289 = vdwg.mxu0
    %3290 = vmatpush.msra.mxu0 %v2976
    %3291 = vmatpush.msra.mxu0 %v2972
    %3292 = vmatpush.msra.mxu0 %v2968
    %3293 = vmatpush.msra.mxu0 %v2964
    %3294 = vmatpush.msra.mxu0 %v2960
    %3295 = vmatpush.msra.mxu0 %v2956
    %3296 = vmatpush.msra.mxu0 %v2952
    %3297 = vmatpush.msra.mxu0 %v2948
    %3298 = vmatpush.msra.mxu0 %v2944
    %3299 = vmatpush.msra.mxu0 %v2940
    %3300 = vmatpush.msra.mxu0 %v2936
    %3301 = vmatpush.msra.mxu0 %v2932
    %3302 = vmatpush.msra.mxu0 %v2928
    %3303 = vmatpush.msra.mxu0 %v2924
    %3304 = vmatpush.msra.mxu0 %v2920
    %3305 = vmatpush.msra.mxu0 %v2916
    %3306 = vmatmul.f32.gmra.mxu0 %v3248
    %v3307 = vpop.f32.mrf.mxu0
    %v3308 = vadd.f32 0.0, %v3307
    %3309 = vdwg.mxu0
    %3310 = vmatpush.msra.mxu0 %v2977
    %3311 = vmatpush.msra.mxu0 %v2973
    %3312 = vmatpush.msra.mxu0 %v2969
    %3313 = vmatpush.msra.mxu0 %v2965
    %3314 = vmatpush.msra.mxu0 %v2961
    %3315 = vmatpush.msra.mxu0 %v2957
    %3316 = vmatpush.msra.mxu0 %v2953
    %3317 = vmatpush.msra.mxu0 %v2949
    %3318 = vmatpush.msra.mxu0 %v2945
    %3319 = vmatpush.msra.mxu0 %v2941
    %3320 = vmatpush.msra.mxu0 %v2937
    %3321 = vmatpush.msra.mxu0 %v2933
    %3322 = vmatpush.msra.mxu0 %v2929
    %3323 = vmatpush.msra.mxu0 %v2925
    %3324 = vmatpush.msra.mxu0 %v2921
    %3325 = vmatpush.msra.mxu0 %v2917
    %3326 = vmatmul.f32.gmra.mxu0 %v3248
    %v3327 = vpop.f32.mrf.mxu0
    %v3328 = vadd.f32 0.0, %v3327
    %3329 = vdwg.mxu0
    %v3330 = vadd.f32 %v3006, %v3268
    %v3331 = vadd.f32 %v3071, %v3288
    %v3332 = vadd.f32 %v3136, %v3308
    %v3333 = vadd.f32 %v3201, %v3328
    %v3334 = vxor.u32 %v3330, 2147483648
    %v3335 = vmul.f32 %v3334, 1.442695
    %v3336 = vpow.pop %v3335
    %v3337 = vadd.f32 %v3336, 1.0
    %v3338 = vrcp.pop %v3337
    %v3339 = vmul.f32 %v3337, %v3338
    %v3340 = vsub.f32 1.0, %v3339
    %v3341 = vmul.f32 %v3338, %v3340
    %v3342 = vadd.f32 %v3338, %v3341
    %vm3343 = vweird.f32 %v3337
    %vm3344 = vweird.f32 %v3338
    %vm3345 = vmor %vm3343, %vm3344
    %v3346 = vsel %vm3345, %v3338, %v3342
    %v3347 = vand.u32 2147483647, %v3337
    %vm3348 = vcmp.eq.f32.partialorder %v3347, 8.507059e+37
    %v3349 = vand.u32 %v3337, 2147483648
    %v3350 = vor.u32 1.1754944e-38, %v3349
    %v3351 = vsel %vm3348, %v3350, %v3346
    %v3352 = vmul.f32 1.0, %v3351
    %v3353 = vxor.u32 %v3331, 2147483648
    %v3354 = vmul.f32 %v3353, 1.442695
    %v3355 = vpow.pop %v3354
    %v3356 = vadd.f32 %v3355, 1.0
    %v3357 = vrcp.pop %v3356
    %v3358 = vmul.f32 %v3356, %v3357
    %v3359 = vsub.f32 1.0, %v3358
    %v3360 = vmul.f32 %v3357, %v3359
    %v3361 = vadd.f32 %v3357, %v3360
    %vm3362 = vweird.f32 %v3356
    %vm3363 = vweird.f32 %v3357
    %vm3364 = vmor %vm3362, %vm3363
    %v3365 = vsel %vm3364, %v3357, %v3361
    %v3366 = vand.u32 2147483647, %v3356
    %vm3367 = vcmp.eq.f32.partialorder %v3366, 8.507059e+37
    %v3368 = vand.u32 %v3356, 2147483648
    %v3369 = vor.u32 1.1754944e-38, %v3368
    %v3370 = vsel %vm3367, %v3369, %v3365
    %v3371 = vmul.f32 1.0, %v3370
    %v3372 = vtanh.pop %v3332
    %v3373 = vxor.u32 %v3333, 2147483648
    %v3374 = vmul.f32 %v3373, 1.442695
    %v3375 = vpow.pop %v3374
    %v3376 = vadd.f32 %v3375, 1.0
    %v3377 = vrcp.pop %v3376
    %v3378 = vmul.f32 %v3376, %v3377
    %v3379 = vsub.f32 1.0, %v3378
    %v3380 = vmul.f32 %v3377, %v3379
    %v3381 = vadd.f32 %v3377, %v3380
    %vm3382 = vweird.f32 %v3376
    %vm3383 = vweird.f32 %v3377
    %vm3384 = vmor %vm3382, %vm3383
    %v3385 = vsel %vm3384, %v3377, %v3381
    %v3386 = vand.u32 2147483647, %v3376
    %vm3387 = vcmp.eq.f32.partialorder %v3386, 8.507059e+37
    %v3388 = vand.u32 %v3376, 2147483648
    %v3389 = vor.u32 1.1754944e-38, %v3388
    %v3390 = vsel %vm3387, %v3389, %v3385
    %v3391 = vmul.f32 1.0, %v3390
    %v3392 = vmul.f32 %v3371, %v3249
    %v3393 = vmul.f32 %v3352, %v3372
    %v3394 = vadd.f32 %v3392, %v3393
    %v3395 = vtanh.pop %v3394
    %v3396 = vmul.f32 %v3391, %v3395
    %3397 = vmatpush.msra.mxu0 %v2974
    %3398 = vmatpush.msra.mxu0 %v2970
    %3399 = vmatpush.msra.mxu0 %v2966
    %3400 = vmatpush.msra.mxu0 %v2962
    %3401 = vmatpush.msra.mxu0 %v2958
    %3402 = vmatpush.msra.mxu0 %v2954
    %3403 = vmatpush.msra.mxu0 %v2950
    %3404 = vmatpush.msra.mxu0 %v2946
    %3405 = vmatpush.msra.mxu0 %v2942
    %3406 = vmatpush.msra.mxu0 %v2938
    %3407 = vmatpush.msra.mxu0 %v2934
    %3408 = vmatpush.msra.mxu0 %v2930
    %3409 = vmatpush.msra.mxu0 %v2926
    %3410 = vmatpush.msra.mxu0 %v2922
    %3411 = vmatpush.msra.mxu0 %v2918
    %3412 = vmatpush.msra.mxu0 %v2914
    %3413 = vmatmul.f32.gmra.mxu0 %v3396
    %v3414 = vpop.f32.mrf.mxu0
    %v3415 = vadd.f32 0.0, %v3414
    %3416 = vdwg.mxu0
    %3417 = vmatpush.msra.mxu0 %v2975
    %3418 = vmatpush.msra.mxu0 %v2971
    %3419 = vmatpush.msra.mxu0 %v2967
    %3420 = vmatpush.msra.mxu0 %v2963
    %3421 = vmatpush.msra.mxu0 %v2959
    %3422 = vmatpush.msra.mxu0 %v2955
    %3423 = vmatpush.msra.mxu0 %v2951
    %3424 = vmatpush.msra.mxu0 %v2947
    %3425 = vmatpush.msra.mxu0 %v2943
    %3426 = vmatpush.msra.mxu0 %v2939
    %3427 = vmatpush.msra.mxu0 %v2935
    %3428 = vmatpush.msra.mxu0 %v2931
    %3429 = vmatpush.msra.mxu0 %v2927
    %3430 = vmatpush.msra.mxu0 %v2923
    %3431 = vmatpush.msra.mxu0 %v2919
    %3432 = vmatpush.msra.mxu0 %v2915
    %3433 = vmatmul.f32.gmra.mxu0 %v3396
    %v3434 = vpop.f32.mrf.mxu0
    %v3435 = vadd.f32 0.0, %v3434
    %3436 = vdwg.mxu0
    %3437 = vmatpush.msra.mxu0 %v2976
    %3438 = vmatpush.msra.mxu0 %v2972
    %3439 = vmatpush.msra.mxu0 %v2968
    %3440 = vmatpush.msra.mxu0 %v2964
    %3441 = vmatpush.msra.mxu0 %v2960
    %3442 = vmatpush.msra.mxu0 %v2956
    %3443 = vmatpush.msra.mxu0 %v2952
    %3444 = vmatpush.msra.mxu0 %v2948
    %3445 = vmatpush.msra.mxu0 %v2944
    %3446 = vmatpush.msra.mxu0 %v2940
    %3447 = vmatpush.msra.mxu0 %v2936
    %3448 = vmatpush.msra.mxu0 %v2932
    %3449 = vmatpush.msra.mxu0 %v2928
    %3450 = vmatpush.msra.mxu0 %v2924
    %3451 = vmatpush.msra.mxu0 %v2920
    %3452 = vmatpush.msra.mxu0 %v2916
    %3453 = vmatmul.f32.gmra.mxu0 %v3396
    %v3454 = vpop.f32.mrf.mxu0
    %v3455 = vadd.f32 0.0, %v3454
    %3456 = vdwg.mxu0
    %3457 = vmatpush.msra.mxu0 %v2977
    %3458 = vmatpush.msra.mxu0 %v2973
    %3459 = vmatpush.msra.mxu0 %v2969
    %3460 = vmatpush.msra.mxu0 %v2965
    %3461 = vmatpush.msra.mxu0 %v2961
    %3462 = vmatpush.msra.mxu0 %v2957
    %3463 = vmatpush.msra.mxu0 %v2953
    %3464 = vmatpush.msra.mxu0 %v2949
    %3465 = vmatpush.msra.mxu0 %v2945
    %3466 = vmatpush.msra.mxu0 %v2941
    %3467 = vmatpush.msra.mxu0 %v2937
    %3468 = vmatpush.msra.mxu0 %v2933
    %3469 = vmatpush.msra.mxu0 %v2929
    %3470 = vmatpush.msra.mxu0 %v2925
    %3471 = vmatpush.msra.mxu0 %v2921
    %3472 = vmatpush.msra.mxu0 %v2917
    %3473 = vmatmul.f32.gmra.mxu0 %v3396
    %v3474 = vpop.f32.mrf.mxu0
    %v3475 = vadd.f32 0.0, %v3474
    %3476 = vdwg.mxu0
    %v3477 = vadd.f32 %v3009, %v3415
    %v3478 = vadd.f32 %v3074, %v3435
    %v3479 = vadd.f32 %v3139, %v3455
    %v3480 = vadd.f32 %v3204, %v3475
    %v3481 = vxor.u32 %v3477, 2147483648
    %v3482 = vmul.f32 %v3481, 1.442695
    %v3483 = vpow.pop %v3482
    %v3484 = vadd.f32 %v3483, 1.0
    %v3485 = vrcp.pop %v3484
    %v3486 = vmul.f32 %v3484, %v3485
    %v3487 = vsub.f32 1.0, %v3486
    %v3488 = vmul.f32 %v3485, %v3487
    %v3489 = vadd.f32 %v3485, %v3488
    %vm3490 = vweird.f32 %v3484
    %vm3491 = vweird.f32 %v3485
    %vm3492 = vmor %vm3490, %vm3491
    %v3493 = vsel %vm3492, %v3485, %v3489
    %v3494 = vand.u32 2147483647, %v3484
    %vm3495 = vcmp.eq.f32.partialorder %v3494, 8.507059e+37
    %v3496 = vand.u32 %v3484, 2147483648
    %v3497 = vor.u32 1.1754944e-38, %v3496
    %v3498 = vsel %vm3495, %v3497, %v3493
    %v3499 = vmul.f32 1.0, %v3498
    %v3500 = vxor.u32 %v3478, 2147483648
    %v3501 = vmul.f32 %v3500, 1.442695
    %v3502 = vpow.pop %v3501
    %v3503 = vadd.f32 %v3502, 1.0
    %v3504 = vrcp.pop %v3503
    %v3505 = vmul.f32 %v3503, %v3504
    %v3506 = vsub.f32 1.0, %v3505
    %v3507 = vmul.f32 %v3504, %v3506
    %v3508 = vadd.f32 %v3504, %v3507
    %vm3509 = vweird.f32 %v3503
    %vm3510 = vweird.f32 %v3504
    %vm3511 = vmor %vm3509, %vm3510
    %v3512 = vsel %vm3511, %v3504, %v3508
    %v3513 = vand.u32 2147483647, %v3503
    %vm3514 = vcmp.eq.f32.partialorder %v3513, 8.507059e+37
    %v3515 = vand.u32 %v3503, 2147483648
    %v3516 = vor.u32 1.1754944e-38, %v3515
    %v3517 = vsel %vm3514, %v3516, %v3512
    %v3518 = vmul.f32 1.0, %v3517
    %v3519 = vtanh.pop %v3479
    %v3520 = vxor.u32 %v3480, 2147483648
    %v3521 = vmul.f32 %v3520, 1.442695
    %v3522 = vpow.pop %v3521
    %v3523 = vadd.f32 %v3522, 1.0
    %v3524 = vrcp.pop %v3523
    %v3525 = vmul.f32 %v3523, %v3524
    %v3526 = vsub.f32 1.0, %v3525
    %v3527 = vmul.f32 %v3524, %v3526
    %v3528 = vadd.f32 %v3524, %v3527
    %vm3529 = vweird.f32 %v3523
    %vm3530 = vweird.f32 %v3524
    %vm3531 = vmor %vm3529, %vm3530
    %v3532 = vsel %vm3531, %v3524, %v3528
    %v3533 = vand.u32 2147483647, %v3523
    %vm3534 = vcmp.eq.f32.partialorder %v3533, 8.507059e+37
    %v3535 = vand.u32 %v3523, 2147483648
    %v3536 = vor.u32 1.1754944e-38, %v3535
    %v3537 = vsel %vm3534, %v3536, %v3532
    %v3538 = vmul.f32 1.0, %v3537
    %v3539 = vmul.f32 %v3518, %v3394
    %v3540 = vmul.f32 %v3499, %v3519
    %v3541 = vadd.f32 %v3539, %v3540
    %v3542 = vtanh.pop %v3541
    %v3543 = vmul.f32 %v3538, %v3542
    %3544 = vmatpush.msra.mxu0 %v2974
    %3545 = vmatpush.msra.mxu0 %v2970
    %3546 = vmatpush.msra.mxu0 %v2966
    %3547 = vmatpush.msra.mxu0 %v2962
    %3548 = vmatpush.msra.mxu0 %v2958
    %3549 = vmatpush.msra.mxu0 %v2954
    %3550 = vmatpush.msra.mxu0 %v2950
    %3551 = vmatpush.msra.mxu0 %v2946
    %3552 = vmatpush.msra.mxu0 %v2942
    %3553 = vmatpush.msra.mxu0 %v2938
    %3554 = vmatpush.msra.mxu0 %v2934
    %3555 = vmatpush.msra.mxu0 %v2930
    %3556 = vmatpush.msra.mxu0 %v2926
    %3557 = vmatpush.msra.mxu0 %v2922
    %3558 = vmatpush.msra.mxu0 %v2918
    %3559 = vmatpush.msra.mxu0 %v2914
    %3560 = vmatmul.f32.gmra.mxu0 %v3543
    %v3561 = vpop.f32.mrf.mxu0
    %v3562 = vadd.f32 0.0, %v3561
    %3563 = vdwg.mxu0
    %3564 = vmatpush.msra.mxu0 %v2975
    %3565 = vmatpush.msra.mxu0 %v2971
    %3566 = vmatpush.msra.mxu0 %v2967
    %3567 = vmatpush.msra.mxu0 %v2963
    %3568 = vmatpush.msra.mxu0 %v2959
    %3569 = vmatpush.msra.mxu0 %v2955
    %3570 = vmatpush.msra.mxu0 %v2951
    %3571 = vmatpush.msra.mxu0 %v2947
    %3572 = vmatpush.msra.mxu0 %v2943
    %3573 = vmatpush.msra.mxu0 %v2939
    %3574 = vmatpush.msra.mxu0 %v2935
    %3575 = vmatpush.msra.mxu0 %v2931
    %3576 = vmatpush.msra.mxu0 %v2927
    %3577 = vmatpush.msra.mxu0 %v2923
    %3578 = vmatpush.msra.mxu0 %v2919
    %3579 = vmatpush.msra.mxu0 %v2915
    %3580 = vmatmul.f32.gmra.mxu0 %v3543
    %v3581 = vpop.f32.mrf.mxu0
    %v3582 = vadd.f32 0.0, %v3581
    %3583 = vdwg.mxu0
    %3584 = vmatpush.msra.mxu0 %v2976
    %3585 = vmatpush.msra.mxu0 %v2972
    %3586 = vmatpush.msra.mxu0 %v2968
    %3587 = vmatpush.msra.mxu0 %v2964
    %3588 = vmatpush.msra.mxu0 %v2960
    %3589 = vmatpush.msra.mxu0 %v2956
    %3590 = vmatpush.msra.mxu0 %v2952
    %3591 = vmatpush.msra.mxu0 %v2948
    %3592 = vmatpush.msra.mxu0 %v2944
    %3593 = vmatpush.msra.mxu0 %v2940
    %3594 = vmatpush.msra.mxu0 %v2936
    %3595 = vmatpush.msra.mxu0 %v2932
    %3596 = vmatpush.msra.mxu0 %v2928
    %3597 = vmatpush.msra.mxu0 %v2924
    %3598 = vmatpush.msra.mxu0 %v2920
    %3599 = vmatpush.msra.mxu0 %v2916
    %3600 = vmatmul.f32.gmra.mxu0 %v3543
    %v3601 = vpop.f32.mrf.mxu0
    %v3602 = vadd.f32 0.0, %v3601
    %3603 = vdwg.mxu0
    %3604 = vmatpush.msra.mxu0 %v2977
    %3605 = vmatpush.msra.mxu0 %v2973
    %3606 = vmatpush.msra.mxu0 %v2969
    %3607 = vmatpush.msra.mxu0 %v2965
    %3608 = vmatpush.msra.mxu0 %v2961
    %3609 = vmatpush.msra.mxu0 %v2957
    %3610 = vmatpush.msra.mxu0 %v2953
    %3611 = vmatpush.msra.mxu0 %v2949
    %3612 = vmatpush.msra.mxu0 %v2945
    %3613 = vmatpush.msra.mxu0 %v2941
    %3614 = vmatpush.msra.mxu0 %v2937
    %3615 = vmatpush.msra.mxu0 %v2933
    %3616 = vmatpush.msra.mxu0 %v2929
    %3617 = vmatpush.msra.mxu0 %v2925
    %3618 = vmatpush.msra.mxu0 %v2921
    %3619 = vmatpush.msra.mxu0 %v2917
    %3620 = vmatmul.f32.gmra.mxu0 %v3543
    %v3621 = vpop.f32.mrf.mxu0
    %v3622 = vadd.f32 0.0, %v3621
    %3623 = vdwg.mxu0
    %v3624 = vadd.f32 %v3012, %v3562
    %v3625 = vadd.f32 %v3077, %v3582
    %v3626 = vadd.f32 %v3142, %v3602
    %v3627 = vadd.f32 %v3207, %v3622
    %v3628 = vxor.u32 %v3624, 2147483648
    %v3629 = vmul.f32 %v3628, 1.442695
    %v3630 = vpow.pop %v3629
    %v3631 = vadd.f32 %v3630, 1.0
    %v3632 = vrcp.pop %v3631
    %v3633 = vmul.f32 %v3631, %v3632
    %v3634 = vsub.f32 1.0, %v3633
    %v3635 = vmul.f32 %v3632, %v3634
    %v3636 = vadd.f32 %v3632, %v3635
    %vm3637 = vweird.f32 %v3631
    %vm3638 = vweird.f32 %v3632
    %vm3639 = vmor %vm3637, %vm3638
    %v3640 = vsel %vm3639, %v3632, %v3636
    %v3641 = vand.u32 2147483647, %v3631
    %vm3642 = vcmp.eq.f32.partialorder %v3641, 8.507059e+37
    %v3643 = vand.u32 %v3631, 2147483648
    %v3644 = vor.u32 1.1754944e-38, %v3643
    %v3645 = vsel %vm3642, %v3644, %v3640
    %v3646 = vmul.f32 1.0, %v3645
    %v3647 = vxor.u32 %v3625, 2147483648
    %v3648 = vmul.f32 %v3647, 1.442695
    %v3649 = vpow.pop %v3648
    %v3650 = vadd.f32 %v3649, 1.0
    %v3651 = vrcp.pop %v3650
    %v3652 = vmul.f32 %v3650, %v3651
    %v3653 = vsub.f32 1.0, %v3652
    %v3654 = vmul.f32 %v3651, %v3653
    %v3655 = vadd.f32 %v3651, %v3654
    %vm3656 = vweird.f32 %v3650
    %vm3657 = vweird.f32 %v3651
    %vm3658 = vmor %vm3656, %vm3657
    %v3659 = vsel %vm3658, %v3651, %v3655
    %v3660 = vand.u32 2147483647, %v3650
    %vm3661 = vcmp.eq.f32.partialorder %v3660, 8.507059e+37
    %v3662 = vand.u32 %v3650, 2147483648
    %v3663 = vor.u32 1.1754944e-38, %v3662
    %v3664 = vsel %vm3661, %v3663, %v3659
    %v3665 = vmul.f32 1.0, %v3664
    %v3666 = vtanh.pop %v3626
    %v3667 = vxor.u32 %v3627, 2147483648
    %v3668 = vmul.f32 %v3667, 1.442695
    %v3669 = vpow.pop %v3668
    %v3670 = vadd.f32 %v3669, 1.0
    %v3671 = vrcp.pop %v3670
    %v3672 = vmul.f32 %v3670, %v3671
    %v3673 = vsub.f32 1.0, %v3672
    %v3674 = vmul.f32 %v3671, %v3673
    %v3675 = vadd.f32 %v3671, %v3674
    %vm3676 = vweird.f32 %v3670
    %vm3677 = vweird.f32 %v3671
    %vm3678 = vmor %vm3676, %vm3677
    %v3679 = vsel %vm3678, %v3671, %v3675
    %v3680 = vand.u32 2147483647, %v3670
    %vm3681 = vcmp.eq.f32.partialorder %v3680, 8.507059e+37
    %v3682 = vand.u32 %v3670, 2147483648
    %v3683 = vor.u32 1.1754944e-38, %v3682
    %v3684 = vsel %vm3681, %v3683, %v3679
    %v3685 = vmul.f32 1.0, %v3684
    %v3686 = vmul.f32 %v3665, %v3541
    %v3687 = vmul.f32 %v3646, %v3666
    %v3688 = vadd.f32 %v3686, %v3687
    %v3689 = vtanh.pop %v3688
    %v3690 = vmul.f32 %v3685, %v3689
    %3691 = vmatpush.msra.mxu0 %v2974
    %3692 = vmatpush.msra.mxu0 %v2970
    %3693 = vmatpush.msra.mxu0 %v2966
    %3694 = vmatpush.msra.mxu0 %v2962
    %3695 = vmatpush.msra.mxu0 %v2958
    %3696 = vmatpush.msra.mxu0 %v2954
    %3697 = vmatpush.msra.mxu0 %v2950
    %3698 = vmatpush.msra.mxu0 %v2946
    %3699 = vmatpush.msra.mxu0 %v2942
    %3700 = vmatpush.msra.mxu0 %v2938
    %3701 = vmatpush.msra.mxu0 %v2934
    %3702 = vmatpush.msra.mxu0 %v2930
    %3703 = vmatpush.msra.mxu0 %v2926
    %3704 = vmatpush.msra.mxu0 %v2922
    %3705 = vmatpush.msra.mxu0 %v2918
    %3706 = vmatpush.msra.mxu0 %v2914
    %3707 = vmatmul.f32.gmra.mxu0 %v3690
    %v3708 = vpop.f32.mrf.mxu0
    %v3709 = vadd.f32 0.0, %v3708
    %3710 = vdwg.mxu0
    %3711 = vmatpush.msra.mxu0 %v2975
    %3712 = vmatpush.msra.mxu0 %v2971
    %3713 = vmatpush.msra.mxu0 %v2967
    %3714 = vmatpush.msra.mxu0 %v2963
    %3715 = vmatpush.msra.mxu0 %v2959
    %3716 = vmatpush.msra.mxu0 %v2955
    %3717 = vmatpush.msra.mxu0 %v2951
    %3718 = vmatpush.msra.mxu0 %v2947
    %3719 = vmatpush.msra.mxu0 %v2943
    %3720 = vmatpush.msra.mxu0 %v2939
    %3721 = vmatpush.msra.mxu0 %v2935
    %3722 = vmatpush.msra.mxu0 %v2931
    %3723 = vmatpush.msra.mxu0 %v2927
    %3724 = vmatpush.msra.mxu0 %v2923
    %3725 = vmatpush.msra.mxu0 %v2919
    %3726 = vmatpush.msra.mxu0 %v2915
    %3727 = vmatmul.f32.gmra.mxu0 %v3690
    %v3728 = vpop.f32.mrf.mxu0
    %v3729 = vadd.f32 0.0, %v3728
    %3730 = vdwg.mxu0
    %3731 = vmatpush.msra.mxu0 %v2976
    %3732 = vmatpush.msra.mxu0 %v2972
    %3733 = vmatpush.msra.mxu0 %v2968
    %3734 = vmatpush.msra.mxu0 %v2964
    %3735 = vmatpush.msra.mxu0 %v2960
    %3736 = vmatpush.msra.mxu0 %v2956
    %3737 = vmatpush.msra.mxu0 %v2952
    %3738 = vmatpush.msra.mxu0 %v2948
    %3739 = vmatpush.msra.mxu0 %v2944
    %3740 = vmatpush.msra.mxu0 %v2940
    %3741 = vmatpush.msra.mxu0 %v2936
    %3742 = vmatpush.msra.mxu0 %v2932
    %3743 = vmatpush.msra.mxu0 %v2928
    %3744 = vmatpush.msra.mxu0 %v2924
    %3745 = vmatpush.msra.mxu0 %v2920
    %3746 = vmatpush.msra.mxu0 %v2916
    %3747 = vmatmul.f32.gmra.mxu0 %v3690
    %v3748 = vpop.f32.mrf.mxu0
    %v3749 = vadd.f32 0.0, %v3748
    %3750 = vdwg.mxu0
    %3751 = vmatpush.msra.mxu0 %v2977
    %3752 = vmatpush.msra.mxu0 %v2973
    %3753 = vmatpush.msra.mxu0 %v2969
    %3754 = vmatpush.msra.mxu0 %v2965
    %3755 = vmatpush.msra.mxu0 %v2961
    %3756 = vmatpush.msra.mxu0 %v2957
    %3757 = vmatpush.msra.mxu0 %v2953
    %3758 = vmatpush.msra.mxu0 %v2949
    %3759 = vmatpush.msra.mxu0 %v2945
    %3760 = vmatpush.msra.mxu0 %v2941
    %3761 = vmatpush.msra.mxu0 %v2937
    %3762 = vmatpush.msra.mxu0 %v2933
    %3763 = vmatpush.msra.mxu0 %v2929
    %3764 = vmatpush.msra.mxu0 %v2925
    %3765 = vmatpush.msra.mxu0 %v2921
    %3766 = vmatpush.msra.mxu0 %v2917
    %3767 = vmatmul.f32.gmra.mxu0 %v3690
    %v3768 = vpop.f32.mrf.mxu0
    %v3769 = vadd.f32 0.0, %v3768
    %3770 = vdwg.mxu0
    %v3771 = vadd.f32 %v3015, %v3709
    %v3772 = vadd.f32 %v3080, %v3729
    %v3773 = vadd.f32 %v3145, %v3749
    %v3774 = vadd.f32 %v3210, %v3769
    %v3775 = vxor.u32 %v3771, 2147483648
    %v3776 = vmul.f32 %v3775, 1.442695
    %v3777 = vpow.pop %v3776
    %v3778 = vadd.f32 %v3777, 1.0
    %v3779 = vrcp.pop %v3778
    %v3780 = vmul.f32 %v3778, %v3779
    %v3781 = vsub.f32 1.0, %v3780
    %v3782 = vmul.f32 %v3779, %v3781
    %v3783 = vadd.f32 %v3779, %v3782
    %vm3784 = vweird.f32 %v3778
    %vm3785 = vweird.f32 %v3779
    %vm3786 = vmor %vm3784, %vm3785
    %v3787 = vsel %vm3786, %v3779, %v3783
    %v3788 = vand.u32 2147483647, %v3778
    %vm3789 = vcmp.eq.f32.partialorder %v3788, 8.507059e+37
    %v3790 = vand.u32 %v3778, 2147483648
    %v3791 = vor.u32 1.1754944e-38, %v3790
    %v3792 = vsel %vm3789, %v3791, %v3787
    %v3793 = vmul.f32 1.0, %v3792
    %v3794 = vxor.u32 %v3772, 2147483648
    %v3795 = vmul.f32 %v3794, 1.442695
    %v3796 = vpow.pop %v3795
    %v3797 = vadd.f32 %v3796, 1.0
    %v3798 = vrcp.pop %v3797
    %v3799 = vmul.f32 %v3797, %v3798
    %v3800 = vsub.f32 1.0, %v3799
    %v3801 = vmul.f32 %v3798, %v3800
    %v3802 = vadd.f32 %v3798, %v3801
    %vm3803 = vweird.f32 %v3797
    %vm3804 = vweird.f32 %v3798
    %vm3805 = vmor %vm3803, %vm3804
    %v3806 = vsel %vm3805, %v3798, %v3802
    %v3807 = vand.u32 2147483647, %v3797
    %vm3808 = vcmp.eq.f32.partialorder %v3807, 8.507059e+37
    %v3809 = vand.u32 %v3797, 2147483648
    %v3810 = vor.u32 1.1754944e-38, %v3809
    %v3811 = vsel %vm3808, %v3810, %v3806
    %v3812 = vmul.f32 1.0, %v3811
    %v3813 = vtanh.pop %v3773
    %v3814 = vxor.u32 %v3774, 2147483648
    %v3815 = vmul.f32 %v3814, 1.442695
    %v3816 = vpow.pop %v3815
    %v3817 = vadd.f32 %v3816, 1.0
    %v3818 = vrcp.pop %v3817
    %v3819 = vmul.f32 %v3817, %v3818
    %v3820 = vsub.f32 1.0, %v3819
    %v3821 = vmul.f32 %v3818, %v3820
    %v3822 = vadd.f32 %v3818, %v3821
    %vm3823 = vweird.f32 %v3817
    %vm3824 = vweird.f32 %v3818
    %vm3825 = vmor %vm3823, %vm3824
    %v3826 = vsel %vm3825, %v3818, %v3822
    %v3827 = vand.u32 2147483647, %v3817
    %vm3828 = vcmp.eq.f32.partialorder %v3827, 8.507059e+37
    %v3829 = vand.u32 %v3817, 2147483648
    %v3830 = vor.u32 1.1754944e-38, %v3829
    %v3831 = vsel %vm3828, %v3830, %v3826
    %v3832 = vmul.f32 1.0, %v3831
    %v3833 = vmul.f32 %v3812, %v3688
    %v3834 = vmul.f32 %v3793, %v3813
    %v3835 = vadd.f32 %v3833, %v3834
    %v3836 = vtanh.pop %v3835
    %v3837 = vmul.f32 %v3832, %v3836
    %3838 = vmatpush.msra.mxu0 %v2974
    %3839 = vmatpush.msra.mxu0 %v2970
    %3840 = vmatpush.msra.mxu0 %v2966
    %3841 = vmatpush.msra.mxu0 %v2962
    %3842 = vmatpush.msra.mxu0 %v2958
    %3843 = vmatpush.msra.mxu0 %v2954
    %3844 = vmatpush.msra.mxu0 %v2950
    %3845 = vmatpush.msra.mxu0 %v2946
    %3846 = vmatpush.msra.mxu0 %v2942
    %3847 = vmatpush.msra.mxu0 %v2938
    %3848 = vmatpush.msra.mxu0 %v2934
    %3849 = vmatpush.msra.mxu0 %v2930
    %3850 = vmatpush.msra.mxu0 %v2926
    %3851 = vmatpush.msra.mxu0 %v2922
    %3852 = vmatpush.msra.mxu0 %v2918
    %3853 = vmatpush.msra.mxu0 %v2914
    %3854 = vmatmul.f32.gmra.mxu0 %v3837
    %v3855 = vpop.f32.mrf.mxu0
    %v3856 = vadd.f32 0.0, %v3855
    %3857 = vdwg.mxu0
    %3858 = vmatpush.msra.mxu0 %v2975
    %3859 = vmatpush.msra.mxu0 %v2971
    %3860 = vmatpush.msra.mxu0 %v2967
    %3861 = vmatpush.msra.mxu0 %v2963
    %3862 = vmatpush.msra.mxu0 %v2959
    %3863 = vmatpush.msra.mxu0 %v2955
    %3864 = vmatpush.msra.mxu0 %v2951
    %3865 = vmatpush.msra.mxu0 %v2947
    %3866 = vmatpush.msra.mxu0 %v2943
    %3867 = vmatpush.msra.mxu0 %v2939
    %3868 = vmatpush.msra.mxu0 %v2935
    %3869 = vmatpush.msra.mxu0 %v2931
    %3870 = vmatpush.msra.mxu0 %v2927
    %3871 = vmatpush.msra.mxu0 %v2923
    %3872 = vmatpush.msra.mxu0 %v2919
    %3873 = vmatpush.msra.mxu0 %v2915
    %3874 = vmatmul.f32.gmra.mxu0 %v3837
    %v3875 = vpop.f32.mrf.mxu0
    %v3876 = vadd.f32 0.0, %v3875
    %3877 = vdwg.mxu0
    %3878 = vmatpush.msra.mxu0 %v2976
    %3879 = vmatpush.msra.mxu0 %v2972
    %3880 = vmatpush.msra.mxu0 %v2968
    %3881 = vmatpush.msra.mxu0 %v2964
    %3882 = vmatpush.msra.mxu0 %v2960
    %3883 = vmatpush.msra.mxu0 %v2956
    %3884 = vmatpush.msra.mxu0 %v2952
    %3885 = vmatpush.msra.mxu0 %v2948
    %3886 = vmatpush.msra.mxu0 %v2944
    %3887 = vmatpush.msra.mxu0 %v2940
    %3888 = vmatpush.msra.mxu0 %v2936
    %3889 = vmatpush.msra.mxu0 %v2932
    %3890 = vmatpush.msra.mxu0 %v2928
    %3891 = vmatpush.msra.mxu0 %v2924
    %3892 = vmatpush.msra.mxu0 %v2920
    %3893 = vmatpush.msra.mxu0 %v2916
    %3894 = vmatmul.f32.gmra.mxu0 %v3837
    %v3895 = vpop.f32.mrf.mxu0
    %v3896 = vadd.f32 0.0, %v3895
    %3897 = vdwg.mxu0
    %3898 = vmatpush.msra.mxu0 %v2977
    %3899 = vmatpush.msra.mxu0 %v2973
    %3900 = vmatpush.msra.mxu0 %v2969
    %3901 = vmatpush.msra.mxu0 %v2965
    %3902 = vmatpush.msra.mxu0 %v2961
    %3903 = vmatpush.msra.mxu0 %v2957
    %3904 = vmatpush.msra.mxu0 %v2953
    %3905 = vmatpush.msra.mxu0 %v2949
    %3906 = vmatpush.msra.mxu0 %v2945
    %3907 = vmatpush.msra.mxu0 %v2941
    %3908 = vmatpush.msra.mxu0 %v2937
    %3909 = vmatpush.msra.mxu0 %v2933
    %3910 = vmatpush.msra.mxu0 %v2929
    %3911 = vmatpush.msra.mxu0 %v2925
    %3912 = vmatpush.msra.mxu0 %v2921
    %3913 = vmatpush.msra.mxu0 %v2917
    %3914 = vmatmul.f32.gmra.mxu0 %v3837
    %v3915 = vpop.f32.mrf.mxu0
    %v3916 = vadd.f32 0.0, %v3915
    %3917 = vdwg.mxu0
    %v3918 = vadd.f32 %v3018, %v3856
    %v3919 = vadd.f32 %v3083, %v3876
    %v3920 = vadd.f32 %v3148, %v3896
    %v3921 = vadd.f32 %v3213, %v3916
    %v3922 = vxor.u32 %v3918, 2147483648
    %v3923 = vmul.f32 %v3922, 1.442695
    %v3924 = vpow.pop %v3923
    %v3925 = vadd.f32 %v3924, 1.0
    %v3926 = vrcp.pop %v3925
    %v3927 = vmul.f32 %v3925, %v3926
    %v3928 = vsub.f32 1.0, %v3927
    %v3929 = vmul.f32 %v3926, %v3928
    %v3930 = vadd.f32 %v3926, %v3929
    %vm3931 = vweird.f32 %v3925
    %vm3932 = vweird.f32 %v3926
    %vm3933 = vmor %vm3931, %vm3932
    %v3934 = vsel %vm3933, %v3926, %v3930
    %v3935 = vand.u32 2147483647, %v3925
    %vm3936 = vcmp.eq.f32.partialorder %v3935, 8.507059e+37
    %v3937 = vand.u32 %v3925, 2147483648
    %v3938 = vor.u32 1.1754944e-38, %v3937
    %v3939 = vsel %vm3936, %v3938, %v3934
    %v3940 = vmul.f32 1.0, %v3939
    %v3941 = vxor.u32 %v3919, 2147483648
    %v3942 = vmul.f32 %v3941, 1.442695
    %v3943 = vpow.pop %v3942
    %v3944 = vadd.f32 %v3943, 1.0
    %v3945 = vrcp.pop %v3944
    %v3946 = vmul.f32 %v3944, %v3945
    %v3947 = vsub.f32 1.0, %v3946
    %v3948 = vmul.f32 %v3945, %v3947
    %v3949 = vadd.f32 %v3945, %v3948
    %vm3950 = vweird.f32 %v3944
    %vm3951 = vweird.f32 %v3945
    %vm3952 = vmor %vm3950, %vm3951
    %v3953 = vsel %vm3952, %v3945, %v3949
    %v3954 = vand.u32 2147483647, %v3944
    %vm3955 = vcmp.eq.f32.partialorder %v3954, 8.507059e+37
    %v3956 = vand.u32 %v3944, 2147483648
    %v3957 = vor.u32 1.1754944e-38, %v3956
    %v3958 = vsel %vm3955, %v3957, %v3953
    %v3959 = vmul.f32 1.0, %v3958
    %v3960 = vtanh.pop %v3920
    %v3961 = vxor.u32 %v3921, 2147483648
    %v3962 = vmul.f32 %v3961, 1.442695
    %v3963 = vpow.pop %v3962
    %v3964 = vadd.f32 %v3963, 1.0
    %v3965 = vrcp.pop %v3964
    %v3966 = vmul.f32 %v3964, %v3965
    %v3967 = vsub.f32 1.0, %v3966
    %v3968 = vmul.f32 %v3965, %v3967
    %v3969 = vadd.f32 %v3965, %v3968
    %vm3970 = vweird.f32 %v3964
    %vm3971 = vweird.f32 %v3965
    %vm3972 = vmor %vm3970, %vm3971
    %v3973 = vsel %vm3972, %v3965, %v3969
    %v3974 = vand.u32 2147483647, %v3964
    %vm3975 = vcmp.eq.f32.partialorder %v3974, 8.507059e+37
    %v3976 = vand.u32 %v3964, 2147483648
    %v3977 = vor.u32 1.1754944e-38, %v3976
    %v3978 = vsel %vm3975, %v3977, %v3973
    %v3979 = vmul.f32 1.0, %v3978
    %v3980 = vmul.f32 %v3959, %v3835
    %v3981 = vmul.f32 %v3940, %v3960
    %v3982 = vadd.f32 %v3980, %v3981
    %v3983 = vtanh.pop %v3982
    %v3984 = vmul.f32 %v3979, %v3983
    %3985 = vmatpush.msra.mxu0 %v2974
    %3986 = vmatpush.msra.mxu0 %v2970
    %3987 = vmatpush.msra.mxu0 %v2966
    %3988 = vmatpush.msra.mxu0 %v2962
    %3989 = vmatpush.msra.mxu0 %v2958
    %3990 = vmatpush.msra.mxu0 %v2954
    %3991 = vmatpush.msra.mxu0 %v2950
    %3992 = vmatpush.msra.mxu0 %v2946
    %3993 = vmatpush.msra.mxu0 %v2942
    %3994 = vmatpush.msra.mxu0 %v2938
    %3995 = vmatpush.msra.mxu0 %v2934
    %3996 = vmatpush.msra.mxu0 %v2930
    %3997 = vmatpush.msra.mxu0 %v2926
    %3998 = vmatpush.msra.mxu0 %v2922
    %3999 = vmatpush.msra.mxu0 %v2918
    %4000 = vmatpush.msra.mxu0 %v2914
    %4001 = vmatmul.f32.gmra.mxu0 %v3984
    %v4002 = vpop.f32.mrf.mxu0
    %v4003 = vadd.f32 0.0, %v4002
    %4004 = vdwg.mxu0
    %4005 = vmatpush.msra.mxu0 %v2975
    %4006 = vmatpush.msra.mxu0 %v2971
    %4007 = vmatpush.msra.mxu0 %v2967
    %4008 = vmatpush.msra.mxu0 %v2963
    %4009 = vmatpush.msra.mxu0 %v2959
    %4010 = vmatpush.msra.mxu0 %v2955
    %4011 = vmatpush.msra.mxu0 %v2951
    %4012 = vmatpush.msra.mxu0 %v2947
    %4013 = vmatpush.msra.mxu0 %v2943
    %4014 = vmatpush.msra.mxu0 %v2939
    %4015 = vmatpush.msra.mxu0 %v2935
    %4016 = vmatpush.msra.mxu0 %v2931
    %4017 = vmatpush.msra.mxu0 %v2927
    %4018 = vmatpush.msra.mxu0 %v2923
    %4019 = vmatpush.msra.mxu0 %v2919
    %4020 = vmatpush.msra.mxu0 %v2915
    %4021 = vmatmul.f32.gmra.mxu0 %v3984
    %v4022 = vpop.f32.mrf.mxu0
    %v4023 = vadd.f32 0.0, %v4022
    %4024 = vdwg.mxu0
    %4025 = vmatpush.msra.mxu0 %v2976
    %4026 = vmatpush.msra.mxu0 %v2972
    %4027 = vmatpush.msra.mxu0 %v2968
    %4028 = vmatpush.msra.mxu0 %v2964
    %4029 = vmatpush.msra.mxu0 %v2960
    %4030 = vmatpush.msra.mxu0 %v2956
    %4031 = vmatpush.msra.mxu0 %v2952
    %4032 = vmatpush.msra.mxu0 %v2948
    %4033 = vmatpush.msra.mxu0 %v2944
    %4034 = vmatpush.msra.mxu0 %v2940
    %4035 = vmatpush.msra.mxu0 %v2936
    %4036 = vmatpush.msra.mxu0 %v2932
    %4037 = vmatpush.msra.mxu0 %v2928
    %4038 = vmatpush.msra.mxu0 %v2924
    %4039 = vmatpush.msra.mxu0 %v2920
    %4040 = vmatpush.msra.mxu0 %v2916
    %4041 = vmatmul.f32.gmra.mxu0 %v3984
    %v4042 = vpop.f32.mrf.mxu0
    %v4043 = vadd.f32 0.0, %v4042
    %4044 = vdwg.mxu0
    %4045 = vmatpush.msra.mxu0 %v2977
    %4046 = vmatpush.msra.mxu0 %v2973
    %4047 = vmatpush.msra.mxu0 %v2969
    %4048 = vmatpush.msra.mxu0 %v2965
    %4049 = vmatpush.msra.mxu0 %v2961
    %4050 = vmatpush.msra.mxu0 %v2957
    %4051 = vmatpush.msra.mxu0 %v2953
    %4052 = vmatpush.msra.mxu0 %v2949
    %4053 = vmatpush.msra.mxu0 %v2945
    %4054 = vmatpush.msra.mxu0 %v2941
    %4055 = vmatpush.msra.mxu0 %v2937
    %4056 = vmatpush.msra.mxu0 %v2933
    %4057 = vmatpush.msra.mxu0 %v2929
    %4058 = vmatpush.msra.mxu0 %v2925
    %4059 = vmatpush.msra.mxu0 %v2921
    %4060 = vmatpush.msra.mxu0 %v2917
    %4061 = vmatmul.f32.gmra.mxu0 %v3984
    %v4062 = vpop.f32.mrf.mxu0
    %v4063 = vadd.f32 0.0, %v4062
    %4064 = vdwg.mxu0
    %v4065 = vadd.f32 %v3021, %v4003
    %v4066 = vadd.f32 %v3086, %v4023
    %v4067 = vadd.f32 %v3151, %v4043
    %v4068 = vadd.f32 %v3216, %v4063
    %v4069 = vxor.u32 %v4065, 2147483648
    %v4070 = vmul.f32 %v4069, 1.442695
    %v4071 = vpow.pop %v4070
    %v4072 = vadd.f32 %v4071, 1.0
    %v4073 = vrcp.pop %v4072
    %v4074 = vmul.f32 %v4072, %v4073
    %v4075 = vsub.f32 1.0, %v4074
    %v4076 = vmul.f32 %v4073, %v4075
    %v4077 = vadd.f32 %v4073, %v4076
    %vm4078 = vweird.f32 %v4072
    %vm4079 = vweird.f32 %v4073
    %vm4080 = vmor %vm4078, %vm4079
    %v4081 = vsel %vm4080, %v4073, %v4077
    %v4082 = vand.u32 2147483647, %v4072
    %vm4083 = vcmp.eq.f32.partialorder %v4082, 8.507059e+37
    %v4084 = vand.u32 %v4072, 2147483648
    %v4085 = vor.u32 1.1754944e-38, %v4084
    %v4086 = vsel %vm4083, %v4085, %v4081
    %v4087 = vmul.f32 1.0, %v4086
    %v4088 = vxor.u32 %v4066, 2147483648
    %v4089 = vmul.f32 %v4088, 1.442695
    %v4090 = vpow.pop %v4089
    %v4091 = vadd.f32 %v4090, 1.0
    %v4092 = vrcp.pop %v4091
    %v4093 = vmul.f32 %v4091, %v4092
    %v4094 = vsub.f32 1.0, %v4093
    %v4095 = vmul.f32 %v4092, %v4094
    %v4096 = vadd.f32 %v4092, %v4095
    %vm4097 = vweird.f32 %v4091
    %vm4098 = vweird.f32 %v4092
    %vm4099 = vmor %vm4097, %vm4098
    %v4100 = vsel %vm4099, %v4092, %v4096
    %v4101 = vand.u32 2147483647, %v4091
    %vm4102 = vcmp.eq.f32.partialorder %v4101, 8.507059e+37
    %v4103 = vand.u32 %v4091, 2147483648
    %v4104 = vor.u32 1.1754944e-38, %v4103
    %v4105 = vsel %vm4102, %v4104, %v4100
    %v4106 = vmul.f32 1.0, %v4105
    %v4107 = vtanh.pop %v4067
    %v4108 = vxor.u32 %v4068, 2147483648
    %v4109 = vmul.f32 %v4108, 1.442695
    %v4110 = vpow.pop %v4109
    %v4111 = vadd.f32 %v4110, 1.0
    %v4112 = vrcp.pop %v4111
    %v4113 = vmul.f32 %v4111, %v4112
    %v4114 = vsub.f32 1.0, %v4113
    %v4115 = vmul.f32 %v4112, %v4114
    %v4116 = vadd.f32 %v4112, %v4115
    %vm4117 = vweird.f32 %v4111
    %vm4118 = vweird.f32 %v4112
    %vm4119 = vmor %vm4117, %vm4118
    %v4120 = vsel %vm4119, %v4112, %v4116
    %v4121 = vand.u32 2147483647, %v4111
    %vm4122 = vcmp.eq.f32.partialorder %v4121, 8.507059e+37
    %v4123 = vand.u32 %v4111, 2147483648
    %v4124 = vor.u32 1.1754944e-38, %v4123
    %v4125 = vsel %vm4122, %v4124, %v4120
    %v4126 = vmul.f32 1.0, %v4125
    %v4127 = vmul.f32 %v4106, %v3982
    %v4128 = vmul.f32 %v4087, %v4107
    %v4129 = vadd.f32 %v4127, %v4128
    %v4130 = vtanh.pop %v4129
    %v4131 = vmul.f32 %v4126, %v4130
    %4132 = vmatpush.msra.mxu0 %v2974
    %4133 = vmatpush.msra.mxu0 %v2970
    %4134 = vmatpush.msra.mxu0 %v2966
    %4135 = vmatpush.msra.mxu0 %v2962
    %4136 = vmatpush.msra.mxu0 %v2958
    %4137 = vmatpush.msra.mxu0 %v2954
    %4138 = vmatpush.msra.mxu0 %v2950
    %4139 = vmatpush.msra.mxu0 %v2946
    %4140 = vmatpush.msra.mxu0 %v2942
    %4141 = vmatpush.msra.mxu0 %v2938
    %4142 = vmatpush.msra.mxu0 %v2934
    %4143 = vmatpush.msra.mxu0 %v2930
    %4144 = vmatpush.msra.mxu0 %v2926
    %4145 = vmatpush.msra.mxu0 %v2922
    %4146 = vmatpush.msra.mxu0 %v2918
    %4147 = vmatpush.msra.mxu0 %v2914
    %4148 = vmatmul.f32.gmra.mxu0 %v4131
    %v4149 = vpop.f32.mrf.mxu0
    %v4150 = vadd.f32 0.0, %v4149
    %4151 = vdwg.mxu0
    %4152 = vmatpush.msra.mxu0 %v2975
    %4153 = vmatpush.msra.mxu0 %v2971
    %4154 = vmatpush.msra.mxu0 %v2967
    %4155 = vmatpush.msra.mxu0 %v2963
    %4156 = vmatpush.msra.mxu0 %v2959
    %4157 = vmatpush.msra.mxu0 %v2955
    %4158 = vmatpush.msra.mxu0 %v2951
    %4159 = vmatpush.msra.mxu0 %v2947
    %4160 = vmatpush.msra.mxu0 %v2943
    %4161 = vmatpush.msra.mxu0 %v2939
    %4162 = vmatpush.msra.mxu0 %v2935
    %4163 = vmatpush.msra.mxu0 %v2931
    %4164 = vmatpush.msra.mxu0 %v2927
    %4165 = vmatpush.msra.mxu0 %v2923
    %4166 = vmatpush.msra.mxu0 %v2919
    %4167 = vmatpush.msra.mxu0 %v2915
    %4168 = vmatmul.f32.gmra.mxu0 %v4131
    %v4169 = vpop.f32.mrf.mxu0
    %v4170 = vadd.f32 0.0, %v4169
    %4171 = vdwg.mxu0
    %4172 = vmatpush.msra.mxu0 %v2976
    %4173 = vmatpush.msra.mxu0 %v2972
    %4174 = vmatpush.msra.mxu0 %v2968
    %4175 = vmatpush.msra.mxu0 %v2964
    %4176 = vmatpush.msra.mxu0 %v2960
    %4177 = vmatpush.msra.mxu0 %v2956
    %4178 = vmatpush.msra.mxu0 %v2952
    %4179 = vmatpush.msra.mxu0 %v2948
    %4180 = vmatpush.msra.mxu0 %v2944
    %4181 = vmatpush.msra.mxu0 %v2940
    %4182 = vmatpush.msra.mxu0 %v2936
    %4183 = vmatpush.msra.mxu0 %v2932
    %4184 = vmatpush.msra.mxu0 %v2928
    %4185 = vmatpush.msra.mxu0 %v2924
    %4186 = vmatpush.msra.mxu0 %v2920
    %4187 = vmatpush.msra.mxu0 %v2916
    %4188 = vmatmul.f32.gmra.mxu0 %v4131
    %v4189 = vpop.f32.mrf.mxu0
    %v4190 = vadd.f32 0.0, %v4189
    %4191 = vdwg.mxu0
    %4192 = vmatpush.msra.mxu0 %v2977
    %4193 = vmatpush.msra.mxu0 %v2973
    %4194 = vmatpush.msra.mxu0 %v2969
    %4195 = vmatpush.msra.mxu0 %v2965
    %4196 = vmatpush.msra.mxu0 %v2961
    %4197 = vmatpush.msra.mxu0 %v2957
    %4198 = vmatpush.msra.mxu0 %v2953
    %4199 = vmatpush.msra.mxu0 %v2949
    %4200 = vmatpush.msra.mxu0 %v2945
    %4201 = vmatpush.msra.mxu0 %v2941
    %4202 = vmatpush.msra.mxu0 %v2937
    %4203 = vmatpush.msra.mxu0 %v2933
    %4204 = vmatpush.msra.mxu0 %v2929
    %4205 = vmatpush.msra.mxu0 %v2925
    %4206 = vmatpush.msra.mxu0 %v2921
    %4207 = vmatpush.msra.mxu0 %v2917
    %4208 = vmatmul.f32.gmra.mxu0 %v4131
    %v4209 = vpop.f32.mrf.mxu0
    %v4210 = vadd.f32 0.0, %v4209
    %4211 = vdwg.mxu0
    %v4212 = vadd.f32 %v3024, %v4150
    %v4213 = vadd.f32 %v3089, %v4170
    %v4214 = vadd.f32 %v3154, %v4190
    %v4215 = vadd.f32 %v3219, %v4210
    %v4216 = vxor.u32 %v4212, 2147483648
    %v4217 = vmul.f32 %v4216, 1.442695
    %v4218 = vpow.pop %v4217
    %v4219 = vadd.f32 %v4218, 1.0
    %v4220 = vrcp.pop %v4219
    %v4221 = vmul.f32 %v4219, %v4220
    %v4222 = vsub.f32 1.0, %v4221
    %v4223 = vmul.f32 %v4220, %v4222
    %v4224 = vadd.f32 %v4220, %v4223
    %vm4225 = vweird.f32 %v4219
    %vm4226 = vweird.f32 %v4220
    %vm4227 = vmor %vm4225, %vm4226
    %v4228 = vsel %vm4227, %v4220, %v4224
    %v4229 = vand.u32 2147483647, %v4219
    %vm4230 = vcmp.eq.f32.partialorder %v4229, 8.507059e+37
    %v4231 = vand.u32 %v4219, 2147483648
    %v4232 = vor.u32 1.1754944e-38, %v4231
    %v4233 = vsel %vm4230, %v4232, %v4228
    %v4234 = vmul.f32 1.0, %v4233
    %v4235 = vxor.u32 %v4213, 2147483648
    %v4236 = vmul.f32 %v4235, 1.442695
    %v4237 = vpow.pop %v4236
    %v4238 = vadd.f32 %v4237, 1.0
    %v4239 = vrcp.pop %v4238
    %v4240 = vmul.f32 %v4238, %v4239
    %v4241 = vsub.f32 1.0, %v4240
    %v4242 = vmul.f32 %v4239, %v4241
    %v4243 = vadd.f32 %v4239, %v4242
    %vm4244 = vweird.f32 %v4238
    %vm4245 = vweird.f32 %v4239
    %vm4246 = vmor %vm4244, %vm4245
    %v4247 = vsel %vm4246, %v4239, %v4243
    %v4248 = vand.u32 2147483647, %v4238
    %vm4249 = vcmp.eq.f32.partialorder %v4248, 8.507059e+37
    %v4250 = vand.u32 %v4238, 2147483648
    %v4251 = vor.u32 1.1754944e-38, %v4250
    %v4252 = vsel %vm4249, %v4251, %v4247
    %v4253 = vmul.f32 1.0, %v4252
    %v4254 = vtanh.pop %v4214
    %v4255 = vxor.u32 %v4215, 2147483648
    %v4256 = vmul.f32 %v4255, 1.442695
    %v4257 = vpow.pop %v4256
    %v4258 = vadd.f32 %v4257, 1.0
    %v4259 = vrcp.pop %v4258
    %v4260 = vmul.f32 %v4258, %v4259
    %v4261 = vsub.f32 1.0, %v4260
    %v4262 = vmul.f32 %v4259, %v4261
    %v4263 = vadd.f32 %v4259, %v4262
    %vm4264 = vweird.f32 %v4258
    %vm4265 = vweird.f32 %v4259
    %vm4266 = vmor %vm4264, %vm4265
    %v4267 = vsel %vm4266, %v4259, %v4263
    %v4268 = vand.u32 2147483647, %v4258
    %vm4269 = vcmp.eq.f32.partialorder %v4268, 8.507059e+37
    %v4270 = vand.u32 %v4258, 2147483648
    %v4271 = vor.u32 1.1754944e-38, %v4270
    %v4272 = vsel %vm4269, %v4271, %v4267
    %v4273 = vmul.f32 1.0, %v4272
    %v4274 = vmul.f32 %v4253, %v4129
    %v4275 = vmul.f32 %v4234, %v4254
    %v4276 = vadd.f32 %v4274, %v4275
    %v4277 = vtanh.pop %v4276
    %v4278 = vmul.f32 %v4273, %v4277
    %4279 = vmatpush.msra.mxu0 %v2974
    %4280 = vmatpush.msra.mxu0 %v2970
    %4281 = vmatpush.msra.mxu0 %v2966
    %4282 = vmatpush.msra.mxu0 %v2962
    %4283 = vmatpush.msra.mxu0 %v2958
    %4284 = vmatpush.msra.mxu0 %v2954
    %4285 = vmatpush.msra.mxu0 %v2950
    %4286 = vmatpush.msra.mxu0 %v2946
    %4287 = vmatpush.msra.mxu0 %v2942
    %4288 = vmatpush.msra.mxu0 %v2938
    %4289 = vmatpush.msra.mxu0 %v2934
    %4290 = vmatpush.msra.mxu0 %v2930
    %4291 = vmatpush.msra.mxu0 %v2926
    %4292 = vmatpush.msra.mxu0 %v2922
    %4293 = vmatpush.msra.mxu0 %v2918
    %4294 = vmatpush.msra.mxu0 %v2914
    %4295 = vmatmul.f32.gmra.mxu0 %v4278
    %v4296 = vpop.f32.mrf.mxu0
    %v4297 = vadd.f32 0.0, %v4296
    %4298 = vdwg.mxu0
    %4299 = vmatpush.msra.mxu0 %v2975
    %4300 = vmatpush.msra.mxu0 %v2971
    %4301 = vmatpush.msra.mxu0 %v2967
    %4302 = vmatpush.msra.mxu0 %v2963
    %4303 = vmatpush.msra.mxu0 %v2959
    %4304 = vmatpush.msra.mxu0 %v2955
    %4305 = vmatpush.msra.mxu0 %v2951
    %4306 = vmatpush.msra.mxu0 %v2947
    %4307 = vmatpush.msra.mxu0 %v2943
    %4308 = vmatpush.msra.mxu0 %v2939
    %4309 = vmatpush.msra.mxu0 %v2935
    %4310 = vmatpush.msra.mxu0 %v2931
    %4311 = vmatpush.msra.mxu0 %v2927
    %4312 = vmatpush.msra.mxu0 %v2923
    %4313 = vmatpush.msra.mxu0 %v2919
    %4314 = vmatpush.msra.mxu0 %v2915
    %4315 = vmatmul.f32.gmra.mxu0 %v4278
    %v4316 = vpop.f32.mrf.mxu0
    %v4317 = vadd.f32 0.0, %v4316
    %4318 = vdwg.mxu0
    %4319 = vmatpush.msra.mxu0 %v2976
    %4320 = vmatpush.msra.mxu0 %v2972
    %4321 = vmatpush.msra.mxu0 %v2968
    %4322 = vmatpush.msra.mxu0 %v2964
    %4323 = vmatpush.msra.mxu0 %v2960
    %4324 = vmatpush.msra.mxu0 %v2956
    %4325 = vmatpush.msra.mxu0 %v2952
    %4326 = vmatpush.msra.mxu0 %v2948
    %4327 = vmatpush.msra.mxu0 %v2944
    %4328 = vmatpush.msra.mxu0 %v2940
    %4329 = vmatpush.msra.mxu0 %v2936
    %4330 = vmatpush.msra.mxu0 %v2932
    %4331 = vmatpush.msra.mxu0 %v2928
    %4332 = vmatpush.msra.mxu0 %v2924
    %4333 = vmatpush.msra.mxu0 %v2920
    %4334 = vmatpush.msra.mxu0 %v2916
    %4335 = vmatmul.f32.gmra.mxu0 %v4278
    %v4336 = vpop.f32.mrf.mxu0
    %v4337 = vadd.f32 0.0, %v4336
    %4338 = vdwg.mxu0
    %4339 = vmatpush.msra.mxu0 %v2977
    %4340 = vmatpush.msra.mxu0 %v2973
    %4341 = vmatpush.msra.mxu0 %v2969
    %4342 = vmatpush.msra.mxu0 %v2965
    %4343 = vmatpush.msra.mxu0 %v2961
    %4344 = vmatpush.msra.mxu0 %v2957
    %4345 = vmatpush.msra.mxu0 %v2953
    %4346 = vmatpush.msra.mxu0 %v2949
    %4347 = vmatpush.msra.mxu0 %v2945
    %4348 = vmatpush.msra.mxu0 %v2941
    %4349 = vmatpush.msra.mxu0 %v2937
    %4350 = vmatpush.msra.mxu0 %v2933
    %4351 = vmatpush.msra.mxu0 %v2929
    %4352 = vmatpush.msra.mxu0 %v2925
    %4353 = vmatpush.msra.mxu0 %v2921
    %4354 = vmatpush.msra.mxu0 %v2917
    %4355 = vmatmul.f32.gmra.mxu0 %v4278
    %v4356 = vpop.f32.mrf.mxu0
    %v4357 = vadd.f32 0.0, %v4356
    %4358 = vdwg.mxu0
    %v4359 = vadd.f32 %v3027, %v4297
    %v4360 = vadd.f32 %v3092, %v4317
    %v4361 = vadd.f32 %v3157, %v4337
    %v4362 = vadd.f32 %v3222, %v4357
    %v4363 = vxor.u32 %v4359, 2147483648
    %v4364 = vmul.f32 %v4363, 1.442695
    %v4365 = vpow.pop %v4364
    %v4366 = vadd.f32 %v4365, 1.0
    %v4367 = vrcp.pop %v4366
    %v4368 = vmul.f32 %v4366, %v4367
    %v4369 = vsub.f32 1.0, %v4368
    %v4370 = vmul.f32 %v4367, %v4369
    %v4371 = vadd.f32 %v4367, %v4370
    %vm4372 = vweird.f32 %v4366
    %vm4373 = vweird.f32 %v4367
    %vm4374 = vmor %vm4372, %vm4373
    %v4375 = vsel %vm4374, %v4367, %v4371
    %v4376 = vand.u32 2147483647, %v4366
    %vm4377 = vcmp.eq.f32.partialorder %v4376, 8.507059e+37
    %v4378 = vand.u32 %v4366, 2147483648
    %v4379 = vor.u32 1.1754944e-38, %v4378
    %v4380 = vsel %vm4377, %v4379, %v4375
    %v4381 = vmul.f32 1.0, %v4380
    %v4382 = vxor.u32 %v4360, 2147483648
    %v4383 = vmul.f32 %v4382, 1.442695
    %v4384 = vpow.pop %v4383
    %v4385 = vadd.f32 %v4384, 1.0
    %v4386 = vrcp.pop %v4385
    %v4387 = vmul.f32 %v4385, %v4386
    %v4388 = vsub.f32 1.0, %v4387
    %v4389 = vmul.f32 %v4386, %v4388
    %v4390 = vadd.f32 %v4386, %v4389
    %vm4391 = vweird.f32 %v4385
    %vm4392 = vweird.f32 %v4386
    %vm4393 = vmor %vm4391, %vm4392
    %v4394 = vsel %vm4393, %v4386, %v4390
    %v4395 = vand.u32 2147483647, %v4385
    %vm4396 = vcmp.eq.f32.partialorder %v4395, 8.507059e+37
    %v4397 = vand.u32 %v4385, 2147483648
    %v4398 = vor.u32 1.1754944e-38, %v4397
    %v4399 = vsel %vm4396, %v4398, %v4394
    %v4400 = vmul.f32 1.0, %v4399
    %v4401 = vtanh.pop %v4361
    %v4402 = vxor.u32 %v4362, 2147483648
    %v4403 = vmul.f32 %v4402, 1.442695
    %v4404 = vpow.pop %v4403
    %v4405 = vadd.f32 %v4404, 1.0
    %v4406 = vrcp.pop %v4405
    %v4407 = vmul.f32 %v4405, %v4406
    %v4408 = vsub.f32 1.0, %v4407
    %v4409 = vmul.f32 %v4406, %v4408
    %v4410 = vadd.f32 %v4406, %v4409
    %vm4411 = vweird.f32 %v4405
    %vm4412 = vweird.f32 %v4406
    %vm4413 = vmor %vm4411, %vm4412
    %v4414 = vsel %vm4413, %v4406, %v4410
    %v4415 = vand.u32 2147483647, %v4405
    %vm4416 = vcmp.eq.f32.partialorder %v4415, 8.507059e+37
    %v4417 = vand.u32 %v4405, 2147483648
    %v4418 = vor.u32 1.1754944e-38, %v4417
    %v4419 = vsel %vm4416, %v4418, %v4414
    %v4420 = vmul.f32 1.0, %v4419
    %v4421 = vmul.f32 %v4400, %v4276
    %v4422 = vmul.f32 %v4381, %v4401
    %v4423 = vadd.f32 %v4421, %v4422
    %v4424 = vtanh.pop %v4423
    %v4425 = vmul.f32 %v4420, %v4424
    %4426 = vmatpush.msra.mxu0 %v2974
    %4427 = vmatpush.msra.mxu0 %v2970
    %4428 = vmatpush.msra.mxu0 %v2966
    %4429 = vmatpush.msra.mxu0 %v2962
    %4430 = vmatpush.msra.mxu0 %v2958
    %4431 = vmatpush.msra.mxu0 %v2954
    %4432 = vmatpush.msra.mxu0 %v2950
    %4433 = vmatpush.msra.mxu0 %v2946
    %4434 = vmatpush.msra.mxu0 %v2942
    %4435 = vmatpush.msra.mxu0 %v2938
    %4436 = vmatpush.msra.mxu0 %v2934
    %4437 = vmatpush.msra.mxu0 %v2930
    %4438 = vmatpush.msra.mxu0 %v2926
    %4439 = vmatpush.msra.mxu0 %v2922
    %4440 = vmatpush.msra.mxu0 %v2918
    %4441 = vmatpush.msra.mxu0 %v2914
    %4442 = vmatmul.f32.gmra.mxu0 %v4425
    %v4443 = vpop.f32.mrf.mxu0
    %v4444 = vadd.f32 0.0, %v4443
    %4445 = vdwg.mxu0
    %4446 = vmatpush.msra.mxu0 %v2975
    %4447 = vmatpush.msra.mxu0 %v2971
    %4448 = vmatpush.msra.mxu0 %v2967
    %4449 = vmatpush.msra.mxu0 %v2963
    %4450 = vmatpush.msra.mxu0 %v2959
    %4451 = vmatpush.msra.mxu0 %v2955
    %4452 = vmatpush.msra.mxu0 %v2951
    %4453 = vmatpush.msra.mxu0 %v2947
    %4454 = vmatpush.msra.mxu0 %v2943
    %4455 = vmatpush.msra.mxu0 %v2939
    %4456 = vmatpush.msra.mxu0 %v2935
    %4457 = vmatpush.msra.mxu0 %v2931
    %4458 = vmatpush.msra.mxu0 %v2927
    %4459 = vmatpush.msra.mxu0 %v2923
    %4460 = vmatpush.msra.mxu0 %v2919
    %4461 = vmatpush.msra.mxu0 %v2915
    %4462 = vmatmul.f32.gmra.mxu0 %v4425
    %v4463 = vpop.f32.mrf.mxu0
    %v4464 = vadd.f32 0.0, %v4463
    %4465 = vdwg.mxu0
    %4466 = vmatpush.msra.mxu0 %v2976
    %4467 = vmatpush.msra.mxu0 %v2972
    %4468 = vmatpush.msra.mxu0 %v2968
    %4469 = vmatpush.msra.mxu0 %v2964
    %4470 = vmatpush.msra.mxu0 %v2960
    %4471 = vmatpush.msra.mxu0 %v2956
    %4472 = vmatpush.msra.mxu0 %v2952
    %4473 = vmatpush.msra.mxu0 %v2948
    %4474 = vmatpush.msra.mxu0 %v2944
    %4475 = vmatpush.msra.mxu0 %v2940
    %4476 = vmatpush.msra.mxu0 %v2936
    %4477 = vmatpush.msra.mxu0 %v2932
    %4478 = vmatpush.msra.mxu0 %v2928
    %4479 = vmatpush.msra.mxu0 %v2924
    %4480 = vmatpush.msra.mxu0 %v2920
    %4481 = vmatpush.msra.mxu0 %v2916
    %4482 = vmatmul.f32.gmra.mxu0 %v4425
    %v4483 = vpop.f32.mrf.mxu0
    %v4484 = vadd.f32 0.0, %v4483
    %4485 = vdwg.mxu0
    %4486 = vmatpush.msra.mxu0 %v2977
    %4487 = vmatpush.msra.mxu0 %v2973
    %4488 = vmatpush.msra.mxu0 %v2969
    %4489 = vmatpush.msra.mxu0 %v2965
    %4490 = vmatpush.msra.mxu0 %v2961
    %4491 = vmatpush.msra.mxu0 %v2957
    %4492 = vmatpush.msra.mxu0 %v2953
    %4493 = vmatpush.msra.mxu0 %v2949
    %4494 = vmatpush.msra.mxu0 %v2945
    %4495 = vmatpush.msra.mxu0 %v2941
    %4496 = vmatpush.msra.mxu0 %v2937
    %4497 = vmatpush.msra.mxu0 %v2933
    %4498 = vmatpush.msra.mxu0 %v2929
    %4499 = vmatpush.msra.mxu0 %v2925
    %4500 = vmatpush.msra.mxu0 %v2921
    %4501 = vmatpush.msra.mxu0 %v2917
    %4502 = vmatmul.f32.gmra.mxu0 %v4425
    %v4503 = vpop.f32.mrf.mxu0
    %v4504 = vadd.f32 0.0, %v4503
    %4505 = vdwg.mxu0
    %v4506 = vadd.f32 %v3030, %v4444
    %v4507 = vadd.f32 %v3095, %v4464
    %v4508 = vadd.f32 %v3160, %v4484
    %v4509 = vadd.f32 %v3225, %v4504
    %v4510 = vxor.u32 %v4506, 2147483648
    %v4511 = vmul.f32 %v4510, 1.442695
    %v4512 = vpow.pop %v4511
    %v4513 = vadd.f32 %v4512, 1.0
    %v4514 = vrcp.pop %v4513
    %v4515 = vmul.f32 %v4513, %v4514
    %v4516 = vsub.f32 1.0, %v4515
    %v4517 = vmul.f32 %v4514, %v4516
    %v4518 = vadd.f32 %v4514, %v4517
    %vm4519 = vweird.f32 %v4513
    %vm4520 = vweird.f32 %v4514
    %vm4521 = vmor %vm4519, %vm4520
    %v4522 = vsel %vm4521, %v4514, %v4518
    %v4523 = vand.u32 2147483647, %v4513
    %vm4524 = vcmp.eq.f32.partialorder %v4523, 8.507059e+37
    %v4525 = vand.u32 %v4513, 2147483648
    %v4526 = vor.u32 1.1754944e-38, %v4525
    %v4527 = vsel %vm4524, %v4526, %v4522
    %v4528 = vmul.f32 1.0, %v4527
    %v4529 = vxor.u32 %v4507, 2147483648
    %v4530 = vmul.f32 %v4529, 1.442695
    %v4531 = vpow.pop %v4530
    %v4532 = vadd.f32 %v4531, 1.0
    %v4533 = vrcp.pop %v4532
    %v4534 = vmul.f32 %v4532, %v4533
    %v4535 = vsub.f32 1.0, %v4534
    %v4536 = vmul.f32 %v4533, %v4535
    %v4537 = vadd.f32 %v4533, %v4536
    %vm4538 = vweird.f32 %v4532
    %vm4539 = vweird.f32 %v4533
    %vm4540 = vmor %vm4538, %vm4539
    %v4541 = vsel %vm4540, %v4533, %v4537
    %v4542 = vand.u32 2147483647, %v4532
    %vm4543 = vcmp.eq.f32.partialorder %v4542, 8.507059e+37
    %v4544 = vand.u32 %v4532, 2147483648
    %v4545 = vor.u32 1.1754944e-38, %v4544
    %v4546 = vsel %vm4543, %v4545, %v4541
    %v4547 = vmul.f32 1.0, %v4546
    %v4548 = vtanh.pop %v4508
    %v4549 = vxor.u32 %v4509, 2147483648
    %v4550 = vmul.f32 %v4549, 1.442695
    %v4551 = vpow.pop %v4550
    %v4552 = vadd.f32 %v4551, 1.0
    %v4553 = vrcp.pop %v4552
    %v4554 = vmul.f32 %v4552, %v4553
    %v4555 = vsub.f32 1.0, %v4554
    %v4556 = vmul.f32 %v4553, %v4555
    %v4557 = vadd.f32 %v4553, %v4556
    %vm4558 = vweird.f32 %v4552
    %vm4559 = vweird.f32 %v4553
    %vm4560 = vmor %vm4558, %vm4559
    %v4561 = vsel %vm4560, %v4553, %v4557
    %v4562 = vand.u32 2147483647, %v4552
    %vm4563 = vcmp.eq.f32.partialorder %v4562, 8.507059e+37
    %v4564 = vand.u32 %v4552, 2147483648
    %v4565 = vor.u32 1.1754944e-38, %v4564
    %v4566 = vsel %vm4563, %v4565, %v4561
    %v4567 = vmul.f32 1.0, %v4566
    %v4568 = vmul.f32 %v4547, %v4423
    %v4569 = vmul.f32 %v4528, %v4548
    %v4570 = vadd.f32 %v4568, %v4569
    %v4571 = vtanh.pop %v4570
    %v4572 = vmul.f32 %v4567, %v4571
    %4573 = vmatpush.msra.mxu0 %v2974
    %4574 = vmatpush.msra.mxu0 %v2970
    %4575 = vmatpush.msra.mxu0 %v2966
    %4576 = vmatpush.msra.mxu0 %v2962
    %4577 = vmatpush.msra.mxu0 %v2958
    %4578 = vmatpush.msra.mxu0 %v2954
    %4579 = vmatpush.msra.mxu0 %v2950
    %4580 = vmatpush.msra.mxu0 %v2946
    %4581 = vmatpush.msra.mxu0 %v2942
    %4582 = vmatpush.msra.mxu0 %v2938
    %4583 = vmatpush.msra.mxu0 %v2934
    %4584 = vmatpush.msra.mxu0 %v2930
    %4585 = vmatpush.msra.mxu0 %v2926
    %4586 = vmatpush.msra.mxu0 %v2922
    %4587 = vmatpush.msra.mxu0 %v2918
    %4588 = vmatpush.msra.mxu0 %v2914
    %4589 = vmatmul.f32.gmra.mxu0 %v4572
    %v4590 = vpop.f32.mrf.mxu0
    %v4591 = vadd.f32 0.0, %v4590
    %4592 = vdwg.mxu0
    %4593 = vmatpush.msra.mxu0 %v2975
    %4594 = vmatpush.msra.mxu0 %v2971
    %4595 = vmatpush.msra.mxu0 %v2967
    %4596 = vmatpush.msra.mxu0 %v2963
    %4597 = vmatpush.msra.mxu0 %v2959
    %4598 = vmatpush.msra.mxu0 %v2955
    %4599 = vmatpush.msra.mxu0 %v2951
    %4600 = vmatpush.msra.mxu0 %v2947
    %4601 = vmatpush.msra.mxu0 %v2943
    %4602 = vmatpush.msra.mxu0 %v2939
    %4603 = vmatpush.msra.mxu0 %v2935
    %4604 = vmatpush.msra.mxu0 %v2931
    %4605 = vmatpush.msra.mxu0 %v2927
    %4606 = vmatpush.msra.mxu0 %v2923
    %4607 = vmatpush.msra.mxu0 %v2919
    %4608 = vmatpush.msra.mxu0 %v2915
    %4609 = vmatmul.f32.gmra.mxu0 %v4572
    %v4610 = vpop.f32.mrf.mxu0
    %v4611 = vadd.f32 0.0, %v4610
    %4612 = vdwg.mxu0
    %4613 = vmatpush.msra.mxu0 %v2976
    %4614 = vmatpush.msra.mxu0 %v2972
    %4615 = vmatpush.msra.mxu0 %v2968
    %4616 = vmatpush.msra.mxu0 %v2964
    %4617 = vmatpush.msra.mxu0 %v2960
    %4618 = vmatpush.msra.mxu0 %v2956
    %4619 = vmatpush.msra.mxu0 %v2952
    %4620 = vmatpush.msra.mxu0 %v2948
    %4621 = vmatpush.msra.mxu0 %v2944
    %4622 = vmatpush.msra.mxu0 %v2940
    %4623 = vmatpush.msra.mxu0 %v2936
    %4624 = vmatpush.msra.mxu0 %v2932
    %4625 = vmatpush.msra.mxu0 %v2928
    %4626 = vmatpush.msra.mxu0 %v2924
    %4627 = vmatpush.msra.mxu0 %v2920
    %4628 = vmatpush.msra.mxu0 %v2916
    %4629 = vmatmul.f32.gmra.mxu0 %v4572
    %v4630 = vpop.f32.mrf.mxu0
    %v4631 = vadd.f32 0.0, %v4630
    %4632 = vdwg.mxu0
    %4633 = vmatpush.msra.mxu0 %v2977
    %4634 = vmatpush.msra.mxu0 %v2973
    %4635 = vmatpush.msra.mxu0 %v2969
    %4636 = vmatpush.msra.mxu0 %v2965
    %4637 = vmatpush.msra.mxu0 %v2961
    %4638 = vmatpush.msra.mxu0 %v2957
    %4639 = vmatpush.msra.mxu0 %v2953
    %4640 = vmatpush.msra.mxu0 %v2949
    %4641 = vmatpush.msra.mxu0 %v2945
    %4642 = vmatpush.msra.mxu0 %v2941
    %4643 = vmatpush.msra.mxu0 %v2937
    %4644 = vmatpush.msra.mxu0 %v2933
    %4645 = vmatpush.msra.mxu0 %v2929
    %4646 = vmatpush.msra.mxu0 %v2925
    %4647 = vmatpush.msra.mxu0 %v2921
    %4648 = vmatpush.msra.mxu0 %v2917
    %4649 = vmatmul.f32.gmra.mxu0 %v4572
    %v4650 = vpop.f32.mrf.mxu0
    %v4651 = vadd.f32 0.0, %v4650
    %4652 = vdwg.mxu0
    %v4653 = vadd.f32 %v3033, %v4591
    %v4654 = vadd.f32 %v3098, %v4611
    %v4655 = vadd.f32 %v3163, %v4631
    %v4656 = vadd.f32 %v3228, %v4651
    %v4657 = vxor.u32 %v4653, 2147483648
    %v4658 = vmul.f32 %v4657, 1.442695
    %v4659 = vpow.pop %v4658
    %v4660 = vadd.f32 %v4659, 1.0
    %v4661 = vrcp.pop %v4660
    %v4662 = vmul.f32 %v4660, %v4661
    %v4663 = vsub.f32 1.0, %v4662
    %v4664 = vmul.f32 %v4661, %v4663
    %v4665 = vadd.f32 %v4661, %v4664
    %vm4666 = vweird.f32 %v4660
    %vm4667 = vweird.f32 %v4661
    %vm4668 = vmor %vm4666, %vm4667
    %v4669 = vsel %vm4668, %v4661, %v4665
    %v4670 = vand.u32 2147483647, %v4660
    %vm4671 = vcmp.eq.f32.partialorder %v4670, 8.507059e+37
    %v4672 = vand.u32 %v4660, 2147483648
    %v4673 = vor.u32 1.1754944e-38, %v4672
    %v4674 = vsel %vm4671, %v4673, %v4669
    %v4675 = vmul.f32 1.0, %v4674
    %v4676 = vxor.u32 %v4654, 2147483648
    %v4677 = vmul.f32 %v4676, 1.442695
    %v4678 = vpow.pop %v4677
    %v4679 = vadd.f32 %v4678, 1.0
    %v4680 = vrcp.pop %v4679
    %v4681 = vmul.f32 %v4679, %v4680
    %v4682 = vsub.f32 1.0, %v4681
    %v4683 = vmul.f32 %v4680, %v4682
    %v4684 = vadd.f32 %v4680, %v4683
    %vm4685 = vweird.f32 %v4679
    %vm4686 = vweird.f32 %v4680
    %vm4687 = vmor %vm4685, %vm4686
    %v4688 = vsel %vm4687, %v4680, %v4684
    %v4689 = vand.u32 2147483647, %v4679
    %vm4690 = vcmp.eq.f32.partialorder %v4689, 8.507059e+37
    %v4691 = vand.u32 %v4679, 2147483648
    %v4692 = vor.u32 1.1754944e-38, %v4691
    %v4693 = vsel %vm4690, %v4692, %v4688
    %v4694 = vmul.f32 1.0, %v4693
    %v4695 = vtanh.pop %v4655
    %v4696 = vxor.u32 %v4656, 2147483648
    %v4697 = vmul.f32 %v4696, 1.442695
    %v4698 = vpow.pop %v4697
    %v4699 = vadd.f32 %v4698, 1.0
    %v4700 = vrcp.pop %v4699
    %v4701 = vmul.f32 %v4699, %v4700
    %v4702 = vsub.f32 1.0, %v4701
    %v4703 = vmul.f32 %v4700, %v4702
    %v4704 = vadd.f32 %v4700, %v4703
    %vm4705 = vweird.f32 %v4699
    %vm4706 = vweird.f32 %v4700
    %vm4707 = vmor %vm4705, %vm4706
    %v4708 = vsel %vm4707, %v4700, %v4704
    %v4709 = vand.u32 2147483647, %v4699
    %vm4710 = vcmp.eq.f32.partialorder %v4709, 8.507059e+37
    %v4711 = vand.u32 %v4699, 2147483648
    %v4712 = vor.u32 1.1754944e-38, %v4711
    %v4713 = vsel %vm4710, %v4712, %v4708
    %v4714 = vmul.f32 1.0, %v4713
    %v4715 = vmul.f32 %v4694, %v4570
    %v4716 = vmul.f32 %v4675, %v4695
    %v4717 = vadd.f32 %v4715, %v4716
    %v4718 = vtanh.pop %v4717
    %v4719 = vmul.f32 %v4714, %v4718
    %4720 = vmatpush.msra.mxu0 %v2974
    %4721 = vmatpush.msra.mxu0 %v2970
    %4722 = vmatpush.msra.mxu0 %v2966
    %4723 = vmatpush.msra.mxu0 %v2962
    %4724 = vmatpush.msra.mxu0 %v2958
    %4725 = vmatpush.msra.mxu0 %v2954
    %4726 = vmatpush.msra.mxu0 %v2950
    %4727 = vmatpush.msra.mxu0 %v2946
    %4728 = vmatpush.msra.mxu0 %v2942
    %4729 = vmatpush.msra.mxu0 %v2938
    %4730 = vmatpush.msra.mxu0 %v2934
    %4731 = vmatpush.msra.mxu0 %v2930
    %4732 = vmatpush.msra.mxu0 %v2926
    %4733 = vmatpush.msra.mxu0 %v2922
    %4734 = vmatpush.msra.mxu0 %v2918
    %4735 = vmatpush.msra.mxu0 %v2914
    %4736 = vmatmul.f32.gmra.mxu0 %v4719
    %v4737 = vpop.f32.mrf.mxu0
    %v4738 = vadd.f32 0.0, %v4737
    %4739 = vdwg.mxu0
    %4740 = vmatpush.msra.mxu0 %v2975
    %4741 = vmatpush.msra.mxu0 %v2971
    %4742 = vmatpush.msra.mxu0 %v2967
    %4743 = vmatpush.msra.mxu0 %v2963
    %4744 = vmatpush.msra.mxu0 %v2959
    %4745 = vmatpush.msra.mxu0 %v2955
    %4746 = vmatpush.msra.mxu0 %v2951
    %4747 = vmatpush.msra.mxu0 %v2947
    %4748 = vmatpush.msra.mxu0 %v2943
    %4749 = vmatpush.msra.mxu0 %v2939
    %4750 = vmatpush.msra.mxu0 %v2935
    %4751 = vmatpush.msra.mxu0 %v2931
    %4752 = vmatpush.msra.mxu0 %v2927
    %4753 = vmatpush.msra.mxu0 %v2923
    %4754 = vmatpush.msra.mxu0 %v2919
    %4755 = vmatpush.msra.mxu0 %v2915
    %4756 = vmatmul.f32.gmra.mxu0 %v4719
    %v4757 = vpop.f32.mrf.mxu0
    %v4758 = vadd.f32 0.0, %v4757
    %4759 = vdwg.mxu0
    %4760 = vmatpush.msra.mxu0 %v2976
    %4761 = vmatpush.msra.mxu0 %v2972
    %4762 = vmatpush.msra.mxu0 %v2968
    %4763 = vmatpush.msra.mxu0 %v2964
    %4764 = vmatpush.msra.mxu0 %v2960
    %4765 = vmatpush.msra.mxu0 %v2956
    %4766 = vmatpush.msra.mxu0 %v2952
    %4767 = vmatpush.msra.mxu0 %v2948
    %4768 = vmatpush.msra.mxu0 %v2944
    %4769 = vmatpush.msra.mxu0 %v2940
    %4770 = vmatpush.msra.mxu0 %v2936
    %4771 = vmatpush.msra.mxu0 %v2932
    %4772 = vmatpush.msra.mxu0 %v2928
    %4773 = vmatpush.msra.mxu0 %v2924
    %4774 = vmatpush.msra.mxu0 %v2920
    %4775 = vmatpush.msra.mxu0 %v2916
    %4776 = vmatmul.f32.gmra.mxu0 %v4719
    %v4777 = vpop.f32.mrf.mxu0
    %v4778 = vadd.f32 0.0, %v4777
    %4779 = vdwg.mxu0
    %4780 = vmatpush.msra.mxu0 %v2977
    %4781 = vmatpush.msra.mxu0 %v2973
    %4782 = vmatpush.msra.mxu0 %v2969
    %4783 = vmatpush.msra.mxu0 %v2965
    %4784 = vmatpush.msra.mxu0 %v2961
    %4785 = vmatpush.msra.mxu0 %v2957
    %4786 = vmatpush.msra.mxu0 %v2953
    %4787 = vmatpush.msra.mxu0 %v2949
    %4788 = vmatpush.msra.mxu0 %v2945
    %4789 = vmatpush.msra.mxu0 %v2941
    %4790 = vmatpush.msra.mxu0 %v2937
    %4791 = vmatpush.msra.mxu0 %v2933
    %4792 = vmatpush.msra.mxu0 %v2929
    %4793 = vmatpush.msra.mxu0 %v2925
    %4794 = vmatpush.msra.mxu0 %v2921
    %4795 = vmatpush.msra.mxu0 %v2917
    %4796 = vmatmul.f32.gmra.mxu0 %v4719
    %v4797 = vpop.f32.mrf.mxu0
    %v4798 = vadd.f32 0.0, %v4797
    %4799 = vdwg.mxu0
    %v4800 = vadd.f32 %v3036, %v4738
    %v4801 = vadd.f32 %v3101, %v4758
    %v4802 = vadd.f32 %v3166, %v4778
    %v4803 = vadd.f32 %v3231, %v4798
    %v4804 = vxor.u32 %v4800, 2147483648
    %v4805 = vmul.f32 %v4804, 1.442695
    %v4806 = vpow.pop %v4805
    %v4807 = vadd.f32 %v4806, 1.0
    %v4808 = vrcp.pop %v4807
    %v4809 = vmul.f32 %v4807, %v4808
    %v4810 = vsub.f32 1.0, %v4809
    %v4811 = vmul.f32 %v4808, %v4810
    %v4812 = vadd.f32 %v4808, %v4811
    %vm4813 = vweird.f32 %v4807
    %vm4814 = vweird.f32 %v4808
    %vm4815 = vmor %vm4813, %vm4814
    %v4816 = vsel %vm4815, %v4808, %v4812
    %v4817 = vand.u32 2147483647, %v4807
    %vm4818 = vcmp.eq.f32.partialorder %v4817, 8.507059e+37
    %v4819 = vand.u32 %v4807, 2147483648
    %v4820 = vor.u32 1.1754944e-38, %v4819
    %v4821 = vsel %vm4818, %v4820, %v4816
    %v4822 = vmul.f32 1.0, %v4821
    %v4823 = vxor.u32 %v4801, 2147483648
    %v4824 = vmul.f32 %v4823, 1.442695
    %v4825 = vpow.pop %v4824
    %v4826 = vadd.f32 %v4825, 1.0
    %v4827 = vrcp.pop %v4826
    %v4828 = vmul.f32 %v4826, %v4827
    %v4829 = vsub.f32 1.0, %v4828
    %v4830 = vmul.f32 %v4827, %v4829
    %v4831 = vadd.f32 %v4827, %v4830
    %vm4832 = vweird.f32 %v4826
    %vm4833 = vweird.f32 %v4827
    %vm4834 = vmor %vm4832, %vm4833
    %v4835 = vsel %vm4834, %v4827, %v4831
    %v4836 = vand.u32 2147483647, %v4826
    %vm4837 = vcmp.eq.f32.partialorder %v4836, 8.507059e+37
    %v4838 = vand.u32 %v4826, 2147483648
    %v4839 = vor.u32 1.1754944e-38, %v4838
    %v4840 = vsel %vm4837, %v4839, %v4835
    %v4841 = vmul.f32 1.0, %v4840
    %v4842 = vtanh.pop %v4802
    %v4843 = vxor.u32 %v4803, 2147483648
    %v4844 = vmul.f32 %v4843, 1.442695
    %v4845 = vpow.pop %v4844
    %v4846 = vadd.f32 %v4845, 1.0
    %v4847 = vrcp.pop %v4846
    %v4848 = vmul.f32 %v4846, %v4847
    %v4849 = vsub.f32 1.0, %v4848
    %v4850 = vmul.f32 %v4847, %v4849
    %v4851 = vadd.f32 %v4847, %v4850
    %vm4852 = vweird.f32 %v4846
    %vm4853 = vweird.f32 %v4847
    %vm4854 = vmor %vm4852, %vm4853
    %v4855 = vsel %vm4854, %v4847, %v4851
    %v4856 = vand.u32 2147483647, %v4846
    %vm4857 = vcmp.eq.f32.partialorder %v4856, 8.507059e+37
    %v4858 = vand.u32 %v4846, 2147483648
    %v4859 = vor.u32 1.1754944e-38, %v4858
    %v4860 = vsel %vm4857, %v4859, %v4855
    %v4861 = vmul.f32 1.0, %v4860
    %v4862 = vmul.f32 %v4841, %v4717
    %v4863 = vmul.f32 %v4822, %v4842
    %v4864 = vadd.f32 %v4862, %v4863
    %v4865 = vtanh.pop %v4864
    %v4866 = vmul.f32 %v4861, %v4865
    %4867 = vmatpush.msra.mxu0 %v2974
    %4868 = vmatpush.msra.mxu0 %v2970
    %4869 = vmatpush.msra.mxu0 %v2966
    %4870 = vmatpush.msra.mxu0 %v2962
    %4871 = vmatpush.msra.mxu0 %v2958
    %4872 = vmatpush.msra.mxu0 %v2954
    %4873 = vmatpush.msra.mxu0 %v2950
    %4874 = vmatpush.msra.mxu0 %v2946
    %4875 = vmatpush.msra.mxu0 %v2942
    %4876 = vmatpush.msra.mxu0 %v2938
    %4877 = vmatpush.msra.mxu0 %v2934
    %4878 = vmatpush.msra.mxu0 %v2930
    %4879 = vmatpush.msra.mxu0 %v2926
    %4880 = vmatpush.msra.mxu0 %v2922
    %4881 = vmatpush.msra.mxu0 %v2918
    %4882 = vmatpush.msra.mxu0 %v2914
    %4883 = vmatmul.f32.gmra.mxu0 %v4866
    %v4884 = vpop.f32.mrf.mxu0
    %v4885 = vadd.f32 0.0, %v4884
    %4886 = vdwg.mxu0
    %4887 = vmatpush.msra.mxu0 %v2975
    %4888 = vmatpush.msra.mxu0 %v2971
    %4889 = vmatpush.msra.mxu0 %v2967
    %4890 = vmatpush.msra.mxu0 %v2963
    %4891 = vmatpush.msra.mxu0 %v2959
    %4892 = vmatpush.msra.mxu0 %v2955
    %4893 = vmatpush.msra.mxu0 %v2951
    %4894 = vmatpush.msra.mxu0 %v2947
    %4895 = vmatpush.msra.mxu0 %v2943
    %4896 = vmatpush.msra.mxu0 %v2939
    %4897 = vmatpush.msra.mxu0 %v2935
    %4898 = vmatpush.msra.mxu0 %v2931
    %4899 = vmatpush.msra.mxu0 %v2927
    %4900 = vmatpush.msra.mxu0 %v2923
    %4901 = vmatpush.msra.mxu0 %v2919
    %4902 = vmatpush.msra.mxu0 %v2915
    %4903 = vmatmul.f32.gmra.mxu0 %v4866
    %v4904 = vpop.f32.mrf.mxu0
    %v4905 = vadd.f32 0.0, %v4904
    %4906 = vdwg.mxu0
    %4907 = vmatpush.msra.mxu0 %v2976
    %4908 = vmatpush.msra.mxu0 %v2972
    %4909 = vmatpush.msra.mxu0 %v2968
    %4910 = vmatpush.msra.mxu0 %v2964
    %4911 = vmatpush.msra.mxu0 %v2960
    %4912 = vmatpush.msra.mxu0 %v2956
    %4913 = vmatpush.msra.mxu0 %v2952
    %4914 = vmatpush.msra.mxu0 %v2948
    %4915 = vmatpush.msra.mxu0 %v2944
    %4916 = vmatpush.msra.mxu0 %v2940
    %4917 = vmatpush.msra.mxu0 %v2936
    %4918 = vmatpush.msra.mxu0 %v2932
    %4919 = vmatpush.msra.mxu0 %v2928
    %4920 = vmatpush.msra.mxu0 %v2924
    %4921 = vmatpush.msra.mxu0 %v2920
    %4922 = vmatpush.msra.mxu0 %v2916
    %4923 = vmatmul.f32.gmra.mxu0 %v4866
    %v4924 = vpop.f32.mrf.mxu0
    %v4925 = vadd.f32 0.0, %v4924
    %4926 = vdwg.mxu0
    %4927 = vmatpush.msra.mxu0 %v2977
    %4928 = vmatpush.msra.mxu0 %v2973
    %4929 = vmatpush.msra.mxu0 %v2969
    %4930 = vmatpush.msra.mxu0 %v2965
    %4931 = vmatpush.msra.mxu0 %v2961
    %4932 = vmatpush.msra.mxu0 %v2957
    %4933 = vmatpush.msra.mxu0 %v2953
    %4934 = vmatpush.msra.mxu0 %v2949
    %4935 = vmatpush.msra.mxu0 %v2945
    %4936 = vmatpush.msra.mxu0 %v2941
    %4937 = vmatpush.msra.mxu0 %v2937
    %4938 = vmatpush.msra.mxu0 %v2933
    %4939 = vmatpush.msra.mxu0 %v2929
    %4940 = vmatpush.msra.mxu0 %v2925
    %4941 = vmatpush.msra.mxu0 %v2921
    %4942 = vmatpush.msra.mxu0 %v2917
    %4943 = vmatmul.f32.gmra.mxu0 %v4866
    %v4944 = vpop.f32.mrf.mxu0
    %v4945 = vadd.f32 0.0, %v4944
    %4946 = vdwg.mxu0
    %v4947 = vadd.f32 %v3039, %v4885
    %v4948 = vadd.f32 %v3104, %v4905
    %v4949 = vadd.f32 %v3169, %v4925
    %v4950 = vadd.f32 %v3234, %v4945
    %v4951 = vxor.u32 %v4947, 2147483648
    %v4952 = vmul.f32 %v4951, 1.442695
    %v4953 = vpow.pop %v4952
    %v4954 = vadd.f32 %v4953, 1.0
    %v4955 = vrcp.pop %v4954
    %v4956 = vmul.f32 %v4954, %v4955
    %v4957 = vsub.f32 1.0, %v4956
    %v4958 = vmul.f32 %v4955, %v4957
    %v4959 = vadd.f32 %v4955, %v4958
    %vm4960 = vweird.f32 %v4954
    %vm4961 = vweird.f32 %v4955
    %vm4962 = vmor %vm4960, %vm4961
    %v4963 = vsel %vm4962, %v4955, %v4959
    %v4964 = vand.u32 2147483647, %v4954
    %vm4965 = vcmp.eq.f32.partialorder %v4964, 8.507059e+37
    %v4966 = vand.u32 %v4954, 2147483648
    %v4967 = vor.u32 1.1754944e-38, %v4966
    %v4968 = vsel %vm4965, %v4967, %v4963
    %v4969 = vmul.f32 1.0, %v4968
    %v4970 = vxor.u32 %v4948, 2147483648
    %v4971 = vmul.f32 %v4970, 1.442695
    %v4972 = vpow.pop %v4971
    %v4973 = vadd.f32 %v4972, 1.0
    %v4974 = vrcp.pop %v4973
    %v4975 = vmul.f32 %v4973, %v4974
    %v4976 = vsub.f32 1.0, %v4975
    %v4977 = vmul.f32 %v4974, %v4976
    %v4978 = vadd.f32 %v4974, %v4977
    %vm4979 = vweird.f32 %v4973
    %vm4980 = vweird.f32 %v4974
    %vm4981 = vmor %vm4979, %vm4980
    %v4982 = vsel %vm4981, %v4974, %v4978
    %v4983 = vand.u32 2147483647, %v4973
    %vm4984 = vcmp.eq.f32.partialorder %v4983, 8.507059e+37
    %v4985 = vand.u32 %v4973, 2147483648
    %v4986 = vor.u32 1.1754944e-38, %v4985
    %v4987 = vsel %vm4984, %v4986, %v4982
    %v4988 = vmul.f32 1.0, %v4987
    %v4989 = vtanh.pop %v4949
    %v4990 = vxor.u32 %v4950, 2147483648
    %v4991 = vmul.f32 %v4990, 1.442695
    %v4992 = vpow.pop %v4991
    %v4993 = vadd.f32 %v4992, 1.0
    %v4994 = vrcp.pop %v4993
    %v4995 = vmul.f32 %v4993, %v4994
    %v4996 = vsub.f32 1.0, %v4995
    %v4997 = vmul.f32 %v4994, %v4996
    %v4998 = vadd.f32 %v4994, %v4997
    %vm4999 = vweird.f32 %v4993
    %vm5000 = vweird.f32 %v4994
    %vm5001 = vmor %vm4999, %vm5000
    %v5002 = vsel %vm5001, %v4994, %v4998
    %v5003 = vand.u32 2147483647, %v4993
    %vm5004 = vcmp.eq.f32.partialorder %v5003, 8.507059e+37
    %v5005 = vand.u32 %v4993, 2147483648
    %v5006 = vor.u32 1.1754944e-38, %v5005
    %v5007 = vsel %vm5004, %v5006, %v5002
    %v5008 = vmul.f32 1.0, %v5007
    %v5009 = vmul.f32 %v4988, %v4864
    %v5010 = vmul.f32 %v4969, %v4989
    %v5011 = vadd.f32 %v5009, %v5010
    %v5012 = vtanh.pop %v5011
    %v5013 = vmul.f32 %v5008, %v5012
    %5014 = vmatpush.msra.mxu0 %v2974
    %5015 = vmatpush.msra.mxu0 %v2970
    %5016 = vmatpush.msra.mxu0 %v2966
    %5017 = vmatpush.msra.mxu0 %v2962
    %5018 = vmatpush.msra.mxu0 %v2958
    %5019 = vmatpush.msra.mxu0 %v2954
    %5020 = vmatpush.msra.mxu0 %v2950
    %5021 = vmatpush.msra.mxu0 %v2946
    %5022 = vmatpush.msra.mxu0 %v2942
    %5023 = vmatpush.msra.mxu0 %v2938
    %5024 = vmatpush.msra.mxu0 %v2934
    %5025 = vmatpush.msra.mxu0 %v2930
    %5026 = vmatpush.msra.mxu0 %v2926
    %5027 = vmatpush.msra.mxu0 %v2922
    %5028 = vmatpush.msra.mxu0 %v2918
    %5029 = vmatpush.msra.mxu0 %v2914
    %5030 = vmatmul.f32.gmra.mxu0 %v5013
    %v5031 = vpop.f32.mrf.mxu0
    %v5032 = vadd.f32 0.0, %v5031
    %5033 = vdwg.mxu0
    %5034 = vmatpush.msra.mxu0 %v2975
    %5035 = vmatpush.msra.mxu0 %v2971
    %5036 = vmatpush.msra.mxu0 %v2967
    %5037 = vmatpush.msra.mxu0 %v2963
    %5038 = vmatpush.msra.mxu0 %v2959
    %5039 = vmatpush.msra.mxu0 %v2955
    %5040 = vmatpush.msra.mxu0 %v2951
    %5041 = vmatpush.msra.mxu0 %v2947
    %5042 = vmatpush.msra.mxu0 %v2943
    %5043 = vmatpush.msra.mxu0 %v2939
    %5044 = vmatpush.msra.mxu0 %v2935
    %5045 = vmatpush.msra.mxu0 %v2931
    %5046 = vmatpush.msra.mxu0 %v2927
    %5047 = vmatpush.msra.mxu0 %v2923
    %5048 = vmatpush.msra.mxu0 %v2919
    %5049 = vmatpush.msra.mxu0 %v2915
    %5050 = vmatmul.f32.gmra.mxu0 %v5013
    %v5051 = vpop.f32.mrf.mxu0
    %v5052 = vadd.f32 0.0, %v5051
    %5053 = vdwg.mxu0
    %5054 = vmatpush.msra.mxu0 %v2976
    %5055 = vmatpush.msra.mxu0 %v2972
    %5056 = vmatpush.msra.mxu0 %v2968
    %5057 = vmatpush.msra.mxu0 %v2964
    %5058 = vmatpush.msra.mxu0 %v2960
    %5059 = vmatpush.msra.mxu0 %v2956
    %5060 = vmatpush.msra.mxu0 %v2952
    %5061 = vmatpush.msra.mxu0 %v2948
    %5062 = vmatpush.msra.mxu0 %v2944
    %5063 = vmatpush.msra.mxu0 %v2940
    %5064 = vmatpush.msra.mxu0 %v2936
    %5065 = vmatpush.msra.mxu0 %v2932
    %5066 = vmatpush.msra.mxu0 %v2928
    %5067 = vmatpush.msra.mxu0 %v2924
    %5068 = vmatpush.msra.mxu0 %v2920
    %5069 = vmatpush.msra.mxu0 %v2916
    %5070 = vmatmul.f32.gmra.mxu0 %v5013
    %v5071 = vpop.f32.mrf.mxu0
    %v5072 = vadd.f32 0.0, %v5071
    %5073 = vdwg.mxu0
    %5074 = vmatpush.msra.mxu0 %v2977
    %5075 = vmatpush.msra.mxu0 %v2973
    %5076 = vmatpush.msra.mxu0 %v2969
    %5077 = vmatpush.msra.mxu0 %v2965
    %5078 = vmatpush.msra.mxu0 %v2961
    %5079 = vmatpush.msra.mxu0 %v2957
    %5080 = vmatpush.msra.mxu0 %v2953
    %5081 = vmatpush.msra.mxu0 %v2949
    %5082 = vmatpush.msra.mxu0 %v2945
    %5083 = vmatpush.msra.mxu0 %v2941
    %5084 = vmatpush.msra.mxu0 %v2937
    %5085 = vmatpush.msra.mxu0 %v2933
    %5086 = vmatpush.msra.mxu0 %v2929
    %5087 = vmatpush.msra.mxu0 %v2925
    %5088 = vmatpush.msra.mxu0 %v2921
    %5089 = vmatpush.msra.mxu0 %v2917
    %5090 = vmatmul.f32.gmra.mxu0 %v5013
    %v5091 = vpop.f32.mrf.mxu0
    %v5092 = vadd.f32 0.0, %v5091
    %5093 = vdwg.mxu0
    %v5094 = vadd.f32 %v3042, %v5032
    %v5095 = vadd.f32 %v3107, %v5052
    %v5096 = vadd.f32 %v3172, %v5072
    %v5097 = vadd.f32 %v3237, %v5092
    %v5098 = vxor.u32 %v5094, 2147483648
    %v5099 = vmul.f32 %v5098, 1.442695
    %v5100 = vpow.pop %v5099
    %v5101 = vadd.f32 %v5100, 1.0
    %v5102 = vrcp.pop %v5101
    %v5103 = vmul.f32 %v5101, %v5102
    %v5104 = vsub.f32 1.0, %v5103
    %v5105 = vmul.f32 %v5102, %v5104
    %v5106 = vadd.f32 %v5102, %v5105
    %vm5107 = vweird.f32 %v5101
    %vm5108 = vweird.f32 %v5102
    %vm5109 = vmor %vm5107, %vm5108
    %v5110 = vsel %vm5109, %v5102, %v5106
    %v5111 = vand.u32 2147483647, %v5101
    %vm5112 = vcmp.eq.f32.partialorder %v5111, 8.507059e+37
    %v5113 = vand.u32 %v5101, 2147483648
    %v5114 = vor.u32 1.1754944e-38, %v5113
    %v5115 = vsel %vm5112, %v5114, %v5110
    %v5116 = vmul.f32 1.0, %v5115
    %v5117 = vxor.u32 %v5095, 2147483648
    %v5118 = vmul.f32 %v5117, 1.442695
    %v5119 = vpow.pop %v5118
    %v5120 = vadd.f32 %v5119, 1.0
    %v5121 = vrcp.pop %v5120
    %v5122 = vmul.f32 %v5120, %v5121
    %v5123 = vsub.f32 1.0, %v5122
    %v5124 = vmul.f32 %v5121, %v5123
    %v5125 = vadd.f32 %v5121, %v5124
    %vm5126 = vweird.f32 %v5120
    %vm5127 = vweird.f32 %v5121
    %vm5128 = vmor %vm5126, %vm5127
    %v5129 = vsel %vm5128, %v5121, %v5125
    %v5130 = vand.u32 2147483647, %v5120
    %vm5131 = vcmp.eq.f32.partialorder %v5130, 8.507059e+37
    %v5132 = vand.u32 %v5120, 2147483648
    %v5133 = vor.u32 1.1754944e-38, %v5132
    %v5134 = vsel %vm5131, %v5133, %v5129
    %v5135 = vmul.f32 1.0, %v5134
    %v5136 = vtanh.pop %v5096
    %v5137 = vxor.u32 %v5097, 2147483648
    %v5138 = vmul.f32 %v5137, 1.442695
    %v5139 = vpow.pop %v5138
    %v5140 = vadd.f32 %v5139, 1.0
    %v5141 = vrcp.pop %v5140
    %v5142 = vmul.f32 %v5140, %v5141
    %v5143 = vsub.f32 1.0, %v5142
    %v5144 = vmul.f32 %v5141, %v5143
    %v5145 = vadd.f32 %v5141, %v5144
    %vm5146 = vweird.f32 %v5140
    %vm5147 = vweird.f32 %v5141
    %vm5148 = vmor %vm5146, %vm5147
    %v5149 = vsel %vm5148, %v5141, %v5145
    %v5150 = vand.u32 2147483647, %v5140
    %vm5151 = vcmp.eq.f32.partialorder %v5150, 8.507059e+37
    %v5152 = vand.u32 %v5140, 2147483648
    %v5153 = vor.u32 1.1754944e-38, %v5152
    %v5154 = vsel %vm5151, %v5153, %v5149
    %v5155 = vmul.f32 1.0, %v5154
    %v5156 = vmul.f32 %v5135, %v5011
    %v5157 = vmul.f32 %v5116, %v5136
    %v5158 = vadd.f32 %v5156, %v5157
    %v5159 = vtanh.pop %v5158
    %v5160 = vmul.f32 %v5155, %v5159
    %5161 = vmatpush.msra.mxu0 %v2974
    %5162 = vmatpush.msra.mxu0 %v2970
    %5163 = vmatpush.msra.mxu0 %v2966
    %5164 = vmatpush.msra.mxu0 %v2962
    %5165 = vmatpush.msra.mxu0 %v2958
    %5166 = vmatpush.msra.mxu0 %v2954
    %5167 = vmatpush.msra.mxu0 %v2950
    %5168 = vmatpush.msra.mxu0 %v2946
    %5169 = vmatpush.msra.mxu0 %v2942
    %5170 = vmatpush.msra.mxu0 %v2938
    %5171 = vmatpush.msra.mxu0 %v2934
    %5172 = vmatpush.msra.mxu0 %v2930
    %5173 = vmatpush.msra.mxu0 %v2926
    %5174 = vmatpush.msra.mxu0 %v2922
    %5175 = vmatpush.msra.mxu0 %v2918
    %5176 = vmatpush.msra.mxu0 %v2914
    %5177 = vmatmul.f32.gmra.mxu0 %v5160
    %v5178 = vpop.f32.mrf.mxu0
    %v5179 = vadd.f32 0.0, %v5178
    %5180 = vdwg.mxu0
    %5181 = vmatpush.msra.mxu0 %v2975
    %5182 = vmatpush.msra.mxu0 %v2971
    %5183 = vmatpush.msra.mxu0 %v2967
    %5184 = vmatpush.msra.mxu0 %v2963
    %5185 = vmatpush.msra.mxu0 %v2959
    %5186 = vmatpush.msra.mxu0 %v2955
    %5187 = vmatpush.msra.mxu0 %v2951
    %5188 = vmatpush.msra.mxu0 %v2947
    %5189 = vmatpush.msra.mxu0 %v2943
    %5190 = vmatpush.msra.mxu0 %v2939
    %5191 = vmatpush.msra.mxu0 %v2935
    %5192 = vmatpush.msra.mxu0 %v2931
    %5193 = vmatpush.msra.mxu0 %v2927
    %5194 = vmatpush.msra.mxu0 %v2923
    %5195 = vmatpush.msra.mxu0 %v2919
    %5196 = vmatpush.msra.mxu0 %v2915
    %5197 = vmatmul.f32.gmra.mxu0 %v5160
    %v5198 = vpop.f32.mrf.mxu0
    %v5199 = vadd.f32 0.0, %v5198
    %5200 = vdwg.mxu0
    %5201 = vmatpush.msra.mxu0 %v2976
    %5202 = vmatpush.msra.mxu0 %v2972
    %5203 = vmatpush.msra.mxu0 %v2968
    %5204 = vmatpush.msra.mxu0 %v2964
    %5205 = vmatpush.msra.mxu0 %v2960
    %5206 = vmatpush.msra.mxu0 %v2956
    %5207 = vmatpush.msra.mxu0 %v2952
    %5208 = vmatpush.msra.mxu0 %v2948
    %5209 = vmatpush.msra.mxu0 %v2944
    %5210 = vmatpush.msra.mxu0 %v2940
    %5211 = vmatpush.msra.mxu0 %v2936
    %5212 = vmatpush.msra.mxu0 %v2932
    %5213 = vmatpush.msra.mxu0 %v2928
    %5214 = vmatpush.msra.mxu0 %v2924
    %5215 = vmatpush.msra.mxu0 %v2920
    %5216 = vmatpush.msra.mxu0 %v2916
    %5217 = vmatmul.f32.gmra.mxu0 %v5160
    %v5218 = vpop.f32.mrf.mxu0
    %v5219 = vadd.f32 0.0, %v5218
    %5220 = vdwg.mxu0
    %5221 = vmatpush.msra.mxu0 %v2977
    %5222 = vmatpush.msra.mxu0 %v2973
    %5223 = vmatpush.msra.mxu0 %v2969
    %5224 = vmatpush.msra.mxu0 %v2965
    %5225 = vmatpush.msra.mxu0 %v2961
    %5226 = vmatpush.msra.mxu0 %v2957
    %5227 = vmatpush.msra.mxu0 %v2953
    %5228 = vmatpush.msra.mxu0 %v2949
    %5229 = vmatpush.msra.mxu0 %v2945
    %5230 = vmatpush.msra.mxu0 %v2941
    %5231 = vmatpush.msra.mxu0 %v2937
    %5232 = vmatpush.msra.mxu0 %v2933
    %5233 = vmatpush.msra.mxu0 %v2929
    %5234 = vmatpush.msra.mxu0 %v2925
    %5235 = vmatpush.msra.mxu0 %v2921
    %5236 = vmatpush.msra.mxu0 %v2917
    %5237 = vmatmul.f32.gmra.mxu0 %v5160
    %v5238 = vpop.f32.mrf.mxu0
    %v5239 = vadd.f32 0.0, %v5238
    %5240 = vdwg.mxu0
    %v5241 = vadd.f32 %v3045, %v5179
    %v5242 = vadd.f32 %v3110, %v5199
    %v5243 = vadd.f32 %v3175, %v5219
    %v5244 = vadd.f32 %v3240, %v5239
    %v5245 = vxor.u32 %v5241, 2147483648
    %v5246 = vmul.f32 %v5245, 1.442695
    %v5247 = vpow.pop %v5246
    %v5248 = vadd.f32 %v5247, 1.0
    %v5249 = vrcp.pop %v5248
    %v5250 = vmul.f32 %v5248, %v5249
    %v5251 = vsub.f32 1.0, %v5250
    %v5252 = vmul.f32 %v5249, %v5251
    %v5253 = vadd.f32 %v5249, %v5252
    %vm5254 = vweird.f32 %v5248
    %vm5255 = vweird.f32 %v5249
    %vm5256 = vmor %vm5254, %vm5255
    %v5257 = vsel %vm5256, %v5249, %v5253
    %v5258 = vand.u32 2147483647, %v5248
    %vm5259 = vcmp.eq.f32.partialorder %v5258, 8.507059e+37
    %v5260 = vand.u32 %v5248, 2147483648
    %v5261 = vor.u32 1.1754944e-38, %v5260
    %v5262 = vsel %vm5259, %v5261, %v5257
    %v5263 = vmul.f32 1.0, %v5262
    %v5264 = vxor.u32 %v5242, 2147483648
    %v5265 = vmul.f32 %v5264, 1.442695
    %v5266 = vpow.pop %v5265
    %v5267 = vadd.f32 %v5266, 1.0
    %v5268 = vrcp.pop %v5267
    %v5269 = vmul.f32 %v5267, %v5268
    %v5270 = vsub.f32 1.0, %v5269
    %v5271 = vmul.f32 %v5268, %v5270
    %v5272 = vadd.f32 %v5268, %v5271
    %vm5273 = vweird.f32 %v5267
    %vm5274 = vweird.f32 %v5268
    %vm5275 = vmor %vm5273, %vm5274
    %v5276 = vsel %vm5275, %v5268, %v5272
    %v5277 = vand.u32 2147483647, %v5267
    %vm5278 = vcmp.eq.f32.partialorder %v5277, 8.507059e+37
    %v5279 = vand.u32 %v5267, 2147483648
    %v5280 = vor.u32 1.1754944e-38, %v5279
    %v5281 = vsel %vm5278, %v5280, %v5276
    %v5282 = vmul.f32 1.0, %v5281
    %v5283 = vtanh.pop %v5243
    %v5284 = vxor.u32 %v5244, 2147483648
    %v5285 = vmul.f32 %v5284, 1.442695
    %v5286 = vpow.pop %v5285
    %v5287 = vadd.f32 %v5286, 1.0
    %v5288 = vrcp.pop %v5287
    %v5289 = vmul.f32 %v5287, %v5288
    %v5290 = vsub.f32 1.0, %v5289
    %v5291 = vmul.f32 %v5288, %v5290
    %v5292 = vadd.f32 %v5288, %v5291
    %vm5293 = vweird.f32 %v5287
    %vm5294 = vweird.f32 %v5288
    %vm5295 = vmor %vm5293, %vm5294
    %v5296 = vsel %vm5295, %v5288, %v5292
    %v5297 = vand.u32 2147483647, %v5287
    %vm5298 = vcmp.eq.f32.partialorder %v5297, 8.507059e+37
    %v5299 = vand.u32 %v5287, 2147483648
    %v5300 = vor.u32 1.1754944e-38, %v5299
    %v5301 = vsel %vm5298, %v5300, %v5296
    %v5302 = vmul.f32 1.0, %v5301
    %v5303 = vmul.f32 %v5282, %v5158
    %v5304 = vmul.f32 %v5263, %v5283
    %v5305 = vadd.f32 %v5303, %v5304
    %v5306 = vtanh.pop %v5305
    %v5307 = vmul.f32 %v5302, %v5306
    %5308 = vmatpush.msra.mxu0 %v2974
    %5309 = vmatpush.msra.mxu0 %v2970
    %5310 = vmatpush.msra.mxu0 %v2966
    %5311 = vmatpush.msra.mxu0 %v2962
    %5312 = vmatpush.msra.mxu0 %v2958
    %5313 = vmatpush.msra.mxu0 %v2954
    %5314 = vmatpush.msra.mxu0 %v2950
    %5315 = vmatpush.msra.mxu0 %v2946
    %5316 = vmatpush.msra.mxu0 %v2942
    %5317 = vmatpush.msra.mxu0 %v2938
    %5318 = vmatpush.msra.mxu0 %v2934
    %5319 = vmatpush.msra.mxu0 %v2930
    %5320 = vmatpush.msra.mxu0 %v2926
    %5321 = vmatpush.msra.mxu0 %v2922
    %5322 = vmatpush.msra.mxu0 %v2918
    %5323 = vmatpush.msra.mxu0 %v2914
    %5324 = vmatmul.f32.gmra.mxu0 %v5307
    %v5325 = vpop.f32.mrf.mxu0
    %v5326 = vadd.f32 0.0, %v5325
    %5327 = vdwg.mxu0
    %5328 = vmatpush.msra.mxu0 %v2975
    %5329 = vmatpush.msra.mxu0 %v2971
    %5330 = vmatpush.msra.mxu0 %v2967
    %5331 = vmatpush.msra.mxu0 %v2963
    %5332 = vmatpush.msra.mxu0 %v2959
    %5333 = vmatpush.msra.mxu0 %v2955
    %5334 = vmatpush.msra.mxu0 %v2951
    %5335 = vmatpush.msra.mxu0 %v2947
    %5336 = vmatpush.msra.mxu0 %v2943
    %5337 = vmatpush.msra.mxu0 %v2939
    %5338 = vmatpush.msra.mxu0 %v2935
    %5339 = vmatpush.msra.mxu0 %v2931
    %5340 = vmatpush.msra.mxu0 %v2927
    %5341 = vmatpush.msra.mxu0 %v2923
    %5342 = vmatpush.msra.mxu0 %v2919
    %5343 = vmatpush.msra.mxu0 %v2915
    %5344 = vmatmul.f32.gmra.mxu0 %v5307
    %v5345 = vpop.f32.mrf.mxu0
    %v5346 = vadd.f32 0.0, %v5345
    %5347 = vdwg.mxu0
    %5348 = vmatpush.msra.mxu0 %v2976
    %5349 = vmatpush.msra.mxu0 %v2972
    %5350 = vmatpush.msra.mxu0 %v2968
    %5351 = vmatpush.msra.mxu0 %v2964
    %5352 = vmatpush.msra.mxu0 %v2960
    %5353 = vmatpush.msra.mxu0 %v2956
    %5354 = vmatpush.msra.mxu0 %v2952
    %5355 = vmatpush.msra.mxu0 %v2948
    %5356 = vmatpush.msra.mxu0 %v2944
    %5357 = vmatpush.msra.mxu0 %v2940
    %5358 = vmatpush.msra.mxu0 %v2936
    %5359 = vmatpush.msra.mxu0 %v2932
    %5360 = vmatpush.msra.mxu0 %v2928
    %5361 = vmatpush.msra.mxu0 %v2924
    %5362 = vmatpush.msra.mxu0 %v2920
    %5363 = vmatpush.msra.mxu0 %v2916
    %5364 = vmatmul.f32.gmra.mxu0 %v5307
    %v5365 = vpop.f32.mrf.mxu0
    %v5366 = vadd.f32 0.0, %v5365
    %5367 = vdwg.mxu0
    %5368 = vmatpush.msra.mxu0 %v2977
    %5369 = vmatpush.msra.mxu0 %v2973
    %5370 = vmatpush.msra.mxu0 %v2969
    %5371 = vmatpush.msra.mxu0 %v2965
    %5372 = vmatpush.msra.mxu0 %v2961
    %5373 = vmatpush.msra.mxu0 %v2957
    %5374 = vmatpush.msra.mxu0 %v2953
    %5375 = vmatpush.msra.mxu0 %v2949
    %5376 = vmatpush.msra.mxu0 %v2945
    %5377 = vmatpush.msra.mxu0 %v2941
    %5378 = vmatpush.msra.mxu0 %v2937
    %5379 = vmatpush.msra.mxu0 %v2933
    %5380 = vmatpush.msra.mxu0 %v2929
    %5381 = vmatpush.msra.mxu0 %v2925
    %5382 = vmatpush.msra.mxu0 %v2921
    %5383 = vmatpush.msra.mxu0 %v2917
    %5384 = vmatmul.f32.gmra.mxu0 %v5307
    %v5385 = vpop.f32.mrf.mxu0
    %v5386 = vadd.f32 0.0, %v5385
    %5387 = vdwg.mxu0
    %v5388 = vadd.f32 %v3048, %v5326
    %v5389 = vadd.f32 %v3113, %v5346
    %v5390 = vadd.f32 %v3178, %v5366
    %v5391 = vadd.f32 %v3243, %v5386
    %v5392 = vxor.u32 %v5388, 2147483648
    %v5393 = vmul.f32 %v5392, 1.442695
    %v5394 = vpow.pop %v5393
    %v5395 = vadd.f32 %v5394, 1.0
    %v5396 = vrcp.pop %v5395
    %v5397 = vmul.f32 %v5395, %v5396
    %v5398 = vsub.f32 1.0, %v5397
    %v5399 = vmul.f32 %v5396, %v5398
    %v5400 = vadd.f32 %v5396, %v5399
    %vm5401 = vweird.f32 %v5395
    %vm5402 = vweird.f32 %v5396
    %vm5403 = vmor %vm5401, %vm5402
    %v5404 = vsel %vm5403, %v5396, %v5400
    %v5405 = vand.u32 2147483647, %v5395
    %vm5406 = vcmp.eq.f32.partialorder %v5405, 8.507059e+37
    %v5407 = vand.u32 %v5395, 2147483648
    %v5408 = vor.u32 1.1754944e-38, %v5407
    %v5409 = vsel %vm5406, %v5408, %v5404
    %v5410 = vmul.f32 1.0, %v5409
    %v5411 = vxor.u32 %v5389, 2147483648
    %v5412 = vmul.f32 %v5411, 1.442695
    %v5413 = vpow.pop %v5412
    %v5414 = vadd.f32 %v5413, 1.0
    %v5415 = vrcp.pop %v5414
    %v5416 = vmul.f32 %v5414, %v5415
    %v5417 = vsub.f32 1.0, %v5416
    %v5418 = vmul.f32 %v5415, %v5417
    %v5419 = vadd.f32 %v5415, %v5418
    %vm5420 = vweird.f32 %v5414
    %vm5421 = vweird.f32 %v5415
    %vm5422 = vmor %vm5420, %vm5421
    %v5423 = vsel %vm5422, %v5415, %v5419
    %v5424 = vand.u32 2147483647, %v5414
    %vm5425 = vcmp.eq.f32.partialorder %v5424, 8.507059e+37
    %v5426 = vand.u32 %v5414, 2147483648
    %v5427 = vor.u32 1.1754944e-38, %v5426
    %v5428 = vsel %vm5425, %v5427, %v5423
    %v5429 = vmul.f32 1.0, %v5428
    %v5430 = vtanh.pop %v5390
    %v5431 = vxor.u32 %v5391, 2147483648
    %v5432 = vmul.f32 %v5431, 1.442695
    %v5433 = vpow.pop %v5432
    %v5434 = vadd.f32 %v5433, 1.0
    %v5435 = vrcp.pop %v5434
    %v5436 = vmul.f32 %v5434, %v5435
    %v5437 = vsub.f32 1.0, %v5436
    %v5438 = vmul.f32 %v5435, %v5437
    %v5439 = vadd.f32 %v5435, %v5438
    %vm5440 = vweird.f32 %v5434
    %vm5441 = vweird.f32 %v5435
    %vm5442 = vmor %vm5440, %vm5441
    %v5443 = vsel %vm5442, %v5435, %v5439
    %v5444 = vand.u32 2147483647, %v5434
    %vm5445 = vcmp.eq.f32.partialorder %v5444, 8.507059e+37
    %v5446 = vand.u32 %v5434, 2147483648
    %v5447 = vor.u32 1.1754944e-38, %v5446
    %v5448 = vsel %vm5445, %v5447, %v5443
    %v5449 = vmul.f32 1.0, %v5448
    %v5450 = vmul.f32 %v5429, %v5305
    %v5451 = vmul.f32 %v5410, %v5430
    %v5452 = vadd.f32 %v5450, %v5451
    %v5453 = vtanh.pop %v5452
    %v5454 = vmul.f32 %v5449, %v5453
    %5455 = vmatpush.msra.mxu0 %v2974
    %5456 = vmatpush.msra.mxu0 %v2970
    %5457 = vmatpush.msra.mxu0 %v2966
    %5458 = vmatpush.msra.mxu0 %v2962
    %5459 = vmatpush.msra.mxu0 %v2958
    %5460 = vmatpush.msra.mxu0 %v2954
    %5461 = vmatpush.msra.mxu0 %v2950
    %5462 = vmatpush.msra.mxu0 %v2946
    %5463 = vmatpush.msra.mxu0 %v2942
    %5464 = vmatpush.msra.mxu0 %v2938
    %5465 = vmatpush.msra.mxu0 %v2934
    %5466 = vmatpush.msra.mxu0 %v2930
    %5467 = vmatpush.msra.mxu0 %v2926
    %5468 = vmatpush.msra.mxu0 %v2922
    %5469 = vmatpush.msra.mxu0 %v2918
    %5470 = vmatpush.msra.mxu0 %v2914
    %5471 = vmatmul.f32.gmra.mxu0 %v5454
    %v5472 = vpop.f32.mrf.mxu0
    %v5473 = vadd.f32 0.0, %v5472
    %5474 = vdwg.mxu0
    %5475 = vmatpush.msra.mxu0 %v2975
    %5476 = vmatpush.msra.mxu0 %v2971
    %5477 = vmatpush.msra.mxu0 %v2967
    %5478 = vmatpush.msra.mxu0 %v2963
    %5479 = vmatpush.msra.mxu0 %v2959
    %5480 = vmatpush.msra.mxu0 %v2955
    %5481 = vmatpush.msra.mxu0 %v2951
    %5482 = vmatpush.msra.mxu0 %v2947
    %5483 = vmatpush.msra.mxu0 %v2943
    %5484 = vmatpush.msra.mxu0 %v2939
    %5485 = vmatpush.msra.mxu0 %v2935
    %5486 = vmatpush.msra.mxu0 %v2931
    %5487 = vmatpush.msra.mxu0 %v2927
    %5488 = vmatpush.msra.mxu0 %v2923
    %5489 = vmatpush.msra.mxu0 %v2919
    %5490 = vmatpush.msra.mxu0 %v2915
    %5491 = vmatmul.f32.gmra.mxu0 %v5454
    %v5492 = vpop.f32.mrf.mxu0
    %v5493 = vadd.f32 0.0, %v5492
    %5494 = vdwg.mxu0
    %5495 = vmatpush.msra.mxu0 %v2976
    %5496 = vmatpush.msra.mxu0 %v2972
    %5497 = vmatpush.msra.mxu0 %v2968
    %5498 = vmatpush.msra.mxu0 %v2964
    %5499 = vmatpush.msra.mxu0 %v2960
    %5500 = vmatpush.msra.mxu0 %v2956
    %5501 = vmatpush.msra.mxu0 %v2952
    %5502 = vmatpush.msra.mxu0 %v2948
    %5503 = vmatpush.msra.mxu0 %v2944
    %5504 = vmatpush.msra.mxu0 %v2940
    %5505 = vmatpush.msra.mxu0 %v2936
    %5506 = vmatpush.msra.mxu0 %v2932
    %5507 = vmatpush.msra.mxu0 %v2928
    %5508 = vmatpush.msra.mxu0 %v2924
    %5509 = vmatpush.msra.mxu0 %v2920
    %5510 = vmatpush.msra.mxu0 %v2916
    %5511 = vmatmul.f32.gmra.mxu0 %v5454
    %v5512 = vpop.f32.mrf.mxu0
    %v5513 = vadd.f32 0.0, %v5512
    %5514 = vdwg.mxu0
    %5515 = vmatpush.msra.mxu0 %v2977
    %5516 = vmatpush.msra.mxu0 %v2973
    %5517 = vmatpush.msra.mxu0 %v2969
    %5518 = vmatpush.msra.mxu0 %v2965
    %5519 = vmatpush.msra.mxu0 %v2961
    %5520 = vmatpush.msra.mxu0 %v2957
    %5521 = vmatpush.msra.mxu0 %v2953
    %5522 = vmatpush.msra.mxu0 %v2949
    %5523 = vmatpush.msra.mxu0 %v2945
    %5524 = vmatpush.msra.mxu0 %v2941
    %5525 = vmatpush.msra.mxu0 %v2937
    %5526 = vmatpush.msra.mxu0 %v2933
    %5527 = vmatpush.msra.mxu0 %v2929
    %5528 = vmatpush.msra.mxu0 %v2925
    %5529 = vmatpush.msra.mxu0 %v2921
    %5530 = vmatpush.msra.mxu0 %v2917
    %5531 = vmatmul.f32.gmra.mxu0 %v5454
    %v5532 = vpop.f32.mrf.mxu0
    %v5533 = vadd.f32 0.0, %v5532
    %5534 = vdwg.mxu0
    %v5535 = vadd.f32 %v3051, %v5473
    %v5536 = vadd.f32 %v3116, %v5493
    %v5537 = vadd.f32 %v3181, %v5513
    %v5538 = vadd.f32 %v3246, %v5533
    %v5539 = vxor.u32 %v5535, 2147483648
    %v5540 = vmul.f32 %v5539, 1.442695
    %v5541 = vpow.pop %v5540
    %v5542 = vadd.f32 %v5541, 1.0
    %v5543 = vrcp.pop %v5542
    %v5544 = vmul.f32 %v5542, %v5543
    %v5545 = vsub.f32 1.0, %v5544
    %v5546 = vmul.f32 %v5543, %v5545
    %v5547 = vadd.f32 %v5543, %v5546
    %vm5548 = vweird.f32 %v5542
    %vm5549 = vweird.f32 %v5543
    %vm5550 = vmor %vm5548, %vm5549
    %v5551 = vsel %vm5550, %v5543, %v5547
    %v5552 = vand.u32 2147483647, %v5542
    %vm5553 = vcmp.eq.f32.partialorder %v5552, 8.507059e+37
    %v5554 = vand.u32 %v5542, 2147483648
    %v5555 = vor.u32 1.1754944e-38, %v5554
    %v5556 = vsel %vm5553, %v5555, %v5551
    %v5557 = vmul.f32 1.0, %v5556
    %v5558 = vxor.u32 %v5536, 2147483648
    %v5559 = vmul.f32 %v5558, 1.442695
    %v5560 = vpow.pop %v5559
    %v5561 = vadd.f32 %v5560, 1.0
    %v5562 = vrcp.pop %v5561
    %v5563 = vmul.f32 %v5561, %v5562
    %v5564 = vsub.f32 1.0, %v5563
    %v5565 = vmul.f32 %v5562, %v5564
    %v5566 = vadd.f32 %v5562, %v5565
    %vm5567 = vweird.f32 %v5561
    %vm5568 = vweird.f32 %v5562
    %vm5569 = vmor %vm5567, %vm5568
    %v5570 = vsel %vm5569, %v5562, %v5566
    %v5571 = vand.u32 2147483647, %v5561
    %vm5572 = vcmp.eq.f32.partialorder %v5571, 8.507059e+37
    %v5573 = vand.u32 %v5561, 2147483648
    %v5574 = vor.u32 1.1754944e-38, %v5573
    %v5575 = vsel %vm5572, %v5574, %v5570
    %v5576 = vmul.f32 1.0, %v5575
    %v5577 = vtanh.pop %v5537
    %v5578 = vxor.u32 %v5538, 2147483648
    %v5579 = vmul.f32 %v5578, 1.442695
    %v5580 = vpow.pop %v5579
    %v5581 = vadd.f32 %v5580, 1.0
    %v5582 = vrcp.pop %v5581
    %v5583 = vmul.f32 %v5581, %v5582
    %v5584 = vsub.f32 1.0, %v5583
    %v5585 = vmul.f32 %v5582, %v5584
    %v5586 = vadd.f32 %v5582, %v5585
    %vm5587 = vweird.f32 %v5581
    %vm5588 = vweird.f32 %v5582
    %vm5589 = vmor %vm5587, %vm5588
    %v5590 = vsel %vm5589, %v5582, %v5586
    %v5591 = vand.u32 2147483647, %v5581
    %vm5592 = vcmp.eq.f32.partialorder %v5591, 8.507059e+37
    %v5593 = vand.u32 %v5581, 2147483648
    %v5594 = vor.u32 1.1754944e-38, %v5593
    %v5595 = vsel %vm5592, %v5594, %v5590
    %v5596 = vmul.f32 1.0, %v5595
    %v5597 = vmul.f32 %v5576, %v5452
    %v5598 = vmul.f32 %v5557, %v5577
    %v5599 = vadd.f32 %v5597, %v5598
    %v5600 = vtanh.pop %v5599
    %v5601 = vmul.f32 %v5596, %v5600
    %5602 = vst [vmem:[#allocation4] sm:$0xff] %v5601
    %5603 = vst [vmem:[#allocation5] sm:$0xff] %v5599
    // Predicated region
    $region54: #{_forward_impl.1} parent=1 // pred_check
      %p5604 = pneg %p79
    $region55: #{_forward_impl.1} parent=1 // pred_check_branch
      %5606 = sbr.rel (%p5604) target = $region57
    $region56: #{_forward_impl.1} parent=1 // pred_region
      %v5607 = vld [vmem:[%s7] sm:$0xff]
      %v5608 = vld [vmem:[%s7 + $0x8] sm:$0xff]
      %v5609 = vld [vmem:[%s7 + $0x10] sm:$0xff]
      %v5610 = vld [vmem:[%s7 + $0x18] sm:$0xff]
      %v5611 = vld [vmem:[%s7 + $0x20] sm:$0xff]
      %v5612 = vld [vmem:[%s7 + $0x28] sm:$0xff]
      %v5613 = vld [vmem:[%s7 + $0x30] sm:$0xff]
      %v5614 = vld [vmem:[%s7 + $0x38] sm:$0xff]
      %v5615 = vld [vmem:[%s7 + $0x40] sm:$0xff]
      %v5616 = vld [vmem:[%s7 + $0x48] sm:$0xff]
      %v5617 = vld [vmem:[%s7 + $0x50] sm:$0xff]
      %v5618 = vld [vmem:[%s7 + $0x58] sm:$0xff]
      %v5619 = vld [vmem:[%s7 + $0x60] sm:$0xff]
      %v5620 = vld [vmem:[%s7 + $0x68] sm:$0xff]
      %v5621 = vld [vmem:[%s7 + $0x70] sm:$0xff]
      %v5622 = vld [vmem:[%s7 + $0x78] sm:$0xff]
      %v5623 = vld [vmem:[%s8] sm:$0x1]
      %v5625 = vperm.slane %v5623, 0
      %5627 = vmatpush.msra.mxu0 %v5622
      %5628 = vmatpush.msra.mxu0 %v5621
      %5629 = vmatpush.msra.mxu0 %v5620
      %5630 = vmatpush.msra.mxu0 %v5619
      %5631 = vmatpush.msra.mxu0 %v5618
      %5632 = vmatpush.msra.mxu0 %v5617
      %5633 = vmatpush.msra.mxu0 %v5616
      %5634 = vmatpush.msra.mxu0 %v5615
      %5635 = vmatpush.msra.mxu0 %v5614
      %5636 = vmatpush.msra.mxu0 %v5613
      %5637 = vmatpush.msra.mxu0 %v5612
      %5638 = vmatpush.msra.mxu0 %v5611
      %5639 = vmatpush.msra.mxu0 %v5610
      %5640 = vmatpush.msra.mxu0 %v5609
      %5641 = vmatpush.msra.mxu0 %v5608
      %5642 = vmatpush.msra.mxu0 %v5607
      %5643 = vmatmul.f32.gmra.mxu0 %v5601
      %v5644 = vpop.f32.mrf.mxu0
      %v5645 = vadd.f32 %v5625, %v5644
      %5646 = vdwg.mxu0
      %v5647 = vmul.f32 %v5645, 2.0
      %v5648 = vtanh.pop %v5647
      %v5649 = vadd.f32 %v5648, 1.0
      %v5650 = vmul.f32 %v5649, 0.5
      %vm5651 = vcmask 64512
      %5652 = vst.msk [vmem:[%s9] sm:$0xff] %vm5651, %v5650
    $region57: #{_forward_impl.1} parent=1 // pred_fallthru
      _
    // Predicated region
    $region58: #{_forward_impl.1} parent=1 // pred_check
      _
    $region59: #{_forward_impl.1} parent=1 // pred_check_branch
      %5654 = sbr.rel (0) target = $region61
    $region60: #{_forward_impl.1} parent=1 // pred_region
      _
    $region61: #{_forward_impl.1} parent=1 // pred_fallthru
      _
    // Predicated region
    $region62: #{_forward_impl.1} parent=1 // pred_check
      _
    $region63: #{_forward_impl.1} parent=1 // pred_check_branch
      %5656 = sbr.rel (0) target = $region65
    $region64: #{_forward_impl.1} parent=1 // pred_region
      _
    $region65: #{_forward_impl.1} parent=1 // pred_fallthru
      _
    %5657 = vsyncpa [#allocation7], 1
    %5658 = vsyncpa [#allocation9], 1

</llo_original>
